<compile_context>
chip_gen: v6e
topology: v6e:2x2x1
jax: 0.10.0
libtpu: 0.0.40
codegen_flags: <defaults>
</compile_context>

<pallas_src>
import jax
import jax.numpy as jnp
from jax.experimental import pallas as pl
from jax.experimental.pallas import tpu as pltpu

# ----------------------------- configuration --------------------------------
BATCH = 2
C_IN = 64             # in_channels  (multiple of 32 for GroupNorm(32, .))
C_OUT = 128           # out_channels (!= C_IN -> residual_layer is a 1x1 conv)
H = W = 8
HW = H * W
L = BATCH * HW        # lane axis: both samples stacked -> 128 lanes (lane-dense)
GROUPS = 32
N_TIME = 128          # n_time (PyTorch default is 1280; kept small for the harness)
GN_EPS = 1e-5         # nn.GroupNorm default eps


# --------------------------- in-kernel helpers -------------------------------
def _mm(a, b):
    return jnp.dot(a, b, preferred_element_type=jnp.float32)


def _silu(x):
    return x * (1.0 / (1.0 + jnp.exp(-x)))


def _onehot_rows(num_blocks, size, block):
    """(num_blocks, size) with M[b, i] = 1 iff i // block == b (no int division)."""
    b = jax.lax.broadcasted_iota(jnp.int32, (num_blocks, size), 0)
    i = jax.lax.broadcasted_iota(jnp.int32, (num_blocks, size), 1)
    hit = (i >= b * block) & (i < (b + 1) * block)
    return jnp.where(hit, 1.0, 0.0).astype(jnp.float32)


def _onehot_cols(size, num_blocks, block):
    """(size, num_blocks) with M[i, b] = 1 iff i // block == b."""
    i = jax.lax.broadcasted_iota(jnp.int32, (size, num_blocks), 0)
    b = jax.lax.broadcasted_iota(jnp.int32, (size, num_blocks), 1)
    hit = (i >= b * block) & (i < (b + 1) * block)
    return jnp.where(hit, 1.0, 0.0).astype(jnp.float32)


def _placement(rows, cols, col_offset):
    """(rows, cols) with M[p, q] = 1 iff q == p + col_offset."""
    r = jax.lax.broadcasted_iota(jnp.int32, (rows, cols), 0)
    c = jax.lax.broadcasted_iota(jnp.int32, (rows, cols), 1)
    return jnp.where(c == r + col_offset, 1.0, 0.0).astype(jnp.float32)


def _groupnorm(x, gamma_col, beta_col, avg_ch, avg_lane):
    """GroupNorm on (C, L) with per-(group, sample) statistics.

    avg_ch  : (C, C) block matrix averaging channels within a group.
    avg_lane: (L, L) block matrix averaging lanes within one sample.
    """
    mean = _mm(avg_ch, _mm(x, avg_lane))
    d = x - mean
    var = _mm(avg_ch, _mm(d * d, avg_lane))          # two-pass, var >= 0
    return d * jax.lax.rsqrt(var + GN_EPS) * gamma_col + beta_col


def _conv3x3(x, w_ref, shift_ref, bias_col):
    """'same' 3x3 conv as 9 shifted matmuls.

    x        : (C_in, L)        activations, samples stacked along lanes
    w_ref    : (9, C_out, C_in) tap weights, tap t = (dy+1)*3 + (dx+1)
    shift_ref: (9, L, L)        0/1 shift matrices (zero padding + sample
                                boundaries folded in); tap 4 is the identity.
    """
    acc = None
    for t in range(9):
        shifted = x if t == 4 else _mm(x, shift_ref[t])
        y = _mm(w_ref[t], shifted)
        acc = y if acc is None else acc + y
    return acc + bias_col


# ------------------------------ Pallas kernel --------------------------------
def _kernel(x_ref, t_ref, wcf_ref, wcm_ref, wtm_ref, wrs_ref,
            vin_ref, vout_ref, shift_ref, o_ref):
    # --- unpack the packed per-channel parameter columns ---------------------
    vin = vin_ref[...]                                  # (C_IN, 2)
    vout = vout_ref[...]                                # (C_OUT, 6)
    gnf_g, gnf_b = vin[:, 0:1], vin[:, 1:2]
    cf_b = vout[:, 0:1]
    tm_b = vout[:, 1:2]
    gnm_g, gnm_b = vout[:, 2:3], vout[:, 3:4]
    cm_b = vout[:, 4:5]
    rs_b = vout[:, 5:6]

    # --- constant selector / averaging matrices (built once per call) --------
    samp_rows = _onehot_rows(BATCH, L, HW)                              # (B, L)
    samp_cols = _onehot_cols(L, BATCH, HW)                              # (L, B)
    avg_lane = _mm(samp_cols, samp_rows) * (1.0 / HW)                   # (L, L)
    cg_in, cg_out = C_IN // GROUPS, C_OUT // GROUPS
    avg_ch_in = _mm(_onehot_cols(C_IN, GROUPS, cg_in),
                    _onehot_rows(GROUPS, C_IN, cg_in)) * (1.0 / cg_in)
    avg_ch_out = _mm(_onehot_cols(C_OUT, GROUPS, cg_out),
                     _onehot_rows(GROUPS, C_OUT, cg_out)) * (1.0 / cg_out)

    # --- stack the batch along the lane axis: (C_IN, L) ----------------------
    x0 = None
    for b in range(BATCH):
        part = _mm(x_ref[b], _placement(HW, L, b * HW))
        x0 = part if x0 is None else x0 + part

    # --- feature branch: GroupNorm -> SiLU -> 3x3 conv ------------------------
    h = _groupnorm(x0, gnf_g, gnf_b, avg_ch_in, avg_lane)
    h = _silu(h)
    feat = _conv3x3(h, wcf_ref, shift_ref, cf_b)                        # (C_OUT, L)

    # --- time branch: SiLU -> Linear -> broadcast over spatial lanes ---------
    t_exp = jax.lax.dot_general(_silu(t_ref[...]), samp_rows,
                                (((0,), (0,)), ((), ())),
                                preferred_element_type=jnp.float32)     # (N_TIME, L)
    merged = feat + _mm(wtm_ref[...], t_exp) + tm_b                     # (C_OUT, L)

    # --- merged branch: GroupNorm -> SiLU -> 3x3 conv -------------------------
    merged = _groupnorm(merged, gnm_g, gnm_b, avg_ch_out, avg_lane)
    merged = _silu(merged)
    merged = _conv3x3(merged, wcm_ref, shift_ref, cm_b)

    # --- residual path (1x1 conv; identity case is wrs=I, rs_b=0) ------------
    out = merged + _mm(wrs_ref[...], x0) + rs_b                         # (C_OUT, L)

    # --- unstack back to (BATCH, C_OUT, HW) -----------------------------------
    for b in range(BATCH):
        o_ref[b] = out[:, b * HW:(b + 1) * HW]


# ------------------------------ host wrapper ----------------------------------
def unet_residual_block(feature, time_emb, kp):
    """feature: (N, C_IN, H, W) NCHW; time_emb: (N, N_TIME). Returns NCHW."""
    n, c_in, h, w = feature.shape
    hw = h * w
    x = feature.reshape(n, c_in, hw)          # contiguous reshape only, no transpose

    args = (x, time_emb, kp["w_cf"], kp["w_cm"], kp["w_tm"], kp["w_rs"],
            kp["vec_in"], kp["vec_out"], kp["shifts"])

    def full_block(a):
        nd = a.ndim
        return pl.BlockSpec(a.shape, lambda i, _nd=nd: (0,) * _nd)

    out = pl.pallas_call(
        _kernel,
        out_shape=jax.ShapeDtypeStruct((n, C_OUT, hw), jnp.float32),
        grid=(1,),                            # whole batch fused in one grid step
        in_specs=[full_block(a) for a in args],
        out_specs=pl.BlockSpec((n, C_OUT, hw), lambda i: (0, 0, 0)),
        compiler_params=pltpu.CompilerParams(
            dimension_semantics=("arbitrary",)),
    )(*args)

    return out.reshape(n, C_OUT, h, w)


# --------------------------- parameter construction ---------------------------
def init_params(key):
    """Parameters in the PyTorch layouts of the reference module."""
    ks = iter(jax.random.split(key, 16))

    def rnd(shape, scale=0.05):
        return (scale * jax.random.normal(next(ks), shape)).astype(jnp.float32)

    return dict(
        gnf_g=(1.0 + rnd((C_IN,))),
        gnf_b=rnd((C_IN,)),
        convf_w=rnd((C_OUT, C_IN, 3, 3)),
        convf_b=rnd((C_OUT,)),
        time_w=rnd((C_OUT, N_TIME)),
        time_b=rnd((C_OUT,)),
        gnm_g=(1.0 + rnd((C_OUT,))),
        gnm_b=rnd((C_OUT,)),
        convm_w=rnd((C_OUT, C_OUT, 3, 3)),
        convm_b=rnd((C_OUT,)),
        res_w=rnd((C_OUT, C_IN)),             # 1x1 conv (C_IN != C_OUT here)
        res_b=rnd((C_OUT,)),
    )


def _shift_matrices(batch, h, w):
    """(9, L, L) 0/1 matrices: (x @ S_t)[:, q] = x[:, q + dy*w + dx] when the tap
    source lies inside the same image, else 0 (zero padding / sample boundary)."""
    hw = h * w
    l = batch * hw
    q = jnp.arange(l)
    p = q % hw
    hh, ww = p // w, p % w
    s = jnp.arange(l)
    mats = []
    for dy in (-1, 0, 1):
        for dx in (-1, 0, 1):
            valid = ((hh + dy >= 0) & (hh + dy < h) &
                     (ww + dx >= 0) & (ww + dx < w))
            src = q + dy * w + dx
            mats.append(((s[:, None] == src[None, :]) &
                         valid[None, :]).astype(jnp.float32))
    return jnp.stack(mats)


def pack_params(p):
    """Repack PyTorch-layout parameters into the few fused kernel operands."""
    def taps(wc):  # (O, I, 3, 3) -> (9, O, I); tap t = (dy+1)*3 + (dx+1)
        o, i = wc.shape[0], wc.shape[1]
        return jnp.transpose(wc, (2, 3, 0, 1)).reshape(9, o, i)

    if p.get("res_w") is None:                # in_channels == out_channels
        w_rs = jnp.eye(C_OUT, dtype=jnp.float32)
        rs_b = jnp.zeros((C_OUT,), jnp.float32)
    else:
        w_rs, rs_b = p["res_w"], p["res_b"]

    return dict(
        w_cf=taps(p["convf_w"]),
        w_cm=taps(p["convm_w"]),
        w_tm=p["time_w"],
        w_rs=w_rs,
        vec_in=jnp.stack([p["gnf_g"], p["gnf_b"]], axis=1),                  # (C_IN, 2)
        vec_out=jnp.stack([p["convf_b"], p["time_b"], p["gnm_g"],
                           p["gnm_b"], p["convm_b"], rs_b], axis=1),         # (C_OUT, 6)
        shifts=_shift_matrices(BATCH, H, W),
    )


# ------------------------------- pure-JAX reference ---------------------------
def reference(feature, time_emb, p):
    hi = jax.lax.Precision.HIGHEST

    def silu(x):
        return x * jax.nn.sigmoid(x)

    def gn(x, g, b, groups):
        n, c, h, w = x.shape
        xg = x.reshape(n, groups, -1)
        mu = xg.mean(-1, keepdims=True)
        var = ((xg - mu) ** 2).mean(-1, keepdims=True)
        xn = ((xg - mu) / jnp.sqrt(var + GN_EPS)).reshape(n, c, h, w)
        return xn * g[None, :, None, None] + b[None, :, None, None]

    def conv(x, wgt, b, pad):
        y = jax.lax.conv_general_dilated(
            x, wgt, (1, 1), ((pad, pad), (pad, pad)),
            dimension_numbers=("NCHW", "OIHW", "NCHW"), precision=hi)
        return y + b[None, :, None, None]

    residue = feature
    f = silu(gn(feature, p["gnf_g"], p["gnf_b"], GROUPS))
    f = conv(f, p["convf_w"], p["convf_b"], 1)
    t = jnp.dot(silu(time_emb), p["time_w"].T, precision=hi) + p["time_b"]
    m = f + t[:, :, None, None]
    m = silu(gn(m, p["gnm_g"], p["gnm_b"], GROUPS))
    m = conv(m, p["convm_w"], p["convm_b"], 1)
    if p.get("res_w") is None:
        res = residue
    else:
        res = conv(residue, p["res_w"][:, :, None, None], p["res_b"], 0)
    return m + res


# ----------------------------------- main --------------------------------------
if __name__ == "__main__":
    key = jax.random.PRNGKey(0)
    kx, kt, kp = jax.random.split(key, 3)

    feature = jax.random.normal(kx, (BATCH, C_IN, H, W), jnp.float32)
    time_in = jax.random.normal(kt, (BATCH, N_TIME), jnp.float32)
    params = init_params(kp)
    kparams = pack_params(params)

    fwd = jax.jit(unet_residual_block)
    out = jax.block_until_ready(fwd(feature, time_in, kparams))

    ref = reference(feature, time_in, params)
    assert out.shape == (BATCH, C_OUT, H, W), out.shape
    err = float(jnp.max(jnp.abs(out - ref)))
    assert err < 2e-3, err
    print("KERNEL_OK")
</pallas_src>

<mosaic_0001>
module attributes {stable_mosaic.version = 11 : i64} {
  func.func @_kernel(%arg0: i32, %arg1: memref<2x64x64xf32, #tpu.memory_space<vmem>>, %arg2: memref<2x128xf32, #tpu.memory_space<vmem>>, %arg3: memref<9x128x64xf32, #tpu.memory_space<vmem>>, %arg4: memref<9x128x128xf32, #tpu.memory_space<vmem>>, %arg5: memref<128x128xf32, #tpu.memory_space<vmem>>, %arg6: memref<128x64xf32, #tpu.memory_space<vmem>>, %arg7: memref<64x2xf32, #tpu.memory_space<vmem>>, %arg8: memref<128x6xf32, #tpu.memory_space<vmem>>, %arg9: memref<9x128x128xf32, #tpu.memory_space<vmem>>, %arg10: memref<2x128x64xf32, #tpu.memory_space<vmem>>) attributes {dimension_semantics = [#tpu.dimension_semantics<arbitrary>], iteration_bounds = array<i64: 1>, scalar_prefetch = 0 : i64, scratch_operands = 0 : i64, tpu.core_type = #tpu.core_type<tc>, window_params = [{pipeline_mode = #tpu.pipeline_mode<synchronous>, transform_indices = @transform_0, window_bounds = array<i64: 2, 64, 64>}, {pipeline_mode = #tpu.pipeline_mode<synchronous>, transform_indices = @transform_1, window_bounds = array<i64: 2, 128>}, {pipeline_mode = #tpu.pipeline_mode<synchronous>, transform_indices = @transform_2, window_bounds = array<i64: 9, 128, 64>}, {pipeline_mode = #tpu.pipeline_mode<synchronous>, transform_indices = @transform_3, window_bounds = array<i64: 9, 128, 128>}, {pipeline_mode = #tpu.pipeline_mode<synchronous>, transform_indices = @transform_4, window_bounds = array<i64: 128, 128>}, {pipeline_mode = #tpu.pipeline_mode<synchronous>, transform_indices = @transform_5, window_bounds = array<i64: 128, 64>}, {pipeline_mode = #tpu.pipeline_mode<synchronous>, transform_indices = @transform_6, window_bounds = array<i64: 64, 2>}, {pipeline_mode = #tpu.pipeline_mode<synchronous>, transform_indices = @transform_7, window_bounds = array<i64: 128, 6>}, {pipeline_mode = #tpu.pipeline_mode<synchronous>, transform_indices = @transform_8, window_bounds = array<i64: 9, 128, 128>}, {pipeline_mode = #tpu.pipeline_mode<synchronous>, transform_indices = @transform_9, window_bounds = array<i64: 2, 128, 64>}]} {
    %c0 = arith.constant 0 : index
    %c0_0 = arith.constant 0 : index
    %0 = vector.load %arg7[%c0, %c0_0] : memref<64x2xf32, #tpu.memory_space<vmem>>, vector<64x2xf32>
    %c0_1 = arith.constant 0 : index
    %c0_2 = arith.constant 0 : index
    %1 = vector.load %arg8[%c0_1, %c0_2] : memref<128x6xf32, #tpu.memory_space<vmem>>, vector<128x6xf32>
    %2 = vector.extract_strided_slice %0 {offsets = [0, 0], sizes = [64, 1], strides = [1, 1]} : vector<64x2xf32> to vector<64x1xf32>
    %3 = vector.extract_strided_slice %0 {offsets = [0, 1], sizes = [64, 1], strides = [1, 1]} : vector<64x2xf32> to vector<64x1xf32>
    %4 = vector.extract_strided_slice %1 {offsets = [0, 0], sizes = [128, 1], strides = [1, 1]} : vector<128x6xf32> to vector<128x1xf32>
    %5 = vector.extract_strided_slice %1 {offsets = [0, 1], sizes = [128, 1], strides = [1, 1]} : vector<128x6xf32> to vector<128x1xf32>
    %6 = vector.extract_strided_slice %1 {offsets = [0, 2], sizes = [128, 1], strides = [1, 1]} : vector<128x6xf32> to vector<128x1xf32>
    %7 = vector.extract_strided_slice %1 {offsets = [0, 3], sizes = [128, 1], strides = [1, 1]} : vector<128x6xf32> to vector<128x1xf32>
    %8 = vector.extract_strided_slice %1 {offsets = [0, 4], sizes = [128, 1], strides = [1, 1]} : vector<128x6xf32> to vector<128x1xf32>
    %9 = vector.extract_strided_slice %1 {offsets = [0, 5], sizes = [128, 1], strides = [1, 1]} : vector<128x6xf32> to vector<128x1xf32>
    %10 = tpu.iota {dimensions = array<i32: 0>} : vector<2x128xi32>
    %11 = tpu.iota {dimensions = array<i32: 1>} : vector<2x128xi32>
    %c64_i32 = arith.constant 64 : i32
    %12 = vector.broadcast %c64_i32 : i32 to vector<2x128xi32>
    %13 = arith.muli %10, %12 : vector<2x128xi32>
    %14 = arith.cmpi sge, %11, %13 : vector<2x128xi32>
    %c1_i32 = arith.constant 1 : i32
    %15 = vector.broadcast %c1_i32 : i32 to vector<2x128xi32>
    %16 = arith.addi %10, %15 : vector<2x128xi32>
    %c64_i32_3 = arith.constant 64 : i32
    %17 = vector.broadcast %c64_i32_3 : i32 to vector<2x128xi32>
    %18 = arith.muli %16, %17 : vector<2x128xi32>
    %19 = arith.cmpi slt, %11, %18 : vector<2x128xi32>
    %20 = arith.andi %14, %19 : vector<2x128xi1>
    %cst = arith.constant 1.000000e+00 : f32
    %cst_4 = arith.constant 0.000000e+00 : f32
    %21 = vector.broadcast %cst : f32 to vector<2x128xf32>
    %22 = vector.broadcast %cst_4 : f32 to vector<2x128xf32>
    %23 = arith.select %20, %21, %22 : vector<2x128xi1>, vector<2x128xf32>
    %24 = tpu.iota {dimensions = array<i32: 0>} : vector<128x2xi32>
    %25 = tpu.iota {dimensions = array<i32: 1>} : vector<128x2xi32>
    %c64_i32_5 = arith.constant 64 : i32
    %26 = vector.broadcast %c64_i32_5 : i32 to vector<128x2xi32>
    %27 = arith.muli %25, %26 : vector<128x2xi32>
    %28 = arith.cmpi sge, %24, %27 : vector<128x2xi32>
    %c1_i32_6 = arith.constant 1 : i32
    %29 = vector.broadcast %c1_i32_6 : i32 to vector<128x2xi32>
    %30 = arith.addi %25, %29 : vector<128x2xi32>
    %c64_i32_7 = arith.constant 64 : i32
    %31 = vector.broadcast %c64_i32_7 : i32 to vector<128x2xi32>
    %32 = arith.muli %30, %31 : vector<128x2xi32>
    %33 = arith.cmpi slt, %24, %32 : vector<128x2xi32>
    %34 = arith.andi %28, %33 : vector<128x2xi1>
    %cst_8 = arith.constant 1.000000e+00 : f32
    %cst_9 = arith.constant 0.000000e+00 : f32
    %35 = vector.broadcast %cst_8 : f32 to vector<128x2xf32>
    %36 = vector.broadcast %cst_9 : f32 to vector<128x2xf32>
    %37 = arith.select %34, %35, %36 : vector<128x2xi1>, vector<128x2xf32>
    %cst_10 = arith.constant dense<0.000000e+00> : vector<128x128xf32>
    %38 = tpu.matmul %37, %23, %cst_10 {dimension_numbers = #tpu.dot_dimension_numbers<[1], [0], [0], [1], [0, 0, 1, 1], [], []>} : vector<128x2xf32>, vector<2x128xf32>, vector<128x128xf32> -> vector<128x128xf32>
    %cst_11 = arith.constant 1.562500e-02 : f32
    %39 = vector.broadcast %cst_11 : f32 to vector<128x128xf32>
    %40 = arith.mulf %38, %39 : vector<128x128xf32>
    %41 = tpu.iota {dimensions = array<i32: 0>} : vector<64x32xi32>
    %42 = tpu.iota {dimensions = array<i32: 1>} : vector<64x32xi32>
    %c2_i32 = arith.constant 2 : i32
    %43 = vector.broadcast %c2_i32 : i32 to vector<64x32xi32>
    %44 = arith.muli %42, %43 : vector<64x32xi32>
    %45 = arith.cmpi sge, %41, %44 : vector<64x32xi32>
    %c1_i32_12 = arith.constant 1 : i32
    %46 = vector.broadcast %c1_i32_12 : i32 to vector<64x32xi32>
    %47 = arith.addi %42, %46 : vector<64x32xi32>
    %c2_i32_13 = arith.constant 2 : i32
    %48 = vector.broadcast %c2_i32_13 : i32 to vector<64x32xi32>
    %49 = arith.muli %47, %48 : vector<64x32xi32>
    %50 = arith.cmpi slt, %41, %49 : vector<64x32xi32>
    %51 = arith.andi %45, %50 : vector<64x32xi1>
    %cst_14 = arith.constant 1.000000e+00 : f32
    %cst_15 = arith.constant 0.000000e+00 : f32
    %52 = vector.broadcast %cst_14 : f32 to vector<64x32xf32>
    %53 = vector.broadcast %cst_15 : f32 to vector<64x32xf32>
    %54 = arith.select %51, %52, %53 : vector<64x32xi1>, vector<64x32xf32>
    %55 = tpu.iota {dimensions = array<i32: 0>} : vector<32x64xi32>
    %56 = tpu.iota {dimensions = array<i32: 1>} : vector<32x64xi32>
    %c2_i32_16 = arith.constant 2 : i32
    %57 = vector.broadcast %c2_i32_16 : i32 to vector<32x64xi32>
    %58 = arith.muli %55, %57 : vector<32x64xi32>
    %59 = arith.cmpi sge, %56, %58 : vector<32x64xi32>
    %c1_i32_17 = arith.constant 1 : i32
    %60 = vector.broadcast %c1_i32_17 : i32 to vector<32x64xi32>
    %61 = arith.addi %55, %60 : vector<32x64xi32>
    %c2_i32_18 = arith.constant 2 : i32
    %62 = vector.broadcast %c2_i32_18 : i32 to vector<32x64xi32>
    %63 = arith.muli %61, %62 : vector<32x64xi32>
    %64 = arith.cmpi slt, %56, %63 : vector<32x64xi32>
    %65 = arith.andi %59, %64 : vector<32x64xi1>
    %cst_19 = arith.constant 1.000000e+00 : f32
    %cst_20 = arith.constant 0.000000e+00 : f32
    %66 = vector.broadcast %cst_19 : f32 to vector<32x64xf32>
    %67 = vector.broadcast %cst_20 : f32 to vector<32x64xf32>
    %68 = arith.select %65, %66, %67 : vector<32x64xi1>, vector<32x64xf32>
    %cst_21 = arith.constant dense<0.000000e+00> : vector<64x64xf32>
    %69 = tpu.matmul %54, %68, %cst_21 {dimension_numbers = #tpu.dot_dimension_numbers<[1], [0], [0], [1], [0, 0, 1, 1], [], []>} : vector<64x32xf32>, vector<32x64xf32>, vector<64x64xf32> -> vector<64x64xf32>
    %cst_22 = arith.constant 5.000000e-01 : f32
    %70 = vector.broadcast %cst_22 : f32 to vector<64x64xf32>
    %71 = arith.mulf %69, %70 : vector<64x64xf32>
    %72 = tpu.iota {dimensions = array<i32: 0>} : vector<128x32xi32>
    %73 = tpu.iota {dimensions = array<i32: 1>} : vector<128x32xi32>
    %c4_i32 = arith.constant 4 : i32
    %74 = vector.broadcast %c4_i32 : i32 to vector<128x32xi32>
    %75 = arith.muli %73, %74 : vector<128x32xi32>
    %76 = arith.cmpi sge, %72, %75 : vector<128x32xi32>
    %c1_i32_23 = arith.constant 1 : i32
    %77 = vector.broadcast %c1_i32_23 : i32 to vector<128x32xi32>
    %78 = arith.addi %73, %77 : vector<128x32xi32>
    %c4_i32_24 = arith.constant 4 : i32
    %79 = vector.broadcast %c4_i32_24 : i32 to vector<128x32xi32>
    %80 = arith.muli %78, %79 : vector<128x32xi32>
    %81 = arith.cmpi slt, %72, %80 : vector<128x32xi32>
    %82 = arith.andi %76, %81 : vector<128x32xi1>
    %cst_25 = arith.constant 1.000000e+00 : f32
    %cst_26 = arith.constant 0.000000e+00 : f32
    %83 = vector.broadcast %cst_25 : f32 to vector<128x32xf32>
    %84 = vector.broadcast %cst_26 : f32 to vector<128x32xf32>
    %85 = arith.select %82, %83, %84 : vector<128x32xi1>, vector<128x32xf32>
    %86 = tpu.iota {dimensions = array<i32: 0>} : vector<32x128xi32>
    %87 = tpu.iota {dimensions = array<i32: 1>} : vector<32x128xi32>
    %c4_i32_27 = arith.constant 4 : i32
    %88 = vector.broadcast %c4_i32_27 : i32 to vector<32x128xi32>
    %89 = arith.muli %86, %88 : vector<32x128xi32>
    %90 = arith.cmpi sge, %87, %89 : vector<32x128xi32>
    %c1_i32_28 = arith.constant 1 : i32
    %91 = vector.broadcast %c1_i32_28 : i32 to vector<32x128xi32>
    %92 = arith.addi %86, %91 : vector<32x128xi32>
    %c4_i32_29 = arith.constant 4 : i32
    %93 = vector.broadcast %c4_i32_29 : i32 to vector<32x128xi32>
    %94 = arith.muli %92, %93 : vector<32x128xi32>
    %95 = arith.cmpi slt, %87, %94 : vector<32x128xi32>
    %96 = arith.andi %90, %95 : vector<32x128xi1>
    %cst_30 = arith.constant 1.000000e+00 : f32
    %cst_31 = arith.constant 0.000000e+00 : f32
    %97 = vector.broadcast %cst_30 : f32 to vector<32x128xf32>
    %98 = vector.broadcast %cst_31 : f32 to vector<32x128xf32>
    %99 = arith.select %96, %97, %98 : vector<32x128xi1>, vector<32x128xf32>
    %cst_32 = arith.constant dense<0.000000e+00> : vector<128x128xf32>
    %100 = tpu.matmul %85, %99, %cst_32 {dimension_numbers = #tpu.dot_dimension_numbers<[1], [0], [0], [1], [0, 0, 1, 1], [], []>} : vector<128x32xf32>, vector<32x128xf32>, vector<128x128xf32> -> vector<128x128xf32>
    %cst_33 = arith.constant 2.500000e-01 : f32
    %101 = vector.broadcast %cst_33 : f32 to vector<128x128xf32>
    %102 = arith.mulf %100, %101 : vector<128x128xf32>
    %c0_34 = arith.constant 0 : index
    %c0_35 = arith.constant 0 : index
    %c0_36 = arith.constant 0 : index
    %103 = vector.load %arg1[%c0_34, %c0_35, %c0_36] : memref<2x64x64xf32, #tpu.memory_space<vmem>>, vector<1x64x64xf32>
    %104 = vector.shape_cast %103 : vector<1x64x64xf32> to vector<64x64xf32>
    %105 = tpu.iota {dimensions = array<i32: 0>} : vector<64x128xi32>
    %106 = tpu.iota {dimensions = array<i32: 1>} : vector<64x128xi32>
    %c0_i32 = arith.constant 0 : i32
    %107 = vector.broadcast %c0_i32 : i32 to vector<64x128xi32>
    %108 = arith.addi %105, %107 : vector<64x128xi32>
    %109 = arith.cmpi eq, %106, %108 : vector<64x128xi32>
    %cst_37 = arith.constant 1.000000e+00 : f32
    %cst_38 = arith.constant 0.000000e+00 : f32
    %110 = vector.broadcast %cst_37 : f32 to vector<64x128xf32>
    %111 = vector.broadcast %cst_38 : f32 to vector<64x128xf32>
    %112 = arith.select %109, %110, %111 : vector<64x128xi1>, vector<64x128xf32>
    %cst_39 = arith.constant dense<0.000000e+00> : vector<64x128xf32>
    %113 = tpu.matmul %104, %112, %cst_39 {dimension_numbers = #tpu.dot_dimension_numbers<[1], [0], [0], [1], [0, 0, 1, 1], [], []>} : vector<64x64xf32>, vector<64x128xf32>, vector<64x128xf32> -> vector<64x128xf32>
    %c1 = arith.constant 1 : index
    %c0_40 = arith.constant 0 : index
    %c0_41 = arith.constant 0 : index
    %114 = vector.load %arg1[%c1, %c0_40, %c0_41] : memref<2x64x64xf32, #tpu.memory_space<vmem>>, vector<1x64x64xf32>
    %115 = vector.shape_cast %114 : vector<1x64x64xf32> to vector<64x64xf32>
    %116 = tpu.iota {dimensions = array<i32: 0>} : vector<64x128xi32>
    %117 = tpu.iota {dimensions = array<i32: 1>} : vector<64x128xi32>
    %c64_i32_42 = arith.constant 64 : i32
    %118 = vector.broadcast %c64_i32_42 : i32 to vector<64x128xi32>
    %119 = arith.addi %116, %118 : vector<64x128xi32>
    %120 = arith.cmpi eq, %117, %119 : vector<64x128xi32>
    %cst_43 = arith.constant 1.000000e+00 : f32
    %cst_44 = arith.constant 0.000000e+00 : f32
    %121 = vector.broadcast %cst_43 : f32 to vector<64x128xf32>
    %122 = vector.broadcast %cst_44 : f32 to vector<64x128xf32>
    %123 = arith.select %120, %121, %122 : vector<64x128xi1>, vector<64x128xf32>
    %cst_45 = arith.constant dense<0.000000e+00> : vector<64x128xf32>
    %124 = tpu.matmul %115, %123, %cst_45 {dimension_numbers = #tpu.dot_dimension_numbers<[1], [0], [0], [1], [0, 0, 1, 1], [], []>} : vector<64x64xf32>, vector<64x128xf32>, vector<64x128xf32> -> vector<64x128xf32>
    %125 = arith.addf %113, %124 : vector<64x128xf32>
    %cst_46 = arith.constant dense<0.000000e+00> : vector<64x128xf32>
    %126 = tpu.matmul %125, %40, %cst_46 {dimension_numbers = #tpu.dot_dimension_numbers<[1], [0], [0], [1], [0, 0, 1, 1], [], []>} : vector<64x128xf32>, vector<128x128xf32>, vector<64x128xf32> -> vector<64x128xf32>
    %cst_47 = arith.constant dense<0.000000e+00> : vector<64x128xf32>
    %127 = tpu.matmul %71, %126, %cst_47 {dimension_numbers = #tpu.dot_dimension_numbers<[1], [0], [0], [1], [0, 0, 1, 1], [], []>} : vector<64x64xf32>, vector<64x128xf32>, vector<64x128xf32> -> vector<64x128xf32>
    %128 = arith.subf %125, %127 : vector<64x128xf32>
    %129 = arith.mulf %128, %128 : vector<64x128xf32>
    %cst_48 = arith.constant dense<0.000000e+00> : vector<64x128xf32>
    %130 = tpu.matmul %129, %40, %cst_48 {dimension_numbers = #tpu.dot_dimension_numbers<[1], [0], [0], [1], [0, 0, 1, 1], [], []>} : vector<64x128xf32>, vector<128x128xf32>, vector<64x128xf32> -> vector<64x128xf32>
    %cst_49 = arith.constant dense<0.000000e+00> : vector<64x128xf32>
    %131 = tpu.matmul %71, %130, %cst_49 {dimension_numbers = #tpu.dot_dimension_numbers<[1], [0], [0], [1], [0, 0, 1, 1], [], []>} : vector<64x64xf32>, vector<64x128xf32>, vector<64x128xf32> -> vector<64x128xf32>
    %cst_50 = arith.constant 9.99999974E-6 : f32
    %132 = vector.broadcast %cst_50 : f32 to vector<64x128xf32>
    %133 = arith.addf %131, %132 : vector<64x128xf32>
    %134 = math.rsqrt %133 : vector<64x128xf32>
    %135 = arith.mulf %128, %134 : vector<64x128xf32>
    %136 = vector.broadcast %2 : vector<64x1xf32> to vector<64x128xf32>
    %137 = arith.mulf %135, %136 : vector<64x128xf32>
    %138 = vector.broadcast %3 : vector<64x1xf32> to vector<64x128xf32>
    %139 = arith.addf %137, %138 : vector<64x128xf32>
    %cst_51 = arith.constant 0.000000e+00 : f32
    %140 = vector.broadcast %cst_51 : f32 to vector<64x128xf32>
    %141 = arith.subf %140, %139 : vector<64x128xf32>
    %142 = math.exp %141 : vector<64x128xf32>
    %cst_52 = arith.constant 1.000000e+00 : f32
    %143 = vector.broadcast %cst_52 : f32 to vector<64x128xf32>
    %144 = arith.addf %143, %142 : vector<64x128xf32>
    %cst_53 = arith.constant 1.000000e+00 : f32
    %145 = vector.broadcast %cst_53 : f32 to vector<64x128xf32>
    %146 = arith.divf %145, %144 : vector<64x128xf32>
    %147 = arith.mulf %139, %146 : vector<64x128xf32>
    %c0_54 = arith.constant 0 : index
    %c0_55 = arith.constant 0 : index
    %c0_56 = arith.constant 0 : index
    %148 = vector.load %arg9[%c0_54, %c0_55, %c0_56] : memref<9x128x128xf32, #tpu.memory_space<vmem>>, vector<1x128x128xf32>
    %149 = vector.shape_cast %148 : vector<1x128x128xf32> to vector<128x128xf32>
    %cst_57 = arith.constant dense<0.000000e+00> : vector<64x128xf32>
    %150 = tpu.matmul %147, %149, %cst_57 {dimension_numbers = #tpu.dot_dimension_numbers<[1], [0], [0], [1], [0, 0, 1, 1], [], []>} : vector<64x128xf32>, vector<128x128xf32>, vector<64x128xf32> -> vector<64x128xf32>
    %c0_58 = arith.constant 0 : index
    %c0_59 = arith.constant 0 : index
    %c0_60 = arith.constant 0 : index
    %151 = vector.load %arg3[%c0_58, %c0_59, %c0_60] : memref<9x128x64xf32, #tpu.memory_space<vmem>>, vector<1x128x64xf32>
    %152 = vector.shape_cast %151 : vector<1x128x64xf32> to vector<128x64xf32>
    %cst_61 = arith.constant dense<0.000000e+00> : vector<128x128xf32>
    %153 = tpu.matmul %152, %150, %cst_61 {dimension_numbers = #tpu.dot_dimension_numbers<[1], [0], [0], [1], [0, 0, 1, 1], [], []>} : vector<128x64xf32>, vector<64x128xf32>, vector<128x128xf32> -> vector<128x128xf32>
    %c1_62 = arith.constant 1 : index
    %c0_63 = arith.constant 0 : index
    %c0_64 = arith.constant 0 : index
    %154 = vector.load %arg9[%c1_62, %c0_63, %c0_64] : memref<9x128x128xf32, #tpu.memory_space<vmem>>, vector<1x128x128xf32>
    %155 = vector.shape_cast %154 : vector<1x128x128xf32> to vector<128x128xf32>
    %cst_65 = arith.constant dense<0.000000e+00> : vector<64x128xf32>
    %156 = tpu.matmul %147, %155, %cst_65 {dimension_numbers = #tpu.dot_dimension_numbers<[1], [0], [0], [1], [0, 0, 1, 1], [], []>} : vector<64x128xf32>, vector<128x128xf32>, vector<64x128xf32> -> vector<64x128xf32>
    %c1_66 = arith.constant 1 : index
    %c0_67 = arith.constant 0 : index
    %c0_68 = arith.constant 0 : index
    %157 = vector.load %arg3[%c1_66, %c0_67, %c0_68] : memref<9x128x64xf32, #tpu.memory_space<vmem>>, vector<1x128x64xf32>
    %158 = vector.shape_cast %157 : vector<1x128x64xf32> to vector<128x64xf32>
    %cst_69 = arith.constant dense<0.000000e+00> : vector<128x128xf32>
    %159 = tpu.matmul %158, %156, %cst_69 {dimension_numbers = #tpu.dot_dimension_numbers<[1], [0], [0], [1], [0, 0, 1, 1], [], []>} : vector<128x64xf32>, vector<64x128xf32>, vector<128x128xf32> -> vector<128x128xf32>
    %160 = arith.addf %153, %159 : vector<128x128xf32>
    %c2 = arith.constant 2 : index
    %c0_70 = arith.constant 0 : index
    %c0_71 = arith.constant 0 : index
    %161 = vector.load %arg9[%c2, %c0_70, %c0_71] : memref<9x128x128xf32, #tpu.memory_space<vmem>>, vector<1x128x128xf32>
    %162 = vector.shape_cast %161 : vector<1x128x128xf32> to vector<128x128xf32>
    %cst_72 = arith.constant dense<0.000000e+00> : vector<64x128xf32>
    %163 = tpu.matmul %147, %162, %cst_72 {dimension_numbers = #tpu.dot_dimension_numbers<[1], [0], [0], [1], [0, 0, 1, 1], [], []>} : vector<64x128xf32>, vector<128x128xf32>, vector<64x128xf32> -> vector<64x128xf32>
    %c2_73 = arith.constant 2 : index
    %c0_74 = arith.constant 0 : index
    %c0_75 = arith.constant 0 : index
    %164 = vector.load %arg3[%c2_73, %c0_74, %c0_75] : memref<9x128x64xf32, #tpu.memory_space<vmem>>, vector<1x128x64xf32>
    %165 = vector.shape_cast %164 : vector<1x128x64xf32> to vector<128x64xf32>
    %cst_76 = arith.constant dense<0.000000e+00> : vector<128x128xf32>
    %166 = tpu.matmul %165, %163, %cst_76 {dimension_numbers = #tpu.dot_dimension_numbers<[1], [0], [0], [1], [0, 0, 1, 1], [], []>} : vector<128x64xf32>, vector<64x128xf32>, vector<128x128xf32> -> vector<128x128xf32>
    %167 = arith.addf %160, %166 : vector<128x128xf32>
    %c3 = arith.constant 3 : index
    %c0_77 = arith.constant 0 : index
    %c0_78 = arith.constant 0 : index
    %168 = vector.load %arg9[%c3, %c0_77, %c0_78] : memref<9x128x128xf32, #tpu.memory_space<vmem>>, vector<1x128x128xf32>
    %169 = vector.shape_cast %168 : vector<1x128x128xf32> to vector<128x128xf32>
    %cst_79 = arith.constant dense<0.000000e+00> : vector<64x128xf32>
    %170 = tpu.matmul %147, %169, %cst_79 {dimension_numbers = #tpu.dot_dimension_numbers<[1], [0], [0], [1], [0, 0, 1, 1], [], []>} : vector<64x128xf32>, vector<128x128xf32>, vector<64x128xf32> -> vector<64x128xf32>
    %c3_80 = arith.constant 3 : index
    %c0_81 = arith.constant 0 : index
    %c0_82 = arith.constant 0 : index
    %171 = vector.load %arg3[%c3_80, %c0_81, %c0_82] : memref<9x128x64xf32, #tpu.memory_space<vmem>>, vector<1x128x64xf32>
    %172 = vector.shape_cast %171 : vector<1x128x64xf32> to vector<128x64xf32>
    %cst_83 = arith.constant dense<0.000000e+00> : vector<128x128xf32>
    %173 = tpu.matmul %172, %170, %cst_83 {dimension_numbers = #tpu.dot_dimension_numbers<[1], [0], [0], [1], [0, 0, 1, 1], [], []>} : vector<128x64xf32>, vector<64x128xf32>, vector<128x128xf32> -> vector<128x128xf32>
    %174 = arith.addf %167, %173 : vector<128x128xf32>
    %c4 = arith.constant 4 : index
    %c0_84 = arith.constant 0 : index
    %c0_85 = arith.constant 0 : index
    %175 = vector.load %arg3[%c4, %c0_84, %c0_85] : memref<9x128x64xf32, #tpu.memory_space<vmem>>, vector<1x128x64xf32>
    %176 = vector.shape_cast %175 : vector<1x128x64xf32> to vector<128x64xf32>
    %cst_86 = arith.constant dense<0.000000e+00> : vector<128x128xf32>
    %177 = tpu.matmul %176, %147, %cst_86 {dimension_numbers = #tpu.dot_dimension_numbers<[1], [0], [0], [1], [0, 0, 1, 1], [], []>} : vector<128x64xf32>, vector<64x128xf32>, vector<128x128xf32> -> vector<128x128xf32>
    %178 = arith.addf %174, %177 : vector<128x128xf32>
    %c5 = arith.constant 5 : index
    %c0_87 = arith.constant 0 : index
    %c0_88 = arith.constant 0 : index
    %179 = vector.load %arg9[%c5, %c0_87, %c0_88] : memref<9x128x128xf32, #tpu.memory_space<vmem>>, vector<1x128x128xf32>
    %180 = vector.shape_cast %179 : vector<1x128x128xf32> to vector<128x128xf32>
    %cst_89 = arith.constant dense<0.000000e+00> : vector<64x128xf32>
    %181 = tpu.matmul %147, %180, %cst_89 {dimension_numbers = #tpu.dot_dimension_numbers<[1], [0], [0], [1], [0, 0, 1, 1], [], []>} : vector<64x128xf32>, vector<128x128xf32>, vector<64x128xf32> -> vector<64x128xf32>
    %c5_90 = arith.constant 5 : index
    %c0_91 = arith.constant 0 : index
    %c0_92 = arith.constant 0 : index
    %182 = vector.load %arg3[%c5_90, %c0_91, %c0_92] : memref<9x128x64xf32, #tpu.memory_space<vmem>>, vector<1x128x64xf32>
    %183 = vector.shape_cast %182 : vector<1x128x64xf32> to vector<128x64xf32>
    %cst_93 = arith.constant dense<0.000000e+00> : vector<128x128xf32>
    %184 = tpu.matmul %183, %181, %cst_93 {dimension_numbers = #tpu.dot_dimension_numbers<[1], [0], [0], [1], [0, 0, 1, 1], [], []>} : vector<128x64xf32>, vector<64x128xf32>, vector<128x128xf32> -> vector<128x128xf32>
    %185 = arith.addf %178, %184 : vector<128x128xf32>
    %c6 = arith.constant 6 : index
    %c0_94 = arith.constant 0 : index
    %c0_95 = arith.constant 0 : index
    %186 = vector.load %arg9[%c6, %c0_94, %c0_95] : memref<9x128x128xf32, #tpu.memory_space<vmem>>, vector<1x128x128xf32>
    %187 = vector.shape_cast %186 : vector<1x128x128xf32> to vector<128x128xf32>
    %cst_96 = arith.constant dense<0.000000e+00> : vector<64x128xf32>
    %188 = tpu.matmul %147, %187, %cst_96 {dimension_numbers = #tpu.dot_dimension_numbers<[1], [0], [0], [1], [0, 0, 1, 1], [], []>} : vector<64x128xf32>, vector<128x128xf32>, vector<64x128xf32> -> vector<64x128xf32>
    %c6_97 = arith.constant 6 : index
    %c0_98 = arith.constant 0 : index
    %c0_99 = arith.constant 0 : index
    %189 = vector.load %arg3[%c6_97, %c0_98, %c0_99] : memref<9x128x64xf32, #tpu.memory_space<vmem>>, vector<1x128x64xf32>
    %190 = vector.shape_cast %189 : vector<1x128x64xf32> to vector<128x64xf32>
    %cst_100 = arith.constant dense<0.000000e+00> : vector<128x128xf32>
    %191 = tpu.matmul %190, %188, %cst_100 {dimension_numbers = #tpu.dot_dimension_numbers<[1], [0], [0], [1], [0, 0, 1, 1], [], []>} : vector<128x64xf32>, vector<64x128xf32>, vector<128x128xf32> -> vector<128x128xf32>
    %192 = arith.addf %185, %191 : vector<128x128xf32>
    %c7 = arith.constant 7 : index
    %c0_101 = arith.constant 0 : index
    %c0_102 = arith.constant 0 : index
    %193 = vector.load %arg9[%c7, %c0_101, %c0_102] : memref<9x128x128xf32, #tpu.memory_space<vmem>>, vector<1x128x128xf32>
    %194 = vector.shape_cast %193 : vector<1x128x128xf32> to vector<128x128xf32>
    %cst_103 = arith.constant dense<0.000000e+00> : vector<64x128xf32>
    %195 = tpu.matmul %147, %194, %cst_103 {dimension_numbers = #tpu.dot_dimension_numbers<[1], [0], [0], [1], [0, 0, 1, 1], [], []>} : vector<64x128xf32>, vector<128x128xf32>, vector<64x128xf32> -> vector<64x128xf32>
    %c7_104 = arith.constant 7 : index
    %c0_105 = arith.constant 0 : index
    %c0_106 = arith.constant 0 : index
    %196 = vector.load %arg3[%c7_104, %c0_105, %c0_106] : memref<9x128x64xf32, #tpu.memory_space<vmem>>, vector<1x128x64xf32>
    %197 = vector.shape_cast %196 : vector<1x128x64xf32> to vector<128x64xf32>
    %cst_107 = arith.constant dense<0.000000e+00> : vector<128x128xf32>
    %198 = tpu.matmul %197, %195, %cst_107 {dimension_numbers = #tpu.dot_dimension_numbers<[1], [0], [0], [1], [0, 0, 1, 1], [], []>} : vector<128x64xf32>, vector<64x128xf32>, vector<128x128xf32> -> vector<128x128xf32>
    %199 = arith.addf %192, %198 : vector<128x128xf32>
    %c8 = arith.constant 8 : index
    %c0_108 = arith.constant 0 : index
    %c0_109 = arith.constant 0 : index
    %200 = vector.load %arg9[%c8, %c0_108, %c0_109] : memref<9x128x128xf32, #tpu.memory_space<vmem>>, vector<1x128x128xf32>
    %201 = vector.shape_cast %200 : vector<1x128x128xf32> to vector<128x128xf32>
    %cst_110 = arith.constant dense<0.000000e+00> : vector<64x128xf32>
    %202 = tpu.matmul %147, %201, %cst_110 {dimension_numbers = #tpu.dot_dimension_numbers<[1], [0], [0], [1], [0, 0, 1, 1], [], []>} : vector<64x128xf32>, vector<128x128xf32>, vector<64x128xf32> -> vector<64x128xf32>
    %c8_111 = arith.constant 8 : index
    %c0_112 = arith.constant 0 : index
    %c0_113 = arith.constant 0 : index
    %203 = vector.load %arg3[%c8_111, %c0_112, %c0_113] : memref<9x128x64xf32, #tpu.memory_space<vmem>>, vector<1x128x64xf32>
    %204 = vector.shape_cast %203 : vector<1x128x64xf32> to vector<128x64xf32>
    %cst_114 = arith.constant dense<0.000000e+00> : vector<128x128xf32>
    %205 = tpu.matmul %204, %202, %cst_114 {dimension_numbers = #tpu.dot_dimension_numbers<[1], [0], [0], [1], [0, 0, 1, 1], [], []>} : vector<128x64xf32>, vector<64x128xf32>, vector<128x128xf32> -> vector<128x128xf32>
    %206 = arith.addf %199, %205 : vector<128x128xf32>
    %207 = vector.broadcast %4 : vector<128x1xf32> to vector<128x128xf32>
    %208 = arith.addf %206, %207 : vector<128x128xf32>
    %c0_115 = arith.constant 0 : index
    %c0_116 = arith.constant 0 : index
    %209 = vector.load %arg2[%c0_115, %c0_116] : memref<2x128xf32, #tpu.memory_space<vmem>>, vector<2x128xf32>
    %cst_117 = arith.constant 0.000000e+00 : f32
    %210 = vector.broadcast %cst_117 : f32 to vector<2x128xf32>
    %211 = arith.subf %210, %209 : vector<2x128xf32>
    %212 = math.exp %211 : vector<2x128xf32>
    %cst_118 = arith.constant 1.000000e+00 : f32
    %213 = vector.broadcast %cst_118 : f32 to vector<2x128xf32>
    %214 = arith.addf %213, %212 : vector<2x128xf32>
    %cst_119 = arith.constant 1.000000e+00 : f32
    %215 = vector.broadcast %cst_119 : f32 to vector<2x128xf32>
    %216 = arith.divf %215, %214 : vector<2x128xf32>
    %217 = arith.mulf %209, %216 : vector<2x128xf32>
    %cst_120 = arith.constant dense<0.000000e+00> : vector<128x128xf32>
    %218 = tpu.matmul %217, %23, %cst_120 {dimension_numbers = #tpu.dot_dimension_numbers<[0], [0], [1], [1], [0, 1, 1, 1], [], []>} : vector<2x128xf32>, vector<2x128xf32>, vector<128x128xf32> -> vector<128x128xf32>
    %c0_121 = arith.constant 0 : index
    %c0_122 = arith.constant 0 : index
    %219 = vector.load %arg5[%c0_121, %c0_122] : memref<128x128xf32, #tpu.memory_space<vmem>>, vector<128x128xf32>
    %cst_123 = arith.constant dense<0.000000e+00> : vector<128x128xf32>
    %220 = tpu.matmul %219, %218, %cst_123 {dimension_numbers = #tpu.dot_dimension_numbers<[1], [0], [0], [1], [0, 0, 1, 1], [], []>} : vector<128x128xf32>, vector<128x128xf32>, vector<128x128xf32> -> vector<128x128xf32>
    %221 = arith.addf %208, %220 : vector<128x128xf32>
    %222 = vector.broadcast %5 : vector<128x1xf32> to vector<128x128xf32>
    %223 = arith.addf %221, %222 : vector<128x128xf32>
    %cst_124 = arith.constant dense<0.000000e+00> : vector<128x128xf32>
    %224 = tpu.matmul %223, %40, %cst_124 {dimension_numbers = #tpu.dot_dimension_numbers<[1], [0], [0], [1], [0, 0, 1, 1], [], []>} : vector<128x128xf32>, vector<128x128xf32>, vector<128x128xf32> -> vector<128x128xf32>
    %cst_125 = arith.constant dense<0.000000e+00> : vector<128x128xf32>
    %225 = tpu.matmul %102, %224, %cst_125 {dimension_numbers = #tpu.dot_dimension_numbers<[1], [0], [0], [1], [0, 0, 1, 1], [], []>} : vector<128x128xf32>, vector<128x128xf32>, vector<128x128xf32> -> vector<128x128xf32>
    %226 = arith.subf %223, %225 : vector<128x128xf32>
    %227 = arith.mulf %226, %226 : vector<128x128xf32>
    %cst_126 = arith.constant dense<0.000000e+00> : vector<128x128xf32>
    %228 = tpu.matmul %227, %40, %cst_126 {dimension_numbers = #tpu.dot_dimension_numbers<[1], [0], [0], [1], [0, 0, 1, 1], [], []>} : vector<128x128xf32>, vector<128x128xf32>, vector<128x128xf32> -> vector<128x128xf32>
    %cst_127 = arith.constant dense<0.000000e+00> : vector<128x128xf32>
    %229 = tpu.matmul %102, %228, %cst_127 {dimension_numbers = #tpu.dot_dimension_numbers<[1], [0], [0], [1], [0, 0, 1, 1], [], []>} : vector<128x128xf32>, vector<128x128xf32>, vector<128x128xf32> -> vector<128x128xf32>
    %cst_128 = arith.constant 9.99999974E-6 : f32
    %230 = vector.broadcast %cst_128 : f32 to vector<128x128xf32>
    %231 = arith.addf %229, %230 : vector<128x128xf32>
    %232 = math.rsqrt %231 : vector<128x128xf32>
    %233 = arith.mulf %226, %232 : vector<128x128xf32>
    %234 = vector.broadcast %6 : vector<128x1xf32> to vector<128x128xf32>
    %235 = arith.mulf %233, %234 : vector<128x128xf32>
    %236 = vector.broadcast %7 : vector<128x1xf32> to vector<128x128xf32>
    %237 = arith.addf %235, %236 : vector<128x128xf32>
    %cst_129 = arith.constant 0.000000e+00 : f32
    %238 = vector.broadcast %cst_129 : f32 to vector<128x128xf32>
    %239 = arith.subf %238, %237 : vector<128x128xf32>
    %240 = math.exp %239 : vector<128x128xf32>
    %cst_130 = arith.constant 1.000000e+00 : f32
    %241 = vector.broadcast %cst_130 : f32 to vector<128x128xf32>
    %242 = arith.addf %241, %240 : vector<128x128xf32>
    %cst_131 = arith.constant 1.000000e+00 : f32
    %243 = vector.broadcast %cst_131 : f32 to vector<128x128xf32>
    %244 = arith.divf %243, %242 : vector<128x128xf32>
    %245 = arith.mulf %237, %244 : vector<128x128xf32>
    %c0_132 = arith.constant 0 : index
    %c0_133 = arith.constant 0 : index
    %c0_134 = arith.constant 0 : index
    %246 = vector.load %arg9[%c0_132, %c0_133, %c0_134] : memref<9x128x128xf32, #tpu.memory_space<vmem>>, vector<1x128x128xf32>
    %247 = vector.shape_cast %246 : vector<1x128x128xf32> to vector<128x128xf32>
    %cst_135 = arith.constant dense<0.000000e+00> : vector<128x128xf32>
    %248 = tpu.matmul %245, %247, %cst_135 {dimension_numbers = #tpu.dot_dimension_numbers<[1], [0], [0], [1], [0, 0, 1, 1], [], []>} : vector<128x128xf32>, vector<128x128xf32>, vector<128x128xf32> -> vector<128x128xf32>
    %c0_136 = arith.constant 0 : index
    %c0_137 = arith.constant 0 : index
    %c0_138 = arith.constant 0 : index
    %249 = vector.load %arg4[%c0_136, %c0_137, %c0_138] : memref<9x128x128xf32, #tpu.memory_space<vmem>>, vector<1x128x128xf32>
    %250 = vector.shape_cast %249 : vector<1x128x128xf32> to vector<128x128xf32>
    %cst_139 = arith.constant dense<0.000000e+00> : vector<128x128xf32>
    %251 = tpu.matmul %250, %248, %cst_139 {dimension_numbers = #tpu.dot_dimension_numbers<[1], [0], [0], [1], [0, 0, 1, 1], [], []>} : vector<128x128xf32>, vector<128x128xf32>, vector<128x128xf32> -> vector<128x128xf32>
    %c1_140 = arith.constant 1 : index
    %c0_141 = arith.constant 0 : index
    %c0_142 = arith.constant 0 : index
    %252 = vector.load %arg9[%c1_140, %c0_141, %c0_142] : memref<9x128x128xf32, #tpu.memory_space<vmem>>, vector<1x128x128xf32>
    %253 = vector.shape_cast %252 : vector<1x128x128xf32> to vector<128x128xf32>
    %cst_143 = arith.constant dense<0.000000e+00> : vector<128x128xf32>
    %254 = tpu.matmul %245, %253, %cst_143 {dimension_numbers = #tpu.dot_dimension_numbers<[1], [0], [0], [1], [0, 0, 1, 1], [], []>} : vector<128x128xf32>, vector<128x128xf32>, vector<128x128xf32> -> vector<128x128xf32>
    %c1_144 = arith.constant 1 : index
    %c0_145 = arith.constant 0 : index
    %c0_146 = arith.constant 0 : index
    %255 = vector.load %arg4[%c1_144, %c0_145, %c0_146] : memref<9x128x128xf32, #tpu.memory_space<vmem>>, vector<1x128x128xf32>
    %256 = vector.shape_cast %255 : vector<1x128x128xf32> to vector<128x128xf32>
    %cst_147 = arith.constant dense<0.000000e+00> : vector<128x128xf32>
    %257 = tpu.matmul %256, %254, %cst_147 {dimension_numbers = #tpu.dot_dimension_numbers<[1], [0], [0], [1], [0, 0, 1, 1], [], []>} : vector<128x128xf32>, vector<128x128xf32>, vector<128x128xf32> -> vector<128x128xf32>
    %258 = arith.addf %251, %257 : vector<128x128xf32>
    %c2_148 = arith.constant 2 : index
    %c0_149 = arith.constant 0 : index
    %c0_150 = arith.constant 0 : index
    %259 = vector.load %arg9[%c2_148, %c0_149, %c0_150] : memref<9x128x128xf32, #tpu.memory_space<vmem>>, vector<1x128x128xf32>
    %260 = vector.shape_cast %259 : vector<1x128x128xf32> to vector<128x128xf32>
    %cst_151 = arith.constant dense<0.000000e+00> : vector<128x128xf32>
    %261 = tpu.matmul %245, %260, %cst_151 {dimension_numbers = #tpu.dot_dimension_numbers<[1], [0], [0], [1], [0, 0, 1, 1], [], []>} : vector<128x128xf32>, vector<128x128xf32>, vector<128x128xf32> -> vector<128x128xf32>
    %c2_152 = arith.constant 2 : index
    %c0_153 = arith.constant 0 : index
    %c0_154 = arith.constant 0 : index
    %262 = vector.load %arg4[%c2_152, %c0_153, %c0_154] : memref<9x128x128xf32, #tpu.memory_space<vmem>>, vector<1x128x128xf32>
    %263 = vector.shape_cast %262 : vector<1x128x128xf32> to vector<128x128xf32>
    %cst_155 = arith.constant dense<0.000000e+00> : vector<128x128xf32>
    %264 = tpu.matmul %263, %261, %cst_155 {dimension_numbers = #tpu.dot_dimension_numbers<[1], [0], [0], [1], [0, 0, 1, 1], [], []>} : vector<128x128xf32>, vector<128x128xf32>, vector<128x128xf32> -> vector<128x128xf32>
    %265 = arith.addf %258, %264 : vector<128x128xf32>
    %c3_156 = arith.constant 3 : index
    %c0_157 = arith.constant 0 : index
    %c0_158 = arith.constant 0 : index
    %266 = vector.load %arg9[%c3_156, %c0_157, %c0_158] : memref<9x128x128xf32, #tpu.memory_space<vmem>>, vector<1x128x128xf32>
    %267 = vector.shape_cast %266 : vector<1x128x128xf32> to vector<128x128xf32>
    %cst_159 = arith.constant dense<0.000000e+00> : vector<128x128xf32>
    %268 = tpu.matmul %245, %267, %cst_159 {dimension_numbers = #tpu.dot_dimension_numbers<[1], [0], [0], [1], [0, 0, 1, 1], [], []>} : vector<128x128xf32>, vector<128x128xf32>, vector<128x128xf32> -> vector<128x128xf32>
    %c3_160 = arith.constant 3 : index
    %c0_161 = arith.constant 0 : index
    %c0_162 = arith.constant 0 : index
    %269 = vector.load %arg4[%c3_160, %c0_161, %c0_162] : memref<9x128x128xf32, #tpu.memory_space<vmem>>, vector<1x128x128xf32>
    %270 = vector.shape_cast %269 : vector<1x128x128xf32> to vector<128x128xf32>
    %cst_163 = arith.constant dense<0.000000e+00> : vector<128x128xf32>
    %271 = tpu.matmul %270, %268, %cst_163 {dimension_numbers = #tpu.dot_dimension_numbers<[1], [0], [0], [1], [0, 0, 1, 1], [], []>} : vector<128x128xf32>, vector<128x128xf32>, vector<128x128xf32> -> vector<128x128xf32>
    %272 = arith.addf %265, %271 : vector<128x128xf32>
    %c4_164 = arith.constant 4 : index
    %c0_165 = arith.constant 0 : index
    %c0_166 = arith.constant 0 : index
    %273 = vector.load %arg4[%c4_164, %c0_165, %c0_166] : memref<9x128x128xf32, #tpu.memory_space<vmem>>, vector<1x128x128xf32>
    %274 = vector.shape_cast %273 : vector<1x128x128xf32> to vector<128x128xf32>
    %cst_167 = arith.constant dense<0.000000e+00> : vector<128x128xf32>
    %275 = tpu.matmul %274, %245, %cst_167 {dimension_numbers = #tpu.dot_dimension_numbers<[1], [0], [0], [1], [0, 0, 1, 1], [], []>} : vector<128x128xf32>, vector<128x128xf32>, vector<128x128xf32> -> vector<128x128xf32>
    %276 = arith.addf %272, %275 : vector<128x128xf32>
    %c5_168 = arith.constant 5 : index
    %c0_169 = arith.constant 0 : index
    %c0_170 = arith.constant 0 : index
    %277 = vector.load %arg9[%c5_168, %c0_169, %c0_170] : memref<9x128x128xf32, #tpu.memory_space<vmem>>, vector<1x128x128xf32>
    %278 = vector.shape_cast %277 : vector<1x128x128xf32> to vector<128x128xf32>
    %cst_171 = arith.constant dense<0.000000e+00> : vector<128x128xf32>
    %279 = tpu.matmul %245, %278, %cst_171 {dimension_numbers = #tpu.dot_dimension_numbers<[1], [0], [0], [1], [0, 0, 1, 1], [], []>} : vector<128x128xf32>, vector<128x128xf32>, vector<128x128xf32> -> vector<128x128xf32>
    %c5_172 = arith.constant 5 : index
    %c0_173 = arith.constant 0 : index
    %c0_174 = arith.constant 0 : index
    %280 = vector.load %arg4[%c5_172, %c0_173, %c0_174] : memref<9x128x128xf32, #tpu.memory_space<vmem>>, vector<1x128x128xf32>
    %281 = vector.shape_cast %280 : vector<1x128x128xf32> to vector<128x128xf32>
    %cst_175 = arith.constant dense<0.000000e+00> : vector<128x128xf32>
    %282 = tpu.matmul %281, %279, %cst_175 {dimension_numbers = #tpu.dot_dimension_numbers<[1], [0], [0], [1], [0, 0, 1, 1], [], []>} : vector<128x128xf32>, vector<128x128xf32>, vector<128x128xf32> -> vector<128x128xf32>
    %283 = arith.addf %276, %282 : vector<128x128xf32>
    %c6_176 = arith.constant 6 : index
    %c0_177 = arith.constant 0 : index
    %c0_178 = arith.constant 0 : index
    %284 = vector.load %arg9[%c6_176, %c0_177, %c0_178] : memref<9x128x128xf32, #tpu.memory_space<vmem>>, vector<1x128x128xf32>
    %285 = vector.shape_cast %284 : vector<1x128x128xf32> to vector<128x128xf32>
    %cst_179 = arith.constant dense<0.000000e+00> : vector<128x128xf32>
    %286 = tpu.matmul %245, %285, %cst_179 {dimension_numbers = #tpu.dot_dimension_numbers<[1], [0], [0], [1], [0, 0, 1, 1], [], []>} : vector<128x128xf32>, vector<128x128xf32>, vector<128x128xf32> -> vector<128x128xf32>
    %c6_180 = arith.constant 6 : index
    %c0_181 = arith.constant 0 : index
    %c0_182 = arith.constant 0 : index
    %287 = vector.load %arg4[%c6_180, %c0_181, %c0_182] : memref<9x128x128xf32, #tpu.memory_space<vmem>>, vector<1x128x128xf32>
    %288 = vector.shape_cast %287 : vector<1x128x128xf32> to vector<128x128xf32>
    %cst_183 = arith.constant dense<0.000000e+00> : vector<128x128xf32>
    %289 = tpu.matmul %288, %286, %cst_183 {dimension_numbers = #tpu.dot_dimension_numbers<[1], [0], [0], [1], [0, 0, 1, 1], [], []>} : vector<128x128xf32>, vector<128x128xf32>, vector<128x128xf32> -> vector<128x128xf32>
    %290 = arith.addf %283, %289 : vector<128x128xf32>
    %c7_184 = arith.constant 7 : index
    %c0_185 = arith.constant 0 : index
    %c0_186 = arith.constant 0 : index
    %291 = vector.load %arg9[%c7_184, %c0_185, %c0_186] : memref<9x128x128xf32, #tpu.memory_space<vmem>>, vector<1x128x128xf32>
    %292 = vector.shape_cast %291 : vector<1x128x128xf32> to vector<128x128xf32>
    %cst_187 = arith.constant dense<0.000000e+00> : vector<128x128xf32>
    %293 = tpu.matmul %245, %292, %cst_187 {dimension_numbers = #tpu.dot_dimension_numbers<[1], [0], [0], [1], [0, 0, 1, 1], [], []>} : vector<128x128xf32>, vector<128x128xf32>, vector<128x128xf32> -> vector<128x128xf32>
    %c7_188 = arith.constant 7 : index
    %c0_189 = arith.constant 0 : index
    %c0_190 = arith.constant 0 : index
    %294 = vector.load %arg4[%c7_188, %c0_189, %c0_190] : memref<9x128x128xf32, #tpu.memory_space<vmem>>, vector<1x128x128xf32>
    %295 = vector.shape_cast %294 : vector<1x128x128xf32> to vector<128x128xf32>
    %cst_191 = arith.constant dense<0.000000e+00> : vector<128x128xf32>
    %296 = tpu.matmul %295, %293, %cst_191 {dimension_numbers = #tpu.dot_dimension_numbers<[1], [0], [0], [1], [0, 0, 1, 1], [], []>} : vector<128x128xf32>, vector<128x128xf32>, vector<128x128xf32> -> vector<128x128xf32>
    %297 = arith.addf %290, %296 : vector<128x128xf32>
    %c8_192 = arith.constant 8 : index
    %c0_193 = arith.constant 0 : index
    %c0_194 = arith.constant 0 : index
    %298 = vector.load %arg9[%c8_192, %c0_193, %c0_194] : memref<9x128x128xf32, #tpu.memory_space<vmem>>, vector<1x128x128xf32>
    %299 = vector.shape_cast %298 : vector<1x128x128xf32> to vector<128x128xf32>
    %cst_195 = arith.constant dense<0.000000e+00> : vector<128x128xf32>
    %300 = tpu.matmul %245, %299, %cst_195 {dimension_numbers = #tpu.dot_dimension_numbers<[1], [0], [0], [1], [0, 0, 1, 1], [], []>} : vector<128x128xf32>, vector<128x128xf32>, vector<128x128xf32> -> vector<128x128xf32>
    %c8_196 = arith.constant 8 : index
    %c0_197 = arith.constant 0 : index
    %c0_198 = arith.constant 0 : index
    %301 = vector.load %arg4[%c8_196, %c0_197, %c0_198] : memref<9x128x128xf32, #tpu.memory_space<vmem>>, vector<1x128x128xf32>
    %302 = vector.shape_cast %301 : vector<1x128x128xf32> to vector<128x128xf32>
    %cst_199 = arith.constant dense<0.000000e+00> : vector<128x128xf32>
    %303 = tpu.matmul %302, %300, %cst_199 {dimension_numbers = #tpu.dot_dimension_numbers<[1], [0], [0], [1], [0, 0, 1, 1], [], []>} : vector<128x128xf32>, vector<128x128xf32>, vector<128x128xf32> -> vector<128x128xf32>
    %304 = arith.addf %297, %303 : vector<128x128xf32>
    %305 = vector.broadcast %8 : vector<128x1xf32> to vector<128x128xf32>
    %306 = arith.addf %304, %305 : vector<128x128xf32>
    %c0_200 = arith.constant 0 : index
    %c0_201 = arith.constant 0 : index
    %307 = vector.load %arg6[%c0_200, %c0_201] : memref<128x64xf32, #tpu.memory_space<vmem>>, vector<128x64xf32>
    %cst_202 = arith.constant dense<0.000000e+00> : vector<128x128xf32>
    %308 = tpu.matmul %307, %125, %cst_202 {dimension_numbers = #tpu.dot_dimension_numbers<[1], [0], [0], [1], [0, 0, 1, 1], [], []>} : vector<128x64xf32>, vector<64x128xf32>, vector<128x128xf32> -> vector<128x128xf32>
    %309 = arith.addf %306, %308 : vector<128x128xf32>
    %310 = vector.broadcast %9 : vector<128x1xf32> to vector<128x128xf32>
    %311 = arith.addf %309, %310 : vector<128x128xf32>
    %312 = vector.extract_strided_slice %311 {offsets = [0, 0], sizes = [128, 64], strides = [1, 1]} : vector<128x128xf32> to vector<128x64xf32>
    %c0_203 = arith.constant 0 : index
    %c0_204 = arith.constant 0 : index
    %c0_205 = arith.constant 0 : index
    %313 = vector.load %arg10[%c0_203, %c0_204, %c0_205] : memref<2x128x64xf32, #tpu.memory_space<vmem>>, vector<1x128x64xf32>
    %314 = vector.shape_cast %313 : vector<1x128x64xf32> to vector<128x64xf32>
    %315 = vector.shape_cast %312 : vector<128x64xf32> to vector<1x128x64xf32>
    tpu.vector_store %arg10[%c0_203, %c0_204, %c0_205], %315 {strides = array<i32>} : memref<2x128x64xf32, #tpu.memory_space<vmem>>, vector<1x128x64xf32>,
    %316 = vector.extract_strided_slice %311 {offsets = [0, 64], sizes = [128, 64], strides = [1, 1]} : vector<128x128xf32> to vector<128x64xf32>
    %c1_206 = arith.constant 1 : index
    %c0_207 = arith.constant 0 : index
    %c0_208 = arith.constant 0 : index
    %317 = vector.load %arg10[%c1_206, %c0_207, %c0_208] : memref<2x128x64xf32, #tpu.memory_space<vmem>>, vector<1x128x64xf32>
    %318 = vector.shape_cast %317 : vector<1x128x64xf32> to vector<128x64xf32>
    %319 = vector.shape_cast %316 : vector<128x64xf32> to vector<1x128x64xf32>
    tpu.vector_store %arg10[%c1_206, %c0_207, %c0_208], %319 {strides = array<i32>} : memref<2x128x64xf32, #tpu.memory_space<vmem>>, vector<1x128x64xf32>,
    return
  }
  func.func @transform_0(%arg0: i32) -> (i32, i32, i32) {
    %c0_i32 = arith.constant 0 : i32
    %c0_i32_0 = arith.constant 0 : i32
    %c0_i32_1 = arith.constant 0 : i32
    %c0_i32_2 = arith.constant 0 : i32
    return %c0_i32, %c0_i32_0, %c0_i32_1 : i32, i32, i32
  }
  func.func @transform_1(%arg0: i32) -> (i32, i32) {
    %c0_i32 = arith.constant 0 : i32
    %c0_i32_0 = arith.constant 0 : i32
    %c0_i32_1 = arith.constant 0 : i32
    return %c0_i32, %c0_i32_0 : i32, i32
  }
  func.func @transform_2(%arg0: i32) -> (i32, i32, i32) {
    %c0_i32 = arith.constant 0 : i32
    %c0_i32_0 = arith.constant 0 : i32
    %c0_i32_1 = arith.constant 0 : i32
    %c0_i32_2 = arith.constant 0 : i32
    return %c0_i32, %c0_i32_0, %c0_i32_1 : i32, i32, i32
  }
  func.func @transform_3(%arg0: i32) -> (i32, i32, i32) {
    %c0_i32 = arith.constant 0 : i32
    %c0_i32_0 = arith.constant 0 : i32
    %c0_i32_1 = arith.constant 0 : i32
    %c0_i32_2 = arith.constant 0 : i32
    return %c0_i32, %c0_i32_0, %c0_i32_1 : i32, i32, i32
  }
  func.func @transform_4(%arg0: i32) -> (i32, i32) {
    %c0_i32 = arith.constant 0 : i32
    %c0_i32_0 = arith.constant 0 : i32
    %c0_i32_1 = arith.constant 0 : i32
    return %c0_i32, %c0_i32_0 : i32, i32
  }
  func.func @transform_5(%arg0: i32) -> (i32, i32) {
    %c0_i32 = arith.constant 0 : i32
    %c0_i32_0 = arith.constant 0 : i32
    %c0_i32_1 = arith.constant 0 : i32
    return %c0_i32, %c0_i32_0 : i32, i32
  }
  func.func @transform_6(%arg0: i32) -> (i32, i32) {
    %c0_i32 = arith.constant 0 : i32
    %c0_i32_0 = arith.constant 0 : i32
    %c0_i32_1 = arith.constant 0 : i32
    return %c0_i32, %c0_i32_0 : i32, i32
  }
  func.func @transform_7(%arg0: i32) -> (i32, i32) {
    %c0_i32 = arith.constant 0 : i32
    %c0_i32_0 = arith.constant 0 : i32
    %c0_i32_1 = arith.constant 0 : i32
    return %c0_i32, %c0_i32_0 : i32, i32
  }
  func.func @transform_8(%arg0: i32) -> (i32, i32, i32) {
    %c0_i32 = arith.constant 0 : i32
    %c0_i32_0 = arith.constant 0 : i32
    %c0_i32_1 = arith.constant 0 : i32
    %c0_i32_2 = arith.constant 0 : i32
    return %c0_i32, %c0_i32_0, %c0_i32_1 : i32, i32, i32
  }
  func.func @transform_9(%arg0: i32) -> (i32, i32, i32) {
    %c0_i32 = arith.constant 0 : i32
    %c0_i32_0 = arith.constant 0 : i32
    %c0_i32_1 = arith.constant 0 : i32
    %c0_i32_2 = arith.constant 0 : i32
    return %c0_i32, %c0_i32_0, %c0_i32_1 : i32, i32, i32
  }
}

</mosaic_0001>

<llo_original>
// kernel: unet_residual_block.1
$region0: #{unet_residual_block.1}
  #allocation0 [shape = 'u32[]', space=smem, size = 0x4, offset = 0x4, fixed_abs, tag = 'smem constant byte address 0x4 - core index']
  #allocation1 [shape = 'u32[144,128]{1,0:T(1,128)}', space=vmem, size = 0x12000, scoped, tag = 'internal scratch']
  %s0 = inlined_call_operand.vmem [shape: f32[2,64,64], index: 0, kind: input, shape index: {}]
  %s1 = inlined_call_operand.vmem [shape: f32[2,128], index: 1, kind: input, shape index: {}]
  %s2 = inlined_call_operand.vmem [shape: f32[9,128,64], index: 2, kind: input, shape index: {}]
  %s3 = inlined_call_operand.vmem [shape: f32[9,128,128], index: 3, kind: input, shape index: {}]
  %s4 = inlined_call_operand.hbm [shape: f32[128,128], index: 4, kind: input, shape index: {}]
  %s5 = inlined_call_operand.vmem [shape: f32[128,64], index: 5, kind: input, shape index: {}]
  %s6 = inlined_call_operand.vmem [shape: f32[64,2], index: 6, kind: input, shape index: {}]
  %s7 = inlined_call_operand.vmem [shape: f32[128,6], index: 7, kind: input, shape index: {}]
  %s8 = inlined_call_operand.vmem [shape: f32[9,128,128], index: 8, kind: input, shape index: {}]
  %s9 = inlined_call_operand.vmem [shape: f32[2,128,64], index: 9, kind: output, shape index: {}]
  %s10 = sld [smem:[#allocation0]]
  $region50: #{unet_residual_block.1} parent=0
    _
  %s12 = ssub.s32 1, %s10
  %s13 = scalar_select 0, %s12, %s10
  $region1: #{unet_residual_block.1} parent=0
    #allocation2 [shape = 'u8[65536]{0}', space=vmem, size = 0x10000, scoped, tag = 'input window, operand 4, single buffered']
    #allocation3 [shape = 's32[1]{0}', space=sflag, size = 0x4, scoped, tag = 'scoped memory for unet_residual_block.1']
    %14 = vsyncpa [#allocation3], 0
    // Predicated region
    $region2: #{unet_residual_block.1} parent=1 // pred_check
      _
    $region3: #{unet_residual_block.1} parent=1 // pred_check_branch
      %16 = sbr.rel (0) target = $region5
    $region4: #{unet_residual_block.1} parent=1 // pred_region
      _
    $region5: #{unet_residual_block.1} parent=1 // pred_fallthru
      _
    // Predicated region
    $region6: #{unet_residual_block.1} parent=1 // pred_check
      _
    $region7: #{unet_residual_block.1} parent=1 // pred_check_branch
      %18 = sbr.rel (0) target = $region9
    $region8: #{unet_residual_block.1} parent=1 // pred_region
      _
    $region9: #{unet_residual_block.1} parent=1 // pred_fallthru
      _
    // Predicated region
    $region10: #{unet_residual_block.1} parent=1 // pred_check
      _
    $region11: #{unet_residual_block.1} parent=1 // pred_check_branch
      %20 = sbr.rel (0) target = $region13
    $region12: #{unet_residual_block.1} parent=1 // pred_region
      _
    $region13: #{unet_residual_block.1} parent=1 // pred_fallthru
      _
    // Predicated region
    $region14: #{unet_residual_block.1} parent=1 // pred_check
      _
    $region15: #{unet_residual_block.1} parent=1 // pred_check_branch
      %22 = sbr.rel (0) target = $region17
    $region16: #{unet_residual_block.1} parent=1 // pred_region
      _
    $region17: #{unet_residual_block.1} parent=1 // pred_fallthru
      _
    // Predicated region
    $region18: #{unet_residual_block.1} parent=1 // pred_check
      _
    $region19: #{unet_residual_block.1} parent=1 // pred_check_branch
      %24 = sbr.rel (0) target = $region21
    $region20: #{unet_residual_block.1} parent=1 // pred_region
      %s26 = ssub.s32 2048, 2048
      %27 = vsyncadd [#allocation3], %s26
      %s28 = sshll.u32 [#allocation2], 4
      %s29 = int_to_ptr.vmem [resolvable:$true] %s28
      %34 = dma.hbm_to_vmem [thread:$0]  %s4, 2048, %s29, [#allocation3], 128, 128, 8
    $region21: #{unet_residual_block.1} parent=1 // pred_fallthru
      _
    // Predicated region
    $region22: #{unet_residual_block.1} parent=1 // pred_check
      _
    $region23: #{unet_residual_block.1} parent=1 // pred_check_branch
      %36 = sbr.rel (0) target = $region25
    $region24: #{unet_residual_block.1} parent=1 // pred_region
      _
    $region25: #{unet_residual_block.1} parent=1 // pred_fallthru
      _
    // Predicated region
    $region26: #{unet_residual_block.1} parent=1 // pred_check
      _
    $region27: #{unet_residual_block.1} parent=1 // pred_check_branch
      %38 = sbr.rel (0) target = $region29
    $region28: #{unet_residual_block.1} parent=1 // pred_region
      _
    $region29: #{unet_residual_block.1} parent=1 // pred_fallthru
      _
    // Predicated region
    $region30: #{unet_residual_block.1} parent=1 // pred_check
      _
    $region31: #{unet_residual_block.1} parent=1 // pred_check_branch
      %40 = sbr.rel (0) target = $region33
    $region32: #{unet_residual_block.1} parent=1 // pred_region
      _
    $region33: #{unet_residual_block.1} parent=1 // pred_fallthru
      _
    // Predicated region
    $region34: #{unet_residual_block.1} parent=1 // pred_check
      _
    $region35: #{unet_residual_block.1} parent=1 // pred_check_branch
      %42 = sbr.rel (0) target = $region37
    $region36: #{unet_residual_block.1} parent=1 // pred_region
      _
    $region37: #{unet_residual_block.1} parent=1 // pred_fallthru
      _
    // Predicated region
    $region38: #{unet_residual_block.1} parent=1 // pred_check
      _
    $region39: #{unet_residual_block.1} parent=1 // pred_check_branch
      %44 = sbr.rel (0) target = $region41
    $region40: #{unet_residual_block.1} parent=1 // pred_region
      %45 = dma.done [#allocation3], 2048
    $region41: #{unet_residual_block.1} parent=1 // pred_fallthru
      _
    %v46 = vld [vmem:[%s6] sm:$0xff]
    %v47 = vld [vmem:[%s6 + $0x8] sm:$0xff]
    %v48 = vld [vmem:[%s6 + $0x10] sm:$0xff]
    %v49 = vld [vmem:[%s6 + $0x18] sm:$0xff]
    %v50 = vld [vmem:[%s6 + $0x20] sm:$0xff]
    %v51 = vld [vmem:[%s6 + $0x28] sm:$0xff]
    %v52 = vld [vmem:[%s6 + $0x30] sm:$0xff]
    %v53 = vld [vmem:[%s6 + $0x38] sm:$0xff]
    %v54 = vld [vmem:[%s7] sm:$0xff]
    %v55 = vld [vmem:[%s7 + $0x8] sm:$0xff]
    %v56 = vld [vmem:[%s7 + $0x10] sm:$0xff]
    %v57 = vld [vmem:[%s7 + $0x18] sm:$0xff]
    %v58 = vld [vmem:[%s7 + $0x20] sm:$0xff]
    %v59 = vld [vmem:[%s7 + $0x28] sm:$0xff]
    %v60 = vld [vmem:[%s7 + $0x30] sm:$0xff]
    %v61 = vld [vmem:[%s7 + $0x38] sm:$0xff]
    %v62 = vld [vmem:[%s7 + $0x40] sm:$0xff]
    %v63 = vld [vmem:[%s7 + $0x48] sm:$0xff]
    %v64 = vld [vmem:[%s7 + $0x50] sm:$0xff]
    %v65 = vld [vmem:[%s7 + $0x58] sm:$0xff]
    %v66 = vld [vmem:[%s7 + $0x60] sm:$0xff]
    %v67 = vld [vmem:[%s7 + $0x68] sm:$0xff]
    %v68 = vld [vmem:[%s7 + $0x70] sm:$0xff]
    %v69 = vld [vmem:[%s7 + $0x78] sm:$0xff]
    %v70 = vlaneseq
    %v71 = vshrl.u32 %v70, 7
    %v72 = vlaneseq
    %v73 = vand.u32 %v72, 127
    %v74 = vmul.u32 %v71, 64
    %vm75 = vcmp.ge.s32.totalorder %v73, %v74
    %v76 = vadd.s32 %v71, 1
    %v77 = vmul.u32 %v76, 64
    %vm78 = vcmp.lt.s32.totalorder %v73, %v77
    %vm79 = vmand %vm75, %vm78
    %v80 = vsel %vm79, 1.0, 0.0
    %v81 = vadd.s32 %v71, 8
    %v82 = vadd.s32 %v71, 16
    %v83 = vadd.s32 %v71, 24
    %v84 = vadd.s32 %v71, 32
    %v85 = vadd.s32 %v71, 40
    %v86 = vadd.s32 %v71, 48
    %v87 = vadd.s32 %v71, 56
    %v88 = vadd.s32 %v71, 64
    %v89 = vadd.s32 %v71, 72
    %v90 = vadd.s32 %v71, 80
    %v91 = vadd.s32 %v71, 88
    %v92 = vadd.s32 %v71, 96
    %v93 = vadd.s32 %v71, 104
    %v94 = vadd.s32 %v71, 112
    %v95 = vadd.s32 %v71, 120
    %v96 = vmul.u32 %v73, 64
    %vm97 = vcmp.ge.s32.totalorder %v71, %v96
    %vm98 = vcmp.ge.s32.totalorder %v81, %v96
    %vm99 = vcmp.ge.s32.totalorder %v82, %v96
    %vm100 = vcmp.ge.s32.totalorder %v83, %v96
    %vm101 = vcmp.ge.s32.totalorder %v84, %v96
    %vm102 = vcmp.ge.s32.totalorder %v85, %v96
    %vm103 = vcmp.ge.s32.totalorder %v86, %v96
    %vm104 = vcmp.ge.s32.totalorder %v87, %v96
    %vm105 = vcmp.ge.s32.totalorder %v88, %v96
    %vm106 = vcmp.ge.s32.totalorder %v89, %v96
    %vm107 = vcmp.ge.s32.totalorder %v90, %v96
    %vm108 = vcmp.ge.s32.totalorder %v91, %v96
    %vm109 = vcmp.ge.s32.totalorder %v92, %v96
    %vm110 = vcmp.ge.s32.totalorder %v93, %v96
    %vm111 = vcmp.ge.s32.totalorder %v94, %v96
    %vm112 = vcmp.ge.s32.totalorder %v95, %v96
    %v113 = vadd.s32 %v73, 1
    %v114 = vmul.u32 %v113, 64
    %vm115 = vcmp.lt.s32.totalorder %v71, %v114
    %vm116 = vcmp.lt.s32.totalorder %v81, %v114
    %vm117 = vcmp.lt.s32.totalorder %v82, %v114
    %vm118 = vcmp.lt.s32.totalorder %v83, %v114
    %vm119 = vcmp.lt.s32.totalorder %v84, %v114
    %vm120 = vcmp.lt.s32.totalorder %v85, %v114
    %vm121 = vcmp.lt.s32.totalorder %v86, %v114
    %vm122 = vcmp.lt.s32.totalorder %v87, %v114
    %vm123 = vcmp.lt.s32.totalorder %v88, %v114
    %vm124 = vcmp.lt.s32.totalorder %v89, %v114
    %vm125 = vcmp.lt.s32.totalorder %v90, %v114
    %vm126 = vcmp.lt.s32.totalorder %v91, %v114
    %vm127 = vcmp.lt.s32.totalorder %v92, %v114
    %vm128 = vcmp.lt.s32.totalorder %v93, %v114
    %vm129 = vcmp.lt.s32.totalorder %v94, %v114
    %vm130 = vcmp.lt.s32.totalorder %v95, %v114
    %vm131 = vmand %vm97, %vm115
    %vm132 = vmand %vm98, %vm116
    %vm133 = vmand %vm99, %vm117
    %vm134 = vmand %vm100, %vm118
    %vm135 = vmand %vm101, %vm119
    %vm136 = vmand %vm102, %vm120
    %vm137 = vmand %vm103, %vm121
    %vm138 = vmand %vm104, %vm122
    %vm139 = vmand %vm105, %vm123
    %vm140 = vmand %vm106, %vm124
    %vm141 = vmand %vm107, %vm125
    %vm142 = vmand %vm108, %vm126
    %vm143 = vmand %vm109, %vm127
    %vm144 = vmand %vm110, %vm128
    %vm145 = vmand %vm111, %vm129
    %vm146 = vmand %vm112, %vm130
    %v147 = vsel %vm131, 1.0, 0.0
    %v148 = vsel %vm132, 1.0, 0.0
    %v149 = vsel %vm133, 1.0, 0.0
    %v150 = vsel %vm134, 1.0, 0.0
    %v151 = vsel %vm135, 1.0, 0.0
    %v152 = vsel %vm136, 1.0, 0.0
    %v153 = vsel %vm137, 1.0, 0.0
    %v154 = vsel %vm138, 1.0, 0.0
    %v155 = vsel %vm139, 1.0, 0.0
    %v156 = vsel %vm140, 1.0, 0.0
    %v157 = vsel %vm141, 1.0, 0.0
    %v158 = vsel %vm142, 1.0, 0.0
    %v159 = vsel %vm143, 1.0, 0.0
    %v160 = vsel %vm144, 1.0, 0.0
    %v161 = vsel %vm145, 1.0, 0.0
    %v162 = vsel %vm146, 1.0, 0.0
    %vm163 = vcmask 15360
    %v165 = vsel %vm163, %v147, 0
    %v168 = vsel %vm163, %v148, 0
    %v171 = vsel %vm163, %v149, 0
    %v174 = vsel %vm163, %v150, 0
    %v177 = vsel %vm163, %v151, 0
    %v180 = vsel %vm163, %v152, 0
    %v183 = vsel %vm163, %v153, 0
    %v186 = vsel %vm163, %v154, 0
    %v189 = vsel %vm163, %v155, 0
    %v192 = vsel %vm163, %v156, 0
    %v195 = vsel %vm163, %v157, 0
    %v198 = vsel %vm163, %v158, 0
    %v201 = vsel %vm163, %v159, 0
    %v204 = vsel %vm163, %v160, 0
    %v207 = vsel %vm163, %v161, 0
    %v210 = vsel %vm163, %v162, 0
    %vm212 = vcmask 1041408
    %v214 = vsel %vm212, %v80, 0
    %216 = vmatprep.subr.mxu0 0.0
    %217 = vmatpush1.msra.mxu0 0.0
    %218 = vmatprep.subr.mxu0 0.0
    %219 = vmatpush1.msra.mxu0 0.0
    %220 = vmatprep.subr.mxu0 0.0
    %221 = vmatpush1.msra.mxu0 0.0
    %222 = vmatprep.subr.mxu0 0.0
    %223 = vmatpush1.msra.mxu0 0.0
    %224 = vmatprep.subr.mxu0 0.0
    %225 = vmatpush1.msra.mxu0 0.0
    %226 = vmatprep.subr.mxu0 0.0
    %227 = vmatpush1.msra.mxu0 0.0
    %228 = vmatprep.subr.mxu0 0.0
    %229 = vmatpush1.msra.mxu0 0.0
    %230 = vmatprep.subr.mxu0 0.0
    %231 = vmatpush1.msra.mxu0 0.0
    %232 = vmatprep.subr.mxu0 0.0
    %233 = vmatpush1.msra.mxu0 0.0
    %234 = vmatprep.subr.mxu0 0.0
    %235 = vmatpush1.msra.mxu0 0.0
    %236 = vmatprep.subr.mxu0 0.0
    %237 = vmatpush1.msra.mxu0 0.0
    %238 = vmatprep.subr.mxu0 0.0
    %239 = vmatpush1.msra.mxu0 0.0
    %240 = vmatprep.subr.mxu0 0.0
    %241 = vmatpush1.msra.mxu0 0.0
    %242 = vmatprep.subr.mxu0 0.0
    %243 = vmatpush1.msra.mxu0 0.0
    %244 = vmatprep.subr.mxu0 0.0
    %245 = vmatpush1.msra.mxu0 0.0
    %246 = vmatprep.subr.mxu0 0.0
    %247 = vmatpush1.msra.mxu0 %v214
    %248 = vmatprep.subr.mxu0 0.0
    %249 = vmatpush2.msra.mxu0 0.0
    %250 = vmatprep.subr.mxu0 0.0
    %251 = vmatpush2.msra.mxu0 0.0
    %252 = vmatprep.subr.mxu0 0.0
    %253 = vmatpush2.msra.mxu0 0.0
    %254 = vmatprep.subr.mxu0 0.0
    %255 = vmatpush2.msra.mxu0 0.0
    %256 = vmatprep.subr.mxu0 0.0
    %257 = vmatpush2.msra.mxu0 0.0
    %258 = vmatprep.subr.mxu0 0.0
    %259 = vmatpush2.msra.mxu0 0.0
    %260 = vmatprep.subr.mxu0 0.0
    %261 = vmatpush2.msra.mxu0 0.0
    %262 = vmatprep.subr.mxu0 0.0
    %263 = vmatpush2.msra.mxu0 0.0
    %264 = vmatprep.subr.mxu0 0.0
    %265 = vmatpush2.msra.mxu0 0.0
    %266 = vmatprep.subr.mxu0 0.0
    %267 = vmatpush2.msra.mxu0 0.0
    %268 = vmatprep.subr.mxu0 0.0
    %269 = vmatpush2.msra.mxu0 0.0
    %270 = vmatprep.subr.mxu0 0.0
    %271 = vmatpush2.msra.mxu0 0.0
    %272 = vmatprep.subr.mxu0 0.0
    %273 = vmatpush2.msra.mxu0 0.0
    %274 = vmatprep.subr.mxu0 0.0
    %275 = vmatpush2.msra.mxu0 0.0
    %276 = vmatprep.subr.mxu0 0.0
    %277 = vmatpush2.msra.mxu0 0.0
    %278 = vmatprep.subr.mxu0 0.0
    %279 = vmatpush2.msra.mxu0 0.0
    %280 = vmatprep.mubr.f32.mxu0 0.0
    %281 = vmatmul.mubr.f32.gmra.mxu0 %v165
    %v282 = vpop.f32.mrf.mxu0
    %v283 = vadd.f32 0.0, %v282
    %v284 = vpop.f32.mrf.mxu0
    %285 = vmatprep.mubr.f32.mxu0 0.0
    %286 = vmatmul.mubr.f32.gmra.mxu0 %v168
    %v287 = vpop.f32.mrf.mxu0
    %v288 = vadd.f32 0.0, %v287
    %v289 = vpop.f32.mrf.mxu0
    %290 = vmatprep.mubr.f32.mxu0 0.0
    %291 = vmatmul.mubr.f32.gmra.mxu0 %v171
    %v292 = vpop.f32.mrf.mxu0
    %v293 = vadd.f32 0.0, %v292
    %v294 = vpop.f32.mrf.mxu0
    %295 = vmatprep.mubr.f32.mxu0 0.0
    %296 = vmatmul.mubr.f32.gmra.mxu0 %v174
    %v297 = vpop.f32.mrf.mxu0
    %v298 = vadd.f32 0.0, %v297
    %v299 = vpop.f32.mrf.mxu0
    %300 = vmatprep.mubr.f32.mxu0 0.0
    %301 = vmatmul.mubr.f32.gmra.mxu0 %v177
    %v302 = vpop.f32.mrf.mxu0
    %v303 = vadd.f32 0.0, %v302
    %v304 = vpop.f32.mrf.mxu0
    %305 = vmatprep.mubr.f32.mxu0 0.0
    %306 = vmatmul.mubr.f32.gmra.mxu0 %v180
    %v307 = vpop.f32.mrf.mxu0
    %v308 = vadd.f32 0.0, %v307
    %v309 = vpop.f32.mrf.mxu0
    %310 = vmatprep.mubr.f32.mxu0 0.0
    %311 = vmatmul.mubr.f32.gmra.mxu0 %v183
    %v312 = vpop.f32.mrf.mxu0
    %v313 = vadd.f32 0.0, %v312
    %v314 = vpop.f32.mrf.mxu0
    %315 = vmatprep.mubr.f32.mxu0 0.0
    %316 = vmatmul.mubr.f32.gmra.mxu0 %v186
    %v317 = vpop.f32.mrf.mxu0
    %v318 = vadd.f32 0.0, %v317
    %v319 = vpop.f32.mrf.mxu0
    %320 = vmatprep.mubr.f32.mxu0 0.0
    %321 = vmatmul.mubr.f32.gmra.mxu0 %v189
    %v322 = vpop.f32.mrf.mxu0
    %v323 = vadd.f32 0.0, %v322
    %v324 = vpop.f32.mrf.mxu0
    %325 = vmatprep.mubr.f32.mxu0 0.0
    %326 = vmatmul.mubr.f32.gmra.mxu0 %v192
    %v327 = vpop.f32.mrf.mxu0
    %v328 = vadd.f32 0.0, %v327
    %v329 = vpop.f32.mrf.mxu0
    %330 = vmatprep.mubr.f32.mxu0 0.0
    %331 = vmatmul.mubr.f32.gmra.mxu0 %v195
    %v332 = vpop.f32.mrf.mxu0
    %v333 = vadd.f32 0.0, %v332
    %v334 = vpop.f32.mrf.mxu0
    %335 = vmatprep.mubr.f32.mxu0 0.0
    %336 = vmatmul.mubr.f32.gmra.mxu0 %v198
    %v337 = vpop.f32.mrf.mxu0
    %v338 = vadd.f32 0.0, %v337
    %v339 = vpop.f32.mrf.mxu0
    %340 = vmatprep.mubr.f32.mxu0 0.0
    %341 = vmatmul.mubr.f32.gmra.mxu0 %v201
    %v342 = vpop.f32.mrf.mxu0
    %v343 = vadd.f32 0.0, %v342
    %v344 = vpop.f32.mrf.mxu0
    %345 = vmatprep.mubr.f32.mxu0 0.0
    %346 = vmatmul.mubr.f32.gmra.mxu0 %v204
    %v347 = vpop.f32.mrf.mxu0
    %v348 = vadd.f32 0.0, %v347
    %v349 = vpop.f32.mrf.mxu0
    %350 = vmatprep.mubr.f32.mxu0 0.0
    %351 = vmatmul.mubr.f32.gmra.mxu0 %v207
    %v352 = vpop.f32.mrf.mxu0
    %v353 = vadd.f32 0.0, %v352
    %v354 = vpop.f32.mrf.mxu0
    %355 = vmatprep.mubr.f32.mxu0 0.0
    %356 = vmatmul.mubr.f32.gmra.mxu0 %v210
    %v357 = vpop.f32.mrf.mxu0
    %v358 = vadd.f32 0.0, %v357
    %v359 = vpop.f32.mrf.mxu0
    %360 = vdwg.mxu0
    %v361 = vmul.f32 %v283, 0.015625
    %v362 = vmul.f32 %v288, 0.015625
    %v363 = vmul.f32 %v293, 0.015625
    %v364 = vmul.f32 %v298, 0.015625
    %v365 = vmul.f32 %v303, 0.015625
    %v366 = vmul.f32 %v308, 0.015625
    %v367 = vmul.f32 %v313, 0.015625
    %v368 = vmul.f32 %v318, 0.015625
    %v369 = vmul.f32 %v323, 0.015625
    %v370 = vmul.f32 %v328, 0.015625
    %v371 = vmul.f32 %v333, 0.015625
    %v372 = vmul.f32 %v338, 0.015625
    %v373 = vmul.f32 %v343, 0.015625
    %v374 = vmul.f32 %v348, 0.015625
    %v375 = vmul.f32 %v353, 0.015625
    %v376 = vmul.f32 %v358, 0.015625
    %v377 = vmul.u32 %v73, 2
    %vm378 = vcmp.ge.s32.totalorder %v71, %v377
    %vm379 = vcmp.ge.s32.totalorder %v81, %v377
    %vm380 = vcmp.ge.s32.totalorder %v82, %v377
    %vm381 = vcmp.ge.s32.totalorder %v83, %v377
    %vm382 = vcmp.ge.s32.totalorder %v84, %v377
    %vm383 = vcmp.ge.s32.totalorder %v85, %v377
    %vm384 = vcmp.ge.s32.totalorder %v86, %v377
    %vm385 = vcmp.ge.s32.totalorder %v87, %v377
    %v386 = vmul.u32 %v113, 2
    %vm387 = vcmp.lt.s32.totalorder %v71, %v386
    %vm388 = vcmp.lt.s32.totalorder %v81, %v386
    %vm389 = vcmp.lt.s32.totalorder %v82, %v386
    %vm390 = vcmp.lt.s32.totalorder %v83, %v386
    %vm391 = vcmp.lt.s32.totalorder %v84, %v386
    %vm392 = vcmp.lt.s32.totalorder %v85, %v386
    %vm393 = vcmp.lt.s32.totalorder %v86, %v386
    %vm394 = vcmp.lt.s32.totalorder %v87, %v386
    %vm395 = vmand %vm378, %vm387
    %vm396 = vmand %vm379, %vm388
    %vm397 = vmand %vm380, %vm389
    %vm398 = vmand %vm381, %vm390
    %vm399 = vmand %vm382, %vm391
    %vm400 = vmand %vm383, %vm392
    %vm401 = vmand %vm384, %vm393
    %vm402 = vmand %vm385, %vm394
    %v403 = vsel %vm395, 1.0, 0.0
    %v404 = vsel %vm396, 1.0, 0.0
    %v405 = vsel %vm397, 1.0, 0.0
    %v406 = vsel %vm398, 1.0, 0.0
    %v407 = vsel %vm399, 1.0, 0.0
    %v408 = vsel %vm400, 1.0, 0.0
    %v409 = vsel %vm401, 1.0, 0.0
    %v410 = vsel %vm402, 1.0, 0.0
    %v411 = vmul.u32 %v71, 2
    %v412 = vmul.u32 %v81, 2
    %v413 = vmul.u32 %v82, 2
    %v414 = vmul.u32 %v83, 2
    %vm415 = vcmp.ge.s32.totalorder %v73, %v411
    %vm416 = vcmp.ge.s32.totalorder %v73, %v412
    %vm417 = vcmp.ge.s32.totalorder %v73, %v413
    %vm418 = vcmp.ge.s32.totalorder %v73, %v414
    %v419 = vadd.s32 %v81, 1
    %v420 = vadd.s32 %v82, 1
    %v421 = vadd.s32 %v83, 1
    %v422 = vmul.u32 %v76, 2
    %v423 = vmul.u32 %v419, 2
    %v424 = vmul.u32 %v420, 2
    %v425 = vmul.u32 %v421, 2
    %vm426 = vcmp.lt.s32.totalorder %v73, %v422
    %vm427 = vcmp.lt.s32.totalorder %v73, %v423
    %vm428 = vcmp.lt.s32.totalorder %v73, %v424
    %vm429 = vcmp.lt.s32.totalorder %v73, %v425
    %vm430 = vmand %vm415, %vm426
    %vm431 = vmand %vm416, %vm427
    %vm432 = vmand %vm417, %vm428
    %vm433 = vmand %vm418, %vm429
    %v434 = vsel %vm430, 1.0, 0.0
    %v435 = vsel %vm431, 1.0, 0.0
    %v436 = vsel %vm432, 1.0, 0.0
    %v437 = vsel %vm433, 1.0, 0.0
    %vm438 = vcmask 261120
    %v440 = vsel %vm438, %v403, 0
    %v443 = vsel %vm438, %v404, 0
    %v446 = vsel %vm438, %v405, 0
    %v449 = vsel %vm438, %v406, 0
    %v452 = vsel %vm438, %v407, 0
    %v455 = vsel %vm438, %v408, 0
    %v458 = vsel %vm438, %v409, 0
    %v461 = vsel %vm438, %v410, 0
    %463 = vmatprep.subr.mxu0 0.0
    %464 = vmatpush1.msra.mxu0 0.0
    %465 = vmatprep.subr.mxu0 0.0
    %466 = vmatpush1.msra.mxu0 0.0
    %467 = vmatprep.subr.mxu0 0.0
    %468 = vmatpush1.msra.mxu0 0.0
    %469 = vmatprep.subr.mxu0 0.0
    %470 = vmatpush1.msra.mxu0 0.0
    %471 = vmatprep.subr.mxu0 0.0
    %472 = vmatpush1.msra.mxu0 0.0
    %473 = vmatprep.subr.mxu0 0.0
    %474 = vmatpush1.msra.mxu0 0.0
    %475 = vmatprep.subr.mxu0 0.0
    %476 = vmatpush1.msra.mxu0 0.0
    %477 = vmatprep.subr.mxu0 0.0
    %478 = vmatpush1.msra.mxu0 0.0
    %479 = vmatprep.subr.mxu0 0.0
    %480 = vmatpush1.msra.mxu0 0.0
    %481 = vmatprep.subr.mxu0 0.0
    %482 = vmatpush1.msra.mxu0 0.0
    %483 = vmatprep.subr.mxu0 0.0
    %484 = vmatpush1.msra.mxu0 0.0
    %485 = vmatprep.subr.mxu0 0.0
    %486 = vmatpush1.msra.mxu0 0.0
    %487 = vmatprep.subr.mxu0 0.0
    %488 = vmatpush1.msra.mxu0 %v437
    %489 = vmatprep.subr.mxu0 0.0
    %490 = vmatpush1.msra.mxu0 %v436
    %491 = vmatprep.subr.mxu0 0.0
    %492 = vmatpush1.msra.mxu0 %v435
    %493 = vmatprep.subr.mxu0 0.0
    %494 = vmatpush1.msra.mxu0 %v434
    %495 = vmatprep.subr.mxu0 0.0
    %496 = vmatpush2.msra.mxu0 0.0
    %497 = vmatprep.subr.mxu0 0.0
    %498 = vmatpush2.msra.mxu0 0.0
    %499 = vmatprep.subr.mxu0 0.0
    %500 = vmatpush2.msra.mxu0 0.0
    %501 = vmatprep.subr.mxu0 0.0
    %502 = vmatpush2.msra.mxu0 0.0
    %503 = vmatprep.subr.mxu0 0.0
    %504 = vmatpush2.msra.mxu0 0.0
    %505 = vmatprep.subr.mxu0 0.0
    %506 = vmatpush2.msra.mxu0 0.0
    %507 = vmatprep.subr.mxu0 0.0
    %508 = vmatpush2.msra.mxu0 0.0
    %509 = vmatprep.subr.mxu0 0.0
    %510 = vmatpush2.msra.mxu0 0.0
    %511 = vmatprep.subr.mxu0 0.0
    %512 = vmatpush2.msra.mxu0 0.0
    %513 = vmatprep.subr.mxu0 0.0
    %514 = vmatpush2.msra.mxu0 0.0
    %515 = vmatprep.subr.mxu0 0.0
    %516 = vmatpush2.msra.mxu0 0.0
    %517 = vmatprep.subr.mxu0 0.0
    %518 = vmatpush2.msra.mxu0 0.0
    %519 = vmatprep.subr.mxu0 0.0
    %520 = vmatpush2.msra.mxu0 0.0
    %521 = vmatprep.subr.mxu0 0.0
    %522 = vmatpush2.msra.mxu0 0.0
    %523 = vmatprep.subr.mxu0 0.0
    %524 = vmatpush2.msra.mxu0 0.0
    %525 = vmatprep.subr.mxu0 0.0
    %526 = vmatpush2.msra.mxu0 0.0
    %527 = vmatprep.mubr.f32.mxu0 0.0
    %528 = vmatmul.mubr.f32.gmra.mxu0 %v440
    %v529 = vpop.f32.mrf.mxu0
    %v530 = vadd.f32 0.0, %v529
    %v531 = vpop.f32.mrf.mxu0
    %532 = vmatprep.mubr.f32.mxu0 0.0
    %533 = vmatmul.mubr.f32.gmra.mxu0 %v443
    %v534 = vpop.f32.mrf.mxu0
    %v535 = vadd.f32 0.0, %v534
    %v536 = vpop.f32.mrf.mxu0
    %537 = vmatprep.mubr.f32.mxu0 0.0
    %538 = vmatmul.mubr.f32.gmra.mxu0 %v446
    %v539 = vpop.f32.mrf.mxu0
    %v540 = vadd.f32 0.0, %v539
    %v541 = vpop.f32.mrf.mxu0
    %542 = vmatprep.mubr.f32.mxu0 0.0
    %543 = vmatmul.mubr.f32.gmra.mxu0 %v449
    %v544 = vpop.f32.mrf.mxu0
    %v545 = vadd.f32 0.0, %v544
    %v546 = vpop.f32.mrf.mxu0
    %547 = vmatprep.mubr.f32.mxu0 0.0
    %548 = vmatmul.mubr.f32.gmra.mxu0 %v452
    %v549 = vpop.f32.mrf.mxu0
    %v550 = vadd.f32 0.0, %v549
    %v551 = vpop.f32.mrf.mxu0
    %552 = vmatprep.mubr.f32.mxu0 0.0
    %553 = vmatmul.mubr.f32.gmra.mxu0 %v455
    %v554 = vpop.f32.mrf.mxu0
    %v555 = vadd.f32 0.0, %v554
    %v556 = vpop.f32.mrf.mxu0
    %557 = vmatprep.mubr.f32.mxu0 0.0
    %558 = vmatmul.mubr.f32.gmra.mxu0 %v458
    %v559 = vpop.f32.mrf.mxu0
    %v560 = vadd.f32 0.0, %v559
    %v561 = vpop.f32.mrf.mxu0
    %562 = vmatprep.mubr.f32.mxu0 0.0
    %563 = vmatmul.mubr.f32.gmra.mxu0 %v461
    %v564 = vpop.f32.mrf.mxu0
    %v565 = vadd.f32 0.0, %v564
    %v566 = vpop.f32.mrf.mxu0
    %567 = vdwg.mxu0
    %v568 = vmul.f32 %v530, 0.5
    %v569 = vmul.f32 %v535, 0.5
    %v570 = vmul.f32 %v540, 0.5
    %v571 = vmul.f32 %v545, 0.5
    %v572 = vmul.f32 %v550, 0.5
    %v573 = vmul.f32 %v555, 0.5
    %v574 = vmul.f32 %v560, 0.5
    %v575 = vmul.f32 %v565, 0.5
    %v576 = vmul.u32 %v73, 4
    %vm577 = vcmp.ge.s32.totalorder %v71, %v576
    %vm578 = vcmp.ge.s32.totalorder %v81, %v576
    %vm579 = vcmp.ge.s32.totalorder %v82, %v576
    %vm580 = vcmp.ge.s32.totalorder %v83, %v576
    %vm581 = vcmp.ge.s32.totalorder %v84, %v576
    %vm582 = vcmp.ge.s32.totalorder %v85, %v576
    %vm583 = vcmp.ge.s32.totalorder %v86, %v576
    %vm584 = vcmp.ge.s32.totalorder %v87, %v576
    %vm585 = vcmp.ge.s32.totalorder %v88, %v576
    %vm586 = vcmp.ge.s32.totalorder %v89, %v576
    %vm587 = vcmp.ge.s32.totalorder %v90, %v576
    %vm588 = vcmp.ge.s32.totalorder %v91, %v576
    %vm589 = vcmp.ge.s32.totalorder %v92, %v576
    %vm590 = vcmp.ge.s32.totalorder %v93, %v576
    %vm591 = vcmp.ge.s32.totalorder %v94, %v576
    %vm592 = vcmp.ge.s32.totalorder %v95, %v576
    %v593 = vmul.u32 %v113, 4
    %vm594 = vcmp.lt.s32.totalorder %v71, %v593
    %vm595 = vcmp.lt.s32.totalorder %v81, %v593
    %vm596 = vcmp.lt.s32.totalorder %v82, %v593
    %vm597 = vcmp.lt.s32.totalorder %v83, %v593
    %vm598 = vcmp.lt.s32.totalorder %v84, %v593
    %vm599 = vcmp.lt.s32.totalorder %v85, %v593
    %vm600 = vcmp.lt.s32.totalorder %v86, %v593
    %vm601 = vcmp.lt.s32.totalorder %v87, %v593
    %vm602 = vcmp.lt.s32.totalorder %v88, %v593
    %vm603 = vcmp.lt.s32.totalorder %v89, %v593
    %vm604 = vcmp.lt.s32.totalorder %v90, %v593
    %vm605 = vcmp.lt.s32.totalorder %v91, %v593
    %vm606 = vcmp.lt.s32.totalorder %v92, %v593
    %vm607 = vcmp.lt.s32.totalorder %v93, %v593
    %vm608 = vcmp.lt.s32.totalorder %v94, %v593
    %vm609 = vcmp.lt.s32.totalorder %v95, %v593
    %vm610 = vmand %vm577, %vm594
    %vm611 = vmand %vm578, %vm595
    %vm612 = vmand %vm579, %vm596
    %vm613 = vmand %vm580, %vm597
    %vm614 = vmand %vm581, %vm598
    %vm615 = vmand %vm582, %vm599
    %vm616 = vmand %vm583, %vm600
    %vm617 = vmand %vm584, %vm601
    %vm618 = vmand %vm585, %vm602
    %vm619 = vmand %vm586, %vm603
    %vm620 = vmand %vm587, %vm604
    %vm621 = vmand %vm588, %vm605
    %vm622 = vmand %vm589, %vm606
    %vm623 = vmand %vm590, %vm607
    %vm624 = vmand %vm591, %vm608
    %vm625 = vmand %vm592, %vm609
    %v626 = vsel %vm610, 1.0, 0.0
    %v627 = vsel %vm611, 1.0, 0.0
    %v628 = vsel %vm612, 1.0, 0.0
    %v629 = vsel %vm613, 1.0, 0.0
    %v630 = vsel %vm614, 1.0, 0.0
    %v631 = vsel %vm615, 1.0, 0.0
    %v632 = vsel %vm616, 1.0, 0.0
    %v633 = vsel %vm617, 1.0, 0.0
    %v634 = vsel %vm618, 1.0, 0.0
    %v635 = vsel %vm619, 1.0, 0.0
    %v636 = vsel %vm620, 1.0, 0.0
    %v637 = vsel %vm621, 1.0, 0.0
    %v638 = vsel %vm622, 1.0, 0.0
    %v639 = vsel %vm623, 1.0, 0.0
    %v640 = vsel %vm624, 1.0, 0.0
    %v641 = vsel %vm625, 1.0, 0.0
    %v642 = vmul.u32 %v71, 4
    %v643 = vmul.u32 %v81, 4
    %v644 = vmul.u32 %v82, 4
    %v645 = vmul.u32 %v83, 4
    %vm646 = vcmp.ge.s32.totalorder %v73, %v642
    %vm647 = vcmp.ge.s32.totalorder %v73, %v643
    %vm648 = vcmp.ge.s32.totalorder %v73, %v644
    %vm649 = vcmp.ge.s32.totalorder %v73, %v645
    %v650 = vmul.u32 %v76, 4
    %v651 = vmul.u32 %v419, 4
    %v652 = vmul.u32 %v420, 4
    %v653 = vmul.u32 %v421, 4
    %vm654 = vcmp.lt.s32.totalorder %v73, %v650
    %vm655 = vcmp.lt.s32.totalorder %v73, %v651
    %vm656 = vcmp.lt.s32.totalorder %v73, %v652
    %vm657 = vcmp.lt.s32.totalorder %v73, %v653
    %vm658 = vmand %vm646, %vm654
    %vm659 = vmand %vm647, %vm655
    %vm660 = vmand %vm648, %vm656
    %vm661 = vmand %vm649, %vm657
    %v662 = vsel %vm658, 1.0, 0.0
    %v663 = vsel %vm659, 1.0, 0.0
    %v664 = vsel %vm660, 1.0, 0.0
    %v665 = vsel %vm661, 1.0, 0.0
    %v667 = vsel %vm438, %v626, 0
    %v670 = vsel %vm438, %v627, 0
    %v673 = vsel %vm438, %v628, 0
    %v676 = vsel %vm438, %v629, 0
    %v679 = vsel %vm438, %v630, 0
    %v682 = vsel %vm438, %v631, 0
    %v685 = vsel %vm438, %v632, 0
    %v688 = vsel %vm438, %v633, 0
    %v691 = vsel %vm438, %v634, 0
    %v694 = vsel %vm438, %v635, 0
    %v697 = vsel %vm438, %v636, 0
    %v700 = vsel %vm438, %v637, 0
    %v703 = vsel %vm438, %v638, 0
    %v706 = vsel %vm438, %v639, 0
    %v709 = vsel %vm438, %v640, 0
    %v712 = vsel %vm438, %v641, 0
    %714 = vmatprep.subr.mxu0 0.0
    %715 = vmatpush1.msra.mxu0 0.0
    %716 = vmatprep.subr.mxu0 0.0
    %717 = vmatpush1.msra.mxu0 0.0
    %718 = vmatprep.subr.mxu0 0.0
    %719 = vmatpush1.msra.mxu0 0.0
    %720 = vmatprep.subr.mxu0 0.0
    %721 = vmatpush1.msra.mxu0 0.0
    %722 = vmatprep.subr.mxu0 0.0
    %723 = vmatpush1.msra.mxu0 0.0
    %724 = vmatprep.subr.mxu0 0.0
    %725 = vmatpush1.msra.mxu0 0.0
    %726 = vmatprep.subr.mxu0 0.0
    %727 = vmatpush1.msra.mxu0 0.0
    %728 = vmatprep.subr.mxu0 0.0
    %729 = vmatpush1.msra.mxu0 0.0
    %730 = vmatprep.subr.mxu0 0.0
    %731 = vmatpush1.msra.mxu0 0.0
    %732 = vmatprep.subr.mxu0 0.0
    %733 = vmatpush1.msra.mxu0 0.0
    %734 = vmatprep.subr.mxu0 0.0
    %735 = vmatpush1.msra.mxu0 0.0
    %736 = vmatprep.subr.mxu0 0.0
    %737 = vmatpush1.msra.mxu0 0.0
    %738 = vmatprep.subr.mxu0 0.0
    %739 = vmatpush1.msra.mxu0 %v665
    %740 = vmatprep.subr.mxu0 0.0
    %741 = vmatpush1.msra.mxu0 %v664
    %742 = vmatprep.subr.mxu0 0.0
    %743 = vmatpush1.msra.mxu0 %v663
    %744 = vmatprep.subr.mxu0 0.0
    %745 = vmatpush1.msra.mxu0 %v662
    %746 = vmatprep.subr.mxu0 0.0
    %747 = vmatpush2.msra.mxu0 0.0
    %748 = vmatprep.subr.mxu0 0.0
    %749 = vmatpush2.msra.mxu0 0.0
    %750 = vmatprep.subr.mxu0 0.0
    %751 = vmatpush2.msra.mxu0 0.0
    %752 = vmatprep.subr.mxu0 0.0
    %753 = vmatpush2.msra.mxu0 0.0
    %754 = vmatprep.subr.mxu0 0.0
    %755 = vmatpush2.msra.mxu0 0.0
    %756 = vmatprep.subr.mxu0 0.0
    %757 = vmatpush2.msra.mxu0 0.0
    %758 = vmatprep.subr.mxu0 0.0
    %759 = vmatpush2.msra.mxu0 0.0
    %760 = vmatprep.subr.mxu0 0.0
    %761 = vmatpush2.msra.mxu0 0.0
    %762 = vmatprep.subr.mxu0 0.0
    %763 = vmatpush2.msra.mxu0 0.0
    %764 = vmatprep.subr.mxu0 0.0
    %765 = vmatpush2.msra.mxu0 0.0
    %766 = vmatprep.subr.mxu0 0.0
    %767 = vmatpush2.msra.mxu0 0.0
    %768 = vmatprep.subr.mxu0 0.0
    %769 = vmatpush2.msra.mxu0 0.0
    %770 = vmatprep.subr.mxu0 0.0
    %771 = vmatpush2.msra.mxu0 0.0
    %772 = vmatprep.subr.mxu0 0.0
    %773 = vmatpush2.msra.mxu0 0.0
    %774 = vmatprep.subr.mxu0 0.0
    %775 = vmatpush2.msra.mxu0 0.0
    %776 = vmatprep.subr.mxu0 0.0
    %777 = vmatpush2.msra.mxu0 0.0
    %778 = vmatprep.mubr.f32.mxu0 0.0
    %779 = vmatmul.mubr.f32.gmra.mxu0 %v667
    %v780 = vpop.f32.mrf.mxu0
    %v781 = vadd.f32 0.0, %v780
    %v782 = vpop.f32.mrf.mxu0
    %783 = vmatprep.mubr.f32.mxu0 0.0
    %784 = vmatmul.mubr.f32.gmra.mxu0 %v670
    %v785 = vpop.f32.mrf.mxu0
    %v786 = vadd.f32 0.0, %v785
    %v787 = vpop.f32.mrf.mxu0
    %788 = vmatprep.mubr.f32.mxu0 0.0
    %789 = vmatmul.mubr.f32.gmra.mxu0 %v673
    %v790 = vpop.f32.mrf.mxu0
    %v791 = vadd.f32 0.0, %v790
    %v792 = vpop.f32.mrf.mxu0
    %793 = vmatprep.mubr.f32.mxu0 0.0
    %794 = vmatmul.mubr.f32.gmra.mxu0 %v676
    %v795 = vpop.f32.mrf.mxu0
    %v796 = vadd.f32 0.0, %v795
    %v797 = vpop.f32.mrf.mxu0
    %798 = vmatprep.mubr.f32.mxu0 0.0
    %799 = vmatmul.mubr.f32.gmra.mxu0 %v679
    %v800 = vpop.f32.mrf.mxu0
    %v801 = vadd.f32 0.0, %v800
    %v802 = vpop.f32.mrf.mxu0
    %803 = vmatprep.mubr.f32.mxu0 0.0
    %804 = vmatmul.mubr.f32.gmra.mxu0 %v682
    %v805 = vpop.f32.mrf.mxu0
    %v806 = vadd.f32 0.0, %v805
    %v807 = vpop.f32.mrf.mxu0
    %808 = vmatprep.mubr.f32.mxu0 0.0
    %809 = vmatmul.mubr.f32.gmra.mxu0 %v685
    %v810 = vpop.f32.mrf.mxu0
    %v811 = vadd.f32 0.0, %v810
    %v812 = vpop.f32.mrf.mxu0
    %813 = vmatprep.mubr.f32.mxu0 0.0
    %814 = vmatmul.mubr.f32.gmra.mxu0 %v688
    %v815 = vpop.f32.mrf.mxu0
    %v816 = vadd.f32 0.0, %v815
    %v817 = vpop.f32.mrf.mxu0
    %818 = vmatprep.mubr.f32.mxu0 0.0
    %819 = vmatmul.mubr.f32.gmra.mxu0 %v691
    %v820 = vpop.f32.mrf.mxu0
    %v821 = vadd.f32 0.0, %v820
    %v822 = vpop.f32.mrf.mxu0
    %823 = vmatprep.mubr.f32.mxu0 0.0
    %824 = vmatmul.mubr.f32.gmra.mxu0 %v694
    %v825 = vpop.f32.mrf.mxu0
    %v826 = vadd.f32 0.0, %v825
    %v827 = vpop.f32.mrf.mxu0
    %828 = vmatprep.mubr.f32.mxu0 0.0
    %829 = vmatmul.mubr.f32.gmra.mxu0 %v697
    %v830 = vpop.f32.mrf.mxu0
    %v831 = vadd.f32 0.0, %v830
    %v832 = vpop.f32.mrf.mxu0
    %833 = vmatprep.mubr.f32.mxu0 0.0
    %834 = vmatmul.mubr.f32.gmra.mxu0 %v700
    %v835 = vpop.f32.mrf.mxu0
    %v836 = vadd.f32 0.0, %v835
    %v837 = vpop.f32.mrf.mxu0
    %838 = vmatprep.mubr.f32.mxu0 0.0
    %839 = vmatmul.mubr.f32.gmra.mxu0 %v703
    %v840 = vpop.f32.mrf.mxu0
    %v841 = vadd.f32 0.0, %v840
    %v842 = vpop.f32.mrf.mxu0
    %843 = vmatprep.mubr.f32.mxu0 0.0
    %844 = vmatmul.mubr.f32.gmra.mxu0 %v706
    %v845 = vpop.f32.mrf.mxu0
    %v846 = vadd.f32 0.0, %v845
    %v847 = vpop.f32.mrf.mxu0
    %848 = vmatprep.mubr.f32.mxu0 0.0
    %849 = vmatmul.mubr.f32.gmra.mxu0 %v709
    %v850 = vpop.f32.mrf.mxu0
    %v851 = vadd.f32 0.0, %v850
    %v852 = vpop.f32.mrf.mxu0
    %853 = vmatprep.mubr.f32.mxu0 0.0
    %854 = vmatmul.mubr.f32.gmra.mxu0 %v712
    %v855 = vpop.f32.mrf.mxu0
    %v856 = vadd.f32 0.0, %v855
    %v857 = vpop.f32.mrf.mxu0
    %858 = vdwg.mxu0
    %v859 = vmul.f32 %v781, 0.25
    %v860 = vmul.f32 %v786, 0.25
    %v861 = vmul.f32 %v791, 0.25
    %v862 = vmul.f32 %v796, 0.25
    %v863 = vmul.f32 %v801, 0.25
    %v864 = vmul.f32 %v806, 0.25
    %v865 = vmul.f32 %v811, 0.25
    %v866 = vmul.f32 %v816, 0.25
    %v867 = vmul.f32 %v821, 0.25
    %v868 = vmul.f32 %v826, 0.25
    %v869 = vmul.f32 %v831, 0.25
    %v870 = vmul.f32 %v836, 0.25
    %v871 = vmul.f32 %v841, 0.25
    %v872 = vmul.f32 %v846, 0.25
    %v873 = vmul.f32 %v851, 0.25
    %v874 = vmul.f32 %v856, 0.25
    %v875 = vld [vmem:[%s0] sm:$0xff]
    %v876 = vld [vmem:[%s0 + $0x8] sm:$0xff]
    %v877 = vld [vmem:[%s0 + $0x10] sm:$0xff]
    %v878 = vld [vmem:[%s0 + $0x18] sm:$0xff]
    %v879 = vld [vmem:[%s0 + $0x20] sm:$0xff]
    %v880 = vld [vmem:[%s0 + $0x28] sm:$0xff]
    %v881 = vld [vmem:[%s0 + $0x30] sm:$0xff]
    %v882 = vld [vmem:[%s0 + $0x38] sm:$0xff]
    %vm883 = vcmp.eq.s32.totalorder %v73, %v71
    %vm884 = vcmp.eq.s32.totalorder %v73, %v81
    %vm885 = vcmp.eq.s32.totalorder %v73, %v82
    %vm886 = vcmp.eq.s32.totalorder %v73, %v83
    %vm887 = vcmp.eq.s32.totalorder %v73, %v84
    %vm888 = vcmp.eq.s32.totalorder %v73, %v85
    %vm889 = vcmp.eq.s32.totalorder %v73, %v86
    %vm890 = vcmp.eq.s32.totalorder %v73, %v87
    %v891 = vsel %vm883, 1.0, 0.0
    %v892 = vsel %vm884, 1.0, 0.0
    %v893 = vsel %vm885, 1.0, 0.0
    %v894 = vsel %vm886, 1.0, 0.0
    %v895 = vsel %vm887, 1.0, 0.0
    %v896 = vsel %vm888, 1.0, 0.0
    %v897 = vsel %vm889, 1.0, 0.0
    %v898 = vsel %vm890, 1.0, 0.0
    %s899 = scalar_lea.vmem %s0, 64
    %v900 = vld [vmem:[%s899] sm:$0xff]
    %v901 = vld [vmem:[%s899 + $0x8] sm:$0xff]
    %v902 = vld [vmem:[%s899 + $0x10] sm:$0xff]
    %v903 = vld [vmem:[%s899 + $0x18] sm:$0xff]
    %v904 = vld [vmem:[%s899 + $0x20] sm:$0xff]
    %v905 = vld [vmem:[%s899 + $0x28] sm:$0xff]
    %v906 = vld [vmem:[%s899 + $0x30] sm:$0xff]
    %v907 = vld [vmem:[%s899 + $0x38] sm:$0xff]
    %v908 = vadd.s32 %v81, 64
    %v909 = vadd.s32 %v82, 64
    %v910 = vadd.s32 %v83, 64
    %v911 = vadd.s32 %v84, 64
    %v912 = vadd.s32 %v85, 64
    %v913 = vadd.s32 %v86, 64
    %v914 = vadd.s32 %v87, 64
    %vm915 = vcmp.eq.s32.totalorder %v73, %v88
    %vm916 = vcmp.eq.s32.totalorder %v73, %v908
    %vm917 = vcmp.eq.s32.totalorder %v73, %v909
    %vm918 = vcmp.eq.s32.totalorder %v73, %v910
    %vm919 = vcmp.eq.s32.totalorder %v73, %v911
    %vm920 = vcmp.eq.s32.totalorder %v73, %v912
    %vm921 = vcmp.eq.s32.totalorder %v73, %v913
    %vm922 = vcmp.eq.s32.totalorder %v73, %v914
    %v923 = vsel %vm915, 1.0, 0.0
    %v924 = vsel %vm916, 1.0, 0.0
    %v925 = vsel %vm917, 1.0, 0.0
    %v926 = vsel %vm918, 1.0, 0.0
    %v927 = vsel %vm919, 1.0, 0.0
    %v928 = vsel %vm920, 1.0, 0.0
    %v929 = vsel %vm921, 1.0, 0.0
    %v930 = vsel %vm922, 1.0, 0.0
    %vm931 = vcmask 523264
    %v933 = vsel %vm931, %v900, 0
    %v936 = vsel %vm931, %v901, 0
    %v939 = vsel %vm931, %v902, 0
    %v942 = vsel %vm931, %v903, 0
    %v945 = vsel %vm931, %v904, 0
    %v948 = vsel %vm931, %v905, 0
    %v951 = vsel %vm931, %v906, 0
    %v954 = vsel %vm931, %v907, 0
    %956 = vmatprep.subr.mxu0 0.0
    %957 = vmatpush1.msra.mxu0 0.0
    %958 = vmatprep.subr.mxu0 0.0
    %959 = vmatpush1.msra.mxu0 0.0
    %960 = vmatprep.subr.mxu0 0.0
    %961 = vmatpush1.msra.mxu0 0.0
    %962 = vmatprep.subr.mxu0 0.0
    %963 = vmatpush1.msra.mxu0 0.0
    %964 = vmatprep.subr.mxu0 0.0
    %965 = vmatpush1.msra.mxu0 0.0
    %966 = vmatprep.subr.mxu0 0.0
    %967 = vmatpush1.msra.mxu0 0.0
    %968 = vmatprep.subr.mxu0 0.0
    %969 = vmatpush1.msra.mxu0 0.0
    %970 = vmatprep.subr.mxu0 0.0
    %971 = vmatpush1.msra.mxu0 0.0
    %972 = vmatprep.subr.mxu0 0.0
    %973 = vmatpush1.msra.mxu0 %v930
    %974 = vmatprep.subr.mxu0 0.0
    %975 = vmatpush1.msra.mxu0 %v929
    %976 = vmatprep.subr.mxu0 0.0
    %977 = vmatpush1.msra.mxu0 %v928
    %978 = vmatprep.subr.mxu0 0.0
    %979 = vmatpush1.msra.mxu0 %v927
    %980 = vmatprep.subr.mxu0 0.0
    %981 = vmatpush1.msra.mxu0 %v926
    %982 = vmatprep.subr.mxu0 0.0
    %983 = vmatpush1.msra.mxu0 %v925
    %984 = vmatprep.subr.mxu0 0.0
    %985 = vmatpush1.msra.mxu0 %v924
    %986 = vmatprep.subr.mxu0 0.0
    %987 = vmatpush1.msra.mxu0 %v923
    %988 = vmatprep.subr.mxu0 0.0
    %989 = vmatpush2.msra.mxu0 0.0
    %990 = vmatprep.subr.mxu0 0.0
    %991 = vmatpush2.msra.mxu0 0.0
    %992 = vmatprep.subr.mxu0 0.0
    %993 = vmatpush2.msra.mxu0 0.0
    %994 = vmatprep.subr.mxu0 0.0
    %995 = vmatpush2.msra.mxu0 0.0
    %996 = vmatprep.subr.mxu0 0.0
    %997 = vmatpush2.msra.mxu0 0.0
    %998 = vmatprep.subr.mxu0 0.0
    %999 = vmatpush2.msra.mxu0 0.0
    %1000 = vmatprep.subr.mxu0 0.0
    %1001 = vmatpush2.msra.mxu0 0.0
    %1002 = vmatprep.subr.mxu0 0.0
    %1003 = vmatpush2.msra.mxu0 0.0
    %1004 = vmatprep.subr.mxu0 0.0
    %1005 = vmatpush2.msra.mxu0 0.0
    %1006 = vmatprep.subr.mxu0 0.0
    %1007 = vmatpush2.msra.mxu0 0.0
    %1008 = vmatprep.subr.mxu0 0.0
    %1009 = vmatpush2.msra.mxu0 0.0
    %1010 = vmatprep.subr.mxu0 0.0
    %1011 = vmatpush2.msra.mxu0 0.0
    %1012 = vmatprep.subr.mxu0 0.0
    %1013 = vmatpush2.msra.mxu0 0.0
    %1014 = vmatprep.subr.mxu0 0.0
    %1015 = vmatpush2.msra.mxu0 0.0
    %1016 = vmatprep.subr.mxu0 0.0
    %1017 = vmatpush2.msra.mxu0 0.0
    %1018 = vmatprep.subr.mxu0 0.0
    %1019 = vmatpush2.msra.mxu0 0.0
    %1020 = vmatprep.mubr.f32.mxu0 0.0
    %1021 = vmatmul.mubr.f32.gmra.mxu0 %v933
    %v1022 = vpop.f32.mrf.mxu0
    %v1023 = vadd.f32 0.0, %v1022
    %v1024 = vpop.f32.mrf.mxu0
    %1025 = vmatprep.mubr.f32.mxu0 0.0
    %1026 = vmatmul.mubr.f32.gmra.mxu0 %v936
    %v1027 = vpop.f32.mrf.mxu0
    %v1028 = vadd.f32 0.0, %v1027
    %v1029 = vpop.f32.mrf.mxu0
    %1030 = vmatprep.mubr.f32.mxu0 0.0
    %1031 = vmatmul.mubr.f32.gmra.mxu0 %v939
    %v1032 = vpop.f32.mrf.mxu0
    %v1033 = vadd.f32 0.0, %v1032
    %v1034 = vpop.f32.mrf.mxu0
    %1035 = vmatprep.mubr.f32.mxu0 0.0
    %1036 = vmatmul.mubr.f32.gmra.mxu0 %v942
    %v1037 = vpop.f32.mrf.mxu0
    %v1038 = vadd.f32 0.0, %v1037
    %v1039 = vpop.f32.mrf.mxu0
    %1040 = vmatprep.mubr.f32.mxu0 0.0
    %1041 = vmatmul.mubr.f32.gmra.mxu0 %v945
    %v1042 = vpop.f32.mrf.mxu0
    %v1043 = vadd.f32 0.0, %v1042
    %v1044 = vpop.f32.mrf.mxu0
    %1045 = vmatprep.mubr.f32.mxu0 0.0
    %1046 = vmatmul.mubr.f32.gmra.mxu0 %v948
    %v1047 = vpop.f32.mrf.mxu0
    %v1048 = vadd.f32 0.0, %v1047
    %v1049 = vpop.f32.mrf.mxu0
    %1050 = vmatprep.mubr.f32.mxu0 0.0
    %1051 = vmatmul.mubr.f32.gmra.mxu0 %v951
    %v1052 = vpop.f32.mrf.mxu0
    %v1053 = vadd.f32 0.0, %v1052
    %v1054 = vpop.f32.mrf.mxu0
    %1055 = vmatprep.mubr.f32.mxu0 0.0
    %1056 = vmatmul.mubr.f32.gmra.mxu0 %v954
    %v1057 = vpop.f32.mrf.mxu0
    %v1058 = vadd.f32 0.0, %v1057
    %v1059 = vpop.f32.mrf.mxu0
    %1060 = vdwg.mxu0
    %v1062 = vsel %vm931, %v875, 0
    %v1065 = vsel %vm931, %v876, 0
    %v1068 = vsel %vm931, %v877, 0
    %v1071 = vsel %vm931, %v878, 0
    %v1074 = vsel %vm931, %v879, 0
    %v1077 = vsel %vm931, %v880, 0
    %v1080 = vsel %vm931, %v881, 0
    %v1083 = vsel %vm931, %v882, 0
    %1085 = vmatprep.subr.mxu0 0.0
    %1086 = vmatpush1.msra.mxu0 0.0
    %1087 = vmatprep.subr.mxu0 0.0
    %1088 = vmatpush1.msra.mxu0 0.0
    %1089 = vmatprep.subr.mxu0 0.0
    %1090 = vmatpush1.msra.mxu0 0.0
    %1091 = vmatprep.subr.mxu0 0.0
    %1092 = vmatpush1.msra.mxu0 0.0
    %1093 = vmatprep.subr.mxu0 0.0
    %1094 = vmatpush1.msra.mxu0 0.0
    %1095 = vmatprep.subr.mxu0 0.0
    %1096 = vmatpush1.msra.mxu0 0.0
    %1097 = vmatprep.subr.mxu0 0.0
    %1098 = vmatpush1.msra.mxu0 0.0
    %1099 = vmatprep.subr.mxu0 0.0
    %1100 = vmatpush1.msra.mxu0 0.0
    %1101 = vmatprep.subr.mxu0 0.0
    %1102 = vmatpush1.msra.mxu0 %v898
    %1103 = vmatprep.subr.mxu0 0.0
    %1104 = vmatpush1.msra.mxu0 %v897
    %1105 = vmatprep.subr.mxu0 0.0
    %1106 = vmatpush1.msra.mxu0 %v896
    %1107 = vmatprep.subr.mxu0 0.0
    %1108 = vmatpush1.msra.mxu0 %v895
    %1109 = vmatprep.subr.mxu0 0.0
    %1110 = vmatpush1.msra.mxu0 %v894
    %1111 = vmatprep.subr.mxu0 0.0
    %1112 = vmatpush1.msra.mxu0 %v893
    %1113 = vmatprep.subr.mxu0 0.0
    %1114 = vmatpush1.msra.mxu0 %v892
    %1115 = vmatprep.subr.mxu0 0.0
    %1116 = vmatpush1.msra.mxu0 %v891
    %1117 = vmatprep.subr.mxu0 0.0
    %1118 = vmatpush2.msra.mxu0 0.0
    %1119 = vmatprep.subr.mxu0 0.0
    %1120 = vmatpush2.msra.mxu0 0.0
    %1121 = vmatprep.subr.mxu0 0.0
    %1122 = vmatpush2.msra.mxu0 0.0
    %1123 = vmatprep.subr.mxu0 0.0
    %1124 = vmatpush2.msra.mxu0 0.0
    %1125 = vmatprep.subr.mxu0 0.0
    %1126 = vmatpush2.msra.mxu0 0.0
    %1127 = vmatprep.subr.mxu0 0.0
    %1128 = vmatpush2.msra.mxu0 0.0
    %1129 = vmatprep.subr.mxu0 0.0
    %1130 = vmatpush2.msra.mxu0 0.0
    %1131 = vmatprep.subr.mxu0 0.0
    %1132 = vmatpush2.msra.mxu0 0.0
    %1133 = vmatprep.subr.mxu0 0.0
    %1134 = vmatpush2.msra.mxu0 0.0
    %1135 = vmatprep.subr.mxu0 0.0
    %1136 = vmatpush2.msra.mxu0 0.0
    %1137 = vmatprep.subr.mxu0 0.0
    %1138 = vmatpush2.msra.mxu0 0.0
    %1139 = vmatprep.subr.mxu0 0.0
    %1140 = vmatpush2.msra.mxu0 0.0
    %1141 = vmatprep.subr.mxu0 0.0
    %1142 = vmatpush2.msra.mxu0 0.0
    %1143 = vmatprep.subr.mxu0 0.0
    %1144 = vmatpush2.msra.mxu0 0.0
    %1145 = vmatprep.subr.mxu0 0.0
    %1146 = vmatpush2.msra.mxu0 0.0
    %1147 = vmatprep.subr.mxu0 0.0
    %1148 = vmatpush2.msra.mxu0 0.0
    %1149 = vmatprep.mubr.f32.mxu0 0.0
    %1150 = vmatmul.mubr.f32.gmra.mxu0 %v1062
    %v1151 = vpop.f32.mrf.mxu0
    %v1152 = vadd.f32 %v1023, %v1151
    %v1153 = vpop.f32.mrf.mxu0
    %1154 = vmatprep.mubr.f32.mxu0 0.0
    %1155 = vmatmul.mubr.f32.gmra.mxu0 %v1065
    %v1156 = vpop.f32.mrf.mxu0
    %v1157 = vadd.f32 %v1028, %v1156
    %v1158 = vpop.f32.mrf.mxu0
    %1159 = vmatprep.mubr.f32.mxu0 0.0
    %1160 = vmatmul.mubr.f32.gmra.mxu0 %v1068
    %v1161 = vpop.f32.mrf.mxu0
    %v1162 = vadd.f32 %v1033, %v1161
    %v1163 = vpop.f32.mrf.mxu0
    %1164 = vmatprep.mubr.f32.mxu0 0.0
    %1165 = vmatmul.mubr.f32.gmra.mxu0 %v1071
    %v1166 = vpop.f32.mrf.mxu0
    %v1167 = vadd.f32 %v1038, %v1166
    %v1168 = vpop.f32.mrf.mxu0
    %1169 = vmatprep.mubr.f32.mxu0 0.0
    %1170 = vmatmul.mubr.f32.gmra.mxu0 %v1074
    %v1171 = vpop.f32.mrf.mxu0
    %v1172 = vadd.f32 %v1043, %v1171
    %v1173 = vpop.f32.mrf.mxu0
    %1174 = vmatprep.mubr.f32.mxu0 0.0
    %1175 = vmatmul.mubr.f32.gmra.mxu0 %v1077
    %v1176 = vpop.f32.mrf.mxu0
    %v1177 = vadd.f32 %v1048, %v1176
    %v1178 = vpop.f32.mrf.mxu0
    %1179 = vmatprep.mubr.f32.mxu0 0.0
    %1180 = vmatmul.mubr.f32.gmra.mxu0 %v1080
    %v1181 = vpop.f32.mrf.mxu0
    %v1182 = vadd.f32 %v1053, %v1181
    %v1183 = vpop.f32.mrf.mxu0
    %1184 = vmatprep.mubr.f32.mxu0 0.0
    %1185 = vmatmul.mubr.f32.gmra.mxu0 %v1083
    %v1186 = vpop.f32.mrf.mxu0
    %v1187 = vadd.f32 %v1058, %v1186
    %v1188 = vpop.f32.mrf.mxu0
    %1189 = vdwg.mxu0
    %1190 = vmatprep.subr.mxu0 0.0
    %1191 = vmatpush1.msra.mxu0 %v376
    %1192 = vmatprep.subr.mxu0 0.0
    %1193 = vmatpush1.msra.mxu0 %v375
    %1194 = vmatprep.subr.mxu0 0.0
    %1195 = vmatpush1.msra.mxu0 %v374
    %1196 = vmatprep.subr.mxu0 0.0
    %1197 = vmatpush1.msra.mxu0 %v373
    %1198 = vmatprep.subr.mxu0 0.0
    %1199 = vmatpush1.msra.mxu0 %v372
    %1200 = vmatprep.subr.mxu0 0.0
    %1201 = vmatpush1.msra.mxu0 %v371
    %1202 = vmatprep.subr.mxu0 0.0
    %1203 = vmatpush1.msra.mxu0 %v370
    %1204 = vmatprep.subr.mxu0 0.0
    %1205 = vmatpush1.msra.mxu0 %v369
    %1206 = vmatprep.subr.mxu0 0.0
    %1207 = vmatpush1.msra.mxu0 %v368
    %1208 = vmatprep.subr.mxu0 0.0
    %1209 = vmatpush1.msra.mxu0 %v367
    %1210 = vmatprep.subr.mxu0 0.0
    %1211 = vmatpush1.msra.mxu0 %v366
    %1212 = vmatprep.subr.mxu0 0.0
    %1213 = vmatpush1.msra.mxu0 %v365
    %1214 = vmatprep.subr.mxu0 0.0
    %1215 = vmatpush1.msra.mxu0 %v364
    %1216 = vmatprep.subr.mxu0 0.0
    %1217 = vmatpush1.msra.mxu0 %v363
    %1218 = vmatprep.subr.mxu0 0.0
    %1219 = vmatpush1.msra.mxu0 %v362
    %1220 = vmatprep.subr.mxu0 0.0
    %1221 = vmatpush1.msra.mxu0 %v361
    %1222 = vmatprep.subr.mxu0 0.0
    %1223 = vmatpush2.msra.mxu0 0.0
    %1224 = vmatprep.subr.mxu0 0.0
    %1225 = vmatpush2.msra.mxu0 0.0
    %1226 = vmatprep.subr.mxu0 0.0
    %1227 = vmatpush2.msra.mxu0 0.0
    %1228 = vmatprep.subr.mxu0 0.0
    %1229 = vmatpush2.msra.mxu0 0.0
    %1230 = vmatprep.subr.mxu0 0.0
    %1231 = vmatpush2.msra.mxu0 0.0
    %1232 = vmatprep.subr.mxu0 0.0
    %1233 = vmatpush2.msra.mxu0 0.0
    %1234 = vmatprep.subr.mxu0 0.0
    %1235 = vmatpush2.msra.mxu0 0.0
    %1236 = vmatprep.subr.mxu0 0.0
    %1237 = vmatpush2.msra.mxu0 0.0
    %1238 = vmatprep.subr.mxu0 0.0
    %1239 = vmatpush2.msra.mxu0 0.0
    %1240 = vmatprep.subr.mxu0 0.0
    %1241 = vmatpush2.msra.mxu0 0.0
    %1242 = vmatprep.subr.mxu0 0.0
    %1243 = vmatpush2.msra.mxu0 0.0
    %1244 = vmatprep.subr.mxu0 0.0
    %1245 = vmatpush2.msra.mxu0 0.0
    %1246 = vmatprep.subr.mxu0 0.0
    %1247 = vmatpush2.msra.mxu0 0.0
    %1248 = vmatprep.subr.mxu0 0.0
    %1249 = vmatpush2.msra.mxu0 0.0
    %1250 = vmatprep.subr.mxu0 0.0
    %1251 = vmatpush2.msra.mxu0 0.0
    %1252 = vmatprep.subr.mxu0 0.0
    %1253 = vmatpush2.msra.mxu0 0.0
    %1254 = vmatprep.mubr.f32.mxu0 0.0
    %1255 = vmatmul.mubr.f32.gmra.mxu0 %v1152
    %v1256 = vpop.f32.mrf.mxu0
    %v1257 = vadd.f32 0.0, %v1256
    %v1258 = vpop.f32.mrf.mxu0
    %1259 = vmatprep.mubr.f32.mxu0 0.0
    %1260 = vmatmul.mubr.f32.gmra.mxu0 %v1157
    %v1261 = vpop.f32.mrf.mxu0
    %v1262 = vadd.f32 0.0, %v1261
    %v1263 = vpop.f32.mrf.mxu0
    %1264 = vmatprep.mubr.f32.mxu0 0.0
    %1265 = vmatmul.mubr.f32.gmra.mxu0 %v1162
    %v1266 = vpop.f32.mrf.mxu0
    %v1267 = vadd.f32 0.0, %v1266
    %v1268 = vpop.f32.mrf.mxu0
    %1269 = vmatprep.mubr.f32.mxu0 0.0
    %1270 = vmatmul.mubr.f32.gmra.mxu0 %v1167
    %v1271 = vpop.f32.mrf.mxu0
    %v1272 = vadd.f32 0.0, %v1271
    %v1273 = vpop.f32.mrf.mxu0
    %1274 = vmatprep.mubr.f32.mxu0 0.0
    %1275 = vmatmul.mubr.f32.gmra.mxu0 %v1172
    %v1276 = vpop.f32.mrf.mxu0
    %v1277 = vadd.f32 0.0, %v1276
    %v1278 = vpop.f32.mrf.mxu0
    %1279 = vmatprep.mubr.f32.mxu0 0.0
    %1280 = vmatmul.mubr.f32.gmra.mxu0 %v1177
    %v1281 = vpop.f32.mrf.mxu0
    %v1282 = vadd.f32 0.0, %v1281
    %v1283 = vpop.f32.mrf.mxu0
    %1284 = vmatprep.mubr.f32.mxu0 0.0
    %1285 = vmatmul.mubr.f32.gmra.mxu0 %v1182
    %v1286 = vpop.f32.mrf.mxu0
    %v1287 = vadd.f32 0.0, %v1286
    %v1288 = vpop.f32.mrf.mxu0
    %1289 = vmatprep.mubr.f32.mxu0 0.0
    %1290 = vmatmul.mubr.f32.gmra.mxu0 %v1187
    %v1291 = vpop.f32.mrf.mxu0
    %v1292 = vadd.f32 0.0, %v1291
    %v1293 = vpop.f32.mrf.mxu0
    %1294 = vdwg.mxu0
    %v1296 = vsel %vm931, %v568, 0
    %v1299 = vsel %vm931, %v569, 0
    %v1302 = vsel %vm931, %v570, 0
    %v1305 = vsel %vm931, %v571, 0
    %v1308 = vsel %vm931, %v572, 0
    %v1311 = vsel %vm931, %v573, 0
    %v1314 = vsel %vm931, %v574, 0
    %v1317 = vsel %vm931, %v575, 0
    %1319 = vmatprep.subr.mxu0 0.0
    %1320 = vmatpush1.msra.mxu0 0.0
    %1321 = vmatprep.subr.mxu0 0.0
    %1322 = vmatpush1.msra.mxu0 0.0
    %1323 = vmatprep.subr.mxu0 0.0
    %1324 = vmatpush1.msra.mxu0 0.0
    %1325 = vmatprep.subr.mxu0 0.0
    %1326 = vmatpush1.msra.mxu0 0.0
    %1327 = vmatprep.subr.mxu0 0.0
    %1328 = vmatpush1.msra.mxu0 0.0
    %1329 = vmatprep.subr.mxu0 0.0
    %1330 = vmatpush1.msra.mxu0 0.0
    %1331 = vmatprep.subr.mxu0 0.0
    %1332 = vmatpush1.msra.mxu0 0.0
    %1333 = vmatprep.subr.mxu0 0.0
    %1334 = vmatpush1.msra.mxu0 0.0
    %1335 = vmatprep.subr.mxu0 0.0
    %1336 = vmatpush1.msra.mxu0 %v1292
    %1337 = vmatprep.subr.mxu0 0.0
    %1338 = vmatpush1.msra.mxu0 %v1287
    %1339 = vmatprep.subr.mxu0 0.0
    %1340 = vmatpush1.msra.mxu0 %v1282
    %1341 = vmatprep.subr.mxu0 0.0
    %1342 = vmatpush1.msra.mxu0 %v1277
    %1343 = vmatprep.subr.mxu0 0.0
    %1344 = vmatpush1.msra.mxu0 %v1272
    %1345 = vmatprep.subr.mxu0 0.0
    %1346 = vmatpush1.msra.mxu0 %v1267
    %1347 = vmatprep.subr.mxu0 0.0
    %1348 = vmatpush1.msra.mxu0 %v1262
    %1349 = vmatprep.subr.mxu0 0.0
    %1350 = vmatpush1.msra.mxu0 %v1257
    %1351 = vmatprep.subr.mxu0 0.0
    %1352 = vmatpush2.msra.mxu0 0.0
    %1353 = vmatprep.subr.mxu0 0.0
    %1354 = vmatpush2.msra.mxu0 0.0
    %1355 = vmatprep.subr.mxu0 0.0
    %1356 = vmatpush2.msra.mxu0 0.0
    %1357 = vmatprep.subr.mxu0 0.0
    %1358 = vmatpush2.msra.mxu0 0.0
    %1359 = vmatprep.subr.mxu0 0.0
    %1360 = vmatpush2.msra.mxu0 0.0
    %1361 = vmatprep.subr.mxu0 0.0
    %1362 = vmatpush2.msra.mxu0 0.0
    %1363 = vmatprep.subr.mxu0 0.0
    %1364 = vmatpush2.msra.mxu0 0.0
    %1365 = vmatprep.subr.mxu0 0.0
    %1366 = vmatpush2.msra.mxu0 0.0
    %1367 = vmatprep.subr.mxu0 0.0
    %1368 = vmatpush2.msra.mxu0 0.0
    %1369 = vmatprep.subr.mxu0 0.0
    %1370 = vmatpush2.msra.mxu0 0.0
    %1371 = vmatprep.subr.mxu0 0.0
    %1372 = vmatpush2.msra.mxu0 0.0
    %1373 = vmatprep.subr.mxu0 0.0
    %1374 = vmatpush2.msra.mxu0 0.0
    %1375 = vmatprep.subr.mxu0 0.0
    %1376 = vmatpush2.msra.mxu0 0.0
    %1377 = vmatprep.subr.mxu0 0.0
    %1378 = vmatpush2.msra.mxu0 0.0
    %1379 = vmatprep.subr.mxu0 0.0
    %1380 = vmatpush2.msra.mxu0 0.0
    %1381 = vmatprep.subr.mxu0 0.0
    %1382 = vmatpush2.msra.mxu0 0.0
    %1383 = vmatprep.mubr.f32.mxu0 0.0
    %1384 = vmatmul.mubr.f32.gmra.mxu0 %v1296
    %v1385 = vpop.f32.mrf.mxu0
    %v1386 = vadd.f32 0.0, %v1385
    %v1387 = vpop.f32.mrf.mxu0
    %1388 = vmatprep.mubr.f32.mxu0 0.0
    %1389 = vmatmul.mubr.f32.gmra.mxu0 %v1299
    %v1390 = vpop.f32.mrf.mxu0
    %v1391 = vadd.f32 0.0, %v1390
    %v1392 = vpop.f32.mrf.mxu0
    %1393 = vmatprep.mubr.f32.mxu0 0.0
    %1394 = vmatmul.mubr.f32.gmra.mxu0 %v1302
    %v1395 = vpop.f32.mrf.mxu0
    %v1396 = vadd.f32 0.0, %v1395
    %v1397 = vpop.f32.mrf.mxu0
    %1398 = vmatprep.mubr.f32.mxu0 0.0
    %1399 = vmatmul.mubr.f32.gmra.mxu0 %v1305
    %v1400 = vpop.f32.mrf.mxu0
    %v1401 = vadd.f32 0.0, %v1400
    %v1402 = vpop.f32.mrf.mxu0
    %1403 = vmatprep.mubr.f32.mxu0 0.0
    %1404 = vmatmul.mubr.f32.gmra.mxu0 %v1308
    %v1405 = vpop.f32.mrf.mxu0
    %v1406 = vadd.f32 0.0, %v1405
    %v1407 = vpop.f32.mrf.mxu0
    %1408 = vmatprep.mubr.f32.mxu0 0.0
    %1409 = vmatmul.mubr.f32.gmra.mxu0 %v1311
    %v1410 = vpop.f32.mrf.mxu0
    %v1411 = vadd.f32 0.0, %v1410
    %v1412 = vpop.f32.mrf.mxu0
    %1413 = vmatprep.mubr.f32.mxu0 0.0
    %1414 = vmatmul.mubr.f32.gmra.mxu0 %v1314
    %v1415 = vpop.f32.mrf.mxu0
    %v1416 = vadd.f32 0.0, %v1415
    %v1417 = vpop.f32.mrf.mxu0
    %1418 = vmatprep.mubr.f32.mxu0 0.0
    %1419 = vmatmul.mubr.f32.gmra.mxu0 %v1317
    %v1420 = vpop.f32.mrf.mxu0
    %v1421 = vadd.f32 0.0, %v1420
    %v1422 = vpop.f32.mrf.mxu0
    %1423 = vdwg.mxu0
    %v1424 = vsub.f32 %v1152, %v1386
    %v1425 = vsub.f32 %v1157, %v1391
    %v1426 = vsub.f32 %v1162, %v1396
    %v1427 = vsub.f32 %v1167, %v1401
    %v1428 = vsub.f32 %v1172, %v1406
    %v1429 = vsub.f32 %v1177, %v1411
    %v1430 = vsub.f32 %v1182, %v1416
    %v1431 = vsub.f32 %v1187, %v1421
    %v1432 = vmul.f32 %v1424, %v1424
    %v1433 = vmul.f32 %v1425, %v1425
    %v1434 = vmul.f32 %v1426, %v1426
    %v1435 = vmul.f32 %v1427, %v1427
    %v1436 = vmul.f32 %v1428, %v1428
    %v1437 = vmul.f32 %v1429, %v1429
    %v1438 = vmul.f32 %v1430, %v1430
    %v1439 = vmul.f32 %v1431, %v1431
    %1440 = vmatprep.subr.mxu0 0.0
    %1441 = vmatpush1.msra.mxu0 %v376
    %1442 = vmatprep.subr.mxu0 0.0
    %1443 = vmatpush1.msra.mxu0 %v375
    %1444 = vmatprep.subr.mxu0 0.0
    %1445 = vmatpush1.msra.mxu0 %v374
    %1446 = vmatprep.subr.mxu0 0.0
    %1447 = vmatpush1.msra.mxu0 %v373
    %1448 = vmatprep.subr.mxu0 0.0
    %1449 = vmatpush1.msra.mxu0 %v372
    %1450 = vmatprep.subr.mxu0 0.0
    %1451 = vmatpush1.msra.mxu0 %v371
    %1452 = vmatprep.subr.mxu0 0.0
    %1453 = vmatpush1.msra.mxu0 %v370
    %1454 = vmatprep.subr.mxu0 0.0
    %1455 = vmatpush1.msra.mxu0 %v369
    %1456 = vmatprep.subr.mxu0 0.0
    %1457 = vmatpush1.msra.mxu0 %v368
    %1458 = vmatprep.subr.mxu0 0.0
    %1459 = vmatpush1.msra.mxu0 %v367
    %1460 = vmatprep.subr.mxu0 0.0
    %1461 = vmatpush1.msra.mxu0 %v366
    %1462 = vmatprep.subr.mxu0 0.0
    %1463 = vmatpush1.msra.mxu0 %v365
    %1464 = vmatprep.subr.mxu0 0.0
    %1465 = vmatpush1.msra.mxu0 %v364
    %1466 = vmatprep.subr.mxu0 0.0
    %1467 = vmatpush1.msra.mxu0 %v363
    %1468 = vmatprep.subr.mxu0 0.0
    %1469 = vmatpush1.msra.mxu0 %v362
    %1470 = vmatprep.subr.mxu0 0.0
    %1471 = vmatpush1.msra.mxu0 %v361
    %1472 = vmatprep.subr.mxu0 0.0
    %1473 = vmatpush2.msra.mxu0 0.0
    %1474 = vmatprep.subr.mxu0 0.0
    %1475 = vmatpush2.msra.mxu0 0.0
    %1476 = vmatprep.subr.mxu0 0.0
    %1477 = vmatpush2.msra.mxu0 0.0
    %1478 = vmatprep.subr.mxu0 0.0
    %1479 = vmatpush2.msra.mxu0 0.0
    %1480 = vmatprep.subr.mxu0 0.0
    %1481 = vmatpush2.msra.mxu0 0.0
    %1482 = vmatprep.subr.mxu0 0.0
    %1483 = vmatpush2.msra.mxu0 0.0
    %1484 = vmatprep.subr.mxu0 0.0
    %1485 = vmatpush2.msra.mxu0 0.0
    %1486 = vmatprep.subr.mxu0 0.0
    %1487 = vmatpush2.msra.mxu0 0.0
    %1488 = vmatprep.subr.mxu0 0.0
    %1489 = vmatpush2.msra.mxu0 0.0
    %1490 = vmatprep.subr.mxu0 0.0
    %1491 = vmatpush2.msra.mxu0 0.0
    %1492 = vmatprep.subr.mxu0 0.0
    %1493 = vmatpush2.msra.mxu0 0.0
    %1494 = vmatprep.subr.mxu0 0.0
    %1495 = vmatpush2.msra.mxu0 0.0
    %1496 = vmatprep.subr.mxu0 0.0
    %1497 = vmatpush2.msra.mxu0 0.0
    %1498 = vmatprep.subr.mxu0 0.0
    %1499 = vmatpush2.msra.mxu0 0.0
    %1500 = vmatprep.subr.mxu0 0.0
    %1501 = vmatpush2.msra.mxu0 0.0
    %1502 = vmatprep.subr.mxu0 0.0
    %1503 = vmatpush2.msra.mxu0 0.0
    %1504 = vmatprep.mubr.f32.mxu0 0.0
    %1505 = vmatmul.mubr.f32.gmra.mxu0 %v1432
    %v1506 = vpop.f32.mrf.mxu0
    %v1507 = vadd.f32 0.0, %v1506
    %v1508 = vpop.f32.mrf.mxu0
    %1509 = vmatprep.mubr.f32.mxu0 0.0
    %1510 = vmatmul.mubr.f32.gmra.mxu0 %v1433
    %v1511 = vpop.f32.mrf.mxu0
    %v1512 = vadd.f32 0.0, %v1511
    %v1513 = vpop.f32.mrf.mxu0
    %1514 = vmatprep.mubr.f32.mxu0 0.0
    %1515 = vmatmul.mubr.f32.gmra.mxu0 %v1434
    %v1516 = vpop.f32.mrf.mxu0
    %v1517 = vadd.f32 0.0, %v1516
    %v1518 = vpop.f32.mrf.mxu0
    %1519 = vmatprep.mubr.f32.mxu0 0.0
    %1520 = vmatmul.mubr.f32.gmra.mxu0 %v1435
    %v1521 = vpop.f32.mrf.mxu0
    %v1522 = vadd.f32 0.0, %v1521
    %v1523 = vpop.f32.mrf.mxu0
    %1524 = vmatprep.mubr.f32.mxu0 0.0
    %1525 = vmatmul.mubr.f32.gmra.mxu0 %v1436
    %v1526 = vpop.f32.mrf.mxu0
    %v1527 = vadd.f32 0.0, %v1526
    %v1528 = vpop.f32.mrf.mxu0
    %1529 = vmatprep.mubr.f32.mxu0 0.0
    %1530 = vmatmul.mubr.f32.gmra.mxu0 %v1437
    %v1531 = vpop.f32.mrf.mxu0
    %v1532 = vadd.f32 0.0, %v1531
    %v1533 = vpop.f32.mrf.mxu0
    %1534 = vmatprep.mubr.f32.mxu0 0.0
    %1535 = vmatmul.mubr.f32.gmra.mxu0 %v1438
    %v1536 = vpop.f32.mrf.mxu0
    %v1537 = vadd.f32 0.0, %v1536
    %v1538 = vpop.f32.mrf.mxu0
    %1539 = vmatprep.mubr.f32.mxu0 0.0
    %1540 = vmatmul.mubr.f32.gmra.mxu0 %v1439
    %v1541 = vpop.f32.mrf.mxu0
    %v1542 = vadd.f32 0.0, %v1541
    %v1543 = vpop.f32.mrf.mxu0
    %1544 = vdwg.mxu0
    %1545 = vmatprep.subr.mxu0 0.0
    %1546 = vmatpush1.msra.mxu0 0.0
    %1547 = vmatprep.subr.mxu0 0.0
    %1548 = vmatpush1.msra.mxu0 0.0
    %1549 = vmatprep.subr.mxu0 0.0
    %1550 = vmatpush1.msra.mxu0 0.0
    %1551 = vmatprep.subr.mxu0 0.0
    %1552 = vmatpush1.msra.mxu0 0.0
    %1553 = vmatprep.subr.mxu0 0.0
    %1554 = vmatpush1.msra.mxu0 0.0
    %1555 = vmatprep.subr.mxu0 0.0
    %1556 = vmatpush1.msra.mxu0 0.0
    %1557 = vmatprep.subr.mxu0 0.0
    %1558 = vmatpush1.msra.mxu0 0.0
    %1559 = vmatprep.subr.mxu0 0.0
    %1560 = vmatpush1.msra.mxu0 0.0
    %1561 = vmatprep.subr.mxu0 0.0
    %1562 = vmatpush1.msra.mxu0 %v1542
    %1563 = vmatprep.subr.mxu0 0.0
    %1564 = vmatpush1.msra.mxu0 %v1537
    %1565 = vmatprep.subr.mxu0 0.0
    %1566 = vmatpush1.msra.mxu0 %v1532
    %1567 = vmatprep.subr.mxu0 0.0
    %1568 = vmatpush1.msra.mxu0 %v1527
    %1569 = vmatprep.subr.mxu0 0.0
    %1570 = vmatpush1.msra.mxu0 %v1522
    %1571 = vmatprep.subr.mxu0 0.0
    %1572 = vmatpush1.msra.mxu0 %v1517
    %1573 = vmatprep.subr.mxu0 0.0
    %1574 = vmatpush1.msra.mxu0 %v1512
    %1575 = vmatprep.subr.mxu0 0.0
    %1576 = vmatpush1.msra.mxu0 %v1507
    %1577 = vmatprep.subr.mxu0 0.0
    %1578 = vmatpush2.msra.mxu0 0.0
    %1579 = vmatprep.subr.mxu0 0.0
    %1580 = vmatpush2.msra.mxu0 0.0
    %1581 = vmatprep.subr.mxu0 0.0
    %1582 = vmatpush2.msra.mxu0 0.0
    %1583 = vmatprep.subr.mxu0 0.0
    %1584 = vmatpush2.msra.mxu0 0.0
    %1585 = vmatprep.subr.mxu0 0.0
    %1586 = vmatpush2.msra.mxu0 0.0
    %1587 = vmatprep.subr.mxu0 0.0
    %1588 = vmatpush2.msra.mxu0 0.0
    %1589 = vmatprep.subr.mxu0 0.0
    %1590 = vmatpush2.msra.mxu0 0.0
    %1591 = vmatprep.subr.mxu0 0.0
    %1592 = vmatpush2.msra.mxu0 0.0
    %1593 = vmatprep.subr.mxu0 0.0
    %1594 = vmatpush2.msra.mxu0 0.0
    %1595 = vmatprep.subr.mxu0 0.0
    %1596 = vmatpush2.msra.mxu0 0.0
    %1597 = vmatprep.subr.mxu0 0.0
    %1598 = vmatpush2.msra.mxu0 0.0
    %1599 = vmatprep.subr.mxu0 0.0
    %1600 = vmatpush2.msra.mxu0 0.0
    %1601 = vmatprep.subr.mxu0 0.0
    %1602 = vmatpush2.msra.mxu0 0.0
    %1603 = vmatprep.subr.mxu0 0.0
    %1604 = vmatpush2.msra.mxu0 0.0
    %1605 = vmatprep.subr.mxu0 0.0
    %1606 = vmatpush2.msra.mxu0 0.0
    %1607 = vmatprep.subr.mxu0 0.0
    %1608 = vmatpush2.msra.mxu0 0.0
    %1609 = vmatprep.mubr.f32.mxu0 0.0
    %1610 = vmatmul.mubr.f32.gmra.mxu0 %v1296
    %v1611 = vpop.f32.mrf.mxu0
    %v1612 = vadd.f32 1e-05, %v1611
    %v1613 = vpop.f32.mrf.mxu0
    %1614 = vmatprep.mubr.f32.mxu0 0.0
    %1615 = vmatmul.mubr.f32.gmra.mxu0 %v1299
    %v1616 = vpop.f32.mrf.mxu0
    %v1617 = vadd.f32 1e-05, %v1616
    %v1618 = vpop.f32.mrf.mxu0
    %1619 = vmatprep.mubr.f32.mxu0 0.0
    %1620 = vmatmul.mubr.f32.gmra.mxu0 %v1302
    %v1621 = vpop.f32.mrf.mxu0
    %v1622 = vadd.f32 1e-05, %v1621
    %v1623 = vpop.f32.mrf.mxu0
    %1624 = vmatprep.mubr.f32.mxu0 0.0
    %1625 = vmatmul.mubr.f32.gmra.mxu0 %v1305
    %v1626 = vpop.f32.mrf.mxu0
    %v1627 = vadd.f32 1e-05, %v1626
    %v1628 = vpop.f32.mrf.mxu0
    %1629 = vmatprep.mubr.f32.mxu0 0.0
    %1630 = vmatmul.mubr.f32.gmra.mxu0 %v1308
    %v1631 = vpop.f32.mrf.mxu0
    %v1632 = vadd.f32 1e-05, %v1631
    %v1633 = vpop.f32.mrf.mxu0
    %1634 = vmatprep.mubr.f32.mxu0 0.0
    %1635 = vmatmul.mubr.f32.gmra.mxu0 %v1311
    %v1636 = vpop.f32.mrf.mxu0
    %v1637 = vadd.f32 1e-05, %v1636
    %v1638 = vpop.f32.mrf.mxu0
    %1639 = vmatprep.mubr.f32.mxu0 0.0
    %1640 = vmatmul.mubr.f32.gmra.mxu0 %v1314
    %v1641 = vpop.f32.mrf.mxu0
    %v1642 = vadd.f32 1e-05, %v1641
    %v1643 = vpop.f32.mrf.mxu0
    %1644 = vmatprep.mubr.f32.mxu0 0.0
    %1645 = vmatmul.mubr.f32.gmra.mxu0 %v1317
    %v1646 = vpop.f32.mrf.mxu0
    %v1647 = vadd.f32 1e-05, %v1646
    %v1648 = vpop.f32.mrf.mxu0
    %1649 = vdwg.mxu0
    %v1650 = vrsqrt.pop %v1612
    %v1651 = vrsqrt.pop %v1617
    %v1652 = vrsqrt.pop %v1622
    %v1653 = vrsqrt.pop %v1627
    %v1654 = vrsqrt.pop %v1632
    %v1655 = vrsqrt.pop %v1637
    %v1656 = vrsqrt.pop %v1642
    %v1657 = vrsqrt.pop %v1647
    %v1658 = vmul.f32 %v1424, %v1650
    %v1659 = vmul.f32 %v1425, %v1651
    %v1660 = vmul.f32 %v1426, %v1652
    %v1661 = vmul.f32 %v1427, %v1653
    %v1662 = vmul.f32 %v1428, %v1654
    %v1663 = vmul.f32 %v1429, %v1655
    %v1664 = vmul.f32 %v1430, %v1656
    %v1665 = vmul.f32 %v1431, %v1657
    %1667 = vset.pattern.permute.xlu0 0
    %1668 = vperm.xlu0 %1667, %v46
    %v1669 = vpop.permute.xlu0 %1668
    %1672 = vset.pattern.permute.xlu0 0
    %1673 = vperm.xlu0 %1672, %v47
    %v1674 = vpop.permute.xlu0 %1673
    %1677 = vset.pattern.permute.xlu0 0
    %1678 = vperm.xlu0 %1677, %v48
    %v1679 = vpop.permute.xlu0 %1678
    %1682 = vset.pattern.permute.xlu0 0
    %1683 = vperm.xlu0 %1682, %v49
    %v1684 = vpop.permute.xlu0 %1683
    %1687 = vset.pattern.permute.xlu0 0
    %1688 = vperm.xlu0 %1687, %v50
    %v1689 = vpop.permute.xlu0 %1688
    %1692 = vset.pattern.permute.xlu0 0
    %1693 = vperm.xlu0 %1692, %v51
    %v1694 = vpop.permute.xlu0 %1693
    %1697 = vset.pattern.permute.xlu0 0
    %1698 = vperm.xlu0 %1697, %v52
    %v1699 = vpop.permute.xlu0 %1698
    %1702 = vset.pattern.permute.xlu0 0
    %1703 = vperm.xlu0 %1702, %v53
    %v1704 = vpop.permute.xlu0 %1703
    %v1706 = vmul.f32 %v1658, %v1669
    %v1707 = vmul.f32 %v1659, %v1674
    %v1708 = vmul.f32 %v1660, %v1679
    %v1709 = vmul.f32 %v1661, %v1684
    %v1710 = vmul.f32 %v1662, %v1689
    %v1711 = vmul.f32 %v1663, %v1694
    %v1712 = vmul.f32 %v1664, %v1699
    %v1713 = vmul.f32 %v1665, %v1704
    %1714 = vset.pattern.permute.xlu0 1
    %1715 = vperm.xlu0 %1714, %v46
    %v1716 = vpop.permute.xlu0 %1715
    %1718 = vset.pattern.permute.xlu0 1
    %1719 = vperm.xlu0 %1718, %v47
    %v1720 = vpop.permute.xlu0 %1719
    %1722 = vset.pattern.permute.xlu0 1
    %1723 = vperm.xlu0 %1722, %v48
    %v1724 = vpop.permute.xlu0 %1723
    %1726 = vset.pattern.permute.xlu0 1
    %1727 = vperm.xlu0 %1726, %v49
    %v1728 = vpop.permute.xlu0 %1727
    %1730 = vset.pattern.permute.xlu0 1
    %1731 = vperm.xlu0 %1730, %v50
    %v1732 = vpop.permute.xlu0 %1731
    %1734 = vset.pattern.permute.xlu0 1
    %1735 = vperm.xlu0 %1734, %v51
    %v1736 = vpop.permute.xlu0 %1735
    %1738 = vset.pattern.permute.xlu0 1
    %1739 = vperm.xlu0 %1738, %v52
    %v1740 = vpop.permute.xlu0 %1739
    %1742 = vset.pattern.permute.xlu0 1
    %1743 = vperm.xlu0 %1742, %v53
    %v1744 = vpop.permute.xlu0 %1743
    %v1746 = vadd.f32 %v1706, %v1716
    %v1747 = vadd.f32 %v1707, %v1720
    %v1748 = vadd.f32 %v1708, %v1724
    %v1749 = vadd.f32 %v1709, %v1728
    %v1750 = vadd.f32 %v1710, %v1732
    %v1751 = vadd.f32 %v1711, %v1736
    %v1752 = vadd.f32 %v1712, %v1740
    %v1753 = vadd.f32 %v1713, %v1744
    %v1754 = vsub.f32 0.0, %v1746
    %v1755 = vsub.f32 0.0, %v1747
    %v1756 = vsub.f32 0.0, %v1748
    %v1757 = vsub.f32 0.0, %v1749
    %v1758 = vsub.f32 0.0, %v1750
    %v1759 = vsub.f32 0.0, %v1751
    %v1760 = vsub.f32 0.0, %v1752
    %v1761 = vsub.f32 0.0, %v1753
    %v1762 = vmul.f32 %v1754, 1.442695
    %v1763 = vpow.pop %v1762
    %v1764 = vmul.f32 %v1755, 1.442695
    %v1765 = vpow.pop %v1764
    %v1766 = vmul.f32 %v1756, 1.442695
    %v1767 = vpow.pop %v1766
    %v1768 = vmul.f32 %v1757, 1.442695
    %v1769 = vpow.pop %v1768
    %v1770 = vmul.f32 %v1758, 1.442695
    %v1771 = vpow.pop %v1770
    %v1772 = vmul.f32 %v1759, 1.442695
    %v1773 = vpow.pop %v1772
    %v1774 = vmul.f32 %v1760, 1.442695
    %v1775 = vpow.pop %v1774
    %v1776 = vmul.f32 %v1761, 1.442695
    %v1777 = vpow.pop %v1776
    %v1778 = vadd.f32 %v1763, 1.0
    %v1779 = vadd.f32 %v1765, 1.0
    %v1780 = vadd.f32 %v1767, 1.0
    %v1781 = vadd.f32 %v1769, 1.0
    %v1782 = vadd.f32 %v1771, 1.0
    %v1783 = vadd.f32 %v1773, 1.0
    %v1784 = vadd.f32 %v1775, 1.0
    %v1785 = vadd.f32 %v1777, 1.0
    %v1786 = vrcp.pop %v1778
    %v1787 = vmul.f32 1.0, %v1786
    %v1788 = vrcp.pop %v1779
    %v1789 = vmul.f32 1.0, %v1788
    %v1790 = vrcp.pop %v1780
    %v1791 = vmul.f32 1.0, %v1790
    %v1792 = vrcp.pop %v1781
    %v1793 = vmul.f32 1.0, %v1792
    %v1794 = vrcp.pop %v1782
    %v1795 = vmul.f32 1.0, %v1794
    %v1796 = vrcp.pop %v1783
    %v1797 = vmul.f32 1.0, %v1796
    %v1798 = vrcp.pop %v1784
    %v1799 = vmul.f32 1.0, %v1798
    %v1800 = vrcp.pop %v1785
    %v1801 = vmul.f32 1.0, %v1800
    %v1802 = vmul.f32 %v1746, %v1787
    %v1803 = vmul.f32 %v1747, %v1789
    %v1804 = vmul.f32 %v1748, %v1791
    %v1805 = vmul.f32 %v1749, %v1793
    %v1806 = vmul.f32 %v1750, %v1795
    %v1807 = vmul.f32 %v1751, %v1797
    %v1808 = vmul.f32 %v1752, %v1799
    %v1809 = vmul.f32 %v1753, %v1801
    %v1810 = vld [vmem:[%s8] sm:$0xff]
    %v1811 = vld [vmem:[%s8 + $0x8] sm:$0xff]
    %v1812 = vld [vmem:[%s8 + $0x10] sm:$0xff]
    %v1813 = vld [vmem:[%s8 + $0x18] sm:$0xff]
    %v1814 = vld [vmem:[%s8 + $0x20] sm:$0xff]
    %v1815 = vld [vmem:[%s8 + $0x28] sm:$0xff]
    %v1816 = vld [vmem:[%s8 + $0x30] sm:$0xff]
    %v1817 = vld [vmem:[%s8 + $0x38] sm:$0xff]
    %v1818 = vld [vmem:[%s8 + $0x40] sm:$0xff]
    %v1819 = vld [vmem:[%s8 + $0x48] sm:$0xff]
    %v1820 = vld [vmem:[%s8 + $0x50] sm:$0xff]
    %v1821 = vld [vmem:[%s8 + $0x58] sm:$0xff]
    %v1822 = vld [vmem:[%s8 + $0x60] sm:$0xff]
    %v1823 = vld [vmem:[%s8 + $0x68] sm:$0xff]
    %v1824 = vld [vmem:[%s8 + $0x70] sm:$0xff]
    %v1825 = vld [vmem:[%s8 + $0x78] sm:$0xff]
    %1826 = vmatprep.subr.mxu0 0.0
    %1827 = vmatpush1.msra.mxu0 %v1825
    %1828 = vmatprep.subr.mxu0 0.0
    %1829 = vmatpush1.msra.mxu0 %v1824
    %1830 = vmatprep.subr.mxu0 0.0
    %1831 = vmatpush1.msra.mxu0 %v1823
    %1832 = vmatprep.subr.mxu0 0.0
    %1833 = vmatpush1.msra.mxu0 %v1822
    %1834 = vmatprep.subr.mxu0 0.0
    %1835 = vmatpush1.msra.mxu0 %v1821
    %1836 = vmatprep.subr.mxu0 0.0
    %1837 = vmatpush1.msra.mxu0 %v1820
    %1838 = vmatprep.subr.mxu0 0.0
    %1839 = vmatpush1.msra.mxu0 %v1819
    %1840 = vmatprep.subr.mxu0 0.0
    %1841 = vmatpush1.msra.mxu0 %v1818
    %1842 = vmatprep.subr.mxu0 0.0
    %1843 = vmatpush1.msra.mxu0 %v1817
    %1844 = vmatprep.subr.mxu0 0.0
    %1845 = vmatpush1.msra.mxu0 %v1816
    %1846 = vmatprep.subr.mxu0 0.0
    %1847 = vmatpush1.msra.mxu0 %v1815
    %1848 = vmatprep.subr.mxu0 0.0
    %1849 = vmatpush1.msra.mxu0 %v1814
    %1850 = vmatprep.subr.mxu0 0.0
    %1851 = vmatpush1.msra.mxu0 %v1813
    %1852 = vmatprep.subr.mxu0 0.0
    %1853 = vmatpush1.msra.mxu0 %v1812
    %1854 = vmatprep.subr.mxu0 0.0
    %1855 = vmatpush1.msra.mxu0 %v1811
    %1856 = vmatprep.subr.mxu0 0.0
    %1857 = vmatpush1.msra.mxu0 %v1810
    %1858 = vmatprep.subr.mxu0 0.0
    %1859 = vmatpush2.msra.mxu0 0.0
    %1860 = vmatprep.subr.mxu0 0.0
    %1861 = vmatpush2.msra.mxu0 0.0
    %1862 = vmatprep.subr.mxu0 0.0
    %1863 = vmatpush2.msra.mxu0 0.0
    %1864 = vmatprep.subr.mxu0 0.0
    %1865 = vmatpush2.msra.mxu0 0.0
    %1866 = vmatprep.subr.mxu0 0.0
    %1867 = vmatpush2.msra.mxu0 0.0
    %1868 = vmatprep.subr.mxu0 0.0
    %1869 = vmatpush2.msra.mxu0 0.0
    %1870 = vmatprep.subr.mxu0 0.0
    %1871 = vmatpush2.msra.mxu0 0.0
    %1872 = vmatprep.subr.mxu0 0.0
    %1873 = vmatpush2.msra.mxu0 0.0
    %1874 = vmatprep.subr.mxu0 0.0
    %1875 = vmatpush2.msra.mxu0 0.0
    %1876 = vmatprep.subr.mxu0 0.0
    %1877 = vmatpush2.msra.mxu0 0.0
    %1878 = vmatprep.subr.mxu0 0.0
    %1879 = vmatpush2.msra.mxu0 0.0
    %1880 = vmatprep.subr.mxu0 0.0
    %1881 = vmatpush2.msra.mxu0 0.0
    %1882 = vmatprep.subr.mxu0 0.0
    %1883 = vmatpush2.msra.mxu0 0.0
    %1884 = vmatprep.subr.mxu0 0.0
    %1885 = vmatpush2.msra.mxu0 0.0
    %1886 = vmatprep.subr.mxu0 0.0
    %1887 = vmatpush2.msra.mxu0 0.0
    %1888 = vmatprep.subr.mxu0 0.0
    %1889 = vmatpush2.msra.mxu0 0.0
    %1890 = vmatprep.mubr.f32.mxu0 0.0
    %1891 = vmatmul.mubr.f32.gmra.mxu0 %v1802
    %v1892 = vpop.f32.mrf.mxu0
    %v1893 = vadd.f32 0.0, %v1892
    %v1894 = vpop.f32.mrf.mxu0
    %1895 = vmatprep.mubr.f32.mxu0 0.0
    %1896 = vmatmul.mubr.f32.gmra.mxu0 %v1803
    %v1897 = vpop.f32.mrf.mxu0
    %v1898 = vadd.f32 0.0, %v1897
    %v1899 = vpop.f32.mrf.mxu0
    %1900 = vmatprep.mubr.f32.mxu0 0.0
    %1901 = vmatmul.mubr.f32.gmra.mxu0 %v1804
    %v1902 = vpop.f32.mrf.mxu0
    %v1903 = vadd.f32 0.0, %v1902
    %v1904 = vpop.f32.mrf.mxu0
    %1905 = vmatprep.mubr.f32.mxu0 0.0
    %1906 = vmatmul.mubr.f32.gmra.mxu0 %v1805
    %v1907 = vpop.f32.mrf.mxu0
    %v1908 = vadd.f32 0.0, %v1907
    %v1909 = vpop.f32.mrf.mxu0
    %1910 = vmatprep.mubr.f32.mxu0 0.0
    %1911 = vmatmul.mubr.f32.gmra.mxu0 %v1806
    %v1912 = vpop.f32.mrf.mxu0
    %v1913 = vadd.f32 0.0, %v1912
    %v1914 = vpop.f32.mrf.mxu0
    %1915 = vmatprep.mubr.f32.mxu0 0.0
    %1916 = vmatmul.mubr.f32.gmra.mxu0 %v1807
    %v1917 = vpop.f32.mrf.mxu0
    %v1918 = vadd.f32 0.0, %v1917
    %v1919 = vpop.f32.mrf.mxu0
    %1920 = vmatprep.mubr.f32.mxu0 0.0
    %1921 = vmatmul.mubr.f32.gmra.mxu0 %v1808
    %v1922 = vpop.f32.mrf.mxu0
    %v1923 = vadd.f32 0.0, %v1922
    %v1924 = vpop.f32.mrf.mxu0
    %1925 = vmatprep.mubr.f32.mxu0 0.0
    %1926 = vmatmul.mubr.f32.gmra.mxu0 %v1809
    %v1927 = vpop.f32.mrf.mxu0
    %v1928 = vadd.f32 0.0, %v1927
    %v1929 = vpop.f32.mrf.mxu0
    %1930 = vdwg.mxu0
    %v1931 = vld [vmem:[%s2] sm:$0xff]
    %v1932 = vld [vmem:[%s2 + $0x8] sm:$0xff]
    %v1933 = vld [vmem:[%s2 + $0x10] sm:$0xff]
    %v1934 = vld [vmem:[%s2 + $0x18] sm:$0xff]
    %v1935 = vld [vmem:[%s2 + $0x20] sm:$0xff]
    %v1936 = vld [vmem:[%s2 + $0x28] sm:$0xff]
    %v1937 = vld [vmem:[%s2 + $0x30] sm:$0xff]
    %v1938 = vld [vmem:[%s2 + $0x38] sm:$0xff]
    %v1939 = vld [vmem:[%s2 + $0x40] sm:$0xff]
    %v1940 = vld [vmem:[%s2 + $0x48] sm:$0xff]
    %v1941 = vld [vmem:[%s2 + $0x50] sm:$0xff]
    %v1942 = vld [vmem:[%s2 + $0x58] sm:$0xff]
    %v1943 = vld [vmem:[%s2 + $0x60] sm:$0xff]
    %v1944 = vld [vmem:[%s2 + $0x68] sm:$0xff]
    %v1945 = vld [vmem:[%s2 + $0x70] sm:$0xff]
    %v1946 = vld [vmem:[%s2 + $0x78] sm:$0xff]
    %s1947 = scalar_lea.vmem %s8, 128
    %v1948 = vld [vmem:[%s1947] sm:$0xff]
    %v1949 = vld [vmem:[%s1947 + $0x8] sm:$0xff]
    %v1950 = vld [vmem:[%s1947 + $0x10] sm:$0xff]
    %v1951 = vld [vmem:[%s1947 + $0x18] sm:$0xff]
    %v1952 = vld [vmem:[%s1947 + $0x20] sm:$0xff]
    %v1953 = vld [vmem:[%s1947 + $0x28] sm:$0xff]
    %v1954 = vld [vmem:[%s1947 + $0x30] sm:$0xff]
    %v1955 = vld [vmem:[%s1947 + $0x38] sm:$0xff]
    %v1956 = vld [vmem:[%s1947 + $0x40] sm:$0xff]
    %v1957 = vld [vmem:[%s1947 + $0x48] sm:$0xff]
    %v1958 = vld [vmem:[%s1947 + $0x50] sm:$0xff]
    %v1959 = vld [vmem:[%s1947 + $0x58] sm:$0xff]
    %v1960 = vld [vmem:[%s1947 + $0x60] sm:$0xff]
    %v1961 = vld [vmem:[%s1947 + $0x68] sm:$0xff]
    %v1962 = vld [vmem:[%s1947 + $0x70] sm:$0xff]
    %v1963 = vld [vmem:[%s1947 + $0x78] sm:$0xff]
    %1964 = vmatprep.subr.mxu0 0.0
    %1965 = vmatpush1.msra.mxu0 %v1963
    %1966 = vmatprep.subr.mxu0 0.0
    %1967 = vmatpush1.msra.mxu0 %v1962
    %1968 = vmatprep.subr.mxu0 0.0
    %1969 = vmatpush1.msra.mxu0 %v1961
    %1970 = vmatprep.subr.mxu0 0.0
    %1971 = vmatpush1.msra.mxu0 %v1960
    %1972 = vmatprep.subr.mxu0 0.0
    %1973 = vmatpush1.msra.mxu0 %v1959
    %1974 = vmatprep.subr.mxu0 0.0
    %1975 = vmatpush1.msra.mxu0 %v1958
    %1976 = vmatprep.subr.mxu0 0.0
    %1977 = vmatpush1.msra.mxu0 %v1957
    %1978 = vmatprep.subr.mxu0 0.0
    %1979 = vmatpush1.msra.mxu0 %v1956
    %1980 = vmatprep.subr.mxu0 0.0
    %1981 = vmatpush1.msra.mxu0 %v1955
    %1982 = vmatprep.subr.mxu0 0.0
    %1983 = vmatpush1.msra.mxu0 %v1954
    %1984 = vmatprep.subr.mxu0 0.0
    %1985 = vmatpush1.msra.mxu0 %v1953
    %1986 = vmatprep.subr.mxu0 0.0
    %1987 = vmatpush1.msra.mxu0 %v1952
    %1988 = vmatprep.subr.mxu0 0.0
    %1989 = vmatpush1.msra.mxu0 %v1951
    %1990 = vmatprep.subr.mxu0 0.0
    %1991 = vmatpush1.msra.mxu0 %v1950
    %1992 = vmatprep.subr.mxu0 0.0
    %1993 = vmatpush1.msra.mxu0 %v1949
    %1994 = vmatprep.subr.mxu0 0.0
    %1995 = vmatpush1.msra.mxu0 %v1948
    %1996 = vmatprep.subr.mxu0 0.0
    %1997 = vmatpush2.msra.mxu0 0.0
    %1998 = vmatprep.subr.mxu0 0.0
    %1999 = vmatpush2.msra.mxu0 0.0
    %2000 = vmatprep.subr.mxu0 0.0
    %2001 = vmatpush2.msra.mxu0 0.0
    %2002 = vmatprep.subr.mxu0 0.0
    %2003 = vmatpush2.msra.mxu0 0.0
    %2004 = vmatprep.subr.mxu0 0.0
    %2005 = vmatpush2.msra.mxu0 0.0
    %2006 = vmatprep.subr.mxu0 0.0
    %2007 = vmatpush2.msra.mxu0 0.0
    %2008 = vmatprep.subr.mxu0 0.0
    %2009 = vmatpush2.msra.mxu0 0.0
    %2010 = vmatprep.subr.mxu0 0.0
    %2011 = vmatpush2.msra.mxu0 0.0
    %2012 = vmatprep.subr.mxu0 0.0
    %2013 = vmatpush2.msra.mxu0 0.0
    %2014 = vmatprep.subr.mxu0 0.0
    %2015 = vmatpush2.msra.mxu0 0.0
    %2016 = vmatprep.subr.mxu0 0.0
    %2017 = vmatpush2.msra.mxu0 0.0
    %2018 = vmatprep.subr.mxu0 0.0
    %2019 = vmatpush2.msra.mxu0 0.0
    %2020 = vmatprep.subr.mxu0 0.0
    %2021 = vmatpush2.msra.mxu0 0.0
    %2022 = vmatprep.subr.mxu0 0.0
    %2023 = vmatpush2.msra.mxu0 0.0
    %2024 = vmatprep.subr.mxu0 0.0
    %2025 = vmatpush2.msra.mxu0 0.0
    %2026 = vmatprep.subr.mxu0 0.0
    %2027 = vmatpush2.msra.mxu0 0.0
    %2028 = vmatprep.mubr.f32.mxu0 0.0
    %2029 = vmatmul.mubr.f32.gmra.mxu0 %v1802
    %v2030 = vpop.f32.mrf.mxu0
    %v2031 = vadd.f32 0.0, %v2030
    %v2032 = vpop.f32.mrf.mxu0
    %2033 = vmatprep.mubr.f32.mxu0 0.0
    %2034 = vmatmul.mubr.f32.gmra.mxu0 %v1803
    %v2035 = vpop.f32.mrf.mxu0
    %v2036 = vadd.f32 0.0, %v2035
    %v2037 = vpop.f32.mrf.mxu0
    %2038 = vmatprep.mubr.f32.mxu0 0.0
    %2039 = vmatmul.mubr.f32.gmra.mxu0 %v1804
    %v2040 = vpop.f32.mrf.mxu0
    %v2041 = vadd.f32 0.0, %v2040
    %v2042 = vpop.f32.mrf.mxu0
    %2043 = vmatprep.mubr.f32.mxu0 0.0
    %2044 = vmatmul.mubr.f32.gmra.mxu0 %v1805
    %v2045 = vpop.f32.mrf.mxu0
    %v2046 = vadd.f32 0.0, %v2045
    %v2047 = vpop.f32.mrf.mxu0
    %2048 = vmatprep.mubr.f32.mxu0 0.0
    %2049 = vmatmul.mubr.f32.gmra.mxu0 %v1806
    %v2050 = vpop.f32.mrf.mxu0
    %v2051 = vadd.f32 0.0, %v2050
    %v2052 = vpop.f32.mrf.mxu0
    %2053 = vmatprep.mubr.f32.mxu0 0.0
    %2054 = vmatmul.mubr.f32.gmra.mxu0 %v1807
    %v2055 = vpop.f32.mrf.mxu0
    %v2056 = vadd.f32 0.0, %v2055
    %v2057 = vpop.f32.mrf.mxu0
    %2058 = vmatprep.mubr.f32.mxu0 0.0
    %2059 = vmatmul.mubr.f32.gmra.mxu0 %v1808
    %v2060 = vpop.f32.mrf.mxu0
    %v2061 = vadd.f32 0.0, %v2060
    %v2062 = vpop.f32.mrf.mxu0
    %2063 = vmatprep.mubr.f32.mxu0 0.0
    %2064 = vmatmul.mubr.f32.gmra.mxu0 %v1809
    %v2065 = vpop.f32.mrf.mxu0
    %v2066 = vadd.f32 0.0, %v2065
    %v2067 = vpop.f32.mrf.mxu0
    %2068 = vdwg.mxu0
    %s2069 = scalar_lea.vmem %s2, 128
    %v2070 = vld [vmem:[%s2069] sm:$0xff]
    %v2071 = vld [vmem:[%s2069 + $0x8] sm:$0xff]
    %v2072 = vld [vmem:[%s2069 + $0x10] sm:$0xff]
    %v2073 = vld [vmem:[%s2069 + $0x18] sm:$0xff]
    %v2074 = vld [vmem:[%s2069 + $0x20] sm:$0xff]
    %v2075 = vld [vmem:[%s2069 + $0x28] sm:$0xff]
    %v2076 = vld [vmem:[%s2069 + $0x30] sm:$0xff]
    %v2077 = vld [vmem:[%s2069 + $0x38] sm:$0xff]
    %v2078 = vld [vmem:[%s2069 + $0x40] sm:$0xff]
    %v2079 = vld [vmem:[%s2069 + $0x48] sm:$0xff]
    %v2080 = vld [vmem:[%s2069 + $0x50] sm:$0xff]
    %v2081 = vld [vmem:[%s2069 + $0x58] sm:$0xff]
    %v2082 = vld [vmem:[%s2069 + $0x60] sm:$0xff]
    %v2083 = vld [vmem:[%s2069 + $0x68] sm:$0xff]
    %v2084 = vld [vmem:[%s2069 + $0x70] sm:$0xff]
    %v2085 = vld [vmem:[%s2069 + $0x78] sm:$0xff]
    %v2087 = vsel %vm931, %v2070, 0
    %v2090 = vsel %vm931, %v2071, 0
    %v2093 = vsel %vm931, %v2072, 0
    %v2096 = vsel %vm931, %v2073, 0
    %v2099 = vsel %vm931, %v2074, 0
    %v2102 = vsel %vm931, %v2075, 0
    %v2105 = vsel %vm931, %v2076, 0
    %v2108 = vsel %vm931, %v2077, 0
    %v2111 = vsel %vm931, %v2078, 0
    %v2114 = vsel %vm931, %v2079, 0
    %v2117 = vsel %vm931, %v2080, 0
    %v2120 = vsel %vm931, %v2081, 0
    %v2123 = vsel %vm931, %v2082, 0
    %v2126 = vsel %vm931, %v2083, 0
    %v2129 = vsel %vm931, %v2084, 0
    %v2132 = vsel %vm931, %v2085, 0
    %2134 = vmatprep.subr.mxu0 0.0
    %2135 = vmatpush1.msra.mxu0 0.0
    %2136 = vmatprep.subr.mxu0 0.0
    %2137 = vmatpush1.msra.mxu0 0.0
    %2138 = vmatprep.subr.mxu0 0.0
    %2139 = vmatpush1.msra.mxu0 0.0
    %2140 = vmatprep.subr.mxu0 0.0
    %2141 = vmatpush1.msra.mxu0 0.0
    %2142 = vmatprep.subr.mxu0 0.0
    %2143 = vmatpush1.msra.mxu0 0.0
    %2144 = vmatprep.subr.mxu0 0.0
    %2145 = vmatpush1.msra.mxu0 0.0
    %2146 = vmatprep.subr.mxu0 0.0
    %2147 = vmatpush1.msra.mxu0 0.0
    %2148 = vmatprep.subr.mxu0 0.0
    %2149 = vmatpush1.msra.mxu0 0.0
    %2150 = vmatprep.subr.mxu0 0.0
    %2151 = vmatpush1.msra.mxu0 %v2066
    %2152 = vmatprep.subr.mxu0 0.0
    %2153 = vmatpush1.msra.mxu0 %v2061
    %2154 = vmatprep.subr.mxu0 0.0
    %2155 = vmatpush1.msra.mxu0 %v2056
    %2156 = vmatprep.subr.mxu0 0.0
    %2157 = vmatpush1.msra.mxu0 %v2051
    %2158 = vmatprep.subr.mxu0 0.0
    %2159 = vmatpush1.msra.mxu0 %v2046
    %2160 = vmatprep.subr.mxu0 0.0
    %2161 = vmatpush1.msra.mxu0 %v2041
    %2162 = vmatprep.subr.mxu0 0.0
    %2163 = vmatpush1.msra.mxu0 %v2036
    %2164 = vmatprep.subr.mxu0 0.0
    %2165 = vmatpush1.msra.mxu0 %v2031
    %2166 = vmatprep.subr.mxu0 0.0
    %2167 = vmatpush2.msra.mxu0 0.0
    %2168 = vmatprep.subr.mxu0 0.0
    %2169 = vmatpush2.msra.mxu0 0.0
    %2170 = vmatprep.subr.mxu0 0.0
    %2171 = vmatpush2.msra.mxu0 0.0
    %2172 = vmatprep.subr.mxu0 0.0
    %2173 = vmatpush2.msra.mxu0 0.0
    %2174 = vmatprep.subr.mxu0 0.0
    %2175 = vmatpush2.msra.mxu0 0.0
    %2176 = vmatprep.subr.mxu0 0.0
    %2177 = vmatpush2.msra.mxu0 0.0
    %2178 = vmatprep.subr.mxu0 0.0
    %2179 = vmatpush2.msra.mxu0 0.0
    %2180 = vmatprep.subr.mxu0 0.0
    %2181 = vmatpush2.msra.mxu0 0.0
    %2182 = vmatprep.subr.mxu0 0.0
    %2183 = vmatpush2.msra.mxu0 0.0
    %2184 = vmatprep.subr.mxu0 0.0
    %2185 = vmatpush2.msra.mxu0 0.0
    %2186 = vmatprep.subr.mxu0 0.0
    %2187 = vmatpush2.msra.mxu0 0.0
    %2188 = vmatprep.subr.mxu0 0.0
    %2189 = vmatpush2.msra.mxu0 0.0
    %2190 = vmatprep.subr.mxu0 0.0
    %2191 = vmatpush2.msra.mxu0 0.0
    %2192 = vmatprep.subr.mxu0 0.0
    %2193 = vmatpush2.msra.mxu0 0.0
    %2194 = vmatprep.subr.mxu0 0.0
    %2195 = vmatpush2.msra.mxu0 0.0
    %2196 = vmatprep.subr.mxu0 0.0
    %2197 = vmatpush2.msra.mxu0 0.0
    %2198 = vmatprep.mubr.f32.mxu0 0.0
    %2199 = vmatmul.mubr.f32.gmra.mxu0 %v2087
    %v2200 = vpop.f32.mrf.mxu0
    %v2201 = vadd.f32 0.0, %v2200
    %v2202 = vpop.f32.mrf.mxu0
    %2203 = vmatprep.mubr.f32.mxu0 0.0
    %2204 = vmatmul.mubr.f32.gmra.mxu0 %v2090
    %v2205 = vpop.f32.mrf.mxu0
    %v2206 = vadd.f32 0.0, %v2205
    %v2207 = vpop.f32.mrf.mxu0
    %2208 = vmatprep.mubr.f32.mxu0 0.0
    %2209 = vmatmul.mubr.f32.gmra.mxu0 %v2093
    %v2210 = vpop.f32.mrf.mxu0
    %v2211 = vadd.f32 0.0, %v2210
    %v2212 = vpop.f32.mrf.mxu0
    %2213 = vmatprep.mubr.f32.mxu0 0.0
    %2214 = vmatmul.mubr.f32.gmra.mxu0 %v2096
    %v2215 = vpop.f32.mrf.mxu0
    %v2216 = vadd.f32 0.0, %v2215
    %v2217 = vpop.f32.mrf.mxu0
    %2218 = vmatprep.mubr.f32.mxu0 0.0
    %2219 = vmatmul.mubr.f32.gmra.mxu0 %v2099
    %v2220 = vpop.f32.mrf.mxu0
    %v2221 = vadd.f32 0.0, %v2220
    %v2222 = vpop.f32.mrf.mxu0
    %2223 = vmatprep.mubr.f32.mxu0 0.0
    %2224 = vmatmul.mubr.f32.gmra.mxu0 %v2102
    %v2225 = vpop.f32.mrf.mxu0
    %v2226 = vadd.f32 0.0, %v2225
    %v2227 = vpop.f32.mrf.mxu0
    %2228 = vmatprep.mubr.f32.mxu0 0.0
    %2229 = vmatmul.mubr.f32.gmra.mxu0 %v2105
    %v2230 = vpop.f32.mrf.mxu0
    %v2231 = vadd.f32 0.0, %v2230
    %v2232 = vpop.f32.mrf.mxu0
    %2233 = vmatprep.mubr.f32.mxu0 0.0
    %2234 = vmatmul.mubr.f32.gmra.mxu0 %v2108
    %v2235 = vpop.f32.mrf.mxu0
    %v2236 = vadd.f32 0.0, %v2235
    %v2237 = vpop.f32.mrf.mxu0
    %2238 = vmatprep.mubr.f32.mxu0 0.0
    %2239 = vmatmul.mubr.f32.gmra.mxu0 %v2111
    %v2240 = vpop.f32.mrf.mxu0
    %v2241 = vadd.f32 0.0, %v2240
    %v2242 = vpop.f32.mrf.mxu0
    %2243 = vmatprep.mubr.f32.mxu0 0.0
    %2244 = vmatmul.mubr.f32.gmra.mxu0 %v2114
    %v2245 = vpop.f32.mrf.mxu0
    %v2246 = vadd.f32 0.0, %v2245
    %v2247 = vpop.f32.mrf.mxu0
    %2248 = vmatprep.mubr.f32.mxu0 0.0
    %2249 = vmatmul.mubr.f32.gmra.mxu0 %v2117
    %v2250 = vpop.f32.mrf.mxu0
    %v2251 = vadd.f32 0.0, %v2250
    %v2252 = vpop.f32.mrf.mxu0
    %2253 = vmatprep.mubr.f32.mxu0 0.0
    %2254 = vmatmul.mubr.f32.gmra.mxu0 %v2120
    %v2255 = vpop.f32.mrf.mxu0
    %v2256 = vadd.f32 0.0, %v2255
    %v2257 = vpop.f32.mrf.mxu0
    %2258 = vmatprep.mubr.f32.mxu0 0.0
    %2259 = vmatmul.mubr.f32.gmra.mxu0 %v2123
    %v2260 = vpop.f32.mrf.mxu0
    %v2261 = vadd.f32 0.0, %v2260
    %v2262 = vpop.f32.mrf.mxu0
    %2263 = vmatprep.mubr.f32.mxu0 0.0
    %2264 = vmatmul.mubr.f32.gmra.mxu0 %v2126
    %v2265 = vpop.f32.mrf.mxu0
    %v2266 = vadd.f32 0.0, %v2265
    %v2267 = vpop.f32.mrf.mxu0
    %2268 = vmatprep.mubr.f32.mxu0 0.0
    %2269 = vmatmul.mubr.f32.gmra.mxu0 %v2129
    %v2270 = vpop.f32.mrf.mxu0
    %v2271 = vadd.f32 0.0, %v2270
    %v2272 = vpop.f32.mrf.mxu0
    %2273 = vmatprep.mubr.f32.mxu0 0.0
    %2274 = vmatmul.mubr.f32.gmra.mxu0 %v2132
    %v2275 = vpop.f32.mrf.mxu0
    %v2276 = vadd.f32 0.0, %v2275
    %v2277 = vpop.f32.mrf.mxu0
    %2278 = vdwg.mxu0
    %v2280 = vsel %vm931, %v1931, 0
    %v2283 = vsel %vm931, %v1932, 0
    %v2286 = vsel %vm931, %v1933, 0
    %v2289 = vsel %vm931, %v1934, 0
    %v2292 = vsel %vm931, %v1935, 0
    %v2295 = vsel %vm931, %v1936, 0
    %v2298 = vsel %vm931, %v1937, 0
    %v2301 = vsel %vm931, %v1938, 0
    %v2304 = vsel %vm931, %v1939, 0
    %v2307 = vsel %vm931, %v1940, 0
    %v2310 = vsel %vm931, %v1941, 0
    %v2313 = vsel %vm931, %v1942, 0
    %v2316 = vsel %vm931, %v1943, 0
    %v2319 = vsel %vm931, %v1944, 0
    %v2322 = vsel %vm931, %v1945, 0
    %v2325 = vsel %vm931, %v1946, 0
    %2327 = vmatprep.subr.mxu0 0.0
    %2328 = vmatpush1.msra.mxu0 0.0
    %2329 = vmatprep.subr.mxu0 0.0
    %2330 = vmatpush1.msra.mxu0 0.0
    %2331 = vmatprep.subr.mxu0 0.0
    %2332 = vmatpush1.msra.mxu0 0.0
    %2333 = vmatprep.subr.mxu0 0.0
    %2334 = vmatpush1.msra.mxu0 0.0
    %2335 = vmatprep.subr.mxu0 0.0
    %2336 = vmatpush1.msra.mxu0 0.0
    %2337 = vmatprep.subr.mxu0 0.0
    %2338 = vmatpush1.msra.mxu0 0.0
    %2339 = vmatprep.subr.mxu0 0.0
    %2340 = vmatpush1.msra.mxu0 0.0
    %2341 = vmatprep.subr.mxu0 0.0
    %2342 = vmatpush1.msra.mxu0 0.0
    %2343 = vmatprep.subr.mxu0 0.0
    %2344 = vmatpush1.msra.mxu0 %v1928
    %2345 = vmatprep.subr.mxu0 0.0
    %2346 = vmatpush1.msra.mxu0 %v1923
    %2347 = vmatprep.subr.mxu0 0.0
    %2348 = vmatpush1.msra.mxu0 %v1918
    %2349 = vmatprep.subr.mxu0 0.0
    %2350 = vmatpush1.msra.mxu0 %v1913
    %2351 = vmatprep.subr.mxu0 0.0
    %2352 = vmatpush1.msra.mxu0 %v1908
    %2353 = vmatprep.subr.mxu0 0.0
    %2354 = vmatpush1.msra.mxu0 %v1903
    %2355 = vmatprep.subr.mxu0 0.0
    %2356 = vmatpush1.msra.mxu0 %v1898
    %2357 = vmatprep.subr.mxu0 0.0
    %2358 = vmatpush1.msra.mxu0 %v1893
    %2359 = vmatprep.subr.mxu0 0.0
    %2360 = vmatpush2.msra.mxu0 0.0
    %2361 = vmatprep.subr.mxu0 0.0
    %2362 = vmatpush2.msra.mxu0 0.0
    %2363 = vmatprep.subr.mxu0 0.0
    %2364 = vmatpush2.msra.mxu0 0.0
    %2365 = vmatprep.subr.mxu0 0.0
    %2366 = vmatpush2.msra.mxu0 0.0
    %2367 = vmatprep.subr.mxu0 0.0
    %2368 = vmatpush2.msra.mxu0 0.0
    %2369 = vmatprep.subr.mxu0 0.0
    %2370 = vmatpush2.msra.mxu0 0.0
    %2371 = vmatprep.subr.mxu0 0.0
    %2372 = vmatpush2.msra.mxu0 0.0
    %2373 = vmatprep.subr.mxu0 0.0
    %2374 = vmatpush2.msra.mxu0 0.0
    %2375 = vmatprep.subr.mxu0 0.0
    %2376 = vmatpush2.msra.mxu0 0.0
    %2377 = vmatprep.subr.mxu0 0.0
    %2378 = vmatpush2.msra.mxu0 0.0
    %2379 = vmatprep.subr.mxu0 0.0
    %2380 = vmatpush2.msra.mxu0 0.0
    %2381 = vmatprep.subr.mxu0 0.0
    %2382 = vmatpush2.msra.mxu0 0.0
    %2383 = vmatprep.subr.mxu0 0.0
    %2384 = vmatpush2.msra.mxu0 0.0
    %2385 = vmatprep.subr.mxu0 0.0
    %2386 = vmatpush2.msra.mxu0 0.0
    %2387 = vmatprep.subr.mxu0 0.0
    %2388 = vmatpush2.msra.mxu0 0.0
    %2389 = vmatprep.subr.mxu0 0.0
    %2390 = vmatpush2.msra.mxu0 0.0
    %2391 = vmatprep.mubr.f32.mxu0 0.0
    %2392 = vmatmul.mubr.f32.gmra.mxu0 %v2280
    %v2393 = vpop.f32.mrf.mxu0
    %v2394 = vadd.f32 %v2201, %v2393
    %v2395 = vpop.f32.mrf.mxu0
    %2396 = vmatprep.mubr.f32.mxu0 0.0
    %2397 = vmatmul.mubr.f32.gmra.mxu0 %v2283
    %v2398 = vpop.f32.mrf.mxu0
    %v2399 = vadd.f32 %v2206, %v2398
    %v2400 = vpop.f32.mrf.mxu0
    %2401 = vmatprep.mubr.f32.mxu0 0.0
    %2402 = vmatmul.mubr.f32.gmra.mxu0 %v2286
    %v2403 = vpop.f32.mrf.mxu0
    %v2404 = vadd.f32 %v2211, %v2403
    %v2405 = vpop.f32.mrf.mxu0
    %2406 = vmatprep.mubr.f32.mxu0 0.0
    %2407 = vmatmul.mubr.f32.gmra.mxu0 %v2289
    %v2408 = vpop.f32.mrf.mxu0
    %v2409 = vadd.f32 %v2216, %v2408
    %v2410 = vpop.f32.mrf.mxu0
    %2411 = vmatprep.mubr.f32.mxu0 0.0
    %2412 = vmatmul.mubr.f32.gmra.mxu0 %v2292
    %v2413 = vpop.f32.mrf.mxu0
    %v2414 = vadd.f32 %v2221, %v2413
    %v2415 = vpop.f32.mrf.mxu0
    %2416 = vmatprep.mubr.f32.mxu0 0.0
    %2417 = vmatmul.mubr.f32.gmra.mxu0 %v2295
    %v2418 = vpop.f32.mrf.mxu0
    %v2419 = vadd.f32 %v2226, %v2418
    %v2420 = vpop.f32.mrf.mxu0
    %2421 = vmatprep.mubr.f32.mxu0 0.0
    %2422 = vmatmul.mubr.f32.gmra.mxu0 %v2298
    %v2423 = vpop.f32.mrf.mxu0
    %v2424 = vadd.f32 %v2231, %v2423
    %v2425 = vpop.f32.mrf.mxu0
    %2426 = vmatprep.mubr.f32.mxu0 0.0
    %2427 = vmatmul.mubr.f32.gmra.mxu0 %v2301
    %v2428 = vpop.f32.mrf.mxu0
    %v2429 = vadd.f32 %v2236, %v2428
    %v2430 = vpop.f32.mrf.mxu0
    %2431 = vmatprep.mubr.f32.mxu0 0.0
    %2432 = vmatmul.mubr.f32.gmra.mxu0 %v2304
    %v2433 = vpop.f32.mrf.mxu0
    %v2434 = vadd.f32 %v2241, %v2433
    %v2435 = vpop.f32.mrf.mxu0
    %2436 = vmatprep.mubr.f32.mxu0 0.0
    %2437 = vmatmul.mubr.f32.gmra.mxu0 %v2307
    %v2438 = vpop.f32.mrf.mxu0
    %v2439 = vadd.f32 %v2246, %v2438
    %v2440 = vpop.f32.mrf.mxu0
    %2441 = vmatprep.mubr.f32.mxu0 0.0
    %2442 = vmatmul.mubr.f32.gmra.mxu0 %v2310
    %v2443 = vpop.f32.mrf.mxu0
    %v2444 = vadd.f32 %v2251, %v2443
    %v2445 = vpop.f32.mrf.mxu0
    %2446 = vmatprep.mubr.f32.mxu0 0.0
    %2447 = vmatmul.mubr.f32.gmra.mxu0 %v2313
    %v2448 = vpop.f32.mrf.mxu0
    %v2449 = vadd.f32 %v2256, %v2448
    %v2450 = vpop.f32.mrf.mxu0
    %2451 = vmatprep.mubr.f32.mxu0 0.0
    %2452 = vmatmul.mubr.f32.gmra.mxu0 %v2316
    %v2453 = vpop.f32.mrf.mxu0
    %v2454 = vadd.f32 %v2261, %v2453
    %v2455 = vpop.f32.mrf.mxu0
    %2456 = vmatprep.mubr.f32.mxu0 0.0
    %2457 = vmatmul.mubr.f32.gmra.mxu0 %v2319
    %v2458 = vpop.f32.mrf.mxu0
    %v2459 = vadd.f32 %v2266, %v2458
    %v2460 = vpop.f32.mrf.mxu0
    %2461 = vmatprep.mubr.f32.mxu0 0.0
    %2462 = vmatmul.mubr.f32.gmra.mxu0 %v2322
    %v2463 = vpop.f32.mrf.mxu0
    %v2464 = vadd.f32 %v2271, %v2463
    %v2465 = vpop.f32.mrf.mxu0
    %2466 = vmatprep.mubr.f32.mxu0 0.0
    %2467 = vmatmul.mubr.f32.gmra.mxu0 %v2325
    %v2468 = vpop.f32.mrf.mxu0
    %v2469 = vadd.f32 %v2276, %v2468
    %v2470 = vpop.f32.mrf.mxu0
    %2471 = vdwg.mxu0
    %s2472 = scalar_lea.vmem %s8, 256
    %v2473 = vld [vmem:[%s2472] sm:$0xff]
    %v2474 = vld [vmem:[%s2472 + $0x8] sm:$0xff]
    %v2475 = vld [vmem:[%s2472 + $0x10] sm:$0xff]
    %v2476 = vld [vmem:[%s2472 + $0x18] sm:$0xff]
    %v2477 = vld [vmem:[%s2472 + $0x20] sm:$0xff]
    %v2478 = vld [vmem:[%s2472 + $0x28] sm:$0xff]
    %v2479 = vld [vmem:[%s2472 + $0x30] sm:$0xff]
    %v2480 = vld [vmem:[%s2472 + $0x38] sm:$0xff]
    %v2481 = vld [vmem:[%s2472 + $0x40] sm:$0xff]
    %v2482 = vld [vmem:[%s2472 + $0x48] sm:$0xff]
    %v2483 = vld [vmem:[%s2472 + $0x50] sm:$0xff]
    %v2484 = vld [vmem:[%s2472 + $0x58] sm:$0xff]
    %v2485 = vld [vmem:[%s2472 + $0x60] sm:$0xff]
    %v2486 = vld [vmem:[%s2472 + $0x68] sm:$0xff]
    %v2487 = vld [vmem:[%s2472 + $0x70] sm:$0xff]
    %v2488 = vld [vmem:[%s2472 + $0x78] sm:$0xff]
    %2489 = vmatprep.subr.mxu0 0.0
    %2490 = vmatpush1.msra.mxu0 %v2488
    %2491 = vmatprep.subr.mxu0 0.0
    %2492 = vmatpush1.msra.mxu0 %v2487
    %2493 = vmatprep.subr.mxu0 0.0
    %2494 = vmatpush1.msra.mxu0 %v2486
    %2495 = vmatprep.subr.mxu0 0.0
    %2496 = vmatpush1.msra.mxu0 %v2485
    %2497 = vmatprep.subr.mxu0 0.0
    %2498 = vmatpush1.msra.mxu0 %v2484
    %2499 = vmatprep.subr.mxu0 0.0
    %2500 = vmatpush1.msra.mxu0 %v2483
    %2501 = vmatprep.subr.mxu0 0.0
    %2502 = vmatpush1.msra.mxu0 %v2482
    %2503 = vmatprep.subr.mxu0 0.0
    %2504 = vmatpush1.msra.mxu0 %v2481
    %2505 = vmatprep.subr.mxu0 0.0
    %2506 = vmatpush1.msra.mxu0 %v2480
    %2507 = vmatprep.subr.mxu0 0.0
    %2508 = vmatpush1.msra.mxu0 %v2479
    %2509 = vmatprep.subr.mxu0 0.0
    %2510 = vmatpush1.msra.mxu0 %v2478
    %2511 = vmatprep.subr.mxu0 0.0
    %2512 = vmatpush1.msra.mxu0 %v2477
    %2513 = vmatprep.subr.mxu0 0.0
    %2514 = vmatpush1.msra.mxu0 %v2476
    %2515 = vmatprep.subr.mxu0 0.0
    %2516 = vmatpush1.msra.mxu0 %v2475
    %2517 = vmatprep.subr.mxu0 0.0
    %2518 = vmatpush1.msra.mxu0 %v2474
    %2519 = vmatprep.subr.mxu0 0.0
    %2520 = vmatpush1.msra.mxu0 %v2473
    %2521 = vmatprep.subr.mxu0 0.0
    %2522 = vmatpush2.msra.mxu0 0.0
    %2523 = vmatprep.subr.mxu0 0.0
    %2524 = vmatpush2.msra.mxu0 0.0
    %2525 = vmatprep.subr.mxu0 0.0
    %2526 = vmatpush2.msra.mxu0 0.0
    %2527 = vmatprep.subr.mxu0 0.0
    %2528 = vmatpush2.msra.mxu0 0.0
    %2529 = vmatprep.subr.mxu0 0.0
    %2530 = vmatpush2.msra.mxu0 0.0
    %2531 = vmatprep.subr.mxu0 0.0
    %2532 = vmatpush2.msra.mxu0 0.0
    %2533 = vmatprep.subr.mxu0 0.0
    %2534 = vmatpush2.msra.mxu0 0.0
    %2535 = vmatprep.subr.mxu0 0.0
    %2536 = vmatpush2.msra.mxu0 0.0
    %2537 = vmatprep.subr.mxu0 0.0
    %2538 = vmatpush2.msra.mxu0 0.0
    %2539 = vmatprep.subr.mxu0 0.0
    %2540 = vmatpush2.msra.mxu0 0.0
    %2541 = vmatprep.subr.mxu0 0.0
    %2542 = vmatpush2.msra.mxu0 0.0
    %2543 = vmatprep.subr.mxu0 0.0
    %2544 = vmatpush2.msra.mxu0 0.0
    %2545 = vmatprep.subr.mxu0 0.0
    %2546 = vmatpush2.msra.mxu0 0.0
    %2547 = vmatprep.subr.mxu0 0.0
    %2548 = vmatpush2.msra.mxu0 0.0
    %2549 = vmatprep.subr.mxu0 0.0
    %2550 = vmatpush2.msra.mxu0 0.0
    %2551 = vmatprep.subr.mxu0 0.0
    %2552 = vmatpush2.msra.mxu0 0.0
    %2553 = vmatprep.mubr.f32.mxu0 0.0
    %2554 = vmatmul.mubr.f32.gmra.mxu0 %v1802
    %v2555 = vpop.f32.mrf.mxu0
    %v2556 = vadd.f32 0.0, %v2555
    %v2557 = vpop.f32.mrf.mxu0
    %2558 = vmatprep.mubr.f32.mxu0 0.0
    %2559 = vmatmul.mubr.f32.gmra.mxu0 %v1803
    %v2560 = vpop.f32.mrf.mxu0
    %v2561 = vadd.f32 0.0, %v2560
    %v2562 = vpop.f32.mrf.mxu0
    %2563 = vmatprep.mubr.f32.mxu0 0.0
    %2564 = vmatmul.mubr.f32.gmra.mxu0 %v1804
    %v2565 = vpop.f32.mrf.mxu0
    %v2566 = vadd.f32 0.0, %v2565
    %v2567 = vpop.f32.mrf.mxu0
    %2568 = vmatprep.mubr.f32.mxu0 0.0
    %2569 = vmatmul.mubr.f32.gmra.mxu0 %v1805
    %v2570 = vpop.f32.mrf.mxu0
    %v2571 = vadd.f32 0.0, %v2570
    %v2572 = vpop.f32.mrf.mxu0
    %2573 = vmatprep.mubr.f32.mxu0 0.0
    %2574 = vmatmul.mubr.f32.gmra.mxu0 %v1806
    %v2575 = vpop.f32.mrf.mxu0
    %v2576 = vadd.f32 0.0, %v2575
    %v2577 = vpop.f32.mrf.mxu0
    %2578 = vmatprep.mubr.f32.mxu0 0.0
    %2579 = vmatmul.mubr.f32.gmra.mxu0 %v1807
    %v2580 = vpop.f32.mrf.mxu0
    %v2581 = vadd.f32 0.0, %v2580
    %v2582 = vpop.f32.mrf.mxu0
    %2583 = vmatprep.mubr.f32.mxu0 0.0
    %2584 = vmatmul.mubr.f32.gmra.mxu0 %v1808
    %v2585 = vpop.f32.mrf.mxu0
    %v2586 = vadd.f32 0.0, %v2585
    %v2587 = vpop.f32.mrf.mxu0
    %2588 = vmatprep.mubr.f32.mxu0 0.0
    %2589 = vmatmul.mubr.f32.gmra.mxu0 %v1809
    %v2590 = vpop.f32.mrf.mxu0
    %v2591 = vadd.f32 0.0, %v2590
    %v2592 = vpop.f32.mrf.mxu0
    %2593 = vdwg.mxu0
    %s2594 = scalar_lea.vmem %s2, 256
    %v2595 = vld [vmem:[%s2594] sm:$0xff]
    %v2596 = vld [vmem:[%s2594 + $0x8] sm:$0xff]
    %v2597 = vld [vmem:[%s2594 + $0x10] sm:$0xff]
    %v2598 = vld [vmem:[%s2594 + $0x18] sm:$0xff]
    %v2599 = vld [vmem:[%s2594 + $0x20] sm:$0xff]
    %v2600 = vld [vmem:[%s2594 + $0x28] sm:$0xff]
    %v2601 = vld [vmem:[%s2594 + $0x30] sm:$0xff]
    %v2602 = vld [vmem:[%s2594 + $0x38] sm:$0xff]
    %v2603 = vld [vmem:[%s2594 + $0x40] sm:$0xff]
    %v2604 = vld [vmem:[%s2594 + $0x48] sm:$0xff]
    %v2605 = vld [vmem:[%s2594 + $0x50] sm:$0xff]
    %v2606 = vld [vmem:[%s2594 + $0x58] sm:$0xff]
    %v2607 = vld [vmem:[%s2594 + $0x60] sm:$0xff]
    %v2608 = vld [vmem:[%s2594 + $0x68] sm:$0xff]
    %v2609 = vld [vmem:[%s2594 + $0x70] sm:$0xff]
    %v2610 = vld [vmem:[%s2594 + $0x78] sm:$0xff]
    %v2612 = vsel %vm931, %v2595, 0
    %v2615 = vsel %vm931, %v2596, 0
    %v2618 = vsel %vm931, %v2597, 0
    %v2621 = vsel %vm931, %v2598, 0
    %v2624 = vsel %vm931, %v2599, 0
    %v2627 = vsel %vm931, %v2600, 0
    %v2630 = vsel %vm931, %v2601, 0
    %v2633 = vsel %vm931, %v2602, 0
    %v2636 = vsel %vm931, %v2603, 0
    %v2639 = vsel %vm931, %v2604, 0
    %v2642 = vsel %vm931, %v2605, 0
    %v2645 = vsel %vm931, %v2606, 0
    %v2648 = vsel %vm931, %v2607, 0
    %v2651 = vsel %vm931, %v2608, 0
    %v2654 = vsel %vm931, %v2609, 0
    %v2657 = vsel %vm931, %v2610, 0
    %2659 = vmatprep.subr.mxu0 0.0
    %2660 = vmatpush1.msra.mxu0 0.0
    %2661 = vmatprep.subr.mxu0 0.0
    %2662 = vmatpush1.msra.mxu0 0.0
    %2663 = vmatprep.subr.mxu0 0.0
    %2664 = vmatpush1.msra.mxu0 0.0
    %2665 = vmatprep.subr.mxu0 0.0
    %2666 = vmatpush1.msra.mxu0 0.0
    %2667 = vmatprep.subr.mxu0 0.0
    %2668 = vmatpush1.msra.mxu0 0.0
    %2669 = vmatprep.subr.mxu0 0.0
    %2670 = vmatpush1.msra.mxu0 0.0
    %2671 = vmatprep.subr.mxu0 0.0
    %2672 = vmatpush1.msra.mxu0 0.0
    %2673 = vmatprep.subr.mxu0 0.0
    %2674 = vmatpush1.msra.mxu0 0.0
    %2675 = vmatprep.subr.mxu0 0.0
    %2676 = vmatpush1.msra.mxu0 %v2591
    %2677 = vmatprep.subr.mxu0 0.0
    %2678 = vmatpush1.msra.mxu0 %v2586
    %2679 = vmatprep.subr.mxu0 0.0
    %2680 = vmatpush1.msra.mxu0 %v2581
    %2681 = vmatprep.subr.mxu0 0.0
    %2682 = vmatpush1.msra.mxu0 %v2576
    %2683 = vmatprep.subr.mxu0 0.0
    %2684 = vmatpush1.msra.mxu0 %v2571
    %2685 = vmatprep.subr.mxu0 0.0
    %2686 = vmatpush1.msra.mxu0 %v2566
    %2687 = vmatprep.subr.mxu0 0.0
    %2688 = vmatpush1.msra.mxu0 %v2561
    %2689 = vmatprep.subr.mxu0 0.0
    %2690 = vmatpush1.msra.mxu0 %v2556
    %2691 = vmatprep.subr.mxu0 0.0
    %2692 = vmatpush2.msra.mxu0 0.0
    %2693 = vmatprep.subr.mxu0 0.0
    %2694 = vmatpush2.msra.mxu0 0.0
    %2695 = vmatprep.subr.mxu0 0.0
    %2696 = vmatpush2.msra.mxu0 0.0
    %2697 = vmatprep.subr.mxu0 0.0
    %2698 = vmatpush2.msra.mxu0 0.0
    %2699 = vmatprep.subr.mxu0 0.0
    %2700 = vmatpush2.msra.mxu0 0.0
    %2701 = vmatprep.subr.mxu0 0.0
    %2702 = vmatpush2.msra.mxu0 0.0
    %2703 = vmatprep.subr.mxu0 0.0
    %2704 = vmatpush2.msra.mxu0 0.0
    %2705 = vmatprep.subr.mxu0 0.0
    %2706 = vmatpush2.msra.mxu0 0.0
    %2707 = vmatprep.subr.mxu0 0.0
    %2708 = vmatpush2.msra.mxu0 0.0
    %2709 = vmatprep.subr.mxu0 0.0
    %2710 = vmatpush2.msra.mxu0 0.0
    %2711 = vmatprep.subr.mxu0 0.0
    %2712 = vmatpush2.msra.mxu0 0.0
    %2713 = vmatprep.subr.mxu0 0.0
    %2714 = vmatpush2.msra.mxu0 0.0
    %2715 = vmatprep.subr.mxu0 0.0
    %2716 = vmatpush2.msra.mxu0 0.0
    %2717 = vmatprep.subr.mxu0 0.0
    %2718 = vmatpush2.msra.mxu0 0.0
    %2719 = vmatprep.subr.mxu0 0.0
    %2720 = vmatpush2.msra.mxu0 0.0
    %2721 = vmatprep.subr.mxu0 0.0
    %2722 = vmatpush2.msra.mxu0 0.0
    %2723 = vmatprep.mubr.f32.mxu0 0.0
    %2724 = vmatmul.mubr.f32.gmra.mxu0 %v2612
    %v2725 = vpop.f32.mrf.mxu0
    %v2726 = vadd.f32 0.0, %v2725
    %v2727 = vpop.f32.mrf.mxu0
    %2728 = vmatprep.mubr.f32.mxu0 0.0
    %2729 = vmatmul.mubr.f32.gmra.mxu0 %v2615
    %v2730 = vpop.f32.mrf.mxu0
    %v2731 = vadd.f32 0.0, %v2730
    %v2732 = vpop.f32.mrf.mxu0
    %2733 = vmatprep.mubr.f32.mxu0 0.0
    %2734 = vmatmul.mubr.f32.gmra.mxu0 %v2618
    %v2735 = vpop.f32.mrf.mxu0
    %v2736 = vadd.f32 0.0, %v2735
    %v2737 = vpop.f32.mrf.mxu0
    %2738 = vmatprep.mubr.f32.mxu0 0.0
    %2739 = vmatmul.mubr.f32.gmra.mxu0 %v2621
    %v2740 = vpop.f32.mrf.mxu0
    %v2741 = vadd.f32 0.0, %v2740
    %v2742 = vpop.f32.mrf.mxu0
    %2743 = vmatprep.mubr.f32.mxu0 0.0
    %2744 = vmatmul.mubr.f32.gmra.mxu0 %v2624
    %v2745 = vpop.f32.mrf.mxu0
    %v2746 = vadd.f32 0.0, %v2745
    %v2747 = vpop.f32.mrf.mxu0
    %2748 = vmatprep.mubr.f32.mxu0 0.0
    %2749 = vmatmul.mubr.f32.gmra.mxu0 %v2627
    %v2750 = vpop.f32.mrf.mxu0
    %v2751 = vadd.f32 0.0, %v2750
    %v2752 = vpop.f32.mrf.mxu0
    %2753 = vmatprep.mubr.f32.mxu0 0.0
    %2754 = vmatmul.mubr.f32.gmra.mxu0 %v2630
    %v2755 = vpop.f32.mrf.mxu0
    %v2756 = vadd.f32 0.0, %v2755
    %v2757 = vpop.f32.mrf.mxu0
    %2758 = vmatprep.mubr.f32.mxu0 0.0
    %2759 = vmatmul.mubr.f32.gmra.mxu0 %v2633
    %v2760 = vpop.f32.mrf.mxu0
    %v2761 = vadd.f32 0.0, %v2760
    %v2762 = vpop.f32.mrf.mxu0
    %2763 = vmatprep.mubr.f32.mxu0 0.0
    %2764 = vmatmul.mubr.f32.gmra.mxu0 %v2636
    %v2765 = vpop.f32.mrf.mxu0
    %v2766 = vadd.f32 0.0, %v2765
    %v2767 = vpop.f32.mrf.mxu0
    %2768 = vmatprep.mubr.f32.mxu0 0.0
    %2769 = vmatmul.mubr.f32.gmra.mxu0 %v2639
    %v2770 = vpop.f32.mrf.mxu0
    %v2771 = vadd.f32 0.0, %v2770
    %v2772 = vpop.f32.mrf.mxu0
    %2773 = vmatprep.mubr.f32.mxu0 0.0
    %2774 = vmatmul.mubr.f32.gmra.mxu0 %v2642
    %v2775 = vpop.f32.mrf.mxu0
    %v2776 = vadd.f32 0.0, %v2775
    %v2777 = vpop.f32.mrf.mxu0
    %2778 = vmatprep.mubr.f32.mxu0 0.0
    %2779 = vmatmul.mubr.f32.gmra.mxu0 %v2645
    %v2780 = vpop.f32.mrf.mxu0
    %v2781 = vadd.f32 0.0, %v2780
    %v2782 = vpop.f32.mrf.mxu0
    %2783 = vmatprep.mubr.f32.mxu0 0.0
    %2784 = vmatmul.mubr.f32.gmra.mxu0 %v2648
    %v2785 = vpop.f32.mrf.mxu0
    %v2786 = vadd.f32 0.0, %v2785
    %v2787 = vpop.f32.mrf.mxu0
    %2788 = vmatprep.mubr.f32.mxu0 0.0
    %2789 = vmatmul.mubr.f32.gmra.mxu0 %v2651
    %v2790 = vpop.f32.mrf.mxu0
    %v2791 = vadd.f32 0.0, %v2790
    %v2792 = vpop.f32.mrf.mxu0
    %2793 = vmatprep.mubr.f32.mxu0 0.0
    %2794 = vmatmul.mubr.f32.gmra.mxu0 %v2654
    %v2795 = vpop.f32.mrf.mxu0
    %v2796 = vadd.f32 0.0, %v2795
    %v2797 = vpop.f32.mrf.mxu0
    %2798 = vmatprep.mubr.f32.mxu0 0.0
    %2799 = vmatmul.mubr.f32.gmra.mxu0 %v2657
    %v2800 = vpop.f32.mrf.mxu0
    %v2801 = vadd.f32 0.0, %v2800
    %v2802 = vpop.f32.mrf.mxu0
    %2803 = vdwg.mxu0
    %v2804 = vadd.f32 %v2394, %v2726
    %v2805 = vadd.f32 %v2399, %v2731
    %v2806 = vadd.f32 %v2404, %v2736
    %v2807 = vadd.f32 %v2409, %v2741
    %v2808 = vadd.f32 %v2414, %v2746
    %v2809 = vadd.f32 %v2419, %v2751
    %v2810 = vadd.f32 %v2424, %v2756
    %v2811 = vadd.f32 %v2429, %v2761
    %v2812 = vadd.f32 %v2434, %v2766
    %v2813 = vadd.f32 %v2439, %v2771
    %v2814 = vadd.f32 %v2444, %v2776
    %v2815 = vadd.f32 %v2449, %v2781
    %v2816 = vadd.f32 %v2454, %v2786
    %v2817 = vadd.f32 %v2459, %v2791
    %v2818 = vadd.f32 %v2464, %v2796
    %v2819 = vadd.f32 %v2469, %v2801
    %s2820 = scalar_lea.vmem %s8, 384
    %v2821 = vld [vmem:[%s2820] sm:$0xff]
    %v2822 = vld [vmem:[%s2820 + $0x8] sm:$0xff]
    %v2823 = vld [vmem:[%s2820 + $0x10] sm:$0xff]
    %v2824 = vld [vmem:[%s2820 + $0x18] sm:$0xff]
    %v2825 = vld [vmem:[%s2820 + $0x20] sm:$0xff]
    %v2826 = vld [vmem:[%s2820 + $0x28] sm:$0xff]
    %v2827 = vld [vmem:[%s2820 + $0x30] sm:$0xff]
    %v2828 = vld [vmem:[%s2820 + $0x38] sm:$0xff]
    %v2829 = vld [vmem:[%s2820 + $0x40] sm:$0xff]
    %v2830 = vld [vmem:[%s2820 + $0x48] sm:$0xff]
    %v2831 = vld [vmem:[%s2820 + $0x50] sm:$0xff]
    %v2832 = vld [vmem:[%s2820 + $0x58] sm:$0xff]
    %v2833 = vld [vmem:[%s2820 + $0x60] sm:$0xff]
    %v2834 = vld [vmem:[%s2820 + $0x68] sm:$0xff]
    %v2835 = vld [vmem:[%s2820 + $0x70] sm:$0xff]
    %v2836 = vld [vmem:[%s2820 + $0x78] sm:$0xff]
    %2837 = vmatprep.subr.mxu0 0.0
    %2838 = vmatpush1.msra.mxu0 %v2836
    %2839 = vmatprep.subr.mxu0 0.0
    %2840 = vmatpush1.msra.mxu0 %v2835
    %2841 = vmatprep.subr.mxu0 0.0
    %2842 = vmatpush1.msra.mxu0 %v2834
    %2843 = vmatprep.subr.mxu0 0.0
    %2844 = vmatpush1.msra.mxu0 %v2833
    %2845 = vmatprep.subr.mxu0 0.0
    %2846 = vmatpush1.msra.mxu0 %v2832
    %2847 = vmatprep.subr.mxu0 0.0
    %2848 = vmatpush1.msra.mxu0 %v2831
    %2849 = vmatprep.subr.mxu0 0.0
    %2850 = vmatpush1.msra.mxu0 %v2830
    %2851 = vmatprep.subr.mxu0 0.0
    %2852 = vmatpush1.msra.mxu0 %v2829
    %2853 = vmatprep.subr.mxu0 0.0
    %2854 = vmatpush1.msra.mxu0 %v2828
    %2855 = vmatprep.subr.mxu0 0.0
    %2856 = vmatpush1.msra.mxu0 %v2827
    %2857 = vmatprep.subr.mxu0 0.0
    %2858 = vmatpush1.msra.mxu0 %v2826
    %2859 = vmatprep.subr.mxu0 0.0
    %2860 = vmatpush1.msra.mxu0 %v2825
    %2861 = vmatprep.subr.mxu0 0.0
    %2862 = vmatpush1.msra.mxu0 %v2824
    %2863 = vmatprep.subr.mxu0 0.0
    %2864 = vmatpush1.msra.mxu0 %v2823
    %2865 = vmatprep.subr.mxu0 0.0
    %2866 = vmatpush1.msra.mxu0 %v2822
    %2867 = vmatprep.subr.mxu0 0.0
    %2868 = vmatpush1.msra.mxu0 %v2821
    %2869 = vmatprep.subr.mxu0 0.0
    %2870 = vmatpush2.msra.mxu0 0.0
    %2871 = vmatprep.subr.mxu0 0.0
    %2872 = vmatpush2.msra.mxu0 0.0
    %2873 = vmatprep.subr.mxu0 0.0
    %2874 = vmatpush2.msra.mxu0 0.0
    %2875 = vmatprep.subr.mxu0 0.0
    %2876 = vmatpush2.msra.mxu0 0.0
    %2877 = vmatprep.subr.mxu0 0.0
    %2878 = vmatpush2.msra.mxu0 0.0
    %2879 = vmatprep.subr.mxu0 0.0
    %2880 = vmatpush2.msra.mxu0 0.0
    %2881 = vmatprep.subr.mxu0 0.0
    %2882 = vmatpush2.msra.mxu0 0.0
    %2883 = vmatprep.subr.mxu0 0.0
    %2884 = vmatpush2.msra.mxu0 0.0
    %2885 = vmatprep.subr.mxu0 0.0
    %2886 = vmatpush2.msra.mxu0 0.0
    %2887 = vmatprep.subr.mxu0 0.0
    %2888 = vmatpush2.msra.mxu0 0.0
    %2889 = vmatprep.subr.mxu0 0.0
    %2890 = vmatpush2.msra.mxu0 0.0
    %2891 = vmatprep.subr.mxu0 0.0
    %2892 = vmatpush2.msra.mxu0 0.0
    %2893 = vmatprep.subr.mxu0 0.0
    %2894 = vmatpush2.msra.mxu0 0.0
    %2895 = vmatprep.subr.mxu0 0.0
    %2896 = vmatpush2.msra.mxu0 0.0
    %2897 = vmatprep.subr.mxu0 0.0
    %2898 = vmatpush2.msra.mxu0 0.0
    %2899 = vmatprep.subr.mxu0 0.0
    %2900 = vmatpush2.msra.mxu0 0.0
    %2901 = vmatprep.mubr.f32.mxu0 0.0
    %2902 = vmatmul.mubr.f32.gmra.mxu0 %v1802
    %v2903 = vpop.f32.mrf.mxu0
    %v2904 = vadd.f32 0.0, %v2903
    %v2905 = vpop.f32.mrf.mxu0
    %2906 = vmatprep.mubr.f32.mxu0 0.0
    %2907 = vmatmul.mubr.f32.gmra.mxu0 %v1803
    %v2908 = vpop.f32.mrf.mxu0
    %v2909 = vadd.f32 0.0, %v2908
    %v2910 = vpop.f32.mrf.mxu0
    %2911 = vmatprep.mubr.f32.mxu0 0.0
    %2912 = vmatmul.mubr.f32.gmra.mxu0 %v1804
    %v2913 = vpop.f32.mrf.mxu0
    %v2914 = vadd.f32 0.0, %v2913
    %v2915 = vpop.f32.mrf.mxu0
    %2916 = vmatprep.mubr.f32.mxu0 0.0
    %2917 = vmatmul.mubr.f32.gmra.mxu0 %v1805
    %v2918 = vpop.f32.mrf.mxu0
    %v2919 = vadd.f32 0.0, %v2918
    %v2920 = vpop.f32.mrf.mxu0
    %2921 = vmatprep.mubr.f32.mxu0 0.0
    %2922 = vmatmul.mubr.f32.gmra.mxu0 %v1806
    %v2923 = vpop.f32.mrf.mxu0
    %v2924 = vadd.f32 0.0, %v2923
    %v2925 = vpop.f32.mrf.mxu0
    %2926 = vmatprep.mubr.f32.mxu0 0.0
    %2927 = vmatmul.mubr.f32.gmra.mxu0 %v1807
    %v2928 = vpop.f32.mrf.mxu0
    %v2929 = vadd.f32 0.0, %v2928
    %v2930 = vpop.f32.mrf.mxu0
    %2931 = vmatprep.mubr.f32.mxu0 0.0
    %2932 = vmatmul.mubr.f32.gmra.mxu0 %v1808
    %v2933 = vpop.f32.mrf.mxu0
    %v2934 = vadd.f32 0.0, %v2933
    %v2935 = vpop.f32.mrf.mxu0
    %2936 = vmatprep.mubr.f32.mxu0 0.0
    %2937 = vmatmul.mubr.f32.gmra.mxu0 %v1809
    %v2938 = vpop.f32.mrf.mxu0
    %v2939 = vadd.f32 0.0, %v2938
    %v2940 = vpop.f32.mrf.mxu0
    %2941 = vdwg.mxu0
    %s2942 = scalar_lea.vmem %s2, 384
    %v2943 = vld [vmem:[%s2942] sm:$0xff]
    %v2944 = vld [vmem:[%s2942 + $0x8] sm:$0xff]
    %v2945 = vld [vmem:[%s2942 + $0x10] sm:$0xff]
    %v2946 = vld [vmem:[%s2942 + $0x18] sm:$0xff]
    %v2947 = vld [vmem:[%s2942 + $0x20] sm:$0xff]
    %v2948 = vld [vmem:[%s2942 + $0x28] sm:$0xff]
    %v2949 = vld [vmem:[%s2942 + $0x30] sm:$0xff]
    %v2950 = vld [vmem:[%s2942 + $0x38] sm:$0xff]
    %v2951 = vld [vmem:[%s2942 + $0x40] sm:$0xff]
    %v2952 = vld [vmem:[%s2942 + $0x48] sm:$0xff]
    %v2953 = vld [vmem:[%s2942 + $0x50] sm:$0xff]
    %v2954 = vld [vmem:[%s2942 + $0x58] sm:$0xff]
    %v2955 = vld [vmem:[%s2942 + $0x60] sm:$0xff]
    %v2956 = vld [vmem:[%s2942 + $0x68] sm:$0xff]
    %v2957 = vld [vmem:[%s2942 + $0x70] sm:$0xff]
    %v2958 = vld [vmem:[%s2942 + $0x78] sm:$0xff]
    %v2960 = vsel %vm931, %v2943, 0
    %v2963 = vsel %vm931, %v2944, 0
    %v2966 = vsel %vm931, %v2945, 0
    %v2969 = vsel %vm931, %v2946, 0
    %v2972 = vsel %vm931, %v2947, 0
    %v2975 = vsel %vm931, %v2948, 0
    %v2978 = vsel %vm931, %v2949, 0
    %v2981 = vsel %vm931, %v2950, 0
    %v2984 = vsel %vm931, %v2951, 0
    %v2987 = vsel %vm931, %v2952, 0
    %v2990 = vsel %vm931, %v2953, 0
    %v2993 = vsel %vm931, %v2954, 0
    %v2996 = vsel %vm931, %v2955, 0
    %v2999 = vsel %vm931, %v2956, 0
    %v3002 = vsel %vm931, %v2957, 0
    %v3005 = vsel %vm931, %v2958, 0
    %3007 = vmatprep.subr.mxu0 0.0
    %3008 = vmatpush1.msra.mxu0 0.0
    %3009 = vmatprep.subr.mxu0 0.0
    %3010 = vmatpush1.msra.mxu0 0.0
    %3011 = vmatprep.subr.mxu0 0.0
    %3012 = vmatpush1.msra.mxu0 0.0
    %3013 = vmatprep.subr.mxu0 0.0
    %3014 = vmatpush1.msra.mxu0 0.0
    %3015 = vmatprep.subr.mxu0 0.0
    %3016 = vmatpush1.msra.mxu0 0.0
    %3017 = vmatprep.subr.mxu0 0.0
    %3018 = vmatpush1.msra.mxu0 0.0
    %3019 = vmatprep.subr.mxu0 0.0
    %3020 = vmatpush1.msra.mxu0 0.0
    %3021 = vmatprep.subr.mxu0 0.0
    %3022 = vmatpush1.msra.mxu0 0.0
    %3023 = vmatprep.subr.mxu0 0.0
    %3024 = vmatpush1.msra.mxu0 %v2939
    %3025 = vmatprep.subr.mxu0 0.0
    %3026 = vmatpush1.msra.mxu0 %v2934
    %3027 = vmatprep.subr.mxu0 0.0
    %3028 = vmatpush1.msra.mxu0 %v2929
    %3029 = vmatprep.subr.mxu0 0.0
    %3030 = vmatpush1.msra.mxu0 %v2924
    %3031 = vmatprep.subr.mxu0 0.0
    %3032 = vmatpush1.msra.mxu0 %v2919
    %3033 = vmatprep.subr.mxu0 0.0
    %3034 = vmatpush1.msra.mxu0 %v2914
    %3035 = vmatprep.subr.mxu0 0.0
    %3036 = vmatpush1.msra.mxu0 %v2909
    %3037 = vmatprep.subr.mxu0 0.0
    %3038 = vmatpush1.msra.mxu0 %v2904
    %3039 = vmatprep.subr.mxu0 0.0
    %3040 = vmatpush2.msra.mxu0 0.0
    %3041 = vmatprep.subr.mxu0 0.0
    %3042 = vmatpush2.msra.mxu0 0.0
    %3043 = vmatprep.subr.mxu0 0.0
    %3044 = vmatpush2.msra.mxu0 0.0
    %3045 = vmatprep.subr.mxu0 0.0
    %3046 = vmatpush2.msra.mxu0 0.0
    %3047 = vmatprep.subr.mxu0 0.0
    %3048 = vmatpush2.msra.mxu0 0.0
    %3049 = vmatprep.subr.mxu0 0.0
    %3050 = vmatpush2.msra.mxu0 0.0
    %3051 = vmatprep.subr.mxu0 0.0
    %3052 = vmatpush2.msra.mxu0 0.0
    %3053 = vmatprep.subr.mxu0 0.0
    %3054 = vmatpush2.msra.mxu0 0.0
    %3055 = vmatprep.subr.mxu0 0.0
    %3056 = vmatpush2.msra.mxu0 0.0
    %3057 = vmatprep.subr.mxu0 0.0
    %3058 = vmatpush2.msra.mxu0 0.0
    %3059 = vmatprep.subr.mxu0 0.0
    %3060 = vmatpush2.msra.mxu0 0.0
    %3061 = vmatprep.subr.mxu0 0.0
    %3062 = vmatpush2.msra.mxu0 0.0
    %3063 = vmatprep.subr.mxu0 0.0
    %3064 = vmatpush2.msra.mxu0 0.0
    %3065 = vmatprep.subr.mxu0 0.0
    %3066 = vmatpush2.msra.mxu0 0.0
    %3067 = vmatprep.subr.mxu0 0.0
    %3068 = vmatpush2.msra.mxu0 0.0
    %3069 = vmatprep.subr.mxu0 0.0
    %3070 = vmatpush2.msra.mxu0 0.0
    %3071 = vmatprep.mubr.f32.mxu0 0.0
    %3072 = vmatmul.mubr.f32.gmra.mxu0 %v2960
    %v3073 = vpop.f32.mrf.mxu0
    %v3074 = vadd.f32 0.0, %v3073
    %v3075 = vpop.f32.mrf.mxu0
    %3076 = vmatprep.mubr.f32.mxu0 0.0
    %3077 = vmatmul.mubr.f32.gmra.mxu0 %v2963
    %v3078 = vpop.f32.mrf.mxu0
    %v3079 = vadd.f32 0.0, %v3078
    %v3080 = vpop.f32.mrf.mxu0
    %3081 = vmatprep.mubr.f32.mxu0 0.0
    %3082 = vmatmul.mubr.f32.gmra.mxu0 %v2966
    %v3083 = vpop.f32.mrf.mxu0
    %v3084 = vadd.f32 0.0, %v3083
    %v3085 = vpop.f32.mrf.mxu0
    %3086 = vmatprep.mubr.f32.mxu0 0.0
    %3087 = vmatmul.mubr.f32.gmra.mxu0 %v2969
    %v3088 = vpop.f32.mrf.mxu0
    %v3089 = vadd.f32 0.0, %v3088
    %v3090 = vpop.f32.mrf.mxu0
    %3091 = vmatprep.mubr.f32.mxu0 0.0
    %3092 = vmatmul.mubr.f32.gmra.mxu0 %v2972
    %v3093 = vpop.f32.mrf.mxu0
    %v3094 = vadd.f32 0.0, %v3093
    %v3095 = vpop.f32.mrf.mxu0
    %3096 = vmatprep.mubr.f32.mxu0 0.0
    %3097 = vmatmul.mubr.f32.gmra.mxu0 %v2975
    %v3098 = vpop.f32.mrf.mxu0
    %v3099 = vadd.f32 0.0, %v3098
    %v3100 = vpop.f32.mrf.mxu0
    %3101 = vmatprep.mubr.f32.mxu0 0.0
    %3102 = vmatmul.mubr.f32.gmra.mxu0 %v2978
    %v3103 = vpop.f32.mrf.mxu0
    %v3104 = vadd.f32 0.0, %v3103
    %v3105 = vpop.f32.mrf.mxu0
    %3106 = vmatprep.mubr.f32.mxu0 0.0
    %3107 = vmatmul.mubr.f32.gmra.mxu0 %v2981
    %v3108 = vpop.f32.mrf.mxu0
    %v3109 = vadd.f32 0.0, %v3108
    %v3110 = vpop.f32.mrf.mxu0
    %3111 = vmatprep.mubr.f32.mxu0 0.0
    %3112 = vmatmul.mubr.f32.gmra.mxu0 %v2984
    %v3113 = vpop.f32.mrf.mxu0
    %v3114 = vadd.f32 0.0, %v3113
    %v3115 = vpop.f32.mrf.mxu0
    %3116 = vmatprep.mubr.f32.mxu0 0.0
    %3117 = vmatmul.mubr.f32.gmra.mxu0 %v2987
    %v3118 = vpop.f32.mrf.mxu0
    %v3119 = vadd.f32 0.0, %v3118
    %v3120 = vpop.f32.mrf.mxu0
    %3121 = vmatprep.mubr.f32.mxu0 0.0
    %3122 = vmatmul.mubr.f32.gmra.mxu0 %v2990
    %v3123 = vpop.f32.mrf.mxu0
    %v3124 = vadd.f32 0.0, %v3123
    %v3125 = vpop.f32.mrf.mxu0
    %3126 = vmatprep.mubr.f32.mxu0 0.0
    %3127 = vmatmul.mubr.f32.gmra.mxu0 %v2993
    %v3128 = vpop.f32.mrf.mxu0
    %v3129 = vadd.f32 0.0, %v3128
    %v3130 = vpop.f32.mrf.mxu0
    %3131 = vmatprep.mubr.f32.mxu0 0.0
    %3132 = vmatmul.mubr.f32.gmra.mxu0 %v2996
    %v3133 = vpop.f32.mrf.mxu0
    %v3134 = vadd.f32 0.0, %v3133
    %v3135 = vpop.f32.mrf.mxu0
    %3136 = vmatprep.mubr.f32.mxu0 0.0
    %3137 = vmatmul.mubr.f32.gmra.mxu0 %v2999
    %v3138 = vpop.f32.mrf.mxu0
    %v3139 = vadd.f32 0.0, %v3138
    %v3140 = vpop.f32.mrf.mxu0
    %3141 = vmatprep.mubr.f32.mxu0 0.0
    %3142 = vmatmul.mubr.f32.gmra.mxu0 %v3002
    %v3143 = vpop.f32.mrf.mxu0
    %v3144 = vadd.f32 0.0, %v3143
    %v3145 = vpop.f32.mrf.mxu0
    %3146 = vmatprep.mubr.f32.mxu0 0.0
    %3147 = vmatmul.mubr.f32.gmra.mxu0 %v3005
    %v3148 = vpop.f32.mrf.mxu0
    %v3149 = vadd.f32 0.0, %v3148
    %v3150 = vpop.f32.mrf.mxu0
    %3151 = vdwg.mxu0
    %v3152 = vadd.f32 %v2804, %v3074
    %v3153 = vadd.f32 %v2805, %v3079
    %v3154 = vadd.f32 %v2806, %v3084
    %v3155 = vadd.f32 %v2807, %v3089
    %v3156 = vadd.f32 %v2808, %v3094
    %v3157 = vadd.f32 %v2809, %v3099
    %v3158 = vadd.f32 %v2810, %v3104
    %v3159 = vadd.f32 %v2811, %v3109
    %v3160 = vadd.f32 %v2812, %v3114
    %v3161 = vadd.f32 %v2813, %v3119
    %v3162 = vadd.f32 %v2814, %v3124
    %v3163 = vadd.f32 %v2815, %v3129
    %v3164 = vadd.f32 %v2816, %v3134
    %v3165 = vadd.f32 %v2817, %v3139
    %v3166 = vadd.f32 %v2818, %v3144
    %v3167 = vadd.f32 %v2819, %v3149
    %s3168 = scalar_lea.vmem %s2, 512
    %v3169 = vld [vmem:[%s3168] sm:$0xff]
    %v3170 = vld [vmem:[%s3168 + $0x8] sm:$0xff]
    %v3171 = vld [vmem:[%s3168 + $0x10] sm:$0xff]
    %v3172 = vld [vmem:[%s3168 + $0x18] sm:$0xff]
    %v3173 = vld [vmem:[%s3168 + $0x20] sm:$0xff]
    %v3174 = vld [vmem:[%s3168 + $0x28] sm:$0xff]
    %v3175 = vld [vmem:[%s3168 + $0x30] sm:$0xff]
    %v3176 = vld [vmem:[%s3168 + $0x38] sm:$0xff]
    %v3177 = vld [vmem:[%s3168 + $0x40] sm:$0xff]
    %v3178 = vld [vmem:[%s3168 + $0x48] sm:$0xff]
    %v3179 = vld [vmem:[%s3168 + $0x50] sm:$0xff]
    %v3180 = vld [vmem:[%s3168 + $0x58] sm:$0xff]
    %v3181 = vld [vmem:[%s3168 + $0x60] sm:$0xff]
    %v3182 = vld [vmem:[%s3168 + $0x68] sm:$0xff]
    %v3183 = vld [vmem:[%s3168 + $0x70] sm:$0xff]
    %v3184 = vld [vmem:[%s3168 + $0x78] sm:$0xff]
    %v3186 = vsel %vm931, %v3169, 0
    %v3189 = vsel %vm931, %v3170, 0
    %v3192 = vsel %vm931, %v3171, 0
    %v3195 = vsel %vm931, %v3172, 0
    %v3198 = vsel %vm931, %v3173, 0
    %v3201 = vsel %vm931, %v3174, 0
    %v3204 = vsel %vm931, %v3175, 0
    %v3207 = vsel %vm931, %v3176, 0
    %v3210 = vsel %vm931, %v3177, 0
    %v3213 = vsel %vm931, %v3178, 0
    %v3216 = vsel %vm931, %v3179, 0
    %v3219 = vsel %vm931, %v3180, 0
    %v3222 = vsel %vm931, %v3181, 0
    %v3225 = vsel %vm931, %v3182, 0
    %v3228 = vsel %vm931, %v3183, 0
    %v3231 = vsel %vm931, %v3184, 0
    %3233 = vmatprep.subr.mxu0 0.0
    %3234 = vmatpush1.msra.mxu0 0.0
    %3235 = vmatprep.subr.mxu0 0.0
    %3236 = vmatpush1.msra.mxu0 0.0
    %3237 = vmatprep.subr.mxu0 0.0
    %3238 = vmatpush1.msra.mxu0 0.0
    %3239 = vmatprep.subr.mxu0 0.0
    %3240 = vmatpush1.msra.mxu0 0.0
    %3241 = vmatprep.subr.mxu0 0.0
    %3242 = vmatpush1.msra.mxu0 0.0
    %3243 = vmatprep.subr.mxu0 0.0
    %3244 = vmatpush1.msra.mxu0 0.0
    %3245 = vmatprep.subr.mxu0 0.0
    %3246 = vmatpush1.msra.mxu0 0.0
    %3247 = vmatprep.subr.mxu0 0.0
    %3248 = vmatpush1.msra.mxu0 0.0
    %3249 = vmatprep.subr.mxu0 0.0
    %3250 = vmatpush1.msra.mxu0 %v1809
    %3251 = vmatprep.subr.mxu0 0.0
    %3252 = vmatpush1.msra.mxu0 %v1808
    %3253 = vmatprep.subr.mxu0 0.0
    %3254 = vmatpush1.msra.mxu0 %v1807
    %3255 = vmatprep.subr.mxu0 0.0
    %3256 = vmatpush1.msra.mxu0 %v1806
    %3257 = vmatprep.subr.mxu0 0.0
    %3258 = vmatpush1.msra.mxu0 %v1805
    %3259 = vmatprep.subr.mxu0 0.0
    %3260 = vmatpush1.msra.mxu0 %v1804
    %3261 = vmatprep.subr.mxu0 0.0
    %3262 = vmatpush1.msra.mxu0 %v1803
    %3263 = vmatprep.subr.mxu0 0.0
    %3264 = vmatpush1.msra.mxu0 %v1802
    %3265 = vmatprep.subr.mxu0 0.0
    %3266 = vmatpush2.msra.mxu0 0.0
    %3267 = vmatprep.subr.mxu0 0.0
    %3268 = vmatpush2.msra.mxu0 0.0
    %3269 = vmatprep.subr.mxu0 0.0
    %3270 = vmatpush2.msra.mxu0 0.0
    %3271 = vmatprep.subr.mxu0 0.0
    %3272 = vmatpush2.msra.mxu0 0.0
    %3273 = vmatprep.subr.mxu0 0.0
    %3274 = vmatpush2.msra.mxu0 0.0
    %3275 = vmatprep.subr.mxu0 0.0
    %3276 = vmatpush2.msra.mxu0 0.0
    %3277 = vmatprep.subr.mxu0 0.0
    %3278 = vmatpush2.msra.mxu0 0.0
    %3279 = vmatprep.subr.mxu0 0.0
    %3280 = vmatpush2.msra.mxu0 0.0
    %3281 = vmatprep.subr.mxu0 0.0
    %3282 = vmatpush2.msra.mxu0 0.0
    %3283 = vmatprep.subr.mxu0 0.0
    %3284 = vmatpush2.msra.mxu0 0.0
    %3285 = vmatprep.subr.mxu0 0.0
    %3286 = vmatpush2.msra.mxu0 0.0
    %3287 = vmatprep.subr.mxu0 0.0
    %3288 = vmatpush2.msra.mxu0 0.0
    %3289 = vmatprep.subr.mxu0 0.0
    %3290 = vmatpush2.msra.mxu0 0.0
    %3291 = vmatprep.subr.mxu0 0.0
    %3292 = vmatpush2.msra.mxu0 0.0
    %3293 = vmatprep.subr.mxu0 0.0
    %3294 = vmatpush2.msra.mxu0 0.0
    %3295 = vmatprep.subr.mxu0 0.0
    %3296 = vmatpush2.msra.mxu0 0.0
    %3297 = vmatprep.mubr.f32.mxu0 0.0
    %3298 = vmatmul.mubr.f32.gmra.mxu0 %v3186
    %v3299 = vpop.f32.mrf.mxu0
    %v3300 = vadd.f32 0.0, %v3299
    %v3301 = vpop.f32.mrf.mxu0
    %3302 = vmatprep.mubr.f32.mxu0 0.0
    %3303 = vmatmul.mubr.f32.gmra.mxu0 %v3189
    %v3304 = vpop.f32.mrf.mxu0
    %v3305 = vadd.f32 0.0, %v3304
    %v3306 = vpop.f32.mrf.mxu0
    %3307 = vmatprep.mubr.f32.mxu0 0.0
    %3308 = vmatmul.mubr.f32.gmra.mxu0 %v3192
    %v3309 = vpop.f32.mrf.mxu0
    %v3310 = vadd.f32 0.0, %v3309
    %v3311 = vpop.f32.mrf.mxu0
    %3312 = vmatprep.mubr.f32.mxu0 0.0
    %3313 = vmatmul.mubr.f32.gmra.mxu0 %v3195
    %v3314 = vpop.f32.mrf.mxu0
    %v3315 = vadd.f32 0.0, %v3314
    %v3316 = vpop.f32.mrf.mxu0
    %3317 = vmatprep.mubr.f32.mxu0 0.0
    %3318 = vmatmul.mubr.f32.gmra.mxu0 %v3198
    %v3319 = vpop.f32.mrf.mxu0
    %v3320 = vadd.f32 0.0, %v3319
    %v3321 = vpop.f32.mrf.mxu0
    %3322 = vmatprep.mubr.f32.mxu0 0.0
    %3323 = vmatmul.mubr.f32.gmra.mxu0 %v3201
    %v3324 = vpop.f32.mrf.mxu0
    %v3325 = vadd.f32 0.0, %v3324
    %v3326 = vpop.f32.mrf.mxu0
    %3327 = vmatprep.mubr.f32.mxu0 0.0
    %3328 = vmatmul.mubr.f32.gmra.mxu0 %v3204
    %v3329 = vpop.f32.mrf.mxu0
    %v3330 = vadd.f32 0.0, %v3329
    %v3331 = vpop.f32.mrf.mxu0
    %3332 = vmatprep.mubr.f32.mxu0 0.0
    %3333 = vmatmul.mubr.f32.gmra.mxu0 %v3207
    %v3334 = vpop.f32.mrf.mxu0
    %v3335 = vadd.f32 0.0, %v3334
    %v3336 = vpop.f32.mrf.mxu0
    %3337 = vmatprep.mubr.f32.mxu0 0.0
    %3338 = vmatmul.mubr.f32.gmra.mxu0 %v3210
    %v3339 = vpop.f32.mrf.mxu0
    %v3340 = vadd.f32 0.0, %v3339
    %v3341 = vpop.f32.mrf.mxu0
    %3342 = vmatprep.mubr.f32.mxu0 0.0
    %3343 = vmatmul.mubr.f32.gmra.mxu0 %v3213
    %v3344 = vpop.f32.mrf.mxu0
    %v3345 = vadd.f32 0.0, %v3344
    %v3346 = vpop.f32.mrf.mxu0
    %3347 = vmatprep.mubr.f32.mxu0 0.0
    %3348 = vmatmul.mubr.f32.gmra.mxu0 %v3216
    %v3349 = vpop.f32.mrf.mxu0
    %v3350 = vadd.f32 0.0, %v3349
    %v3351 = vpop.f32.mrf.mxu0
    %3352 = vmatprep.mubr.f32.mxu0 0.0
    %3353 = vmatmul.mubr.f32.gmra.mxu0 %v3219
    %v3354 = vpop.f32.mrf.mxu0
    %v3355 = vadd.f32 0.0, %v3354
    %v3356 = vpop.f32.mrf.mxu0
    %3357 = vmatprep.mubr.f32.mxu0 0.0
    %3358 = vmatmul.mubr.f32.gmra.mxu0 %v3222
    %v3359 = vpop.f32.mrf.mxu0
    %v3360 = vadd.f32 0.0, %v3359
    %v3361 = vpop.f32.mrf.mxu0
    %3362 = vmatprep.mubr.f32.mxu0 0.0
    %3363 = vmatmul.mubr.f32.gmra.mxu0 %v3225
    %v3364 = vpop.f32.mrf.mxu0
    %v3365 = vadd.f32 0.0, %v3364
    %v3366 = vpop.f32.mrf.mxu0
    %3367 = vmatprep.mubr.f32.mxu0 0.0
    %3368 = vmatmul.mubr.f32.gmra.mxu0 %v3228
    %v3369 = vpop.f32.mrf.mxu0
    %v3370 = vadd.f32 0.0, %v3369
    %v3371 = vpop.f32.mrf.mxu0
    %3372 = vmatprep.mubr.f32.mxu0 0.0
    %3373 = vmatmul.mubr.f32.gmra.mxu0 %v3231
    %v3374 = vpop.f32.mrf.mxu0
    %v3375 = vadd.f32 0.0, %v3374
    %v3376 = vpop.f32.mrf.mxu0
    %3377 = vdwg.mxu0
    %v3378 = vadd.f32 %v3152, %v3300
    %v3379 = vadd.f32 %v3153, %v3305
    %v3380 = vadd.f32 %v3154, %v3310
    %v3381 = vadd.f32 %v3155, %v3315
    %v3382 = vadd.f32 %v3156, %v3320
    %v3383 = vadd.f32 %v3157, %v3325
    %v3384 = vadd.f32 %v3158, %v3330
    %v3385 = vadd.f32 %v3159, %v3335
    %v3386 = vadd.f32 %v3160, %v3340
    %v3387 = vadd.f32 %v3161, %v3345
    %v3388 = vadd.f32 %v3162, %v3350
    %v3389 = vadd.f32 %v3163, %v3355
    %v3390 = vadd.f32 %v3164, %v3360
    %v3391 = vadd.f32 %v3165, %v3365
    %v3392 = vadd.f32 %v3166, %v3370
    %v3393 = vadd.f32 %v3167, %v3375
    %s3394 = scalar_lea.vmem %s8, 640
    %v3395 = vld [vmem:[%s3394] sm:$0xff]
    %v3396 = vld [vmem:[%s3394 + $0x8] sm:$0xff]
    %v3397 = vld [vmem:[%s3394 + $0x10] sm:$0xff]
    %v3398 = vld [vmem:[%s3394 + $0x18] sm:$0xff]
    %v3399 = vld [vmem:[%s3394 + $0x20] sm:$0xff]
    %v3400 = vld [vmem:[%s3394 + $0x28] sm:$0xff]
    %v3401 = vld [vmem:[%s3394 + $0x30] sm:$0xff]
    %v3402 = vld [vmem:[%s3394 + $0x38] sm:$0xff]
    %v3403 = vld [vmem:[%s3394 + $0x40] sm:$0xff]
    %v3404 = vld [vmem:[%s3394 + $0x48] sm:$0xff]
    %v3405 = vld [vmem:[%s3394 + $0x50] sm:$0xff]
    %v3406 = vld [vmem:[%s3394 + $0x58] sm:$0xff]
    %v3407 = vld [vmem:[%s3394 + $0x60] sm:$0xff]
    %v3408 = vld [vmem:[%s3394 + $0x68] sm:$0xff]
    %v3409 = vld [vmem:[%s3394 + $0x70] sm:$0xff]
    %v3410 = vld [vmem:[%s3394 + $0x78] sm:$0xff]
    %3411 = vmatprep.subr.mxu0 0.0
    %3412 = vmatpush1.msra.mxu0 %v3410
    %3413 = vmatprep.subr.mxu0 0.0
    %3414 = vmatpush1.msra.mxu0 %v3409
    %3415 = vmatprep.subr.mxu0 0.0
    %3416 = vmatpush1.msra.mxu0 %v3408
    %3417 = vmatprep.subr.mxu0 0.0
    %3418 = vmatpush1.msra.mxu0 %v3407
    %3419 = vmatprep.subr.mxu0 0.0
    %3420 = vmatpush1.msra.mxu0 %v3406
    %3421 = vmatprep.subr.mxu0 0.0
    %3422 = vmatpush1.msra.mxu0 %v3405
    %3423 = vmatprep.subr.mxu0 0.0
    %3424 = vmatpush1.msra.mxu0 %v3404
    %3425 = vmatprep.subr.mxu0 0.0
    %3426 = vmatpush1.msra.mxu0 %v3403
    %3427 = vmatprep.subr.mxu0 0.0
    %3428 = vmatpush1.msra.mxu0 %v3402
    %3429 = vmatprep.subr.mxu0 0.0
    %3430 = vmatpush1.msra.mxu0 %v3401
    %3431 = vmatprep.subr.mxu0 0.0
    %3432 = vmatpush1.msra.mxu0 %v3400
    %3433 = vmatprep.subr.mxu0 0.0
    %3434 = vmatpush1.msra.mxu0 %v3399
    %3435 = vmatprep.subr.mxu0 0.0
    %3436 = vmatpush1.msra.mxu0 %v3398
    %3437 = vmatprep.subr.mxu0 0.0
    %3438 = vmatpush1.msra.mxu0 %v3397
    %3439 = vmatprep.subr.mxu0 0.0
    %3440 = vmatpush1.msra.mxu0 %v3396
    %3441 = vmatprep.subr.mxu0 0.0
    %3442 = vmatpush1.msra.mxu0 %v3395
    %3443 = vmatprep.subr.mxu0 0.0
    %3444 = vmatpush2.msra.mxu0 0.0
    %3445 = vmatprep.subr.mxu0 0.0
    %3446 = vmatpush2.msra.mxu0 0.0
    %3447 = vmatprep.subr.mxu0 0.0
    %3448 = vmatpush2.msra.mxu0 0.0
    %3449 = vmatprep.subr.mxu0 0.0
    %3450 = vmatpush2.msra.mxu0 0.0
    %3451 = vmatprep.subr.mxu0 0.0
    %3452 = vmatpush2.msra.mxu0 0.0
    %3453 = vmatprep.subr.mxu0 0.0
    %3454 = vmatpush2.msra.mxu0 0.0
    %3455 = vmatprep.subr.mxu0 0.0
    %3456 = vmatpush2.msra.mxu0 0.0
    %3457 = vmatprep.subr.mxu0 0.0
    %3458 = vmatpush2.msra.mxu0 0.0
    %3459 = vmatprep.subr.mxu0 0.0
    %3460 = vmatpush2.msra.mxu0 0.0
    %3461 = vmatprep.subr.mxu0 0.0
    %3462 = vmatpush2.msra.mxu0 0.0
    %3463 = vmatprep.subr.mxu0 0.0
    %3464 = vmatpush2.msra.mxu0 0.0
    %3465 = vmatprep.subr.mxu0 0.0
    %3466 = vmatpush2.msra.mxu0 0.0
    %3467 = vmatprep.subr.mxu0 0.0
    %3468 = vmatpush2.msra.mxu0 0.0
    %3469 = vmatprep.subr.mxu0 0.0
    %3470 = vmatpush2.msra.mxu0 0.0
    %3471 = vmatprep.subr.mxu0 0.0
    %3472 = vmatpush2.msra.mxu0 0.0
    %3473 = vmatprep.subr.mxu0 0.0
    %3474 = vmatpush2.msra.mxu0 0.0
    %3475 = vmatprep.mubr.f32.mxu0 0.0
    %3476 = vmatmul.mubr.f32.gmra.mxu0 %v1802
    %v3477 = vpop.f32.mrf.mxu0
    %v3478 = vadd.f32 0.0, %v3477
    %v3479 = vpop.f32.mrf.mxu0
    %3480 = vmatprep.mubr.f32.mxu0 0.0
    %3481 = vmatmul.mubr.f32.gmra.mxu0 %v1803
    %v3482 = vpop.f32.mrf.mxu0
    %v3483 = vadd.f32 0.0, %v3482
    %v3484 = vpop.f32.mrf.mxu0
    %3485 = vmatprep.mubr.f32.mxu0 0.0
    %3486 = vmatmul.mubr.f32.gmra.mxu0 %v1804
    %v3487 = vpop.f32.mrf.mxu0
    %v3488 = vadd.f32 0.0, %v3487
    %v3489 = vpop.f32.mrf.mxu0
    %3490 = vmatprep.mubr.f32.mxu0 0.0
    %3491 = vmatmul.mubr.f32.gmra.mxu0 %v1805
    %v3492 = vpop.f32.mrf.mxu0
    %v3493 = vadd.f32 0.0, %v3492
    %v3494 = vpop.f32.mrf.mxu0
    %3495 = vmatprep.mubr.f32.mxu0 0.0
    %3496 = vmatmul.mubr.f32.gmra.mxu0 %v1806
    %v3497 = vpop.f32.mrf.mxu0
    %v3498 = vadd.f32 0.0, %v3497
    %v3499 = vpop.f32.mrf.mxu0
    %3500 = vmatprep.mubr.f32.mxu0 0.0
    %3501 = vmatmul.mubr.f32.gmra.mxu0 %v1807
    %v3502 = vpop.f32.mrf.mxu0
    %v3503 = vadd.f32 0.0, %v3502
    %v3504 = vpop.f32.mrf.mxu0
    %3505 = vmatprep.mubr.f32.mxu0 0.0
    %3506 = vmatmul.mubr.f32.gmra.mxu0 %v1808
    %v3507 = vpop.f32.mrf.mxu0
    %v3508 = vadd.f32 0.0, %v3507
    %v3509 = vpop.f32.mrf.mxu0
    %3510 = vmatprep.mubr.f32.mxu0 0.0
    %3511 = vmatmul.mubr.f32.gmra.mxu0 %v1809
    %v3512 = vpop.f32.mrf.mxu0
    %v3513 = vadd.f32 0.0, %v3512
    %v3514 = vpop.f32.mrf.mxu0
    %3515 = vdwg.mxu0
    %s3516 = scalar_lea.vmem %s2, 640
    %v3517 = vld [vmem:[%s3516] sm:$0xff]
    %v3518 = vld [vmem:[%s3516 + $0x8] sm:$0xff]
    %v3519 = vld [vmem:[%s3516 + $0x10] sm:$0xff]
    %v3520 = vld [vmem:[%s3516 + $0x18] sm:$0xff]
    %v3521 = vld [vmem:[%s3516 + $0x20] sm:$0xff]
    %v3522 = vld [vmem:[%s3516 + $0x28] sm:$0xff]
    %v3523 = vld [vmem:[%s3516 + $0x30] sm:$0xff]
    %v3524 = vld [vmem:[%s3516 + $0x38] sm:$0xff]
    %v3525 = vld [vmem:[%s3516 + $0x40] sm:$0xff]
    %v3526 = vld [vmem:[%s3516 + $0x48] sm:$0xff]
    %v3527 = vld [vmem:[%s3516 + $0x50] sm:$0xff]
    %v3528 = vld [vmem:[%s3516 + $0x58] sm:$0xff]
    %v3529 = vld [vmem:[%s3516 + $0x60] sm:$0xff]
    %v3530 = vld [vmem:[%s3516 + $0x68] sm:$0xff]
    %v3531 = vld [vmem:[%s3516 + $0x70] sm:$0xff]
    %v3532 = vld [vmem:[%s3516 + $0x78] sm:$0xff]
    %v3534 = vsel %vm931, %v3517, 0
    %v3537 = vsel %vm931, %v3518, 0
    %v3540 = vsel %vm931, %v3519, 0
    %v3543 = vsel %vm931, %v3520, 0
    %v3546 = vsel %vm931, %v3521, 0
    %v3549 = vsel %vm931, %v3522, 0
    %v3552 = vsel %vm931, %v3523, 0
    %v3555 = vsel %vm931, %v3524, 0
    %v3558 = vsel %vm931, %v3525, 0
    %v3561 = vsel %vm931, %v3526, 0
    %v3564 = vsel %vm931, %v3527, 0
    %v3567 = vsel %vm931, %v3528, 0
    %v3570 = vsel %vm931, %v3529, 0
    %v3573 = vsel %vm931, %v3530, 0
    %v3576 = vsel %vm931, %v3531, 0
    %v3579 = vsel %vm931, %v3532, 0
    %3581 = vmatprep.subr.mxu0 0.0
    %3582 = vmatpush1.msra.mxu0 0.0
    %3583 = vmatprep.subr.mxu0 0.0
    %3584 = vmatpush1.msra.mxu0 0.0
    %3585 = vmatprep.subr.mxu0 0.0
    %3586 = vmatpush1.msra.mxu0 0.0
    %3587 = vmatprep.subr.mxu0 0.0
    %3588 = vmatpush1.msra.mxu0 0.0
    %3589 = vmatprep.subr.mxu0 0.0
    %3590 = vmatpush1.msra.mxu0 0.0
    %3591 = vmatprep.subr.mxu0 0.0
    %3592 = vmatpush1.msra.mxu0 0.0
    %3593 = vmatprep.subr.mxu0 0.0
    %3594 = vmatpush1.msra.mxu0 0.0
    %3595 = vmatprep.subr.mxu0 0.0
    %3596 = vmatpush1.msra.mxu0 0.0
    %3597 = vmatprep.subr.mxu0 0.0
    %3598 = vmatpush1.msra.mxu0 %v3513
    %3599 = vmatprep.subr.mxu0 0.0
    %3600 = vmatpush1.msra.mxu0 %v3508
    %3601 = vmatprep.subr.mxu0 0.0
    %3602 = vmatpush1.msra.mxu0 %v3503
    %3603 = vmatprep.subr.mxu0 0.0
    %3604 = vmatpush1.msra.mxu0 %v3498
    %3605 = vmatprep.subr.mxu0 0.0
    %3606 = vmatpush1.msra.mxu0 %v3493
    %3607 = vmatprep.subr.mxu0 0.0
    %3608 = vmatpush1.msra.mxu0 %v3488
    %3609 = vmatprep.subr.mxu0 0.0
    %3610 = vmatpush1.msra.mxu0 %v3483
    %3611 = vmatprep.subr.mxu0 0.0
    %3612 = vmatpush1.msra.mxu0 %v3478
    %3613 = vmatprep.subr.mxu0 0.0
    %3614 = vmatpush2.msra.mxu0 0.0
    %3615 = vmatprep.subr.mxu0 0.0
    %3616 = vmatpush2.msra.mxu0 0.0
    %3617 = vmatprep.subr.mxu0 0.0
    %3618 = vmatpush2.msra.mxu0 0.0
    %3619 = vmatprep.subr.mxu0 0.0
    %3620 = vmatpush2.msra.mxu0 0.0
    %3621 = vmatprep.subr.mxu0 0.0
    %3622 = vmatpush2.msra.mxu0 0.0
    %3623 = vmatprep.subr.mxu0 0.0
    %3624 = vmatpush2.msra.mxu0 0.0
    %3625 = vmatprep.subr.mxu0 0.0
    %3626 = vmatpush2.msra.mxu0 0.0
    %3627 = vmatprep.subr.mxu0 0.0
    %3628 = vmatpush2.msra.mxu0 0.0
    %3629 = vmatprep.subr.mxu0 0.0
    %3630 = vmatpush2.msra.mxu0 0.0
    %3631 = vmatprep.subr.mxu0 0.0
    %3632 = vmatpush2.msra.mxu0 0.0
    %3633 = vmatprep.subr.mxu0 0.0
    %3634 = vmatpush2.msra.mxu0 0.0
    %3635 = vmatprep.subr.mxu0 0.0
    %3636 = vmatpush2.msra.mxu0 0.0
    %3637 = vmatprep.subr.mxu0 0.0
    %3638 = vmatpush2.msra.mxu0 0.0
    %3639 = vmatprep.subr.mxu0 0.0
    %3640 = vmatpush2.msra.mxu0 0.0
    %3641 = vmatprep.subr.mxu0 0.0
    %3642 = vmatpush2.msra.mxu0 0.0
    %3643 = vmatprep.subr.mxu0 0.0
    %3644 = vmatpush2.msra.mxu0 0.0
    %3645 = vmatprep.mubr.f32.mxu0 0.0
    %3646 = vmatmul.mubr.f32.gmra.mxu0 %v3534
    %v3647 = vpop.f32.mrf.mxu0
    %v3648 = vadd.f32 0.0, %v3647
    %v3649 = vpop.f32.mrf.mxu0
    %3650 = vmatprep.mubr.f32.mxu0 0.0
    %3651 = vmatmul.mubr.f32.gmra.mxu0 %v3537
    %v3652 = vpop.f32.mrf.mxu0
    %v3653 = vadd.f32 0.0, %v3652
    %v3654 = vpop.f32.mrf.mxu0
    %3655 = vmatprep.mubr.f32.mxu0 0.0
    %3656 = vmatmul.mubr.f32.gmra.mxu0 %v3540
    %v3657 = vpop.f32.mrf.mxu0
    %v3658 = vadd.f32 0.0, %v3657
    %v3659 = vpop.f32.mrf.mxu0
    %3660 = vmatprep.mubr.f32.mxu0 0.0
    %3661 = vmatmul.mubr.f32.gmra.mxu0 %v3543
    %v3662 = vpop.f32.mrf.mxu0
    %v3663 = vadd.f32 0.0, %v3662
    %v3664 = vpop.f32.mrf.mxu0
    %3665 = vmatprep.mubr.f32.mxu0 0.0
    %3666 = vmatmul.mubr.f32.gmra.mxu0 %v3546
    %v3667 = vpop.f32.mrf.mxu0
    %v3668 = vadd.f32 0.0, %v3667
    %v3669 = vpop.f32.mrf.mxu0
    %3670 = vmatprep.mubr.f32.mxu0 0.0
    %3671 = vmatmul.mubr.f32.gmra.mxu0 %v3549
    %v3672 = vpop.f32.mrf.mxu0
    %v3673 = vadd.f32 0.0, %v3672
    %v3674 = vpop.f32.mrf.mxu0
    %3675 = vmatprep.mubr.f32.mxu0 0.0
    %3676 = vmatmul.mubr.f32.gmra.mxu0 %v3552
    %v3677 = vpop.f32.mrf.mxu0
    %v3678 = vadd.f32 0.0, %v3677
    %v3679 = vpop.f32.mrf.mxu0
    %3680 = vmatprep.mubr.f32.mxu0 0.0
    %3681 = vmatmul.mubr.f32.gmra.mxu0 %v3555
    %v3682 = vpop.f32.mrf.mxu0
    %v3683 = vadd.f32 0.0, %v3682
    %v3684 = vpop.f32.mrf.mxu0
    %3685 = vmatprep.mubr.f32.mxu0 0.0
    %3686 = vmatmul.mubr.f32.gmra.mxu0 %v3558
    %v3687 = vpop.f32.mrf.mxu0
    %v3688 = vadd.f32 0.0, %v3687
    %v3689 = vpop.f32.mrf.mxu0
    %3690 = vmatprep.mubr.f32.mxu0 0.0
    %3691 = vmatmul.mubr.f32.gmra.mxu0 %v3561
    %v3692 = vpop.f32.mrf.mxu0
    %v3693 = vadd.f32 0.0, %v3692
    %v3694 = vpop.f32.mrf.mxu0
    %3695 = vmatprep.mubr.f32.mxu0 0.0
    %3696 = vmatmul.mubr.f32.gmra.mxu0 %v3564
    %v3697 = vpop.f32.mrf.mxu0
    %v3698 = vadd.f32 0.0, %v3697
    %v3699 = vpop.f32.mrf.mxu0
    %3700 = vmatprep.mubr.f32.mxu0 0.0
    %3701 = vmatmul.mubr.f32.gmra.mxu0 %v3567
    %v3702 = vpop.f32.mrf.mxu0
    %v3703 = vadd.f32 0.0, %v3702
    %v3704 = vpop.f32.mrf.mxu0
    %3705 = vmatprep.mubr.f32.mxu0 0.0
    %3706 = vmatmul.mubr.f32.gmra.mxu0 %v3570
    %v3707 = vpop.f32.mrf.mxu0
    %v3708 = vadd.f32 0.0, %v3707
    %v3709 = vpop.f32.mrf.mxu0
    %3710 = vmatprep.mubr.f32.mxu0 0.0
    %3711 = vmatmul.mubr.f32.gmra.mxu0 %v3573
    %v3712 = vpop.f32.mrf.mxu0
    %v3713 = vadd.f32 0.0, %v3712
    %v3714 = vpop.f32.mrf.mxu0
    %3715 = vmatprep.mubr.f32.mxu0 0.0
    %3716 = vmatmul.mubr.f32.gmra.mxu0 %v3576
    %v3717 = vpop.f32.mrf.mxu0
    %v3718 = vadd.f32 0.0, %v3717
    %v3719 = vpop.f32.mrf.mxu0
    %3720 = vmatprep.mubr.f32.mxu0 0.0
    %3721 = vmatmul.mubr.f32.gmra.mxu0 %v3579
    %v3722 = vpop.f32.mrf.mxu0
    %v3723 = vadd.f32 0.0, %v3722
    %v3724 = vpop.f32.mrf.mxu0
    %3725 = vdwg.mxu0
    %v3726 = vadd.f32 %v3378, %v3648
    %v3727 = vadd.f32 %v3379, %v3653
    %v3728 = vadd.f32 %v3380, %v3658
    %v3729 = vadd.f32 %v3381, %v3663
    %v3730 = vadd.f32 %v3382, %v3668
    %v3731 = vadd.f32 %v3383, %v3673
    %v3732 = vadd.f32 %v3384, %v3678
    %v3733 = vadd.f32 %v3385, %v3683
    %v3734 = vadd.f32 %v3386, %v3688
    %v3735 = vadd.f32 %v3387, %v3693
    %v3736 = vadd.f32 %v3388, %v3698
    %v3737 = vadd.f32 %v3389, %v3703
    %v3738 = vadd.f32 %v3390, %v3708
    %v3739 = vadd.f32 %v3391, %v3713
    %v3740 = vadd.f32 %v3392, %v3718
    %v3741 = vadd.f32 %v3393, %v3723
    %s3742 = scalar_lea.vmem %s8, 768
    %v3743 = vld [vmem:[%s3742] sm:$0xff]
    %v3744 = vld [vmem:[%s3742 + $0x8] sm:$0xff]
    %v3745 = vld [vmem:[%s3742 + $0x10] sm:$0xff]
    %v3746 = vld [vmem:[%s3742 + $0x18] sm:$0xff]
    %v3747 = vld [vmem:[%s3742 + $0x20] sm:$0xff]
    %v3748 = vld [vmem:[%s3742 + $0x28] sm:$0xff]
    %v3749 = vld [vmem:[%s3742 + $0x30] sm:$0xff]
    %v3750 = vld [vmem:[%s3742 + $0x38] sm:$0xff]
    %v3751 = vld [vmem:[%s3742 + $0x40] sm:$0xff]
    %v3752 = vld [vmem:[%s3742 + $0x48] sm:$0xff]
    %v3753 = vld [vmem:[%s3742 + $0x50] sm:$0xff]
    %v3754 = vld [vmem:[%s3742 + $0x58] sm:$0xff]
    %v3755 = vld [vmem:[%s3742 + $0x60] sm:$0xff]
    %v3756 = vld [vmem:[%s3742 + $0x68] sm:$0xff]
    %v3757 = vld [vmem:[%s3742 + $0x70] sm:$0xff]
    %v3758 = vld [vmem:[%s3742 + $0x78] sm:$0xff]
    %3759 = vmatprep.subr.mxu0 0.0
    %3760 = vmatpush1.msra.mxu0 %v3758
    %3761 = vmatprep.subr.mxu0 0.0
    %3762 = vmatpush1.msra.mxu0 %v3757
    %3763 = vmatprep.subr.mxu0 0.0
    %3764 = vmatpush1.msra.mxu0 %v3756
    %3765 = vmatprep.subr.mxu0 0.0
    %3766 = vmatpush1.msra.mxu0 %v3755
    %3767 = vmatprep.subr.mxu0 0.0
    %3768 = vmatpush1.msra.mxu0 %v3754
    %3769 = vmatprep.subr.mxu0 0.0
    %3770 = vmatpush1.msra.mxu0 %v3753
    %3771 = vmatprep.subr.mxu0 0.0
    %3772 = vmatpush1.msra.mxu0 %v3752
    %3773 = vmatprep.subr.mxu0 0.0
    %3774 = vmatpush1.msra.mxu0 %v3751
    %3775 = vmatprep.subr.mxu0 0.0
    %3776 = vmatpush1.msra.mxu0 %v3750
    %3777 = vmatprep.subr.mxu0 0.0
    %3778 = vmatpush1.msra.mxu0 %v3749
    %3779 = vmatprep.subr.mxu0 0.0
    %3780 = vmatpush1.msra.mxu0 %v3748
    %3781 = vmatprep.subr.mxu0 0.0
    %3782 = vmatpush1.msra.mxu0 %v3747
    %3783 = vmatprep.subr.mxu0 0.0
    %3784 = vmatpush1.msra.mxu0 %v3746
    %3785 = vmatprep.subr.mxu0 0.0
    %3786 = vmatpush1.msra.mxu0 %v3745
    %3787 = vmatprep.subr.mxu0 0.0
    %3788 = vmatpush1.msra.mxu0 %v3744
    %3789 = vmatprep.subr.mxu0 0.0
    %3790 = vmatpush1.msra.mxu0 %v3743
    %3791 = vmatprep.subr.mxu0 0.0
    %3792 = vmatpush2.msra.mxu0 0.0
    %3793 = vmatprep.subr.mxu0 0.0
    %3794 = vmatpush2.msra.mxu0 0.0
    %3795 = vmatprep.subr.mxu0 0.0
    %3796 = vmatpush2.msra.mxu0 0.0
    %3797 = vmatprep.subr.mxu0 0.0
    %3798 = vmatpush2.msra.mxu0 0.0
    %3799 = vmatprep.subr.mxu0 0.0
    %3800 = vmatpush2.msra.mxu0 0.0
    %3801 = vmatprep.subr.mxu0 0.0
    %3802 = vmatpush2.msra.mxu0 0.0
    %3803 = vmatprep.subr.mxu0 0.0
    %3804 = vmatpush2.msra.mxu0 0.0
    %3805 = vmatprep.subr.mxu0 0.0
    %3806 = vmatpush2.msra.mxu0 0.0
    %3807 = vmatprep.subr.mxu0 0.0
    %3808 = vmatpush2.msra.mxu0 0.0
    %3809 = vmatprep.subr.mxu0 0.0
    %3810 = vmatpush2.msra.mxu0 0.0
    %3811 = vmatprep.subr.mxu0 0.0
    %3812 = vmatpush2.msra.mxu0 0.0
    %3813 = vmatprep.subr.mxu0 0.0
    %3814 = vmatpush2.msra.mxu0 0.0
    %3815 = vmatprep.subr.mxu0 0.0
    %3816 = vmatpush2.msra.mxu0 0.0
    %3817 = vmatprep.subr.mxu0 0.0
    %3818 = vmatpush2.msra.mxu0 0.0
    %3819 = vmatprep.subr.mxu0 0.0
    %3820 = vmatpush2.msra.mxu0 0.0
    %3821 = vmatprep.subr.mxu0 0.0
    %3822 = vmatpush2.msra.mxu0 0.0
    %3823 = vmatprep.mubr.f32.mxu0 0.0
    %3824 = vmatmul.mubr.f32.gmra.mxu0 %v1802
    %v3825 = vpop.f32.mrf.mxu0
    %v3826 = vadd.f32 0.0, %v3825
    %v3827 = vpop.f32.mrf.mxu0
    %3828 = vmatprep.mubr.f32.mxu0 0.0
    %3829 = vmatmul.mubr.f32.gmra.mxu0 %v1803
    %v3830 = vpop.f32.mrf.mxu0
    %v3831 = vadd.f32 0.0, %v3830
    %v3832 = vpop.f32.mrf.mxu0
    %3833 = vmatprep.mubr.f32.mxu0 0.0
    %3834 = vmatmul.mubr.f32.gmra.mxu0 %v1804
    %v3835 = vpop.f32.mrf.mxu0
    %v3836 = vadd.f32 0.0, %v3835
    %v3837 = vpop.f32.mrf.mxu0
    %3838 = vmatprep.mubr.f32.mxu0 0.0
    %3839 = vmatmul.mubr.f32.gmra.mxu0 %v1805
    %v3840 = vpop.f32.mrf.mxu0
    %v3841 = vadd.f32 0.0, %v3840
    %v3842 = vpop.f32.mrf.mxu0
    %3843 = vmatprep.mubr.f32.mxu0 0.0
    %3844 = vmatmul.mubr.f32.gmra.mxu0 %v1806
    %v3845 = vpop.f32.mrf.mxu0
    %v3846 = vadd.f32 0.0, %v3845
    %v3847 = vpop.f32.mrf.mxu0
    %3848 = vmatprep.mubr.f32.mxu0 0.0
    %3849 = vmatmul.mubr.f32.gmra.mxu0 %v1807
    %v3850 = vpop.f32.mrf.mxu0
    %v3851 = vadd.f32 0.0, %v3850
    %v3852 = vpop.f32.mrf.mxu0
    %3853 = vmatprep.mubr.f32.mxu0 0.0
    %3854 = vmatmul.mubr.f32.gmra.mxu0 %v1808
    %v3855 = vpop.f32.mrf.mxu0
    %v3856 = vadd.f32 0.0, %v3855
    %v3857 = vpop.f32.mrf.mxu0
    %3858 = vmatprep.mubr.f32.mxu0 0.0
    %3859 = vmatmul.mubr.f32.gmra.mxu0 %v1809
    %v3860 = vpop.f32.mrf.mxu0
    %v3861 = vadd.f32 0.0, %v3860
    %v3862 = vpop.f32.mrf.mxu0
    %3863 = vdwg.mxu0
    %s3864 = scalar_lea.vmem %s2, 768
    %v3865 = vld [vmem:[%s3864] sm:$0xff]
    %v3866 = vld [vmem:[%s3864 + $0x8] sm:$0xff]
    %v3867 = vld [vmem:[%s3864 + $0x10] sm:$0xff]
    %v3868 = vld [vmem:[%s3864 + $0x18] sm:$0xff]
    %v3869 = vld [vmem:[%s3864 + $0x20] sm:$0xff]
    %v3870 = vld [vmem:[%s3864 + $0x28] sm:$0xff]
    %v3871 = vld [vmem:[%s3864 + $0x30] sm:$0xff]
    %v3872 = vld [vmem:[%s3864 + $0x38] sm:$0xff]
    %v3873 = vld [vmem:[%s3864 + $0x40] sm:$0xff]
    %v3874 = vld [vmem:[%s3864 + $0x48] sm:$0xff]
    %v3875 = vld [vmem:[%s3864 + $0x50] sm:$0xff]
    %v3876 = vld [vmem:[%s3864 + $0x58] sm:$0xff]
    %v3877 = vld [vmem:[%s3864 + $0x60] sm:$0xff]
    %v3878 = vld [vmem:[%s3864 + $0x68] sm:$0xff]
    %v3879 = vld [vmem:[%s3864 + $0x70] sm:$0xff]
    %v3880 = vld [vmem:[%s3864 + $0x78] sm:$0xff]
    %v3882 = vsel %vm931, %v3865, 0
    %v3885 = vsel %vm931, %v3866, 0
    %v3888 = vsel %vm931, %v3867, 0
    %v3891 = vsel %vm931, %v3868, 0
    %v3894 = vsel %vm931, %v3869, 0
    %v3897 = vsel %vm931, %v3870, 0
    %v3900 = vsel %vm931, %v3871, 0
    %v3903 = vsel %vm931, %v3872, 0
    %v3906 = vsel %vm931, %v3873, 0
    %v3909 = vsel %vm931, %v3874, 0
    %v3912 = vsel %vm931, %v3875, 0
    %v3915 = vsel %vm931, %v3876, 0
    %v3918 = vsel %vm931, %v3877, 0
    %v3921 = vsel %vm931, %v3878, 0
    %v3924 = vsel %vm931, %v3879, 0
    %v3927 = vsel %vm931, %v3880, 0
    %3929 = vmatprep.subr.mxu0 0.0
    %3930 = vmatpush1.msra.mxu0 0.0
    %3931 = vmatprep.subr.mxu0 0.0
    %3932 = vmatpush1.msra.mxu0 0.0
    %3933 = vmatprep.subr.mxu0 0.0
    %3934 = vmatpush1.msra.mxu0 0.0
    %3935 = vmatprep.subr.mxu0 0.0
    %3936 = vmatpush1.msra.mxu0 0.0
    %3937 = vmatprep.subr.mxu0 0.0
    %3938 = vmatpush1.msra.mxu0 0.0
    %3939 = vmatprep.subr.mxu0 0.0
    %3940 = vmatpush1.msra.mxu0 0.0
    %3941 = vmatprep.subr.mxu0 0.0
    %3942 = vmatpush1.msra.mxu0 0.0
    %3943 = vmatprep.subr.mxu0 0.0
    %3944 = vmatpush1.msra.mxu0 0.0
    %3945 = vmatprep.subr.mxu0 0.0
    %3946 = vmatpush1.msra.mxu0 %v3861
    %3947 = vmatprep.subr.mxu0 0.0
    %3948 = vmatpush1.msra.mxu0 %v3856
    %3949 = vmatprep.subr.mxu0 0.0
    %3950 = vmatpush1.msra.mxu0 %v3851
    %3951 = vmatprep.subr.mxu0 0.0
    %3952 = vmatpush1.msra.mxu0 %v3846
    %3953 = vmatprep.subr.mxu0 0.0
    %3954 = vmatpush1.msra.mxu0 %v3841
    %3955 = vmatprep.subr.mxu0 0.0
    %3956 = vmatpush1.msra.mxu0 %v3836
    %3957 = vmatprep.subr.mxu0 0.0
    %3958 = vmatpush1.msra.mxu0 %v3831
    %3959 = vmatprep.subr.mxu0 0.0
    %3960 = vmatpush1.msra.mxu0 %v3826
    %3961 = vmatprep.subr.mxu0 0.0
    %3962 = vmatpush2.msra.mxu0 0.0
    %3963 = vmatprep.subr.mxu0 0.0
    %3964 = vmatpush2.msra.mxu0 0.0
    %3965 = vmatprep.subr.mxu0 0.0
    %3966 = vmatpush2.msra.mxu0 0.0
    %3967 = vmatprep.subr.mxu0 0.0
    %3968 = vmatpush2.msra.mxu0 0.0
    %3969 = vmatprep.subr.mxu0 0.0
    %3970 = vmatpush2.msra.mxu0 0.0
    %3971 = vmatprep.subr.mxu0 0.0
    %3972 = vmatpush2.msra.mxu0 0.0
    %3973 = vmatprep.subr.mxu0 0.0
    %3974 = vmatpush2.msra.mxu0 0.0
    %3975 = vmatprep.subr.mxu0 0.0
    %3976 = vmatpush2.msra.mxu0 0.0
    %3977 = vmatprep.subr.mxu0 0.0
    %3978 = vmatpush2.msra.mxu0 0.0
    %3979 = vmatprep.subr.mxu0 0.0
    %3980 = vmatpush2.msra.mxu0 0.0
    %3981 = vmatprep.subr.mxu0 0.0
    %3982 = vmatpush2.msra.mxu0 0.0
    %3983 = vmatprep.subr.mxu0 0.0
    %3984 = vmatpush2.msra.mxu0 0.0
    %3985 = vmatprep.subr.mxu0 0.0
    %3986 = vmatpush2.msra.mxu0 0.0
    %3987 = vmatprep.subr.mxu0 0.0
    %3988 = vmatpush2.msra.mxu0 0.0
    %3989 = vmatprep.subr.mxu0 0.0
    %3990 = vmatpush2.msra.mxu0 0.0
    %3991 = vmatprep.subr.mxu0 0.0
    %3992 = vmatpush2.msra.mxu0 0.0
    %3993 = vmatprep.mubr.f32.mxu0 0.0
    %3994 = vmatmul.mubr.f32.gmra.mxu0 %v3882
    %v3995 = vpop.f32.mrf.mxu0
    %v3996 = vadd.f32 0.0, %v3995
    %v3997 = vpop.f32.mrf.mxu0
    %3998 = vmatprep.mubr.f32.mxu0 0.0
    %3999 = vmatmul.mubr.f32.gmra.mxu0 %v3885
    %v4000 = vpop.f32.mrf.mxu0
    %v4001 = vadd.f32 0.0, %v4000
    %v4002 = vpop.f32.mrf.mxu0
    %4003 = vmatprep.mubr.f32.mxu0 0.0
    %4004 = vmatmul.mubr.f32.gmra.mxu0 %v3888
    %v4005 = vpop.f32.mrf.mxu0
    %v4006 = vadd.f32 0.0, %v4005
    %v4007 = vpop.f32.mrf.mxu0
    %4008 = vmatprep.mubr.f32.mxu0 0.0
    %4009 = vmatmul.mubr.f32.gmra.mxu0 %v3891
    %v4010 = vpop.f32.mrf.mxu0
    %v4011 = vadd.f32 0.0, %v4010
    %v4012 = vpop.f32.mrf.mxu0
    %4013 = vmatprep.mubr.f32.mxu0 0.0
    %4014 = vmatmul.mubr.f32.gmra.mxu0 %v3894
    %v4015 = vpop.f32.mrf.mxu0
    %v4016 = vadd.f32 0.0, %v4015
    %v4017 = vpop.f32.mrf.mxu0
    %4018 = vmatprep.mubr.f32.mxu0 0.0
    %4019 = vmatmul.mubr.f32.gmra.mxu0 %v3897
    %v4020 = vpop.f32.mrf.mxu0
    %v4021 = vadd.f32 0.0, %v4020
    %v4022 = vpop.f32.mrf.mxu0
    %4023 = vmatprep.mubr.f32.mxu0 0.0
    %4024 = vmatmul.mubr.f32.gmra.mxu0 %v3900
    %v4025 = vpop.f32.mrf.mxu0
    %v4026 = vadd.f32 0.0, %v4025
    %v4027 = vpop.f32.mrf.mxu0
    %4028 = vmatprep.mubr.f32.mxu0 0.0
    %4029 = vmatmul.mubr.f32.gmra.mxu0 %v3903
    %v4030 = vpop.f32.mrf.mxu0
    %v4031 = vadd.f32 0.0, %v4030
    %v4032 = vpop.f32.mrf.mxu0
    %4033 = vmatprep.mubr.f32.mxu0 0.0
    %4034 = vmatmul.mubr.f32.gmra.mxu0 %v3906
    %v4035 = vpop.f32.mrf.mxu0
    %v4036 = vadd.f32 0.0, %v4035
    %v4037 = vpop.f32.mrf.mxu0
    %4038 = vmatprep.mubr.f32.mxu0 0.0
    %4039 = vmatmul.mubr.f32.gmra.mxu0 %v3909
    %v4040 = vpop.f32.mrf.mxu0
    %v4041 = vadd.f32 0.0, %v4040
    %v4042 = vpop.f32.mrf.mxu0
    %4043 = vmatprep.mubr.f32.mxu0 0.0
    %4044 = vmatmul.mubr.f32.gmra.mxu0 %v3912
    %v4045 = vpop.f32.mrf.mxu0
    %v4046 = vadd.f32 0.0, %v4045
    %v4047 = vpop.f32.mrf.mxu0
    %4048 = vmatprep.mubr.f32.mxu0 0.0
    %4049 = vmatmul.mubr.f32.gmra.mxu0 %v3915
    %v4050 = vpop.f32.mrf.mxu0
    %v4051 = vadd.f32 0.0, %v4050
    %v4052 = vpop.f32.mrf.mxu0
    %4053 = vmatprep.mubr.f32.mxu0 0.0
    %4054 = vmatmul.mubr.f32.gmra.mxu0 %v3918
    %v4055 = vpop.f32.mrf.mxu0
    %v4056 = vadd.f32 0.0, %v4055
    %v4057 = vpop.f32.mrf.mxu0
    %4058 = vmatprep.mubr.f32.mxu0 0.0
    %4059 = vmatmul.mubr.f32.gmra.mxu0 %v3921
    %v4060 = vpop.f32.mrf.mxu0
    %v4061 = vadd.f32 0.0, %v4060
    %v4062 = vpop.f32.mrf.mxu0
    %4063 = vmatprep.mubr.f32.mxu0 0.0
    %4064 = vmatmul.mubr.f32.gmra.mxu0 %v3924
    %v4065 = vpop.f32.mrf.mxu0
    %v4066 = vadd.f32 0.0, %v4065
    %v4067 = vpop.f32.mrf.mxu0
    %4068 = vmatprep.mubr.f32.mxu0 0.0
    %4069 = vmatmul.mubr.f32.gmra.mxu0 %v3927
    %v4070 = vpop.f32.mrf.mxu0
    %v4071 = vadd.f32 0.0, %v4070
    %v4072 = vpop.f32.mrf.mxu0
    %4073 = vdwg.mxu0
    %v4074 = vadd.f32 %v3726, %v3996
    %v4075 = vadd.f32 %v3727, %v4001
    %v4076 = vadd.f32 %v3728, %v4006
    %v4077 = vadd.f32 %v3729, %v4011
    %v4078 = vadd.f32 %v3730, %v4016
    %v4079 = vadd.f32 %v3731, %v4021
    %v4080 = vadd.f32 %v3732, %v4026
    %v4081 = vadd.f32 %v3733, %v4031
    %v4082 = vadd.f32 %v3734, %v4036
    %v4083 = vadd.f32 %v3735, %v4041
    %v4084 = vadd.f32 %v3736, %v4046
    %v4085 = vadd.f32 %v3737, %v4051
    %v4086 = vadd.f32 %v3738, %v4056
    %v4087 = vadd.f32 %v3739, %v4061
    %v4088 = vadd.f32 %v3740, %v4066
    %v4089 = vadd.f32 %v3741, %v4071
    %s4090 = scalar_lea.vmem %s8, 896
    %v4091 = vld [vmem:[%s4090] sm:$0xff]
    %v4092 = vld [vmem:[%s4090 + $0x8] sm:$0xff]
    %v4093 = vld [vmem:[%s4090 + $0x10] sm:$0xff]
    %v4094 = vld [vmem:[%s4090 + $0x18] sm:$0xff]
    %v4095 = vld [vmem:[%s4090 + $0x20] sm:$0xff]
    %v4096 = vld [vmem:[%s4090 + $0x28] sm:$0xff]
    %v4097 = vld [vmem:[%s4090 + $0x30] sm:$0xff]
    %v4098 = vld [vmem:[%s4090 + $0x38] sm:$0xff]
    %v4099 = vld [vmem:[%s4090 + $0x40] sm:$0xff]
    %v4100 = vld [vmem:[%s4090 + $0x48] sm:$0xff]
    %v4101 = vld [vmem:[%s4090 + $0x50] sm:$0xff]
    %v4102 = vld [vmem:[%s4090 + $0x58] sm:$0xff]
    %v4103 = vld [vmem:[%s4090 + $0x60] sm:$0xff]
    %v4104 = vld [vmem:[%s4090 + $0x68] sm:$0xff]
    %v4105 = vld [vmem:[%s4090 + $0x70] sm:$0xff]
    %v4106 = vld [vmem:[%s4090 + $0x78] sm:$0xff]
    %4107 = vmatprep.subr.mxu0 0.0
    %4108 = vmatpush1.msra.mxu0 %v4106
    %4109 = vmatprep.subr.mxu0 0.0
    %4110 = vmatpush1.msra.mxu0 %v4105
    %4111 = vmatprep.subr.mxu0 0.0
    %4112 = vmatpush1.msra.mxu0 %v4104
    %4113 = vmatprep.subr.mxu0 0.0
    %4114 = vmatpush1.msra.mxu0 %v4103
    %4115 = vmatprep.subr.mxu0 0.0
    %4116 = vmatpush1.msra.mxu0 %v4102
    %4117 = vmatprep.subr.mxu0 0.0
    %4118 = vmatpush1.msra.mxu0 %v4101
    %4119 = vmatprep.subr.mxu0 0.0
    %4120 = vmatpush1.msra.mxu0 %v4100
    %4121 = vmatprep.subr.mxu0 0.0
    %4122 = vmatpush1.msra.mxu0 %v4099
    %4123 = vmatprep.subr.mxu0 0.0
    %4124 = vmatpush1.msra.mxu0 %v4098
    %4125 = vmatprep.subr.mxu0 0.0
    %4126 = vmatpush1.msra.mxu0 %v4097
    %4127 = vmatprep.subr.mxu0 0.0
    %4128 = vmatpush1.msra.mxu0 %v4096
    %4129 = vmatprep.subr.mxu0 0.0
    %4130 = vmatpush1.msra.mxu0 %v4095
    %4131 = vmatprep.subr.mxu0 0.0
    %4132 = vmatpush1.msra.mxu0 %v4094
    %4133 = vmatprep.subr.mxu0 0.0
    %4134 = vmatpush1.msra.mxu0 %v4093
    %4135 = vmatprep.subr.mxu0 0.0
    %4136 = vmatpush1.msra.mxu0 %v4092
    %4137 = vmatprep.subr.mxu0 0.0
    %4138 = vmatpush1.msra.mxu0 %v4091
    %4139 = vmatprep.subr.mxu0 0.0
    %4140 = vmatpush2.msra.mxu0 0.0
    %4141 = vmatprep.subr.mxu0 0.0
    %4142 = vmatpush2.msra.mxu0 0.0
    %4143 = vmatprep.subr.mxu0 0.0
    %4144 = vmatpush2.msra.mxu0 0.0
    %4145 = vmatprep.subr.mxu0 0.0
    %4146 = vmatpush2.msra.mxu0 0.0
    %4147 = vmatprep.subr.mxu0 0.0
    %4148 = vmatpush2.msra.mxu0 0.0
    %4149 = vmatprep.subr.mxu0 0.0
    %4150 = vmatpush2.msra.mxu0 0.0
    %4151 = vmatprep.subr.mxu0 0.0
    %4152 = vmatpush2.msra.mxu0 0.0
    %4153 = vmatprep.subr.mxu0 0.0
    %4154 = vmatpush2.msra.mxu0 0.0
    %4155 = vmatprep.subr.mxu0 0.0
    %4156 = vmatpush2.msra.mxu0 0.0
    %4157 = vmatprep.subr.mxu0 0.0
    %4158 = vmatpush2.msra.mxu0 0.0
    %4159 = vmatprep.subr.mxu0 0.0
    %4160 = vmatpush2.msra.mxu0 0.0
    %4161 = vmatprep.subr.mxu0 0.0
    %4162 = vmatpush2.msra.mxu0 0.0
    %4163 = vmatprep.subr.mxu0 0.0
    %4164 = vmatpush2.msra.mxu0 0.0
    %4165 = vmatprep.subr.mxu0 0.0
    %4166 = vmatpush2.msra.mxu0 0.0
    %4167 = vmatprep.subr.mxu0 0.0
    %4168 = vmatpush2.msra.mxu0 0.0
    %4169 = vmatprep.subr.mxu0 0.0
    %4170 = vmatpush2.msra.mxu0 0.0
    %4171 = vmatprep.mubr.f32.mxu0 0.0
    %4172 = vmatmul.mubr.f32.gmra.mxu0 %v1802
    %v4173 = vpop.f32.mrf.mxu0
    %v4174 = vadd.f32 0.0, %v4173
    %v4175 = vpop.f32.mrf.mxu0
    %4176 = vmatprep.mubr.f32.mxu0 0.0
    %4177 = vmatmul.mubr.f32.gmra.mxu0 %v1803
    %v4178 = vpop.f32.mrf.mxu0
    %v4179 = vadd.f32 0.0, %v4178
    %v4180 = vpop.f32.mrf.mxu0
    %4181 = vmatprep.mubr.f32.mxu0 0.0
    %4182 = vmatmul.mubr.f32.gmra.mxu0 %v1804
    %v4183 = vpop.f32.mrf.mxu0
    %v4184 = vadd.f32 0.0, %v4183
    %v4185 = vpop.f32.mrf.mxu0
    %4186 = vmatprep.mubr.f32.mxu0 0.0
    %4187 = vmatmul.mubr.f32.gmra.mxu0 %v1805
    %v4188 = vpop.f32.mrf.mxu0
    %v4189 = vadd.f32 0.0, %v4188
    %v4190 = vpop.f32.mrf.mxu0
    %4191 = vmatprep.mubr.f32.mxu0 0.0
    %4192 = vmatmul.mubr.f32.gmra.mxu0 %v1806
    %v4193 = vpop.f32.mrf.mxu0
    %v4194 = vadd.f32 0.0, %v4193
    %v4195 = vpop.f32.mrf.mxu0
    %4196 = vmatprep.mubr.f32.mxu0 0.0
    %4197 = vmatmul.mubr.f32.gmra.mxu0 %v1807
    %v4198 = vpop.f32.mrf.mxu0
    %v4199 = vadd.f32 0.0, %v4198
    %v4200 = vpop.f32.mrf.mxu0
    %4201 = vmatprep.mubr.f32.mxu0 0.0
    %4202 = vmatmul.mubr.f32.gmra.mxu0 %v1808
    %v4203 = vpop.f32.mrf.mxu0
    %v4204 = vadd.f32 0.0, %v4203
    %v4205 = vpop.f32.mrf.mxu0
    %4206 = vmatprep.mubr.f32.mxu0 0.0
    %4207 = vmatmul.mubr.f32.gmra.mxu0 %v1809
    %v4208 = vpop.f32.mrf.mxu0
    %v4209 = vadd.f32 0.0, %v4208
    %v4210 = vpop.f32.mrf.mxu0
    %4211 = vdwg.mxu0
    %s4212 = scalar_lea.vmem %s2, 896
    %v4213 = vld [vmem:[%s4212] sm:$0xff]
    %v4214 = vld [vmem:[%s4212 + $0x8] sm:$0xff]
    %v4215 = vld [vmem:[%s4212 + $0x10] sm:$0xff]
    %v4216 = vld [vmem:[%s4212 + $0x18] sm:$0xff]
    %v4217 = vld [vmem:[%s4212 + $0x20] sm:$0xff]
    %v4218 = vld [vmem:[%s4212 + $0x28] sm:$0xff]
    %v4219 = vld [vmem:[%s4212 + $0x30] sm:$0xff]
    %v4220 = vld [vmem:[%s4212 + $0x38] sm:$0xff]
    %v4221 = vld [vmem:[%s4212 + $0x40] sm:$0xff]
    %v4222 = vld [vmem:[%s4212 + $0x48] sm:$0xff]
    %v4223 = vld [vmem:[%s4212 + $0x50] sm:$0xff]
    %v4224 = vld [vmem:[%s4212 + $0x58] sm:$0xff]
    %v4225 = vld [vmem:[%s4212 + $0x60] sm:$0xff]
    %v4226 = vld [vmem:[%s4212 + $0x68] sm:$0xff]
    %v4227 = vld [vmem:[%s4212 + $0x70] sm:$0xff]
    %v4228 = vld [vmem:[%s4212 + $0x78] sm:$0xff]
    %v4230 = vsel %vm931, %v4213, 0
    %v4233 = vsel %vm931, %v4214, 0
    %v4236 = vsel %vm931, %v4215, 0
    %v4239 = vsel %vm931, %v4216, 0
    %v4242 = vsel %vm931, %v4217, 0
    %v4245 = vsel %vm931, %v4218, 0
    %v4248 = vsel %vm931, %v4219, 0
    %v4251 = vsel %vm931, %v4220, 0
    %v4254 = vsel %vm931, %v4221, 0
    %v4257 = vsel %vm931, %v4222, 0
    %v4260 = vsel %vm931, %v4223, 0
    %v4263 = vsel %vm931, %v4224, 0
    %v4266 = vsel %vm931, %v4225, 0
    %v4269 = vsel %vm931, %v4226, 0
    %v4272 = vsel %vm931, %v4227, 0
    %v4275 = vsel %vm931, %v4228, 0
    %4277 = vmatprep.subr.mxu0 0.0
    %4278 = vmatpush1.msra.mxu0 0.0
    %4279 = vmatprep.subr.mxu0 0.0
    %4280 = vmatpush1.msra.mxu0 0.0
    %4281 = vmatprep.subr.mxu0 0.0
    %4282 = vmatpush1.msra.mxu0 0.0
    %4283 = vmatprep.subr.mxu0 0.0
    %4284 = vmatpush1.msra.mxu0 0.0
    %4285 = vmatprep.subr.mxu0 0.0
    %4286 = vmatpush1.msra.mxu0 0.0
    %4287 = vmatprep.subr.mxu0 0.0
    %4288 = vmatpush1.msra.mxu0 0.0
    %4289 = vmatprep.subr.mxu0 0.0
    %4290 = vmatpush1.msra.mxu0 0.0
    %4291 = vmatprep.subr.mxu0 0.0
    %4292 = vmatpush1.msra.mxu0 0.0
    %4293 = vmatprep.subr.mxu0 0.0
    %4294 = vmatpush1.msra.mxu0 %v4209
    %4295 = vmatprep.subr.mxu0 0.0
    %4296 = vmatpush1.msra.mxu0 %v4204
    %4297 = vmatprep.subr.mxu0 0.0
    %4298 = vmatpush1.msra.mxu0 %v4199
    %4299 = vmatprep.subr.mxu0 0.0
    %4300 = vmatpush1.msra.mxu0 %v4194
    %4301 = vmatprep.subr.mxu0 0.0
    %4302 = vmatpush1.msra.mxu0 %v4189
    %4303 = vmatprep.subr.mxu0 0.0
    %4304 = vmatpush1.msra.mxu0 %v4184
    %4305 = vmatprep.subr.mxu0 0.0
    %4306 = vmatpush1.msra.mxu0 %v4179
    %4307 = vmatprep.subr.mxu0 0.0
    %4308 = vmatpush1.msra.mxu0 %v4174
    %4309 = vmatprep.subr.mxu0 0.0
    %4310 = vmatpush2.msra.mxu0 0.0
    %4311 = vmatprep.subr.mxu0 0.0
    %4312 = vmatpush2.msra.mxu0 0.0
    %4313 = vmatprep.subr.mxu0 0.0
    %4314 = vmatpush2.msra.mxu0 0.0
    %4315 = vmatprep.subr.mxu0 0.0
    %4316 = vmatpush2.msra.mxu0 0.0
    %4317 = vmatprep.subr.mxu0 0.0
    %4318 = vmatpush2.msra.mxu0 0.0
    %4319 = vmatprep.subr.mxu0 0.0
    %4320 = vmatpush2.msra.mxu0 0.0
    %4321 = vmatprep.subr.mxu0 0.0
    %4322 = vmatpush2.msra.mxu0 0.0
    %4323 = vmatprep.subr.mxu0 0.0
    %4324 = vmatpush2.msra.mxu0 0.0
    %4325 = vmatprep.subr.mxu0 0.0
    %4326 = vmatpush2.msra.mxu0 0.0
    %4327 = vmatprep.subr.mxu0 0.0
    %4328 = vmatpush2.msra.mxu0 0.0
    %4329 = vmatprep.subr.mxu0 0.0
    %4330 = vmatpush2.msra.mxu0 0.0
    %4331 = vmatprep.subr.mxu0 0.0
    %4332 = vmatpush2.msra.mxu0 0.0
    %4333 = vmatprep.subr.mxu0 0.0
    %4334 = vmatpush2.msra.mxu0 0.0
    %4335 = vmatprep.subr.mxu0 0.0
    %4336 = vmatpush2.msra.mxu0 0.0
    %4337 = vmatprep.subr.mxu0 0.0
    %4338 = vmatpush2.msra.mxu0 0.0
    %4339 = vmatprep.subr.mxu0 0.0
    %4340 = vmatpush2.msra.mxu0 0.0
    %4341 = vmatprep.mubr.f32.mxu0 0.0
    %4342 = vmatmul.mubr.f32.gmra.mxu0 %v4230
    %v4343 = vpop.f32.mrf.mxu0
    %v4344 = vadd.f32 0.0, %v4343
    %v4345 = vpop.f32.mrf.mxu0
    %4346 = vmatprep.mubr.f32.mxu0 0.0
    %4347 = vmatmul.mubr.f32.gmra.mxu0 %v4233
    %v4348 = vpop.f32.mrf.mxu0
    %v4349 = vadd.f32 0.0, %v4348
    %v4350 = vpop.f32.mrf.mxu0
    %4351 = vmatprep.mubr.f32.mxu0 0.0
    %4352 = vmatmul.mubr.f32.gmra.mxu0 %v4236
    %v4353 = vpop.f32.mrf.mxu0
    %v4354 = vadd.f32 0.0, %v4353
    %v4355 = vpop.f32.mrf.mxu0
    %4356 = vmatprep.mubr.f32.mxu0 0.0
    %4357 = vmatmul.mubr.f32.gmra.mxu0 %v4239
    %v4358 = vpop.f32.mrf.mxu0
    %v4359 = vadd.f32 0.0, %v4358
    %v4360 = vpop.f32.mrf.mxu0
    %4361 = vmatprep.mubr.f32.mxu0 0.0
    %4362 = vmatmul.mubr.f32.gmra.mxu0 %v4242
    %v4363 = vpop.f32.mrf.mxu0
    %v4364 = vadd.f32 0.0, %v4363
    %v4365 = vpop.f32.mrf.mxu0
    %4366 = vmatprep.mubr.f32.mxu0 0.0
    %4367 = vmatmul.mubr.f32.gmra.mxu0 %v4245
    %v4368 = vpop.f32.mrf.mxu0
    %v4369 = vadd.f32 0.0, %v4368
    %v4370 = vpop.f32.mrf.mxu0
    %4371 = vmatprep.mubr.f32.mxu0 0.0
    %4372 = vmatmul.mubr.f32.gmra.mxu0 %v4248
    %v4373 = vpop.f32.mrf.mxu0
    %v4374 = vadd.f32 0.0, %v4373
    %v4375 = vpop.f32.mrf.mxu0
    %4376 = vmatprep.mubr.f32.mxu0 0.0
    %4377 = vmatmul.mubr.f32.gmra.mxu0 %v4251
    %v4378 = vpop.f32.mrf.mxu0
    %v4379 = vadd.f32 0.0, %v4378
    %v4380 = vpop.f32.mrf.mxu0
    %4381 = vmatprep.mubr.f32.mxu0 0.0
    %4382 = vmatmul.mubr.f32.gmra.mxu0 %v4254
    %v4383 = vpop.f32.mrf.mxu0
    %v4384 = vadd.f32 0.0, %v4383
    %v4385 = vpop.f32.mrf.mxu0
    %4386 = vmatprep.mubr.f32.mxu0 0.0
    %4387 = vmatmul.mubr.f32.gmra.mxu0 %v4257
    %v4388 = vpop.f32.mrf.mxu0
    %v4389 = vadd.f32 0.0, %v4388
    %v4390 = vpop.f32.mrf.mxu0
    %4391 = vmatprep.mubr.f32.mxu0 0.0
    %4392 = vmatmul.mubr.f32.gmra.mxu0 %v4260
    %v4393 = vpop.f32.mrf.mxu0
    %v4394 = vadd.f32 0.0, %v4393
    %v4395 = vpop.f32.mrf.mxu0
    %4396 = vmatprep.mubr.f32.mxu0 0.0
    %4397 = vmatmul.mubr.f32.gmra.mxu0 %v4263
    %v4398 = vpop.f32.mrf.mxu0
    %v4399 = vadd.f32 0.0, %v4398
    %v4400 = vpop.f32.mrf.mxu0
    %4401 = vmatprep.mubr.f32.mxu0 0.0
    %4402 = vmatmul.mubr.f32.gmra.mxu0 %v4266
    %v4403 = vpop.f32.mrf.mxu0
    %v4404 = vadd.f32 0.0, %v4403
    %v4405 = vpop.f32.mrf.mxu0
    %4406 = vmatprep.mubr.f32.mxu0 0.0
    %4407 = vmatmul.mubr.f32.gmra.mxu0 %v4269
    %v4408 = vpop.f32.mrf.mxu0
    %v4409 = vadd.f32 0.0, %v4408
    %v4410 = vpop.f32.mrf.mxu0
    %4411 = vmatprep.mubr.f32.mxu0 0.0
    %4412 = vmatmul.mubr.f32.gmra.mxu0 %v4272
    %v4413 = vpop.f32.mrf.mxu0
    %v4414 = vadd.f32 0.0, %v4413
    %v4415 = vpop.f32.mrf.mxu0
    %4416 = vmatprep.mubr.f32.mxu0 0.0
    %4417 = vmatmul.mubr.f32.gmra.mxu0 %v4275
    %v4418 = vpop.f32.mrf.mxu0
    %v4419 = vadd.f32 0.0, %v4418
    %v4420 = vpop.f32.mrf.mxu0
    %4421 = vdwg.mxu0
    %v4422 = vadd.f32 %v4074, %v4344
    %v4423 = vadd.f32 %v4075, %v4349
    %v4424 = vadd.f32 %v4076, %v4354
    %v4425 = vadd.f32 %v4077, %v4359
    %v4426 = vadd.f32 %v4078, %v4364
    %v4427 = vadd.f32 %v4079, %v4369
    %v4428 = vadd.f32 %v4080, %v4374
    %v4429 = vadd.f32 %v4081, %v4379
    %v4430 = vadd.f32 %v4082, %v4384
    %v4431 = vadd.f32 %v4083, %v4389
    %v4432 = vadd.f32 %v4084, %v4394
    %v4433 = vadd.f32 %v4085, %v4399
    %v4434 = vadd.f32 %v4086, %v4404
    %v4435 = vadd.f32 %v4087, %v4409
    %v4436 = vadd.f32 %v4088, %v4414
    %v4437 = vadd.f32 %v4089, %v4419
    %s4438 = scalar_lea.vmem %s8, 1024
    %v4439 = vld [vmem:[%s4438] sm:$0xff]
    %v4440 = vld [vmem:[%s4438 + $0x8] sm:$0xff]
    %v4441 = vld [vmem:[%s4438 + $0x10] sm:$0xff]
    %v4442 = vld [vmem:[%s4438 + $0x18] sm:$0xff]
    %v4443 = vld [vmem:[%s4438 + $0x20] sm:$0xff]
    %v4444 = vld [vmem:[%s4438 + $0x28] sm:$0xff]
    %v4445 = vld [vmem:[%s4438 + $0x30] sm:$0xff]
    %v4446 = vld [vmem:[%s4438 + $0x38] sm:$0xff]
    %v4447 = vld [vmem:[%s4438 + $0x40] sm:$0xff]
    %v4448 = vld [vmem:[%s4438 + $0x48] sm:$0xff]
    %v4449 = vld [vmem:[%s4438 + $0x50] sm:$0xff]
    %v4450 = vld [vmem:[%s4438 + $0x58] sm:$0xff]
    %v4451 = vld [vmem:[%s4438 + $0x60] sm:$0xff]
    %v4452 = vld [vmem:[%s4438 + $0x68] sm:$0xff]
    %v4453 = vld [vmem:[%s4438 + $0x70] sm:$0xff]
    %v4454 = vld [vmem:[%s4438 + $0x78] sm:$0xff]
    %4455 = vmatprep.subr.mxu0 0.0
    %4456 = vmatpush1.msra.mxu0 %v4454
    %4457 = vmatprep.subr.mxu0 0.0
    %4458 = vmatpush1.msra.mxu0 %v4453
    %4459 = vmatprep.subr.mxu0 0.0
    %4460 = vmatpush1.msra.mxu0 %v4452
    %4461 = vmatprep.subr.mxu0 0.0
    %4462 = vmatpush1.msra.mxu0 %v4451
    %4463 = vmatprep.subr.mxu0 0.0
    %4464 = vmatpush1.msra.mxu0 %v4450
    %4465 = vmatprep.subr.mxu0 0.0
    %4466 = vmatpush1.msra.mxu0 %v4449
    %4467 = vmatprep.subr.mxu0 0.0
    %4468 = vmatpush1.msra.mxu0 %v4448
    %4469 = vmatprep.subr.mxu0 0.0
    %4470 = vmatpush1.msra.mxu0 %v4447
    %4471 = vmatprep.subr.mxu0 0.0
    %4472 = vmatpush1.msra.mxu0 %v4446
    %4473 = vmatprep.subr.mxu0 0.0
    %4474 = vmatpush1.msra.mxu0 %v4445
    %4475 = vmatprep.subr.mxu0 0.0
    %4476 = vmatpush1.msra.mxu0 %v4444
    %4477 = vmatprep.subr.mxu0 0.0
    %4478 = vmatpush1.msra.mxu0 %v4443
    %4479 = vmatprep.subr.mxu0 0.0
    %4480 = vmatpush1.msra.mxu0 %v4442
    %4481 = vmatprep.subr.mxu0 0.0
    %4482 = vmatpush1.msra.mxu0 %v4441
    %4483 = vmatprep.subr.mxu0 0.0
    %4484 = vmatpush1.msra.mxu0 %v4440
    %4485 = vmatprep.subr.mxu0 0.0
    %4486 = vmatpush1.msra.mxu0 %v4439
    %4487 = vmatprep.subr.mxu0 0.0
    %4488 = vmatpush2.msra.mxu0 0.0
    %4489 = vmatprep.subr.mxu0 0.0
    %4490 = vmatpush2.msra.mxu0 0.0
    %4491 = vmatprep.subr.mxu0 0.0
    %4492 = vmatpush2.msra.mxu0 0.0
    %4493 = vmatprep.subr.mxu0 0.0
    %4494 = vmatpush2.msra.mxu0 0.0
    %4495 = vmatprep.subr.mxu0 0.0
    %4496 = vmatpush2.msra.mxu0 0.0
    %4497 = vmatprep.subr.mxu0 0.0
    %4498 = vmatpush2.msra.mxu0 0.0
    %4499 = vmatprep.subr.mxu0 0.0
    %4500 = vmatpush2.msra.mxu0 0.0
    %4501 = vmatprep.subr.mxu0 0.0
    %4502 = vmatpush2.msra.mxu0 0.0
    %4503 = vmatprep.subr.mxu0 0.0
    %4504 = vmatpush2.msra.mxu0 0.0
    %4505 = vmatprep.subr.mxu0 0.0
    %4506 = vmatpush2.msra.mxu0 0.0
    %4507 = vmatprep.subr.mxu0 0.0
    %4508 = vmatpush2.msra.mxu0 0.0
    %4509 = vmatprep.subr.mxu0 0.0
    %4510 = vmatpush2.msra.mxu0 0.0
    %4511 = vmatprep.subr.mxu0 0.0
    %4512 = vmatpush2.msra.mxu0 0.0
    %4513 = vmatprep.subr.mxu0 0.0
    %4514 = vmatpush2.msra.mxu0 0.0
    %4515 = vmatprep.subr.mxu0 0.0
    %4516 = vmatpush2.msra.mxu0 0.0
    %4517 = vmatprep.subr.mxu0 0.0
    %4518 = vmatpush2.msra.mxu0 0.0
    %4519 = vmatprep.mubr.f32.mxu0 0.0
    %4520 = vmatmul.mubr.f32.gmra.mxu0 %v1802
    %v4521 = vpop.f32.mrf.mxu0
    %v4522 = vadd.f32 0.0, %v4521
    %v4523 = vpop.f32.mrf.mxu0
    %4524 = vmatprep.mubr.f32.mxu0 0.0
    %4525 = vmatmul.mubr.f32.gmra.mxu0 %v1803
    %v4526 = vpop.f32.mrf.mxu0
    %v4527 = vadd.f32 0.0, %v4526
    %v4528 = vpop.f32.mrf.mxu0
    %4529 = vmatprep.mubr.f32.mxu0 0.0
    %4530 = vmatmul.mubr.f32.gmra.mxu0 %v1804
    %v4531 = vpop.f32.mrf.mxu0
    %v4532 = vadd.f32 0.0, %v4531
    %v4533 = vpop.f32.mrf.mxu0
    %4534 = vmatprep.mubr.f32.mxu0 0.0
    %4535 = vmatmul.mubr.f32.gmra.mxu0 %v1805
    %v4536 = vpop.f32.mrf.mxu0
    %v4537 = vadd.f32 0.0, %v4536
    %v4538 = vpop.f32.mrf.mxu0
    %4539 = vmatprep.mubr.f32.mxu0 0.0
    %4540 = vmatmul.mubr.f32.gmra.mxu0 %v1806
    %v4541 = vpop.f32.mrf.mxu0
    %v4542 = vadd.f32 0.0, %v4541
    %v4543 = vpop.f32.mrf.mxu0
    %4544 = vmatprep.mubr.f32.mxu0 0.0
    %4545 = vmatmul.mubr.f32.gmra.mxu0 %v1807
    %v4546 = vpop.f32.mrf.mxu0
    %v4547 = vadd.f32 0.0, %v4546
    %v4548 = vpop.f32.mrf.mxu0
    %4549 = vmatprep.mubr.f32.mxu0 0.0
    %4550 = vmatmul.mubr.f32.gmra.mxu0 %v1808
    %v4551 = vpop.f32.mrf.mxu0
    %v4552 = vadd.f32 0.0, %v4551
    %v4553 = vpop.f32.mrf.mxu0
    %4554 = vmatprep.mubr.f32.mxu0 0.0
    %4555 = vmatmul.mubr.f32.gmra.mxu0 %v1809
    %v4556 = vpop.f32.mrf.mxu0
    %v4557 = vadd.f32 0.0, %v4556
    %v4558 = vpop.f32.mrf.mxu0
    %4559 = vdwg.mxu0
    %s4560 = scalar_lea.vmem %s2, 1024
    %v4561 = vld [vmem:[%s4560] sm:$0xff]
    %v4562 = vld [vmem:[%s4560 + $0x8] sm:$0xff]
    %v4563 = vld [vmem:[%s4560 + $0x10] sm:$0xff]
    %v4564 = vld [vmem:[%s4560 + $0x18] sm:$0xff]
    %v4565 = vld [vmem:[%s4560 + $0x20] sm:$0xff]
    %v4566 = vld [vmem:[%s4560 + $0x28] sm:$0xff]
    %v4567 = vld [vmem:[%s4560 + $0x30] sm:$0xff]
    %v4568 = vld [vmem:[%s4560 + $0x38] sm:$0xff]
    %v4569 = vld [vmem:[%s4560 + $0x40] sm:$0xff]
    %v4570 = vld [vmem:[%s4560 + $0x48] sm:$0xff]
    %v4571 = vld [vmem:[%s4560 + $0x50] sm:$0xff]
    %v4572 = vld [vmem:[%s4560 + $0x58] sm:$0xff]
    %v4573 = vld [vmem:[%s4560 + $0x60] sm:$0xff]
    %v4574 = vld [vmem:[%s4560 + $0x68] sm:$0xff]
    %v4575 = vld [vmem:[%s4560 + $0x70] sm:$0xff]
    %v4576 = vld [vmem:[%s4560 + $0x78] sm:$0xff]
    %v4578 = vsel %vm931, %v4561, 0
    %v4581 = vsel %vm931, %v4562, 0
    %v4584 = vsel %vm931, %v4563, 0
    %v4587 = vsel %vm931, %v4564, 0
    %v4590 = vsel %vm931, %v4565, 0
    %v4593 = vsel %vm931, %v4566, 0
    %v4596 = vsel %vm931, %v4567, 0
    %v4599 = vsel %vm931, %v4568, 0
    %v4602 = vsel %vm931, %v4569, 0
    %v4605 = vsel %vm931, %v4570, 0
    %v4608 = vsel %vm931, %v4571, 0
    %v4611 = vsel %vm931, %v4572, 0
    %v4614 = vsel %vm931, %v4573, 0
    %v4617 = vsel %vm931, %v4574, 0
    %v4620 = vsel %vm931, %v4575, 0
    %v4623 = vsel %vm931, %v4576, 0
    %4625 = vmatprep.subr.mxu0 0.0
    %4626 = vmatpush1.msra.mxu0 0.0
    %4627 = vmatprep.subr.mxu0 0.0
    %4628 = vmatpush1.msra.mxu0 0.0
    %4629 = vmatprep.subr.mxu0 0.0
    %4630 = vmatpush1.msra.mxu0 0.0
    %4631 = vmatprep.subr.mxu0 0.0
    %4632 = vmatpush1.msra.mxu0 0.0
    %4633 = vmatprep.subr.mxu0 0.0
    %4634 = vmatpush1.msra.mxu0 0.0
    %4635 = vmatprep.subr.mxu0 0.0
    %4636 = vmatpush1.msra.mxu0 0.0
    %4637 = vmatprep.subr.mxu0 0.0
    %4638 = vmatpush1.msra.mxu0 0.0
    %4639 = vmatprep.subr.mxu0 0.0
    %4640 = vmatpush1.msra.mxu0 0.0
    %4641 = vmatprep.subr.mxu0 0.0
    %4642 = vmatpush1.msra.mxu0 %v4557
    %4643 = vmatprep.subr.mxu0 0.0
    %4644 = vmatpush1.msra.mxu0 %v4552
    %4645 = vmatprep.subr.mxu0 0.0
    %4646 = vmatpush1.msra.mxu0 %v4547
    %4647 = vmatprep.subr.mxu0 0.0
    %4648 = vmatpush1.msra.mxu0 %v4542
    %4649 = vmatprep.subr.mxu0 0.0
    %4650 = vmatpush1.msra.mxu0 %v4537
    %4651 = vmatprep.subr.mxu0 0.0
    %4652 = vmatpush1.msra.mxu0 %v4532
    %4653 = vmatprep.subr.mxu0 0.0
    %4654 = vmatpush1.msra.mxu0 %v4527
    %4655 = vmatprep.subr.mxu0 0.0
    %4656 = vmatpush1.msra.mxu0 %v4522
    %4657 = vmatprep.subr.mxu0 0.0
    %4658 = vmatpush2.msra.mxu0 0.0
    %4659 = vmatprep.subr.mxu0 0.0
    %4660 = vmatpush2.msra.mxu0 0.0
    %4661 = vmatprep.subr.mxu0 0.0
    %4662 = vmatpush2.msra.mxu0 0.0
    %4663 = vmatprep.subr.mxu0 0.0
    %4664 = vmatpush2.msra.mxu0 0.0
    %4665 = vmatprep.subr.mxu0 0.0
    %4666 = vmatpush2.msra.mxu0 0.0
    %4667 = vmatprep.subr.mxu0 0.0
    %4668 = vmatpush2.msra.mxu0 0.0
    %4669 = vmatprep.subr.mxu0 0.0
    %4670 = vmatpush2.msra.mxu0 0.0
    %4671 = vmatprep.subr.mxu0 0.0
    %4672 = vmatpush2.msra.mxu0 0.0
    %4673 = vmatprep.subr.mxu0 0.0
    %4674 = vmatpush2.msra.mxu0 0.0
    %4675 = vmatprep.subr.mxu0 0.0
    %4676 = vmatpush2.msra.mxu0 0.0
    %4677 = vmatprep.subr.mxu0 0.0
    %4678 = vmatpush2.msra.mxu0 0.0
    %4679 = vmatprep.subr.mxu0 0.0
    %4680 = vmatpush2.msra.mxu0 0.0
    %4681 = vmatprep.subr.mxu0 0.0
    %4682 = vmatpush2.msra.mxu0 0.0
    %4683 = vmatprep.subr.mxu0 0.0
    %4684 = vmatpush2.msra.mxu0 0.0
    %4685 = vmatprep.subr.mxu0 0.0
    %4686 = vmatpush2.msra.mxu0 0.0
    %4687 = vmatprep.subr.mxu0 0.0
    %4688 = vmatpush2.msra.mxu0 0.0
    %4689 = vmatprep.mubr.f32.mxu0 0.0
    %4690 = vmatmul.mubr.f32.gmra.mxu0 %v4578
    %v4691 = vpop.f32.mrf.mxu0
    %v4692 = vadd.f32 0.0, %v4691
    %v4693 = vpop.f32.mrf.mxu0
    %4694 = vmatprep.mubr.f32.mxu0 0.0
    %4695 = vmatmul.mubr.f32.gmra.mxu0 %v4581
    %v4696 = vpop.f32.mrf.mxu0
    %v4697 = vadd.f32 0.0, %v4696
    %v4698 = vpop.f32.mrf.mxu0
    %4699 = vmatprep.mubr.f32.mxu0 0.0
    %4700 = vmatmul.mubr.f32.gmra.mxu0 %v4584
    %v4701 = vpop.f32.mrf.mxu0
    %v4702 = vadd.f32 0.0, %v4701
    %v4703 = vpop.f32.mrf.mxu0
    %4704 = vmatprep.mubr.f32.mxu0 0.0
    %4705 = vmatmul.mubr.f32.gmra.mxu0 %v4587
    %v4706 = vpop.f32.mrf.mxu0
    %v4707 = vadd.f32 0.0, %v4706
    %v4708 = vpop.f32.mrf.mxu0
    %4709 = vmatprep.mubr.f32.mxu0 0.0
    %4710 = vmatmul.mubr.f32.gmra.mxu0 %v4590
    %v4711 = vpop.f32.mrf.mxu0
    %v4712 = vadd.f32 0.0, %v4711
    %v4713 = vpop.f32.mrf.mxu0
    %4714 = vmatprep.mubr.f32.mxu0 0.0
    %4715 = vmatmul.mubr.f32.gmra.mxu0 %v4593
    %v4716 = vpop.f32.mrf.mxu0
    %v4717 = vadd.f32 0.0, %v4716
    %v4718 = vpop.f32.mrf.mxu0
    %4719 = vmatprep.mubr.f32.mxu0 0.0
    %4720 = vmatmul.mubr.f32.gmra.mxu0 %v4596
    %v4721 = vpop.f32.mrf.mxu0
    %v4722 = vadd.f32 0.0, %v4721
    %v4723 = vpop.f32.mrf.mxu0
    %4724 = vmatprep.mubr.f32.mxu0 0.0
    %4725 = vmatmul.mubr.f32.gmra.mxu0 %v4599
    %v4726 = vpop.f32.mrf.mxu0
    %v4727 = vadd.f32 0.0, %v4726
    %v4728 = vpop.f32.mrf.mxu0
    %4729 = vmatprep.mubr.f32.mxu0 0.0
    %4730 = vmatmul.mubr.f32.gmra.mxu0 %v4602
    %v4731 = vpop.f32.mrf.mxu0
    %v4732 = vadd.f32 0.0, %v4731
    %v4733 = vpop.f32.mrf.mxu0
    %4734 = vmatprep.mubr.f32.mxu0 0.0
    %4735 = vmatmul.mubr.f32.gmra.mxu0 %v4605
    %v4736 = vpop.f32.mrf.mxu0
    %v4737 = vadd.f32 0.0, %v4736
    %v4738 = vpop.f32.mrf.mxu0
    %4739 = vmatprep.mubr.f32.mxu0 0.0
    %4740 = vmatmul.mubr.f32.gmra.mxu0 %v4608
    %v4741 = vpop.f32.mrf.mxu0
    %v4742 = vadd.f32 0.0, %v4741
    %v4743 = vpop.f32.mrf.mxu0
    %4744 = vmatprep.mubr.f32.mxu0 0.0
    %4745 = vmatmul.mubr.f32.gmra.mxu0 %v4611
    %v4746 = vpop.f32.mrf.mxu0
    %v4747 = vadd.f32 0.0, %v4746
    %v4748 = vpop.f32.mrf.mxu0
    %4749 = vmatprep.mubr.f32.mxu0 0.0
    %4750 = vmatmul.mubr.f32.gmra.mxu0 %v4614
    %v4751 = vpop.f32.mrf.mxu0
    %v4752 = vadd.f32 0.0, %v4751
    %v4753 = vpop.f32.mrf.mxu0
    %4754 = vmatprep.mubr.f32.mxu0 0.0
    %4755 = vmatmul.mubr.f32.gmra.mxu0 %v4617
    %v4756 = vpop.f32.mrf.mxu0
    %v4757 = vadd.f32 0.0, %v4756
    %v4758 = vpop.f32.mrf.mxu0
    %4759 = vmatprep.mubr.f32.mxu0 0.0
    %4760 = vmatmul.mubr.f32.gmra.mxu0 %v4620
    %v4761 = vpop.f32.mrf.mxu0
    %v4762 = vadd.f32 0.0, %v4761
    %v4763 = vpop.f32.mrf.mxu0
    %4764 = vmatprep.mubr.f32.mxu0 0.0
    %4765 = vmatmul.mubr.f32.gmra.mxu0 %v4623
    %v4766 = vpop.f32.mrf.mxu0
    %v4767 = vadd.f32 0.0, %v4766
    %v4768 = vpop.f32.mrf.mxu0
    %4769 = vdwg.mxu0
    %v4770 = vadd.f32 %v4422, %v4692
    %v4771 = vadd.f32 %v4423, %v4697
    %v4772 = vadd.f32 %v4424, %v4702
    %v4773 = vadd.f32 %v4425, %v4707
    %v4774 = vadd.f32 %v4426, %v4712
    %v4775 = vadd.f32 %v4427, %v4717
    %v4776 = vadd.f32 %v4428, %v4722
    %v4777 = vadd.f32 %v4429, %v4727
    %v4778 = vadd.f32 %v4430, %v4732
    %v4779 = vadd.f32 %v4431, %v4737
    %v4780 = vadd.f32 %v4432, %v4742
    %v4781 = vadd.f32 %v4433, %v4747
    %v4782 = vadd.f32 %v4434, %v4752
    %v4783 = vadd.f32 %v4435, %v4757
    %v4784 = vadd.f32 %v4436, %v4762
    %v4785 = vadd.f32 %v4437, %v4767
    %4787 = vset.pattern.permute.xlu0 0
    %4788 = vperm.xlu0 %4787, %v54
    %v4789 = vpop.permute.xlu0 %4788
    %4792 = vset.pattern.permute.xlu0 0
    %4793 = vperm.xlu0 %4792, %v55
    %v4794 = vpop.permute.xlu0 %4793
    %4797 = vset.pattern.permute.xlu0 0
    %4798 = vperm.xlu0 %4797, %v56
    %v4799 = vpop.permute.xlu0 %4798
    %4802 = vset.pattern.permute.xlu0 0
    %4803 = vperm.xlu0 %4802, %v57
    %v4804 = vpop.permute.xlu0 %4803
    %4807 = vset.pattern.permute.xlu0 0
    %4808 = vperm.xlu0 %4807, %v58
    %v4809 = vpop.permute.xlu0 %4808
    %4812 = vset.pattern.permute.xlu0 0
    %4813 = vperm.xlu0 %4812, %v59
    %v4814 = vpop.permute.xlu0 %4813
    %4817 = vset.pattern.permute.xlu0 0
    %4818 = vperm.xlu0 %4817, %v60
    %v4819 = vpop.permute.xlu0 %4818
    %4822 = vset.pattern.permute.xlu0 0
    %4823 = vperm.xlu0 %4822, %v61
    %v4824 = vpop.permute.xlu0 %4823
    %4827 = vset.pattern.permute.xlu0 0
    %4828 = vperm.xlu0 %4827, %v62
    %v4829 = vpop.permute.xlu0 %4828
    %4832 = vset.pattern.permute.xlu0 0
    %4833 = vperm.xlu0 %4832, %v63
    %v4834 = vpop.permute.xlu0 %4833
    %4837 = vset.pattern.permute.xlu0 0
    %4838 = vperm.xlu0 %4837, %v64
    %v4839 = vpop.permute.xlu0 %4838
    %4842 = vset.pattern.permute.xlu0 0
    %4843 = vperm.xlu0 %4842, %v65
    %v4844 = vpop.permute.xlu0 %4843
    %4847 = vset.pattern.permute.xlu0 0
    %4848 = vperm.xlu0 %4847, %v66
    %v4849 = vpop.permute.xlu0 %4848
    %4852 = vset.pattern.permute.xlu0 0
    %4853 = vperm.xlu0 %4852, %v67
    %v4854 = vpop.permute.xlu0 %4853
    %4857 = vset.pattern.permute.xlu0 0
    %4858 = vperm.xlu0 %4857, %v68
    %v4859 = vpop.permute.xlu0 %4858
    %4862 = vset.pattern.permute.xlu0 0
    %4863 = vperm.xlu0 %4862, %v69
    %v4864 = vpop.permute.xlu0 %4863
    %v4866 = vadd.f32 %v4770, %v4789
    %v4867 = vadd.f32 %v4771, %v4794
    %v4868 = vadd.f32 %v4772, %v4799
    %v4869 = vadd.f32 %v4773, %v4804
    %v4870 = vadd.f32 %v4774, %v4809
    %v4871 = vadd.f32 %v4775, %v4814
    %v4872 = vadd.f32 %v4776, %v4819
    %v4873 = vadd.f32 %v4777, %v4824
    %v4874 = vadd.f32 %v4778, %v4829
    %v4875 = vadd.f32 %v4779, %v4834
    %v4876 = vadd.f32 %v4780, %v4839
    %v4877 = vadd.f32 %v4781, %v4844
    %v4878 = vadd.f32 %v4782, %v4849
    %v4879 = vadd.f32 %v4783, %v4854
    %v4880 = vadd.f32 %v4784, %v4859
    %v4881 = vadd.f32 %v4785, %v4864
    %v4882 = vld [vmem:[%s1] sm:$0x3]
    %v4883 = vsub.f32 0.0, %v4882
    %v4884 = vmul.f32 %v4883, 1.442695
    %v4885 = vpow.pop %v4884
    %v4886 = vadd.f32 %v4885, 1.0
    %v4887 = vrcp.pop %v4886
    %v4888 = vmul.f32 1.0, %v4887
    %v4889 = vmul.f32 %v4882, %v4888
    %4890 = vxpose.xlu0.b32.start [1/16] %v4889, 128
    %4891 = vxpose.xlu0.b32.cont [2/16] 0.0, 128
    %4892 = vxpose.xlu0.b32.cont [3/16] 0.0, 128
    %4893 = vxpose.xlu0.b32.cont [4/16] 0.0, 128
    %4894 = vxpose.xlu0.b32.cont [5/16] 0.0, 128
    %4895 = vxpose.xlu0.b32.cont [6/16] 0.0, 128
    %4896 = vxpose.xlu0.b32.cont [7/16] 0.0, 128
    %4897 = vxpose.xlu0.b32.cont [8/16] 0.0, 128
    %4898 = vxpose.xlu0.b32.cont [9/16] 0.0, 128
    %4899 = vxpose.xlu0.b32.cont [10/16] 0.0, 128
    %4900 = vxpose.xlu0.b32.cont [11/16] 0.0, 128
    %4901 = vxpose.xlu0.b32.cont [12/16] 0.0, 128
    %4902 = vxpose.xlu0.b32.cont [13/16] 0.0, 128
    %4903 = vxpose.xlu0.b32.cont [14/16] 0.0, 128
    %4904 = vxpose.xlu0.b32.cont [15/16] 0.0, 128
    %4905 = vxpose.xlu0.b32.end [16/16] 0.0, 128
    %v4906 = vpop.trf.xlu0
    %v4907 = vpop.trf.xlu0
    %v4908 = vpop.trf.xlu0
    %v4909 = vpop.trf.xlu0
    %v4910 = vpop.trf.xlu0
    %v4911 = vpop.trf.xlu0
    %v4912 = vpop.trf.xlu0
    %v4913 = vpop.trf.xlu0
    %v4914 = vpop.trf.xlu0
    %v4915 = vpop.trf.xlu0
    %v4916 = vpop.trf.xlu0
    %v4917 = vpop.trf.xlu0
    %v4918 = vpop.trf.xlu0
    %v4919 = vpop.trf.xlu0
    %v4920 = vpop.trf.xlu0
    %v4921 = vpop.trf.xlu0
    %v4923 = vsel %vm163, %v4906, 0
    %v4926 = vsel %vm163, %v4907, 0
    %v4929 = vsel %vm163, %v4908, 0
    %v4932 = vsel %vm163, %v4909, 0
    %v4935 = vsel %vm163, %v4910, 0
    %v4938 = vsel %vm163, %v4911, 0
    %v4941 = vsel %vm163, %v4912, 0
    %v4944 = vsel %vm163, %v4913, 0
    %v4947 = vsel %vm163, %v4914, 0
    %v4950 = vsel %vm163, %v4915, 0
    %v4953 = vsel %vm163, %v4916, 0
    %v4956 = vsel %vm163, %v4917, 0
    %v4959 = vsel %vm163, %v4918, 0
    %v4962 = vsel %vm163, %v4919, 0
    %v4965 = vsel %vm163, %v4920, 0
    %v4968 = vsel %vm163, %v4921, 0
    %4970 = vmatprep.subr.mxu0 0.0
    %4971 = vmatpush1.msra.mxu0 0.0
    %4972 = vmatprep.subr.mxu0 0.0
    %4973 = vmatpush1.msra.mxu0 0.0
    %4974 = vmatprep.subr.mxu0 0.0
    %4975 = vmatpush1.msra.mxu0 0.0
    %4976 = vmatprep.subr.mxu0 0.0
    %4977 = vmatpush1.msra.mxu0 0.0
    %4978 = vmatprep.subr.mxu0 0.0
    %4979 = vmatpush1.msra.mxu0 0.0
    %4980 = vmatprep.subr.mxu0 0.0
    %4981 = vmatpush1.msra.mxu0 0.0
    %4982 = vmatprep.subr.mxu0 0.0
    %4983 = vmatpush1.msra.mxu0 0.0
    %4984 = vmatprep.subr.mxu0 0.0
    %4985 = vmatpush1.msra.mxu0 0.0
    %4986 = vmatprep.subr.mxu0 0.0
    %4987 = vmatpush1.msra.mxu0 0.0
    %4988 = vmatprep.subr.mxu0 0.0
    %4989 = vmatpush1.msra.mxu0 0.0
    %4990 = vmatprep.subr.mxu0 0.0
    %4991 = vmatpush1.msra.mxu0 0.0
    %4992 = vmatprep.subr.mxu0 0.0
    %4993 = vmatpush1.msra.mxu0 0.0
    %4994 = vmatprep.subr.mxu0 0.0
    %4995 = vmatpush1.msra.mxu0 0.0
    %4996 = vmatprep.subr.mxu0 0.0
    %4997 = vmatpush1.msra.mxu0 0.0
    %4998 = vmatprep.subr.mxu0 0.0
    %4999 = vmatpush1.msra.mxu0 0.0
    %5000 = vmatprep.subr.mxu0 0.0
    %5001 = vmatpush1.msra.mxu0 %v214
    %5002 = vmatprep.subr.mxu0 0.0
    %5003 = vmatpush2.msra.mxu0 0.0
    %5004 = vmatprep.subr.mxu0 0.0
    %5005 = vmatpush2.msra.mxu0 0.0
    %5006 = vmatprep.subr.mxu0 0.0
    %5007 = vmatpush2.msra.mxu0 0.0
    %5008 = vmatprep.subr.mxu0 0.0
    %5009 = vmatpush2.msra.mxu0 0.0
    %5010 = vmatprep.subr.mxu0 0.0
    %5011 = vmatpush2.msra.mxu0 0.0
    %5012 = vmatprep.subr.mxu0 0.0
    %5013 = vmatpush2.msra.mxu0 0.0
    %5014 = vmatprep.subr.mxu0 0.0
    %5015 = vmatpush2.msra.mxu0 0.0
    %5016 = vmatprep.subr.mxu0 0.0
    %5017 = vmatpush2.msra.mxu0 0.0
    %5018 = vmatprep.subr.mxu0 0.0
    %5019 = vmatpush2.msra.mxu0 0.0
    %5020 = vmatprep.subr.mxu0 0.0
    %5021 = vmatpush2.msra.mxu0 0.0
    %5022 = vmatprep.subr.mxu0 0.0
    %5023 = vmatpush2.msra.mxu0 0.0
    %5024 = vmatprep.subr.mxu0 0.0
    %5025 = vmatpush2.msra.mxu0 0.0
    %5026 = vmatprep.subr.mxu0 0.0
    %5027 = vmatpush2.msra.mxu0 0.0
    %5028 = vmatprep.subr.mxu0 0.0
    %5029 = vmatpush2.msra.mxu0 0.0
    %5030 = vmatprep.subr.mxu0 0.0
    %5031 = vmatpush2.msra.mxu0 0.0
    %5032 = vmatprep.subr.mxu0 0.0
    %5033 = vmatpush2.msra.mxu0 0.0
    %5034 = vmatprep.mubr.f32.mxu0 0.0
    %5035 = vmatmul.mubr.f32.gmra.mxu0 %v4923
    %v5036 = vpop.f32.mrf.mxu0
    %v5037 = vadd.f32 0.0, %v5036
    %v5038 = vpop.f32.mrf.mxu0
    %5039 = vmatprep.mubr.f32.mxu0 0.0
    %5040 = vmatmul.mubr.f32.gmra.mxu0 %v4926
    %v5041 = vpop.f32.mrf.mxu0
    %v5042 = vadd.f32 0.0, %v5041
    %v5043 = vpop.f32.mrf.mxu0
    %5044 = vmatprep.mubr.f32.mxu0 0.0
    %5045 = vmatmul.mubr.f32.gmra.mxu0 %v4929
    %v5046 = vpop.f32.mrf.mxu0
    %v5047 = vadd.f32 0.0, %v5046
    %v5048 = vpop.f32.mrf.mxu0
    %5049 = vmatprep.mubr.f32.mxu0 0.0
    %5050 = vmatmul.mubr.f32.gmra.mxu0 %v4932
    %v5051 = vpop.f32.mrf.mxu0
    %v5052 = vadd.f32 0.0, %v5051
    %v5053 = vpop.f32.mrf.mxu0
    %5054 = vmatprep.mubr.f32.mxu0 0.0
    %5055 = vmatmul.mubr.f32.gmra.mxu0 %v4935
    %v5056 = vpop.f32.mrf.mxu0
    %v5057 = vadd.f32 0.0, %v5056
    %v5058 = vpop.f32.mrf.mxu0
    %5059 = vmatprep.mubr.f32.mxu0 0.0
    %5060 = vmatmul.mubr.f32.gmra.mxu0 %v4938
    %v5061 = vpop.f32.mrf.mxu0
    %v5062 = vadd.f32 0.0, %v5061
    %v5063 = vpop.f32.mrf.mxu0
    %5064 = vmatprep.mubr.f32.mxu0 0.0
    %5065 = vmatmul.mubr.f32.gmra.mxu0 %v4941
    %v5066 = vpop.f32.mrf.mxu0
    %v5067 = vadd.f32 0.0, %v5066
    %v5068 = vpop.f32.mrf.mxu0
    %5069 = vmatprep.mubr.f32.mxu0 0.0
    %5070 = vmatmul.mubr.f32.gmra.mxu0 %v4944
    %v5071 = vpop.f32.mrf.mxu0
    %v5072 = vadd.f32 0.0, %v5071
    %v5073 = vpop.f32.mrf.mxu0
    %5074 = vmatprep.mubr.f32.mxu0 0.0
    %5075 = vmatmul.mubr.f32.gmra.mxu0 %v4947
    %v5076 = vpop.f32.mrf.mxu0
    %v5077 = vadd.f32 0.0, %v5076
    %v5078 = vpop.f32.mrf.mxu0
    %5079 = vmatprep.mubr.f32.mxu0 0.0
    %5080 = vmatmul.mubr.f32.gmra.mxu0 %v4950
    %v5081 = vpop.f32.mrf.mxu0
    %v5082 = vadd.f32 0.0, %v5081
    %v5083 = vpop.f32.mrf.mxu0
    %5084 = vmatprep.mubr.f32.mxu0 0.0
    %5085 = vmatmul.mubr.f32.gmra.mxu0 %v4953
    %v5086 = vpop.f32.mrf.mxu0
    %v5087 = vadd.f32 0.0, %v5086
    %v5088 = vpop.f32.mrf.mxu0
    %5089 = vmatprep.mubr.f32.mxu0 0.0
    %5090 = vmatmul.mubr.f32.gmra.mxu0 %v4956
    %v5091 = vpop.f32.mrf.mxu0
    %v5092 = vadd.f32 0.0, %v5091
    %v5093 = vpop.f32.mrf.mxu0
    %5094 = vmatprep.mubr.f32.mxu0 0.0
    %5095 = vmatmul.mubr.f32.gmra.mxu0 %v4959
    %v5096 = vpop.f32.mrf.mxu0
    %v5097 = vadd.f32 0.0, %v5096
    %v5098 = vpop.f32.mrf.mxu0
    %5099 = vmatprep.mubr.f32.mxu0 0.0
    %5100 = vmatmul.mubr.f32.gmra.mxu0 %v4962
    %v5101 = vpop.f32.mrf.mxu0
    %v5102 = vadd.f32 0.0, %v5101
    %v5103 = vpop.f32.mrf.mxu0
    %5104 = vmatprep.mubr.f32.mxu0 0.0
    %5105 = vmatmul.mubr.f32.gmra.mxu0 %v4965
    %v5106 = vpop.f32.mrf.mxu0
    %v5107 = vadd.f32 0.0, %v5106
    %v5108 = vpop.f32.mrf.mxu0
    %5109 = vmatprep.mubr.f32.mxu0 0.0
    %5110 = vmatmul.mubr.f32.gmra.mxu0 %v4968
    %v5111 = vpop.f32.mrf.mxu0
    %v5112 = vadd.f32 0.0, %v5111
    %v5113 = vpop.f32.mrf.mxu0
    %5114 = vdwg.mxu0
    %v5115 = vld [vmem:[#allocation2] sm:$0xff]
    %v5116 = vld [vmem:[#allocation2 + $0x8] sm:$0xff]
    %v5117 = vld [vmem:[#allocation2 + $0x10] sm:$0xff]
    %v5118 = vld [vmem:[#allocation2 + $0x18] sm:$0xff]
    %v5119 = vld [vmem:[#allocation2 + $0x20] sm:$0xff]
    %v5120 = vld [vmem:[#allocation2 + $0x28] sm:$0xff]
    %v5121 = vld [vmem:[#allocation2 + $0x30] sm:$0xff]
    %v5122 = vld [vmem:[#allocation2 + $0x38] sm:$0xff]
    %v5123 = vld [vmem:[#allocation2 + $0x40] sm:$0xff]
    %v5124 = vld [vmem:[#allocation2 + $0x48] sm:$0xff]
    %v5125 = vld [vmem:[#allocation2 + $0x50] sm:$0xff]
    %v5126 = vld [vmem:[#allocation2 + $0x58] sm:$0xff]
    %v5127 = vld [vmem:[#allocation2 + $0x60] sm:$0xff]
    %v5128 = vld [vmem:[#allocation2 + $0x68] sm:$0xff]
    %v5129 = vld [vmem:[#allocation2 + $0x70] sm:$0xff]
    %v5130 = vld [vmem:[#allocation2 + $0x78] sm:$0xff]
    %5131 = vmatprep.subr.mxu0 0.0
    %5132 = vmatpush1.msra.mxu0 %v5112
    %5133 = vmatprep.subr.mxu0 0.0
    %5134 = vmatpush1.msra.mxu0 %v5107
    %5135 = vmatprep.subr.mxu0 0.0
    %5136 = vmatpush1.msra.mxu0 %v5102
    %5137 = vmatprep.subr.mxu0 0.0
    %5138 = vmatpush1.msra.mxu0 %v5097
    %5139 = vmatprep.subr.mxu0 0.0
    %5140 = vmatpush1.msra.mxu0 %v5092
    %5141 = vmatprep.subr.mxu0 0.0
    %5142 = vmatpush1.msra.mxu0 %v5087
    %5143 = vmatprep.subr.mxu0 0.0
    %5144 = vmatpush1.msra.mxu0 %v5082
    %5145 = vmatprep.subr.mxu0 0.0
    %5146 = vmatpush1.msra.mxu0 %v5077
    %5147 = vmatprep.subr.mxu0 0.0
    %5148 = vmatpush1.msra.mxu0 %v5072
    %5149 = vmatprep.subr.mxu0 0.0
    %5150 = vmatpush1.msra.mxu0 %v5067
    %5151 = vmatprep.subr.mxu0 0.0
    %5152 = vmatpush1.msra.mxu0 %v5062
    %5153 = vmatprep.subr.mxu0 0.0
    %5154 = vmatpush1.msra.mxu0 %v5057
    %5155 = vmatprep.subr.mxu0 0.0
    %5156 = vmatpush1.msra.mxu0 %v5052
    %5157 = vmatprep.subr.mxu0 0.0
    %5158 = vmatpush1.msra.mxu0 %v5047
    %5159 = vmatprep.subr.mxu0 0.0
    %5160 = vmatpush1.msra.mxu0 %v5042
    %5161 = vmatprep.subr.mxu0 0.0
    %5162 = vmatpush1.msra.mxu0 %v5037
    %5163 = vmatprep.subr.mxu0 0.0
    %5164 = vmatpush2.msra.mxu0 0.0
    %5165 = vmatprep.subr.mxu0 0.0
    %5166 = vmatpush2.msra.mxu0 0.0
    %5167 = vmatprep.subr.mxu0 0.0
    %5168 = vmatpush2.msra.mxu0 0.0
    %5169 = vmatprep.subr.mxu0 0.0
    %5170 = vmatpush2.msra.mxu0 0.0
    %5171 = vmatprep.subr.mxu0 0.0
    %5172 = vmatpush2.msra.mxu0 0.0
    %5173 = vmatprep.subr.mxu0 0.0
    %5174 = vmatpush2.msra.mxu0 0.0
    %5175 = vmatprep.subr.mxu0 0.0
    %5176 = vmatpush2.msra.mxu0 0.0
    %5177 = vmatprep.subr.mxu0 0.0
    %5178 = vmatpush2.msra.mxu0 0.0
    %5179 = vmatprep.subr.mxu0 0.0
    %5180 = vmatpush2.msra.mxu0 0.0
    %5181 = vmatprep.subr.mxu0 0.0
    %5182 = vmatpush2.msra.mxu0 0.0
    %5183 = vmatprep.subr.mxu0 0.0
    %5184 = vmatpush2.msra.mxu0 0.0
    %5185 = vmatprep.subr.mxu0 0.0
    %5186 = vmatpush2.msra.mxu0 0.0
    %5187 = vmatprep.subr.mxu0 0.0
    %5188 = vmatpush2.msra.mxu0 0.0
    %5189 = vmatprep.subr.mxu0 0.0
    %5190 = vmatpush2.msra.mxu0 0.0
    %5191 = vmatprep.subr.mxu0 0.0
    %5192 = vmatpush2.msra.mxu0 0.0
    %5193 = vmatprep.subr.mxu0 0.0
    %5194 = vmatpush2.msra.mxu0 0.0
    %5195 = vmatprep.mubr.f32.mxu0 0.0
    %5196 = vmatmul.mubr.f32.gmra.mxu0 %v5115
    %v5197 = vpop.f32.mrf.mxu0
    %v5198 = vadd.f32 0.0, %v5197
    %v5199 = vpop.f32.mrf.mxu0
    %5200 = vmatprep.mubr.f32.mxu0 0.0
    %5201 = vmatmul.mubr.f32.gmra.mxu0 %v5116
    %v5202 = vpop.f32.mrf.mxu0
    %v5203 = vadd.f32 0.0, %v5202
    %v5204 = vpop.f32.mrf.mxu0
    %5205 = vmatprep.mubr.f32.mxu0 0.0
    %5206 = vmatmul.mubr.f32.gmra.mxu0 %v5117
    %v5207 = vpop.f32.mrf.mxu0
    %v5208 = vadd.f32 0.0, %v5207
    %v5209 = vpop.f32.mrf.mxu0
    %5210 = vmatprep.mubr.f32.mxu0 0.0
    %5211 = vmatmul.mubr.f32.gmra.mxu0 %v5118
    %v5212 = vpop.f32.mrf.mxu0
    %v5213 = vadd.f32 0.0, %v5212
    %v5214 = vpop.f32.mrf.mxu0
    %5215 = vmatprep.mubr.f32.mxu0 0.0
    %5216 = vmatmul.mubr.f32.gmra.mxu0 %v5119
    %v5217 = vpop.f32.mrf.mxu0
    %v5218 = vadd.f32 0.0, %v5217
    %v5219 = vpop.f32.mrf.mxu0
    %5220 = vmatprep.mubr.f32.mxu0 0.0
    %5221 = vmatmul.mubr.f32.gmra.mxu0 %v5120
    %v5222 = vpop.f32.mrf.mxu0
    %v5223 = vadd.f32 0.0, %v5222
    %v5224 = vpop.f32.mrf.mxu0
    %5225 = vmatprep.mubr.f32.mxu0 0.0
    %5226 = vmatmul.mubr.f32.gmra.mxu0 %v5121
    %v5227 = vpop.f32.mrf.mxu0
    %v5228 = vadd.f32 0.0, %v5227
    %v5229 = vpop.f32.mrf.mxu0
    %5230 = vmatprep.mubr.f32.mxu0 0.0
    %5231 = vmatmul.mubr.f32.gmra.mxu0 %v5122
    %v5232 = vpop.f32.mrf.mxu0
    %v5233 = vadd.f32 0.0, %v5232
    %v5234 = vpop.f32.mrf.mxu0
    %5235 = vmatprep.mubr.f32.mxu0 0.0
    %5236 = vmatmul.mubr.f32.gmra.mxu0 %v5123
    %v5237 = vpop.f32.mrf.mxu0
    %v5238 = vadd.f32 0.0, %v5237
    %v5239 = vpop.f32.mrf.mxu0
    %5240 = vmatprep.mubr.f32.mxu0 0.0
    %5241 = vmatmul.mubr.f32.gmra.mxu0 %v5124
    %v5242 = vpop.f32.mrf.mxu0
    %v5243 = vadd.f32 0.0, %v5242
    %v5244 = vpop.f32.mrf.mxu0
    %5245 = vmatprep.mubr.f32.mxu0 0.0
    %5246 = vmatmul.mubr.f32.gmra.mxu0 %v5125
    %v5247 = vpop.f32.mrf.mxu0
    %v5248 = vadd.f32 0.0, %v5247
    %v5249 = vpop.f32.mrf.mxu0
    %5250 = vmatprep.mubr.f32.mxu0 0.0
    %5251 = vmatmul.mubr.f32.gmra.mxu0 %v5126
    %v5252 = vpop.f32.mrf.mxu0
    %v5253 = vadd.f32 0.0, %v5252
    %v5254 = vpop.f32.mrf.mxu0
    %5255 = vmatprep.mubr.f32.mxu0 0.0
    %5256 = vmatmul.mubr.f32.gmra.mxu0 %v5127
    %v5257 = vpop.f32.mrf.mxu0
    %v5258 = vadd.f32 0.0, %v5257
    %v5259 = vpop.f32.mrf.mxu0
    %5260 = vmatprep.mubr.f32.mxu0 0.0
    %5261 = vmatmul.mubr.f32.gmra.mxu0 %v5128
    %v5262 = vpop.f32.mrf.mxu0
    %v5263 = vadd.f32 0.0, %v5262
    %v5264 = vpop.f32.mrf.mxu0
    %5265 = vmatprep.mubr.f32.mxu0 0.0
    %5266 = vmatmul.mubr.f32.gmra.mxu0 %v5129
    %v5267 = vpop.f32.mrf.mxu0
    %v5268 = vadd.f32 0.0, %v5267
    %v5269 = vpop.f32.mrf.mxu0
    %5270 = vmatprep.mubr.f32.mxu0 0.0
    %5271 = vmatmul.mubr.f32.gmra.mxu0 %v5130
    %v5272 = vpop.f32.mrf.mxu0
    %v5273 = vadd.f32 0.0, %v5272
    %v5274 = vpop.f32.mrf.mxu0
    %5275 = vdwg.mxu0
    %v5276 = vadd.f32 %v4866, %v5198
    %v5277 = vadd.f32 %v4867, %v5203
    %v5278 = vadd.f32 %v4868, %v5208
    %v5279 = vadd.f32 %v4869, %v5213
    %v5280 = vadd.f32 %v4870, %v5218
    %v5281 = vadd.f32 %v4871, %v5223
    %v5282 = vadd.f32 %v4872, %v5228
    %v5283 = vadd.f32 %v4873, %v5233
    %v5284 = vadd.f32 %v4874, %v5238
    %v5285 = vadd.f32 %v4875, %v5243
    %v5286 = vadd.f32 %v4876, %v5248
    %v5287 = vadd.f32 %v4877, %v5253
    %v5288 = vadd.f32 %v4878, %v5258
    %v5289 = vadd.f32 %v4879, %v5263
    %v5290 = vadd.f32 %v4880, %v5268
    %v5291 = vadd.f32 %v4881, %v5273
    %5292 = vset.pattern.permute.xlu0 1
    %5293 = vperm.xlu0 %5292, %v54
    %v5294 = vpop.permute.xlu0 %5293
    %5296 = vset.pattern.permute.xlu0 1
    %5297 = vperm.xlu0 %5296, %v55
    %v5298 = vpop.permute.xlu0 %5297
    %5300 = vset.pattern.permute.xlu0 1
    %5301 = vperm.xlu0 %5300, %v56
    %v5302 = vpop.permute.xlu0 %5301
    %5304 = vset.pattern.permute.xlu0 1
    %5305 = vperm.xlu0 %5304, %v57
    %v5306 = vpop.permute.xlu0 %5305
    %5308 = vset.pattern.permute.xlu0 1
    %5309 = vperm.xlu0 %5308, %v58
    %v5310 = vpop.permute.xlu0 %5309
    %5312 = vset.pattern.permute.xlu0 1
    %5313 = vperm.xlu0 %5312, %v59
    %v5314 = vpop.permute.xlu0 %5313
    %5316 = vset.pattern.permute.xlu0 1
    %5317 = vperm.xlu0 %5316, %v60
    %v5318 = vpop.permute.xlu0 %5317
    %5320 = vset.pattern.permute.xlu0 1
    %5321 = vperm.xlu0 %5320, %v61
    %v5322 = vpop.permute.xlu0 %5321
    %5324 = vset.pattern.permute.xlu0 1
    %5325 = vperm.xlu0 %5324, %v62
    %v5326 = vpop.permute.xlu0 %5325
    %5328 = vset.pattern.permute.xlu0 1
    %5329 = vperm.xlu0 %5328, %v63
    %v5330 = vpop.permute.xlu0 %5329
    %5332 = vset.pattern.permute.xlu0 1
    %5333 = vperm.xlu0 %5332, %v64
    %v5334 = vpop.permute.xlu0 %5333
    %5336 = vset.pattern.permute.xlu0 1
    %5337 = vperm.xlu0 %5336, %v65
    %v5338 = vpop.permute.xlu0 %5337
    %5340 = vset.pattern.permute.xlu0 1
    %5341 = vperm.xlu0 %5340, %v66
    %v5342 = vpop.permute.xlu0 %5341
    %5344 = vset.pattern.permute.xlu0 1
    %5345 = vperm.xlu0 %5344, %v67
    %v5346 = vpop.permute.xlu0 %5345
    %5348 = vset.pattern.permute.xlu0 1
    %5349 = vperm.xlu0 %5348, %v68
    %v5350 = vpop.permute.xlu0 %5349
    %5352 = vset.pattern.permute.xlu0 1
    %5353 = vperm.xlu0 %5352, %v69
    %v5354 = vpop.permute.xlu0 %5353
    %v5356 = vadd.f32 %v5276, %v5294
    %v5357 = vadd.f32 %v5277, %v5298
    %v5358 = vadd.f32 %v5278, %v5302
    %v5359 = vadd.f32 %v5279, %v5306
    %v5360 = vadd.f32 %v5280, %v5310
    %v5361 = vadd.f32 %v5281, %v5314
    %v5362 = vadd.f32 %v5282, %v5318
    %v5363 = vadd.f32 %v5283, %v5322
    %v5364 = vadd.f32 %v5284, %v5326
    %v5365 = vadd.f32 %v5285, %v5330
    %v5366 = vadd.f32 %v5286, %v5334
    %v5367 = vadd.f32 %v5287, %v5338
    %v5368 = vadd.f32 %v5288, %v5342
    %v5369 = vadd.f32 %v5289, %v5346
    %v5370 = vadd.f32 %v5290, %v5350
    %v5371 = vadd.f32 %v5291, %v5354
    %5372 = vmatprep.subr.mxu0 0.0
    %5373 = vmatpush1.msra.mxu0 %v376
    %5374 = vmatprep.subr.mxu0 0.0
    %5375 = vmatpush1.msra.mxu0 %v375
    %5376 = vmatprep.subr.mxu0 0.0
    %5377 = vmatpush1.msra.mxu0 %v374
    %5378 = vmatprep.subr.mxu0 0.0
    %5379 = vmatpush1.msra.mxu0 %v373
    %5380 = vmatprep.subr.mxu0 0.0
    %5381 = vmatpush1.msra.mxu0 %v372
    %5382 = vmatprep.subr.mxu0 0.0
    %5383 = vmatpush1.msra.mxu0 %v371
    %5384 = vmatprep.subr.mxu0 0.0
    %5385 = vmatpush1.msra.mxu0 %v370
    %5386 = vmatprep.subr.mxu0 0.0
    %5387 = vmatpush1.msra.mxu0 %v369
    %5388 = vmatprep.subr.mxu0 0.0
    %5389 = vmatpush1.msra.mxu0 %v368
    %5390 = vmatprep.subr.mxu0 0.0
    %5391 = vmatpush1.msra.mxu0 %v367
    %5392 = vmatprep.subr.mxu0 0.0
    %5393 = vmatpush1.msra.mxu0 %v366
    %5394 = vmatprep.subr.mxu0 0.0
    %5395 = vmatpush1.msra.mxu0 %v365
    %5396 = vmatprep.subr.mxu0 0.0
    %5397 = vmatpush1.msra.mxu0 %v364
    %5398 = vmatprep.subr.mxu0 0.0
    %5399 = vmatpush1.msra.mxu0 %v363
    %5400 = vmatprep.subr.mxu0 0.0
    %5401 = vmatpush1.msra.mxu0 %v362
    %5402 = vmatprep.subr.mxu0 0.0
    %5403 = vmatpush1.msra.mxu0 %v361
    %5404 = vmatprep.subr.mxu0 0.0
    %5405 = vmatpush2.msra.mxu0 0.0
    %5406 = vmatprep.subr.mxu0 0.0
    %5407 = vmatpush2.msra.mxu0 0.0
    %5408 = vmatprep.subr.mxu0 0.0
    %5409 = vmatpush2.msra.mxu0 0.0
    %5410 = vmatprep.subr.mxu0 0.0
    %5411 = vmatpush2.msra.mxu0 0.0
    %5412 = vmatprep.subr.mxu0 0.0
    %5413 = vmatpush2.msra.mxu0 0.0
    %5414 = vmatprep.subr.mxu0 0.0
    %5415 = vmatpush2.msra.mxu0 0.0
    %5416 = vmatprep.subr.mxu0 0.0
    %5417 = vmatpush2.msra.mxu0 0.0
    %5418 = vmatprep.subr.mxu0 0.0
    %5419 = vmatpush2.msra.mxu0 0.0
    %5420 = vmatprep.subr.mxu0 0.0
    %5421 = vmatpush2.msra.mxu0 0.0
    %5422 = vmatprep.subr.mxu0 0.0
    %5423 = vmatpush2.msra.mxu0 0.0
    %5424 = vmatprep.subr.mxu0 0.0
    %5425 = vmatpush2.msra.mxu0 0.0
    %5426 = vmatprep.subr.mxu0 0.0
    %5427 = vmatpush2.msra.mxu0 0.0
    %5428 = vmatprep.subr.mxu0 0.0
    %5429 = vmatpush2.msra.mxu0 0.0
    %5430 = vmatprep.subr.mxu0 0.0
    %5431 = vmatpush2.msra.mxu0 0.0
    %5432 = vmatprep.subr.mxu0 0.0
    %5433 = vmatpush2.msra.mxu0 0.0
    %5434 = vmatprep.subr.mxu0 0.0
    %5435 = vmatpush2.msra.mxu0 0.0
    %5436 = vmatprep.mubr.f32.mxu0 0.0
    %5437 = vmatmul.mubr.f32.gmra.mxu0 %v5356
    %v5438 = vpop.f32.mrf.mxu0
    %v5439 = vadd.f32 0.0, %v5438
    %v5440 = vpop.f32.mrf.mxu0
    %5441 = vmatprep.mubr.f32.mxu0 0.0
    %5442 = vmatmul.mubr.f32.gmra.mxu0 %v5357
    %v5443 = vpop.f32.mrf.mxu0
    %v5444 = vadd.f32 0.0, %v5443
    %v5445 = vpop.f32.mrf.mxu0
    %5446 = vmatprep.mubr.f32.mxu0 0.0
    %5447 = vmatmul.mubr.f32.gmra.mxu0 %v5358
    %v5448 = vpop.f32.mrf.mxu0
    %v5449 = vadd.f32 0.0, %v5448
    %v5450 = vpop.f32.mrf.mxu0
    %5451 = vmatprep.mubr.f32.mxu0 0.0
    %5452 = vmatmul.mubr.f32.gmra.mxu0 %v5359
    %v5453 = vpop.f32.mrf.mxu0
    %v5454 = vadd.f32 0.0, %v5453
    %v5455 = vpop.f32.mrf.mxu0
    %5456 = vmatprep.mubr.f32.mxu0 0.0
    %5457 = vmatmul.mubr.f32.gmra.mxu0 %v5360
    %v5458 = vpop.f32.mrf.mxu0
    %v5459 = vadd.f32 0.0, %v5458
    %v5460 = vpop.f32.mrf.mxu0
    %5461 = vmatprep.mubr.f32.mxu0 0.0
    %5462 = vmatmul.mubr.f32.gmra.mxu0 %v5361
    %v5463 = vpop.f32.mrf.mxu0
    %v5464 = vadd.f32 0.0, %v5463
    %v5465 = vpop.f32.mrf.mxu0
    %5466 = vmatprep.mubr.f32.mxu0 0.0
    %5467 = vmatmul.mubr.f32.gmra.mxu0 %v5362
    %v5468 = vpop.f32.mrf.mxu0
    %v5469 = vadd.f32 0.0, %v5468
    %v5470 = vpop.f32.mrf.mxu0
    %5471 = vmatprep.mubr.f32.mxu0 0.0
    %5472 = vmatmul.mubr.f32.gmra.mxu0 %v5363
    %v5473 = vpop.f32.mrf.mxu0
    %v5474 = vadd.f32 0.0, %v5473
    %v5475 = vpop.f32.mrf.mxu0
    %5476 = vmatprep.mubr.f32.mxu0 0.0
    %5477 = vmatmul.mubr.f32.gmra.mxu0 %v5364
    %v5478 = vpop.f32.mrf.mxu0
    %v5479 = vadd.f32 0.0, %v5478
    %v5480 = vpop.f32.mrf.mxu0
    %5481 = vmatprep.mubr.f32.mxu0 0.0
    %5482 = vmatmul.mubr.f32.gmra.mxu0 %v5365
    %v5483 = vpop.f32.mrf.mxu0
    %v5484 = vadd.f32 0.0, %v5483
    %v5485 = vpop.f32.mrf.mxu0
    %5486 = vmatprep.mubr.f32.mxu0 0.0
    %5487 = vmatmul.mubr.f32.gmra.mxu0 %v5366
    %v5488 = vpop.f32.mrf.mxu0
    %v5489 = vadd.f32 0.0, %v5488
    %v5490 = vpop.f32.mrf.mxu0
    %5491 = vmatprep.mubr.f32.mxu0 0.0
    %5492 = vmatmul.mubr.f32.gmra.mxu0 %v5367
    %v5493 = vpop.f32.mrf.mxu0
    %v5494 = vadd.f32 0.0, %v5493
    %v5495 = vpop.f32.mrf.mxu0
    %5496 = vmatprep.mubr.f32.mxu0 0.0
    %5497 = vmatmul.mubr.f32.gmra.mxu0 %v5368
    %v5498 = vpop.f32.mrf.mxu0
    %v5499 = vadd.f32 0.0, %v5498
    %v5500 = vpop.f32.mrf.mxu0
    %5501 = vmatprep.mubr.f32.mxu0 0.0
    %5502 = vmatmul.mubr.f32.gmra.mxu0 %v5369
    %v5503 = vpop.f32.mrf.mxu0
    %v5504 = vadd.f32 0.0, %v5503
    %v5505 = vpop.f32.mrf.mxu0
    %5506 = vmatprep.mubr.f32.mxu0 0.0
    %5507 = vmatmul.mubr.f32.gmra.mxu0 %v5370
    %v5508 = vpop.f32.mrf.mxu0
    %v5509 = vadd.f32 0.0, %v5508
    %v5510 = vpop.f32.mrf.mxu0
    %5511 = vmatprep.mubr.f32.mxu0 0.0
    %5512 = vmatmul.mubr.f32.gmra.mxu0 %v5371
    %v5513 = vpop.f32.mrf.mxu0
    %v5514 = vadd.f32 0.0, %v5513
    %v5515 = vpop.f32.mrf.mxu0
    %5516 = vdwg.mxu0
    %5517 = vmatprep.subr.mxu0 0.0
    %5518 = vmatpush1.msra.mxu0 %v5514
    %5519 = vmatprep.subr.mxu0 0.0
    %5520 = vmatpush1.msra.mxu0 %v5509
    %5521 = vmatprep.subr.mxu0 0.0
    %5522 = vmatpush1.msra.mxu0 %v5504
    %5523 = vmatprep.subr.mxu0 0.0
    %5524 = vmatpush1.msra.mxu0 %v5499
    %5525 = vmatprep.subr.mxu0 0.0
    %5526 = vmatpush1.msra.mxu0 %v5494
    %5527 = vmatprep.subr.mxu0 0.0
    %5528 = vmatpush1.msra.mxu0 %v5489
    %5529 = vmatprep.subr.mxu0 0.0
    %5530 = vmatpush1.msra.mxu0 %v5484
    %5531 = vmatprep.subr.mxu0 0.0
    %5532 = vmatpush1.msra.mxu0 %v5479
    %5533 = vmatprep.subr.mxu0 0.0
    %5534 = vmatpush1.msra.mxu0 %v5474
    %5535 = vmatprep.subr.mxu0 0.0
    %5536 = vmatpush1.msra.mxu0 %v5469
    %5537 = vmatprep.subr.mxu0 0.0
    %5538 = vmatpush1.msra.mxu0 %v5464
    %5539 = vmatprep.subr.mxu0 0.0
    %5540 = vmatpush1.msra.mxu0 %v5459
    %5541 = vmatprep.subr.mxu0 0.0
    %5542 = vmatpush1.msra.mxu0 %v5454
    %5543 = vmatprep.subr.mxu0 0.0
    %5544 = vmatpush1.msra.mxu0 %v5449
    %5545 = vmatprep.subr.mxu0 0.0
    %5546 = vmatpush1.msra.mxu0 %v5444
    %5547 = vmatprep.subr.mxu0 0.0
    %5548 = vmatpush1.msra.mxu0 %v5439
    %5549 = vmatprep.subr.mxu0 0.0
    %5550 = vmatpush2.msra.mxu0 0.0
    %5551 = vmatprep.subr.mxu0 0.0
    %5552 = vmatpush2.msra.mxu0 0.0
    %5553 = vmatprep.subr.mxu0 0.0
    %5554 = vmatpush2.msra.mxu0 0.0
    %5555 = vmatprep.subr.mxu0 0.0
    %5556 = vmatpush2.msra.mxu0 0.0
    %5557 = vmatprep.subr.mxu0 0.0
    %5558 = vmatpush2.msra.mxu0 0.0
    %5559 = vmatprep.subr.mxu0 0.0
    %5560 = vmatpush2.msra.mxu0 0.0
    %5561 = vmatprep.subr.mxu0 0.0
    %5562 = vmatpush2.msra.mxu0 0.0
    %5563 = vmatprep.subr.mxu0 0.0
    %5564 = vmatpush2.msra.mxu0 0.0
    %5565 = vmatprep.subr.mxu0 0.0
    %5566 = vmatpush2.msra.mxu0 0.0
    %5567 = vmatprep.subr.mxu0 0.0
    %5568 = vmatpush2.msra.mxu0 0.0
    %5569 = vmatprep.subr.mxu0 0.0
    %5570 = vmatpush2.msra.mxu0 0.0
    %5571 = vmatprep.subr.mxu0 0.0
    %5572 = vmatpush2.msra.mxu0 0.0
    %5573 = vmatprep.subr.mxu0 0.0
    %5574 = vmatpush2.msra.mxu0 0.0
    %5575 = vmatprep.subr.mxu0 0.0
    %5576 = vmatpush2.msra.mxu0 0.0
    %5577 = vmatprep.subr.mxu0 0.0
    %5578 = vmatpush2.msra.mxu0 0.0
    %5579 = vmatprep.subr.mxu0 0.0
    %5580 = vmatpush2.msra.mxu0 0.0
    %5581 = vmatprep.mubr.f32.mxu0 0.0
    %5582 = vmatmul.mubr.f32.gmra.mxu0 %v859
    %v5583 = vpop.f32.mrf.mxu0
    %v5584 = vadd.f32 0.0, %v5583
    %v5585 = vpop.f32.mrf.mxu0
    %5586 = vmatprep.mubr.f32.mxu0 0.0
    %5587 = vmatmul.mubr.f32.gmra.mxu0 %v860
    %v5588 = vpop.f32.mrf.mxu0
    %v5589 = vadd.f32 0.0, %v5588
    %v5590 = vpop.f32.mrf.mxu0
    %5591 = vmatprep.mubr.f32.mxu0 0.0
    %5592 = vmatmul.mubr.f32.gmra.mxu0 %v861
    %v5593 = vpop.f32.mrf.mxu0
    %v5594 = vadd.f32 0.0, %v5593
    %v5595 = vpop.f32.mrf.mxu0
    %5596 = vmatprep.mubr.f32.mxu0 0.0
    %5597 = vmatmul.mubr.f32.gmra.mxu0 %v862
    %v5598 = vpop.f32.mrf.mxu0
    %v5599 = vadd.f32 0.0, %v5598
    %v5600 = vpop.f32.mrf.mxu0
    %5601 = vmatprep.mubr.f32.mxu0 0.0
    %5602 = vmatmul.mubr.f32.gmra.mxu0 %v863
    %v5603 = vpop.f32.mrf.mxu0
    %v5604 = vadd.f32 0.0, %v5603
    %v5605 = vpop.f32.mrf.mxu0
    %5606 = vmatprep.mubr.f32.mxu0 0.0
    %5607 = vmatmul.mubr.f32.gmra.mxu0 %v864
    %v5608 = vpop.f32.mrf.mxu0
    %v5609 = vadd.f32 0.0, %v5608
    %v5610 = vpop.f32.mrf.mxu0
    %5611 = vmatprep.mubr.f32.mxu0 0.0
    %5612 = vmatmul.mubr.f32.gmra.mxu0 %v865
    %v5613 = vpop.f32.mrf.mxu0
    %v5614 = vadd.f32 0.0, %v5613
    %v5615 = vpop.f32.mrf.mxu0
    %5616 = vmatprep.mubr.f32.mxu0 0.0
    %5617 = vmatmul.mubr.f32.gmra.mxu0 %v866
    %v5618 = vpop.f32.mrf.mxu0
    %v5619 = vadd.f32 0.0, %v5618
    %v5620 = vpop.f32.mrf.mxu0
    %5621 = vmatprep.mubr.f32.mxu0 0.0
    %5622 = vmatmul.mubr.f32.gmra.mxu0 %v867
    %v5623 = vpop.f32.mrf.mxu0
    %v5624 = vadd.f32 0.0, %v5623
    %v5625 = vpop.f32.mrf.mxu0
    %5626 = vmatprep.mubr.f32.mxu0 0.0
    %5627 = vmatmul.mubr.f32.gmra.mxu0 %v868
    %v5628 = vpop.f32.mrf.mxu0
    %v5629 = vadd.f32 0.0, %v5628
    %v5630 = vpop.f32.mrf.mxu0
    %5631 = vmatprep.mubr.f32.mxu0 0.0
    %5632 = vmatmul.mubr.f32.gmra.mxu0 %v869
    %v5633 = vpop.f32.mrf.mxu0
    %v5634 = vadd.f32 0.0, %v5633
    %v5635 = vpop.f32.mrf.mxu0
    %5636 = vmatprep.mubr.f32.mxu0 0.0
    %5637 = vmatmul.mubr.f32.gmra.mxu0 %v870
    %v5638 = vpop.f32.mrf.mxu0
    %v5639 = vadd.f32 0.0, %v5638
    %v5640 = vpop.f32.mrf.mxu0
    %5641 = vmatprep.mubr.f32.mxu0 0.0
    %5642 = vmatmul.mubr.f32.gmra.mxu0 %v871
    %v5643 = vpop.f32.mrf.mxu0
    %v5644 = vadd.f32 0.0, %v5643
    %v5645 = vpop.f32.mrf.mxu0
    %5646 = vmatprep.mubr.f32.mxu0 0.0
    %5647 = vmatmul.mubr.f32.gmra.mxu0 %v872
    %v5648 = vpop.f32.mrf.mxu0
    %v5649 = vadd.f32 0.0, %v5648
    %v5650 = vpop.f32.mrf.mxu0
    %5651 = vmatprep.mubr.f32.mxu0 0.0
    %5652 = vmatmul.mubr.f32.gmra.mxu0 %v873
    %v5653 = vpop.f32.mrf.mxu0
    %v5654 = vadd.f32 0.0, %v5653
    %v5655 = vpop.f32.mrf.mxu0
    %5656 = vmatprep.mubr.f32.mxu0 0.0
    %5657 = vmatmul.mubr.f32.gmra.mxu0 %v874
    %v5658 = vpop.f32.mrf.mxu0
    %v5659 = vadd.f32 0.0, %v5658
    %v5660 = vpop.f32.mrf.mxu0
    %5661 = vdwg.mxu0
    %v5662 = vsub.f32 %v5356, %v5584
    %v5663 = vsub.f32 %v5357, %v5589
    %v5664 = vsub.f32 %v5358, %v5594
    %v5665 = vsub.f32 %v5359, %v5599
    %v5666 = vsub.f32 %v5360, %v5604
    %v5667 = vsub.f32 %v5361, %v5609
    %v5668 = vsub.f32 %v5362, %v5614
    %v5669 = vsub.f32 %v5363, %v5619
    %v5670 = vsub.f32 %v5364, %v5624
    %v5671 = vsub.f32 %v5365, %v5629
    %v5672 = vsub.f32 %v5366, %v5634
    %v5673 = vsub.f32 %v5367, %v5639
    %v5674 = vsub.f32 %v5368, %v5644
    %v5675 = vsub.f32 %v5369, %v5649
    %v5676 = vsub.f32 %v5370, %v5654
    %v5677 = vsub.f32 %v5371, %v5659
    %v5678 = vmul.f32 %v5662, %v5662
    %v5679 = vmul.f32 %v5663, %v5663
    %v5680 = vmul.f32 %v5664, %v5664
    %v5681 = vmul.f32 %v5665, %v5665
    %v5682 = vmul.f32 %v5666, %v5666
    %v5683 = vmul.f32 %v5667, %v5667
    %v5684 = vmul.f32 %v5668, %v5668
    %v5685 = vmul.f32 %v5669, %v5669
    %v5686 = vmul.f32 %v5670, %v5670
    %v5687 = vmul.f32 %v5671, %v5671
    %v5688 = vmul.f32 %v5672, %v5672
    %v5689 = vmul.f32 %v5673, %v5673
    %v5690 = vmul.f32 %v5674, %v5674
    %v5691 = vmul.f32 %v5675, %v5675
    %v5692 = vmul.f32 %v5676, %v5676
    %v5693 = vmul.f32 %v5677, %v5677
    %5694 = vmatprep.subr.mxu0 0.0
    %5695 = vmatpush1.msra.mxu0 %v376
    %5696 = vmatprep.subr.mxu0 0.0
    %5697 = vmatpush1.msra.mxu0 %v375
    %5698 = vmatprep.subr.mxu0 0.0
    %5699 = vmatpush1.msra.mxu0 %v374
    %5700 = vmatprep.subr.mxu0 0.0
    %5701 = vmatpush1.msra.mxu0 %v373
    %5702 = vmatprep.subr.mxu0 0.0
    %5703 = vmatpush1.msra.mxu0 %v372
    %5704 = vmatprep.subr.mxu0 0.0
    %5705 = vmatpush1.msra.mxu0 %v371
    %5706 = vmatprep.subr.mxu0 0.0
    %5707 = vmatpush1.msra.mxu0 %v370
    %5708 = vmatprep.subr.mxu0 0.0
    %5709 = vmatpush1.msra.mxu0 %v369
    %5710 = vmatprep.subr.mxu0 0.0
    %5711 = vmatpush1.msra.mxu0 %v368
    %5712 = vmatprep.subr.mxu0 0.0
    %5713 = vmatpush1.msra.mxu0 %v367
    %5714 = vmatprep.subr.mxu0 0.0
    %5715 = vmatpush1.msra.mxu0 %v366
    %5716 = vmatprep.subr.mxu0 0.0
    %5717 = vmatpush1.msra.mxu0 %v365
    %5718 = vmatprep.subr.mxu0 0.0
    %5719 = vmatpush1.msra.mxu0 %v364
    %5720 = vmatprep.subr.mxu0 0.0
    %5721 = vmatpush1.msra.mxu0 %v363
    %5722 = vmatprep.subr.mxu0 0.0
    %5723 = vmatpush1.msra.mxu0 %v362
    %5724 = vmatprep.subr.mxu0 0.0
    %5725 = vmatpush1.msra.mxu0 %v361
    %5726 = vmatprep.subr.mxu0 0.0
    %5727 = vmatpush2.msra.mxu0 0.0
    %5728 = vmatprep.subr.mxu0 0.0
    %5729 = vmatpush2.msra.mxu0 0.0
    %5730 = vmatprep.subr.mxu0 0.0
    %5731 = vmatpush2.msra.mxu0 0.0
    %5732 = vmatprep.subr.mxu0 0.0
    %5733 = vmatpush2.msra.mxu0 0.0
    %5734 = vmatprep.subr.mxu0 0.0
    %5735 = vmatpush2.msra.mxu0 0.0
    %5736 = vmatprep.subr.mxu0 0.0
    %5737 = vmatpush2.msra.mxu0 0.0
    %5738 = vmatprep.subr.mxu0 0.0
    %5739 = vmatpush2.msra.mxu0 0.0
    %5740 = vmatprep.subr.mxu0 0.0
    %5741 = vmatpush2.msra.mxu0 0.0
    %5742 = vmatprep.subr.mxu0 0.0
    %5743 = vmatpush2.msra.mxu0 0.0
    %5744 = vmatprep.subr.mxu0 0.0
    %5745 = vmatpush2.msra.mxu0 0.0
    %5746 = vmatprep.subr.mxu0 0.0
    %5747 = vmatpush2.msra.mxu0 0.0
    %5748 = vmatprep.subr.mxu0 0.0
    %5749 = vmatpush2.msra.mxu0 0.0
    %5750 = vmatprep.subr.mxu0 0.0
    %5751 = vmatpush2.msra.mxu0 0.0
    %5752 = vmatprep.subr.mxu0 0.0
    %5753 = vmatpush2.msra.mxu0 0.0
    %5754 = vmatprep.subr.mxu0 0.0
    %5755 = vmatpush2.msra.mxu0 0.0
    %5756 = vmatprep.subr.mxu0 0.0
    %5757 = vmatpush2.msra.mxu0 0.0
    %5758 = vmatprep.mubr.f32.mxu0 0.0
    %5759 = vmatmul.mubr.f32.gmra.mxu0 %v5678
    %v5760 = vpop.f32.mrf.mxu0
    %v5761 = vadd.f32 0.0, %v5760
    %v5762 = vpop.f32.mrf.mxu0
    %5763 = vmatprep.mubr.f32.mxu0 0.0
    %5764 = vmatmul.mubr.f32.gmra.mxu0 %v5679
    %v5765 = vpop.f32.mrf.mxu0
    %v5766 = vadd.f32 0.0, %v5765
    %v5767 = vpop.f32.mrf.mxu0
    %5768 = vmatprep.mubr.f32.mxu0 0.0
    %5769 = vmatmul.mubr.f32.gmra.mxu0 %v5680
    %v5770 = vpop.f32.mrf.mxu0
    %v5771 = vadd.f32 0.0, %v5770
    %v5772 = vpop.f32.mrf.mxu0
    %5773 = vmatprep.mubr.f32.mxu0 0.0
    %5774 = vmatmul.mubr.f32.gmra.mxu0 %v5681
    %v5775 = vpop.f32.mrf.mxu0
    %v5776 = vadd.f32 0.0, %v5775
    %v5777 = vpop.f32.mrf.mxu0
    %5778 = vmatprep.mubr.f32.mxu0 0.0
    %5779 = vmatmul.mubr.f32.gmra.mxu0 %v5682
    %v5780 = vpop.f32.mrf.mxu0
    %v5781 = vadd.f32 0.0, %v5780
    %v5782 = vpop.f32.mrf.mxu0
    %5783 = vmatprep.mubr.f32.mxu0 0.0
    %5784 = vmatmul.mubr.f32.gmra.mxu0 %v5683
    %v5785 = vpop.f32.mrf.mxu0
    %v5786 = vadd.f32 0.0, %v5785
    %v5787 = vpop.f32.mrf.mxu0
    %5788 = vmatprep.mubr.f32.mxu0 0.0
    %5789 = vmatmul.mubr.f32.gmra.mxu0 %v5684
    %v5790 = vpop.f32.mrf.mxu0
    %v5791 = vadd.f32 0.0, %v5790
    %v5792 = vpop.f32.mrf.mxu0
    %5793 = vmatprep.mubr.f32.mxu0 0.0
    %5794 = vmatmul.mubr.f32.gmra.mxu0 %v5685
    %v5795 = vpop.f32.mrf.mxu0
    %v5796 = vadd.f32 0.0, %v5795
    %v5797 = vpop.f32.mrf.mxu0
    %5798 = vmatprep.mubr.f32.mxu0 0.0
    %5799 = vmatmul.mubr.f32.gmra.mxu0 %v5686
    %v5800 = vpop.f32.mrf.mxu0
    %v5801 = vadd.f32 0.0, %v5800
    %v5802 = vpop.f32.mrf.mxu0
    %5803 = vmatprep.mubr.f32.mxu0 0.0
    %5804 = vmatmul.mubr.f32.gmra.mxu0 %v5687
    %v5805 = vpop.f32.mrf.mxu0
    %v5806 = vadd.f32 0.0, %v5805
    %v5807 = vpop.f32.mrf.mxu0
    %5808 = vmatprep.mubr.f32.mxu0 0.0
    %5809 = vmatmul.mubr.f32.gmra.mxu0 %v5688
    %v5810 = vpop.f32.mrf.mxu0
    %v5811 = vadd.f32 0.0, %v5810
    %v5812 = vpop.f32.mrf.mxu0
    %5813 = vmatprep.mubr.f32.mxu0 0.0
    %5814 = vmatmul.mubr.f32.gmra.mxu0 %v5689
    %v5815 = vpop.f32.mrf.mxu0
    %v5816 = vadd.f32 0.0, %v5815
    %v5817 = vpop.f32.mrf.mxu0
    %5818 = vmatprep.mubr.f32.mxu0 0.0
    %5819 = vmatmul.mubr.f32.gmra.mxu0 %v5690
    %v5820 = vpop.f32.mrf.mxu0
    %v5821 = vadd.f32 0.0, %v5820
    %v5822 = vpop.f32.mrf.mxu0
    %5823 = vmatprep.mubr.f32.mxu0 0.0
    %5824 = vmatmul.mubr.f32.gmra.mxu0 %v5691
    %v5825 = vpop.f32.mrf.mxu0
    %v5826 = vadd.f32 0.0, %v5825
    %v5827 = vpop.f32.mrf.mxu0
    %5828 = vmatprep.mubr.f32.mxu0 0.0
    %5829 = vmatmul.mubr.f32.gmra.mxu0 %v5692
    %v5830 = vpop.f32.mrf.mxu0
    %v5831 = vadd.f32 0.0, %v5830
    %v5832 = vpop.f32.mrf.mxu0
    %5833 = vmatprep.mubr.f32.mxu0 0.0
    %5834 = vmatmul.mubr.f32.gmra.mxu0 %v5693
    %v5835 = vpop.f32.mrf.mxu0
    %v5836 = vadd.f32 0.0, %v5835
    %v5837 = vpop.f32.mrf.mxu0
    %5838 = vdwg.mxu0
    %5839 = vmatprep.subr.mxu0 0.0
    %5840 = vmatpush1.msra.mxu0 %v5836
    %5841 = vmatprep.subr.mxu0 0.0
    %5842 = vmatpush1.msra.mxu0 %v5831
    %5843 = vmatprep.subr.mxu0 0.0
    %5844 = vmatpush1.msra.mxu0 %v5826
    %5845 = vmatprep.subr.mxu0 0.0
    %5846 = vmatpush1.msra.mxu0 %v5821
    %5847 = vmatprep.subr.mxu0 0.0
    %5848 = vmatpush1.msra.mxu0 %v5816
    %5849 = vmatprep.subr.mxu0 0.0
    %5850 = vmatpush1.msra.mxu0 %v5811
    %5851 = vmatprep.subr.mxu0 0.0
    %5852 = vmatpush1.msra.mxu0 %v5806
    %5853 = vmatprep.subr.mxu0 0.0
    %5854 = vmatpush1.msra.mxu0 %v5801
    %5855 = vmatprep.subr.mxu0 0.0
    %5856 = vmatpush1.msra.mxu0 %v5796
    %5857 = vmatprep.subr.mxu0 0.0
    %5858 = vmatpush1.msra.mxu0 %v5791
    %5859 = vmatprep.subr.mxu0 0.0
    %5860 = vmatpush1.msra.mxu0 %v5786
    %5861 = vmatprep.subr.mxu0 0.0
    %5862 = vmatpush1.msra.mxu0 %v5781
    %5863 = vmatprep.subr.mxu0 0.0
    %5864 = vmatpush1.msra.mxu0 %v5776
    %5865 = vmatprep.subr.mxu0 0.0
    %5866 = vmatpush1.msra.mxu0 %v5771
    %5867 = vmatprep.subr.mxu0 0.0
    %5868 = vmatpush1.msra.mxu0 %v5766
    %5869 = vmatprep.subr.mxu0 0.0
    %5870 = vmatpush1.msra.mxu0 %v5761
    %5871 = vmatprep.subr.mxu0 0.0
    %5872 = vmatpush2.msra.mxu0 0.0
    %5873 = vmatprep.subr.mxu0 0.0
    %5874 = vmatpush2.msra.mxu0 0.0
    %5875 = vmatprep.subr.mxu0 0.0
    %5876 = vmatpush2.msra.mxu0 0.0
    %5877 = vmatprep.subr.mxu0 0.0
    %5878 = vmatpush2.msra.mxu0 0.0
    %5879 = vmatprep.subr.mxu0 0.0
    %5880 = vmatpush2.msra.mxu0 0.0
    %5881 = vmatprep.subr.mxu0 0.0
    %5882 = vmatpush2.msra.mxu0 0.0
    %5883 = vmatprep.subr.mxu0 0.0
    %5884 = vmatpush2.msra.mxu0 0.0
    %5885 = vmatprep.subr.mxu0 0.0
    %5886 = vmatpush2.msra.mxu0 0.0
    %5887 = vmatprep.subr.mxu0 0.0
    %5888 = vmatpush2.msra.mxu0 0.0
    %5889 = vmatprep.subr.mxu0 0.0
    %5890 = vmatpush2.msra.mxu0 0.0
    %5891 = vmatprep.subr.mxu0 0.0
    %5892 = vmatpush2.msra.mxu0 0.0
    %5893 = vmatprep.subr.mxu0 0.0
    %5894 = vmatpush2.msra.mxu0 0.0
    %5895 = vmatprep.subr.mxu0 0.0
    %5896 = vmatpush2.msra.mxu0 0.0
    %5897 = vmatprep.subr.mxu0 0.0
    %5898 = vmatpush2.msra.mxu0 0.0
    %5899 = vmatprep.subr.mxu0 0.0
    %5900 = vmatpush2.msra.mxu0 0.0
    %5901 = vmatprep.subr.mxu0 0.0
    %5902 = vmatpush2.msra.mxu0 0.0
    %5903 = vmatprep.mubr.f32.mxu0 0.0
    %5904 = vmatmul.mubr.f32.gmra.mxu0 %v859
    %v5905 = vpop.f32.mrf.mxu0
    %v5906 = vadd.f32 1e-05, %v5905
    %v5907 = vpop.f32.mrf.mxu0
    %5908 = vmatprep.mubr.f32.mxu0 0.0
    %5909 = vmatmul.mubr.f32.gmra.mxu0 %v860
    %v5910 = vpop.f32.mrf.mxu0
    %v5911 = vadd.f32 1e-05, %v5910
    %v5912 = vpop.f32.mrf.mxu0
    %5913 = vmatprep.mubr.f32.mxu0 0.0
    %5914 = vmatmul.mubr.f32.gmra.mxu0 %v861
    %v5915 = vpop.f32.mrf.mxu0
    %v5916 = vadd.f32 1e-05, %v5915
    %v5917 = vpop.f32.mrf.mxu0
    %5918 = vmatprep.mubr.f32.mxu0 0.0
    %5919 = vmatmul.mubr.f32.gmra.mxu0 %v862
    %v5920 = vpop.f32.mrf.mxu0
    %v5921 = vadd.f32 1e-05, %v5920
    %v5922 = vpop.f32.mrf.mxu0
    %5923 = vmatprep.mubr.f32.mxu0 0.0
    %5924 = vmatmul.mubr.f32.gmra.mxu0 %v863
    %v5925 = vpop.f32.mrf.mxu0
    %v5926 = vadd.f32 1e-05, %v5925
    %v5927 = vpop.f32.mrf.mxu0
    %5928 = vmatprep.mubr.f32.mxu0 0.0
    %5929 = vmatmul.mubr.f32.gmra.mxu0 %v864
    %v5930 = vpop.f32.mrf.mxu0
    %v5931 = vadd.f32 1e-05, %v5930
    %v5932 = vpop.f32.mrf.mxu0
    %5933 = vmatprep.mubr.f32.mxu0 0.0
    %5934 = vmatmul.mubr.f32.gmra.mxu0 %v865
    %v5935 = vpop.f32.mrf.mxu0
    %v5936 = vadd.f32 1e-05, %v5935
    %v5937 = vpop.f32.mrf.mxu0
    %5938 = vmatprep.mubr.f32.mxu0 0.0
    %5939 = vmatmul.mubr.f32.gmra.mxu0 %v866
    %v5940 = vpop.f32.mrf.mxu0
    %v5941 = vadd.f32 1e-05, %v5940
    %v5942 = vpop.f32.mrf.mxu0
    %5943 = vmatprep.mubr.f32.mxu0 0.0
    %5944 = vmatmul.mubr.f32.gmra.mxu0 %v867
    %v5945 = vpop.f32.mrf.mxu0
    %v5946 = vadd.f32 1e-05, %v5945
    %v5947 = vpop.f32.mrf.mxu0
    %5948 = vmatprep.mubr.f32.mxu0 0.0
    %5949 = vmatmul.mubr.f32.gmra.mxu0 %v868
    %v5950 = vpop.f32.mrf.mxu0
    %v5951 = vadd.f32 1e-05, %v5950
    %v5952 = vpop.f32.mrf.mxu0
    %5953 = vmatprep.mubr.f32.mxu0 0.0
    %5954 = vmatmul.mubr.f32.gmra.mxu0 %v869
    %v5955 = vpop.f32.mrf.mxu0
    %v5956 = vadd.f32 1e-05, %v5955
    %v5957 = vpop.f32.mrf.mxu0
    %5958 = vmatprep.mubr.f32.mxu0 0.0
    %5959 = vmatmul.mubr.f32.gmra.mxu0 %v870
    %v5960 = vpop.f32.mrf.mxu0
    %v5961 = vadd.f32 1e-05, %v5960
    %v5962 = vpop.f32.mrf.mxu0
    %5963 = vmatprep.mubr.f32.mxu0 0.0
    %5964 = vmatmul.mubr.f32.gmra.mxu0 %v871
    %v5965 = vpop.f32.mrf.mxu0
    %v5966 = vadd.f32 1e-05, %v5965
    %v5967 = vpop.f32.mrf.mxu0
    %5968 = vmatprep.mubr.f32.mxu0 0.0
    %5969 = vmatmul.mubr.f32.gmra.mxu0 %v872
    %v5970 = vpop.f32.mrf.mxu0
    %v5971 = vadd.f32 1e-05, %v5970
    %v5972 = vpop.f32.mrf.mxu0
    %5973 = vmatprep.mubr.f32.mxu0 0.0
    %5974 = vmatmul.mubr.f32.gmra.mxu0 %v873
    %v5975 = vpop.f32.mrf.mxu0
    %v5976 = vadd.f32 1e-05, %v5975
    %v5977 = vpop.f32.mrf.mxu0
    %5978 = vmatprep.mubr.f32.mxu0 0.0
    %5979 = vmatmul.mubr.f32.gmra.mxu0 %v874
    %v5980 = vpop.f32.mrf.mxu0
    %v5981 = vadd.f32 1e-05, %v5980
    %v5982 = vpop.f32.mrf.mxu0
    %5983 = vdwg.mxu0
    %v5984 = vrsqrt.pop %v5906
    %v5985 = vrsqrt.pop %v5911
    %v5986 = vrsqrt.pop %v5916
    %v5987 = vrsqrt.pop %v5921
    %v5988 = vrsqrt.pop %v5926
    %v5989 = vrsqrt.pop %v5931
    %v5990 = vrsqrt.pop %v5936
    %v5991 = vrsqrt.pop %v5941
    %v5992 = vrsqrt.pop %v5946
    %v5993 = vrsqrt.pop %v5951
    %v5994 = vrsqrt.pop %v5956
    %v5995 = vrsqrt.pop %v5961
    %v5996 = vrsqrt.pop %v5966
    %v5997 = vrsqrt.pop %v5971
    %v5998 = vrsqrt.pop %v5976
    %v5999 = vrsqrt.pop %v5981
    %v6000 = vmul.f32 %v5662, %v5984
    %v6001 = vmul.f32 %v5663, %v5985
    %v6002 = vmul.f32 %v5664, %v5986
    %v6003 = vmul.f32 %v5665, %v5987
    %v6004 = vmul.f32 %v5666, %v5988
    %v6005 = vmul.f32 %v5667, %v5989
    %v6006 = vmul.f32 %v5668, %v5990
    %v6007 = vmul.f32 %v5669, %v5991
    %v6008 = vmul.f32 %v5670, %v5992
    %v6009 = vmul.f32 %v5671, %v5993
    %v6010 = vmul.f32 %v5672, %v5994
    %v6011 = vmul.f32 %v5673, %v5995
    %v6012 = vmul.f32 %v5674, %v5996
    %v6013 = vmul.f32 %v5675, %v5997
    %v6014 = vmul.f32 %v5676, %v5998
    %v6015 = vmul.f32 %v5677, %v5999
    %6016 = vset.pattern.permute.xlu0 2
    %6017 = vperm.xlu0 %6016, %v54
    %v6018 = vpop.permute.xlu0 %6017
    %6020 = vset.pattern.permute.xlu0 2
    %6021 = vperm.xlu0 %6020, %v55
    %v6022 = vpop.permute.xlu0 %6021
    %6024 = vset.pattern.permute.xlu0 2
    %6025 = vperm.xlu0 %6024, %v56
    %v6026 = vpop.permute.xlu0 %6025
    %6028 = vset.pattern.permute.xlu0 2
    %6029 = vperm.xlu0 %6028, %v57
    %v6030 = vpop.permute.xlu0 %6029
    %6032 = vset.pattern.permute.xlu0 2
    %6033 = vperm.xlu0 %6032, %v58
    %v6034 = vpop.permute.xlu0 %6033
    %6036 = vset.pattern.permute.xlu0 2
    %6037 = vperm.xlu0 %6036, %v59
    %v6038 = vpop.permute.xlu0 %6037
    %6040 = vset.pattern.permute.xlu0 2
    %6041 = vperm.xlu0 %6040, %v60
    %v6042 = vpop.permute.xlu0 %6041
    %6044 = vset.pattern.permute.xlu0 2
    %6045 = vperm.xlu0 %6044, %v61
    %v6046 = vpop.permute.xlu0 %6045
    %6048 = vset.pattern.permute.xlu0 2
    %6049 = vperm.xlu0 %6048, %v62
    %v6050 = vpop.permute.xlu0 %6049
    %6052 = vset.pattern.permute.xlu0 2
    %6053 = vperm.xlu0 %6052, %v63
    %v6054 = vpop.permute.xlu0 %6053
    %6056 = vset.pattern.permute.xlu0 2
    %6057 = vperm.xlu0 %6056, %v64
    %v6058 = vpop.permute.xlu0 %6057
    %6060 = vset.pattern.permute.xlu0 2
    %6061 = vperm.xlu0 %6060, %v65
    %v6062 = vpop.permute.xlu0 %6061
    %6064 = vset.pattern.permute.xlu0 2
    %6065 = vperm.xlu0 %6064, %v66
    %v6066 = vpop.permute.xlu0 %6065
    %6068 = vset.pattern.permute.xlu0 2
    %6069 = vperm.xlu0 %6068, %v67
    %v6070 = vpop.permute.xlu0 %6069
    %6072 = vset.pattern.permute.xlu0 2
    %6073 = vperm.xlu0 %6072, %v68
    %v6074 = vpop.permute.xlu0 %6073
    %6076 = vset.pattern.permute.xlu0 2
    %6077 = vperm.xlu0 %6076, %v69
    %v6078 = vpop.permute.xlu0 %6077
    %v6080 = vmul.f32 %v6000, %v6018
    %v6081 = vmul.f32 %v6001, %v6022
    %v6082 = vmul.f32 %v6002, %v6026
    %v6083 = vmul.f32 %v6003, %v6030
    %v6084 = vmul.f32 %v6004, %v6034
    %v6085 = vmul.f32 %v6005, %v6038
    %v6086 = vmul.f32 %v6006, %v6042
    %v6087 = vmul.f32 %v6007, %v6046
    %v6088 = vmul.f32 %v6008, %v6050
    %v6089 = vmul.f32 %v6009, %v6054
    %v6090 = vmul.f32 %v6010, %v6058
    %v6091 = vmul.f32 %v6011, %v6062
    %v6092 = vmul.f32 %v6012, %v6066
    %v6093 = vmul.f32 %v6013, %v6070
    %v6094 = vmul.f32 %v6014, %v6074
    %v6095 = vmul.f32 %v6015, %v6078
    %6096 = vset.pattern.permute.xlu0 3
    %6097 = vperm.xlu0 %6096, %v54
    %v6098 = vpop.permute.xlu0 %6097
    %6100 = vset.pattern.permute.xlu0 3
    %6101 = vperm.xlu0 %6100, %v55
    %v6102 = vpop.permute.xlu0 %6101
    %6104 = vset.pattern.permute.xlu0 3
    %6105 = vperm.xlu0 %6104, %v56
    %v6106 = vpop.permute.xlu0 %6105
    %6108 = vset.pattern.permute.xlu0 3
    %6109 = vperm.xlu0 %6108, %v57
    %v6110 = vpop.permute.xlu0 %6109
    %6112 = vset.pattern.permute.xlu0 3
    %6113 = vperm.xlu0 %6112, %v58
    %v6114 = vpop.permute.xlu0 %6113
    %6116 = vset.pattern.permute.xlu0 3
    %6117 = vperm.xlu0 %6116, %v59
    %v6118 = vpop.permute.xlu0 %6117
    %6120 = vset.pattern.permute.xlu0 3
    %6121 = vperm.xlu0 %6120, %v60
    %v6122 = vpop.permute.xlu0 %6121
    %6124 = vset.pattern.permute.xlu0 3
    %6125 = vperm.xlu0 %6124, %v61
    %v6126 = vpop.permute.xlu0 %6125
    %6128 = vset.pattern.permute.xlu0 3
    %6129 = vperm.xlu0 %6128, %v62
    %v6130 = vpop.permute.xlu0 %6129
    %6132 = vset.pattern.permute.xlu0 3
    %6133 = vperm.xlu0 %6132, %v63
    %v6134 = vpop.permute.xlu0 %6133
    %6136 = vset.pattern.permute.xlu0 3
    %6137 = vperm.xlu0 %6136, %v64
    %v6138 = vpop.permute.xlu0 %6137
    %6140 = vset.pattern.permute.xlu0 3
    %6141 = vperm.xlu0 %6140, %v65
    %v6142 = vpop.permute.xlu0 %6141
    %6144 = vset.pattern.permute.xlu0 3
    %6145 = vperm.xlu0 %6144, %v66
    %v6146 = vpop.permute.xlu0 %6145
    %6148 = vset.pattern.permute.xlu0 3
    %6149 = vperm.xlu0 %6148, %v67
    %v6150 = vpop.permute.xlu0 %6149
    %6152 = vset.pattern.permute.xlu0 3
    %6153 = vperm.xlu0 %6152, %v68
    %v6154 = vpop.permute.xlu0 %6153
    %6156 = vset.pattern.permute.xlu0 3
    %6157 = vperm.xlu0 %6156, %v69
    %v6158 = vpop.permute.xlu0 %6157
    %v6160 = vadd.f32 %v6080, %v6098
    %v6161 = vadd.f32 %v6081, %v6102
    %v6162 = vadd.f32 %v6082, %v6106
    %v6163 = vadd.f32 %v6083, %v6110
    %v6164 = vadd.f32 %v6084, %v6114
    %v6165 = vadd.f32 %v6085, %v6118
    %v6166 = vadd.f32 %v6086, %v6122
    %v6167 = vadd.f32 %v6087, %v6126
    %v6168 = vadd.f32 %v6088, %v6130
    %v6169 = vadd.f32 %v6089, %v6134
    %v6170 = vadd.f32 %v6090, %v6138
    %v6171 = vadd.f32 %v6091, %v6142
    %v6172 = vadd.f32 %v6092, %v6146
    %v6173 = vadd.f32 %v6093, %v6150
    %v6174 = vadd.f32 %v6094, %v6154
    %v6175 = vadd.f32 %v6095, %v6158
    %v6176 = vsub.f32 0.0, %v6160
    %v6177 = vsub.f32 0.0, %v6161
    %v6178 = vsub.f32 0.0, %v6162
    %v6179 = vsub.f32 0.0, %v6163
    %v6180 = vsub.f32 0.0, %v6164
    %v6181 = vsub.f32 0.0, %v6165
    %v6182 = vsub.f32 0.0, %v6166
    %v6183 = vsub.f32 0.0, %v6167
    %v6184 = vsub.f32 0.0, %v6168
    %v6185 = vsub.f32 0.0, %v6169
    %v6186 = vsub.f32 0.0, %v6170
    %v6187 = vsub.f32 0.0, %v6171
    %v6188 = vsub.f32 0.0, %v6172
    %v6189 = vsub.f32 0.0, %v6173
    %v6190 = vsub.f32 0.0, %v6174
    %v6191 = vsub.f32 0.0, %v6175
    %v6192 = vmul.f32 %v6176, 1.442695
    %v6193 = vpow.pop %v6192
    %v6194 = vmul.f32 %v6177, 1.442695
    %v6195 = vpow.pop %v6194
    %v6196 = vmul.f32 %v6178, 1.442695
    %v6197 = vpow.pop %v6196
    %v6198 = vmul.f32 %v6179, 1.442695
    %v6199 = vpow.pop %v6198
    %v6200 = vmul.f32 %v6180, 1.442695
    %v6201 = vpow.pop %v6200
    %v6202 = vmul.f32 %v6181, 1.442695
    %v6203 = vpow.pop %v6202
    %v6204 = vmul.f32 %v6182, 1.442695
    %v6205 = vpow.pop %v6204
    %v6206 = vmul.f32 %v6183, 1.442695
    %v6207 = vpow.pop %v6206
    %v6208 = vmul.f32 %v6184, 1.442695
    %v6209 = vpow.pop %v6208
    %v6210 = vmul.f32 %v6185, 1.442695
    %v6211 = vpow.pop %v6210
    %v6212 = vmul.f32 %v6186, 1.442695
    %v6213 = vpow.pop %v6212
    %v6214 = vmul.f32 %v6187, 1.442695
    %v6215 = vpow.pop %v6214
    %v6216 = vmul.f32 %v6188, 1.442695
    %v6217 = vpow.pop %v6216
    %v6218 = vmul.f32 %v6189, 1.442695
    %v6219 = vpow.pop %v6218
    %v6220 = vmul.f32 %v6190, 1.442695
    %v6221 = vpow.pop %v6220
    %v6222 = vmul.f32 %v6191, 1.442695
    %v6223 = vpow.pop %v6222
    %v6224 = vadd.f32 %v6193, 1.0
    %v6225 = vadd.f32 %v6195, 1.0
    %v6226 = vadd.f32 %v6197, 1.0
    %v6227 = vadd.f32 %v6199, 1.0
    %v6228 = vadd.f32 %v6201, 1.0
    %v6229 = vadd.f32 %v6203, 1.0
    %v6230 = vadd.f32 %v6205, 1.0
    %v6231 = vadd.f32 %v6207, 1.0
    %v6232 = vadd.f32 %v6209, 1.0
    %v6233 = vadd.f32 %v6211, 1.0
    %v6234 = vadd.f32 %v6213, 1.0
    %v6235 = vadd.f32 %v6215, 1.0
    %v6236 = vadd.f32 %v6217, 1.0
    %v6237 = vadd.f32 %v6219, 1.0
    %v6238 = vadd.f32 %v6221, 1.0
    %v6239 = vadd.f32 %v6223, 1.0
    %v6240 = vrcp.pop %v6224
    %v6241 = vmul.f32 1.0, %v6240
    %v6242 = vrcp.pop %v6225
    %v6243 = vmul.f32 1.0, %v6242
    %v6244 = vrcp.pop %v6226
    %v6245 = vmul.f32 1.0, %v6244
    %v6246 = vrcp.pop %v6227
    %v6247 = vmul.f32 1.0, %v6246
    %v6248 = vrcp.pop %v6228
    %v6249 = vmul.f32 1.0, %v6248
    %v6250 = vrcp.pop %v6229
    %v6251 = vmul.f32 1.0, %v6250
    %v6252 = vrcp.pop %v6230
    %v6253 = vmul.f32 1.0, %v6252
    %v6254 = vrcp.pop %v6231
    %v6255 = vmul.f32 1.0, %v6254
    %v6256 = vrcp.pop %v6232
    %v6257 = vmul.f32 1.0, %v6256
    %v6258 = vrcp.pop %v6233
    %v6259 = vmul.f32 1.0, %v6258
    %v6260 = vrcp.pop %v6234
    %v6261 = vmul.f32 1.0, %v6260
    %v6262 = vrcp.pop %v6235
    %v6263 = vmul.f32 1.0, %v6262
    %v6264 = vrcp.pop %v6236
    %v6265 = vmul.f32 1.0, %v6264
    %v6266 = vrcp.pop %v6237
    %v6267 = vmul.f32 1.0, %v6266
    %v6268 = vrcp.pop %v6238
    %v6269 = vmul.f32 1.0, %v6268
    %v6270 = vrcp.pop %v6239
    %v6271 = vmul.f32 1.0, %v6270
    %v6272 = vmul.f32 %v6160, %v6241
    %v6273 = vmul.f32 %v6161, %v6243
    %v6274 = vmul.f32 %v6162, %v6245
    %v6275 = vmul.f32 %v6163, %v6247
    %v6276 = vmul.f32 %v6164, %v6249
    %v6277 = vmul.f32 %v6165, %v6251
    %v6278 = vmul.f32 %v6166, %v6253
    %v6279 = vmul.f32 %v6167, %v6255
    %v6280 = vmul.f32 %v6168, %v6257
    %v6281 = vmul.f32 %v6169, %v6259
    %v6282 = vmul.f32 %v6170, %v6261
    %v6283 = vmul.f32 %v6171, %v6263
    %v6284 = vmul.f32 %v6172, %v6265
    %v6285 = vmul.f32 %v6173, %v6267
    %v6286 = vmul.f32 %v6174, %v6269
    %v6287 = vmul.f32 %v6175, %v6271
    %6288 = vmatprep.subr.mxu0 0.0
    %6289 = vmatpush1.msra.mxu0 %v1825
    %6290 = vmatprep.subr.mxu0 0.0
    %6291 = vmatpush1.msra.mxu0 %v1824
    %6292 = vmatprep.subr.mxu0 0.0
    %6293 = vmatpush1.msra.mxu0 %v1823
    %6294 = vmatprep.subr.mxu0 0.0
    %6295 = vmatpush1.msra.mxu0 %v1822
    %6296 = vmatprep.subr.mxu0 0.0
    %6297 = vmatpush1.msra.mxu0 %v1821
    %6298 = vmatprep.subr.mxu0 0.0
    %6299 = vmatpush1.msra.mxu0 %v1820
    %6300 = vmatprep.subr.mxu0 0.0
    %6301 = vmatpush1.msra.mxu0 %v1819
    %6302 = vmatprep.subr.mxu0 0.0
    %6303 = vmatpush1.msra.mxu0 %v1818
    %6304 = vmatprep.subr.mxu0 0.0
    %6305 = vmatpush1.msra.mxu0 %v1817
    %6306 = vmatprep.subr.mxu0 0.0
    %6307 = vmatpush1.msra.mxu0 %v1816
    %6308 = vmatprep.subr.mxu0 0.0
    %6309 = vmatpush1.msra.mxu0 %v1815
    %6310 = vmatprep.subr.mxu0 0.0
    %6311 = vmatpush1.msra.mxu0 %v1814
    %6312 = vmatprep.subr.mxu0 0.0
    %6313 = vmatpush1.msra.mxu0 %v1813
    %6314 = vmatprep.subr.mxu0 0.0
    %6315 = vmatpush1.msra.mxu0 %v1812
    %6316 = vmatprep.subr.mxu0 0.0
    %6317 = vmatpush1.msra.mxu0 %v1811
    %6318 = vmatprep.subr.mxu0 0.0
    %6319 = vmatpush1.msra.mxu0 %v1810
    %6320 = vmatprep.subr.mxu0 0.0
    %6321 = vmatpush2.msra.mxu0 0.0
    %6322 = vmatprep.subr.mxu0 0.0
    %6323 = vmatpush2.msra.mxu0 0.0
    %6324 = vmatprep.subr.mxu0 0.0
    %6325 = vmatpush2.msra.mxu0 0.0
    %6326 = vmatprep.subr.mxu0 0.0
    %6327 = vmatpush2.msra.mxu0 0.0
    %6328 = vmatprep.subr.mxu0 0.0
    %6329 = vmatpush2.msra.mxu0 0.0
    %6330 = vmatprep.subr.mxu0 0.0
    %6331 = vmatpush2.msra.mxu0 0.0
    %6332 = vmatprep.subr.mxu0 0.0
    %6333 = vmatpush2.msra.mxu0 0.0
    %6334 = vmatprep.subr.mxu0 0.0
    %6335 = vmatpush2.msra.mxu0 0.0
    %6336 = vmatprep.subr.mxu0 0.0
    %6337 = vmatpush2.msra.mxu0 0.0
    %6338 = vmatprep.subr.mxu0 0.0
    %6339 = vmatpush2.msra.mxu0 0.0
    %6340 = vmatprep.subr.mxu0 0.0
    %6341 = vmatpush2.msra.mxu0 0.0
    %6342 = vmatprep.subr.mxu0 0.0
    %6343 = vmatpush2.msra.mxu0 0.0
    %6344 = vmatprep.subr.mxu0 0.0
    %6345 = vmatpush2.msra.mxu0 0.0
    %6346 = vmatprep.subr.mxu0 0.0
    %6347 = vmatpush2.msra.mxu0 0.0
    %6348 = vmatprep.subr.mxu0 0.0
    %6349 = vmatpush2.msra.mxu0 0.0
    %6350 = vmatprep.subr.mxu0 0.0
    %6351 = vmatpush2.msra.mxu0 0.0
    %6352 = vmatprep.mubr.f32.mxu0 0.0
    %6353 = vmatmul.mubr.f32.gmra.mxu0 %v6272
    %v6354 = vpop.f32.mrf.mxu0
    %v6355 = vadd.f32 0.0, %v6354
    %v6356 = vpop.f32.mrf.mxu0
    %6357 = vmatprep.mubr.f32.mxu0 0.0
    %6358 = vmatmul.mubr.f32.gmra.mxu0 %v6273
    %v6359 = vpop.f32.mrf.mxu0
    %v6360 = vadd.f32 0.0, %v6359
    %v6361 = vpop.f32.mrf.mxu0
    %6362 = vmatprep.mubr.f32.mxu0 0.0
    %6363 = vmatmul.mubr.f32.gmra.mxu0 %v6274
    %v6364 = vpop.f32.mrf.mxu0
    %v6365 = vadd.f32 0.0, %v6364
    %v6366 = vpop.f32.mrf.mxu0
    %6367 = vmatprep.mubr.f32.mxu0 0.0
    %6368 = vmatmul.mubr.f32.gmra.mxu0 %v6275
    %v6369 = vpop.f32.mrf.mxu0
    %v6370 = vadd.f32 0.0, %v6369
    %v6371 = vpop.f32.mrf.mxu0
    %6372 = vmatprep.mubr.f32.mxu0 0.0
    %6373 = vmatmul.mubr.f32.gmra.mxu0 %v6276
    %v6374 = vpop.f32.mrf.mxu0
    %v6375 = vadd.f32 0.0, %v6374
    %v6376 = vpop.f32.mrf.mxu0
    %6377 = vmatprep.mubr.f32.mxu0 0.0
    %6378 = vmatmul.mubr.f32.gmra.mxu0 %v6277
    %v6379 = vpop.f32.mrf.mxu0
    %v6380 = vadd.f32 0.0, %v6379
    %v6381 = vpop.f32.mrf.mxu0
    %6382 = vmatprep.mubr.f32.mxu0 0.0
    %6383 = vmatmul.mubr.f32.gmra.mxu0 %v6278
    %v6384 = vpop.f32.mrf.mxu0
    %v6385 = vadd.f32 0.0, %v6384
    %v6386 = vpop.f32.mrf.mxu0
    %6387 = vmatprep.mubr.f32.mxu0 0.0
    %6388 = vmatmul.mubr.f32.gmra.mxu0 %v6279
    %v6389 = vpop.f32.mrf.mxu0
    %v6390 = vadd.f32 0.0, %v6389
    %v6391 = vpop.f32.mrf.mxu0
    %6392 = vmatprep.mubr.f32.mxu0 0.0
    %6393 = vmatmul.mubr.f32.gmra.mxu0 %v6280
    %v6394 = vpop.f32.mrf.mxu0
    %v6395 = vadd.f32 0.0, %v6394
    %v6396 = vpop.f32.mrf.mxu0
    %6397 = vmatprep.mubr.f32.mxu0 0.0
    %6398 = vmatmul.mubr.f32.gmra.mxu0 %v6281
    %v6399 = vpop.f32.mrf.mxu0
    %v6400 = vadd.f32 0.0, %v6399
    %v6401 = vpop.f32.mrf.mxu0
    %6402 = vmatprep.mubr.f32.mxu0 0.0
    %6403 = vmatmul.mubr.f32.gmra.mxu0 %v6282
    %v6404 = vpop.f32.mrf.mxu0
    %v6405 = vadd.f32 0.0, %v6404
    %v6406 = vpop.f32.mrf.mxu0
    %6407 = vmatprep.mubr.f32.mxu0 0.0
    %6408 = vmatmul.mubr.f32.gmra.mxu0 %v6283
    %v6409 = vpop.f32.mrf.mxu0
    %v6410 = vadd.f32 0.0, %v6409
    %v6411 = vpop.f32.mrf.mxu0
    %6412 = vmatprep.mubr.f32.mxu0 0.0
    %6413 = vmatmul.mubr.f32.gmra.mxu0 %v6284
    %v6414 = vpop.f32.mrf.mxu0
    %v6415 = vadd.f32 0.0, %v6414
    %v6416 = vpop.f32.mrf.mxu0
    %6417 = vmatprep.mubr.f32.mxu0 0.0
    %6418 = vmatmul.mubr.f32.gmra.mxu0 %v6285
    %v6419 = vpop.f32.mrf.mxu0
    %v6420 = vadd.f32 0.0, %v6419
    %v6421 = vpop.f32.mrf.mxu0
    %6422 = vmatprep.mubr.f32.mxu0 0.0
    %6423 = vmatmul.mubr.f32.gmra.mxu0 %v6286
    %v6424 = vpop.f32.mrf.mxu0
    %v6425 = vadd.f32 0.0, %v6424
    %v6426 = vpop.f32.mrf.mxu0
    %6427 = vmatprep.mubr.f32.mxu0 0.0
    %6428 = vmatmul.mubr.f32.gmra.mxu0 %v6287
    %v6429 = vpop.f32.mrf.mxu0
    %v6430 = vadd.f32 0.0, %v6429
    %v6431 = vpop.f32.mrf.mxu0
    %6432 = vdwg.mxu0
    %v6433 = vld [vmem:[%s3] sm:$0xff]
    %v6434 = vld [vmem:[%s3 + $0x8] sm:$0xff]
    %v6435 = vld [vmem:[%s3 + $0x10] sm:$0xff]
    %v6436 = vld [vmem:[%s3 + $0x18] sm:$0xff]
    %v6437 = vld [vmem:[%s3 + $0x20] sm:$0xff]
    %v6438 = vld [vmem:[%s3 + $0x28] sm:$0xff]
    %v6439 = vld [vmem:[%s3 + $0x30] sm:$0xff]
    %v6440 = vld [vmem:[%s3 + $0x38] sm:$0xff]
    %v6441 = vld [vmem:[%s3 + $0x40] sm:$0xff]
    %v6442 = vld [vmem:[%s3 + $0x48] sm:$0xff]
    %v6443 = vld [vmem:[%s3 + $0x50] sm:$0xff]
    %v6444 = vld [vmem:[%s3 + $0x58] sm:$0xff]
    %v6445 = vld [vmem:[%s3 + $0x60] sm:$0xff]
    %v6446 = vld [vmem:[%s3 + $0x68] sm:$0xff]
    %v6447 = vld [vmem:[%s3 + $0x70] sm:$0xff]
    %v6448 = vld [vmem:[%s3 + $0x78] sm:$0xff]
    %6449 = vmatprep.subr.mxu0 0.0
    %6450 = vmatpush1.msra.mxu0 %v1963
    %6451 = vmatprep.subr.mxu0 0.0
    %6452 = vmatpush1.msra.mxu0 %v1962
    %6453 = vmatprep.subr.mxu0 0.0
    %6454 = vmatpush1.msra.mxu0 %v1961
    %6455 = vmatprep.subr.mxu0 0.0
    %6456 = vmatpush1.msra.mxu0 %v1960
    %6457 = vmatprep.subr.mxu0 0.0
    %6458 = vmatpush1.msra.mxu0 %v1959
    %6459 = vmatprep.subr.mxu0 0.0
    %6460 = vmatpush1.msra.mxu0 %v1958
    %6461 = vmatprep.subr.mxu0 0.0
    %6462 = vmatpush1.msra.mxu0 %v1957
    %6463 = vmatprep.subr.mxu0 0.0
    %6464 = vmatpush1.msra.mxu0 %v1956
    %6465 = vmatprep.subr.mxu0 0.0
    %6466 = vmatpush1.msra.mxu0 %v1955
    %6467 = vmatprep.subr.mxu0 0.0
    %6468 = vmatpush1.msra.mxu0 %v1954
    %6469 = vmatprep.subr.mxu0 0.0
    %6470 = vmatpush1.msra.mxu0 %v1953
    %6471 = vmatprep.subr.mxu0 0.0
    %6472 = vmatpush1.msra.mxu0 %v1952
    %6473 = vmatprep.subr.mxu0 0.0
    %6474 = vmatpush1.msra.mxu0 %v1951
    %6475 = vmatprep.subr.mxu0 0.0
    %6476 = vmatpush1.msra.mxu0 %v1950
    %6477 = vmatprep.subr.mxu0 0.0
    %6478 = vmatpush1.msra.mxu0 %v1949
    %6479 = vmatprep.subr.mxu0 0.0
    %6480 = vmatpush1.msra.mxu0 %v1948
    %6481 = vmatprep.subr.mxu0 0.0
    %6482 = vmatpush2.msra.mxu0 0.0
    %6483 = vmatprep.subr.mxu0 0.0
    %6484 = vmatpush2.msra.mxu0 0.0
    %6485 = vmatprep.subr.mxu0 0.0
    %6486 = vmatpush2.msra.mxu0 0.0
    %6487 = vmatprep.subr.mxu0 0.0
    %6488 = vmatpush2.msra.mxu0 0.0
    %6489 = vmatprep.subr.mxu0 0.0
    %6490 = vmatpush2.msra.mxu0 0.0
    %6491 = vmatprep.subr.mxu0 0.0
    %6492 = vmatpush2.msra.mxu0 0.0
    %6493 = vmatprep.subr.mxu0 0.0
    %6494 = vmatpush2.msra.mxu0 0.0
    %6495 = vmatprep.subr.mxu0 0.0
    %6496 = vmatpush2.msra.mxu0 0.0
    %6497 = vmatprep.subr.mxu0 0.0
    %6498 = vmatpush2.msra.mxu0 0.0
    %6499 = vmatprep.subr.mxu0 0.0
    %6500 = vmatpush2.msra.mxu0 0.0
    %6501 = vmatprep.subr.mxu0 0.0
    %6502 = vmatpush2.msra.mxu0 0.0
    %6503 = vmatprep.subr.mxu0 0.0
    %6504 = vmatpush2.msra.mxu0 0.0
    %6505 = vmatprep.subr.mxu0 0.0
    %6506 = vmatpush2.msra.mxu0 0.0
    %6507 = vmatprep.subr.mxu0 0.0
    %6508 = vmatpush2.msra.mxu0 0.0
    %6509 = vmatprep.subr.mxu0 0.0
    %6510 = vmatpush2.msra.mxu0 0.0
    %6511 = vmatprep.subr.mxu0 0.0
    %6512 = vmatpush2.msra.mxu0 0.0
    %6513 = vmatprep.mubr.f32.mxu0 0.0
    %6514 = vmatmul.mubr.f32.gmra.mxu0 %v6272
    %v6515 = vpop.f32.mrf.mxu0
    %v6516 = vadd.f32 0.0, %v6515
    %v6517 = vpop.f32.mrf.mxu0
    %6518 = vmatprep.mubr.f32.mxu0 0.0
    %6519 = vmatmul.mubr.f32.gmra.mxu0 %v6273
    %v6520 = vpop.f32.mrf.mxu0
    %v6521 = vadd.f32 0.0, %v6520
    %v6522 = vpop.f32.mrf.mxu0
    %6523 = vmatprep.mubr.f32.mxu0 0.0
    %6524 = vmatmul.mubr.f32.gmra.mxu0 %v6274
    %v6525 = vpop.f32.mrf.mxu0
    %v6526 = vadd.f32 0.0, %v6525
    %v6527 = vpop.f32.mrf.mxu0
    %6528 = vmatprep.mubr.f32.mxu0 0.0
    %6529 = vmatmul.mubr.f32.gmra.mxu0 %v6275
    %v6530 = vpop.f32.mrf.mxu0
    %v6531 = vadd.f32 0.0, %v6530
    %v6532 = vpop.f32.mrf.mxu0
    %6533 = vmatprep.mubr.f32.mxu0 0.0
    %6534 = vmatmul.mubr.f32.gmra.mxu0 %v6276
    %v6535 = vpop.f32.mrf.mxu0
    %v6536 = vadd.f32 0.0, %v6535
    %v6537 = vpop.f32.mrf.mxu0
    %6538 = vmatprep.mubr.f32.mxu0 0.0
    %6539 = vmatmul.mubr.f32.gmra.mxu0 %v6277
    %v6540 = vpop.f32.mrf.mxu0
    %v6541 = vadd.f32 0.0, %v6540
    %v6542 = vpop.f32.mrf.mxu0
    %6543 = vmatprep.mubr.f32.mxu0 0.0
    %6544 = vmatmul.mubr.f32.gmra.mxu0 %v6278
    %v6545 = vpop.f32.mrf.mxu0
    %v6546 = vadd.f32 0.0, %v6545
    %v6547 = vpop.f32.mrf.mxu0
    %6548 = vmatprep.mubr.f32.mxu0 0.0
    %6549 = vmatmul.mubr.f32.gmra.mxu0 %v6279
    %v6550 = vpop.f32.mrf.mxu0
    %v6551 = vadd.f32 0.0, %v6550
    %v6552 = vpop.f32.mrf.mxu0
    %6553 = vmatprep.mubr.f32.mxu0 0.0
    %6554 = vmatmul.mubr.f32.gmra.mxu0 %v6280
    %v6555 = vpop.f32.mrf.mxu0
    %v6556 = vadd.f32 0.0, %v6555
    %v6557 = vpop.f32.mrf.mxu0
    %6558 = vmatprep.mubr.f32.mxu0 0.0
    %6559 = vmatmul.mubr.f32.gmra.mxu0 %v6281
    %v6560 = vpop.f32.mrf.mxu0
    %v6561 = vadd.f32 0.0, %v6560
    %v6562 = vpop.f32.mrf.mxu0
    %6563 = vmatprep.mubr.f32.mxu0 0.0
    %6564 = vmatmul.mubr.f32.gmra.mxu0 %v6282
    %v6565 = vpop.f32.mrf.mxu0
    %v6566 = vadd.f32 0.0, %v6565
    %v6567 = vpop.f32.mrf.mxu0
    %6568 = vmatprep.mubr.f32.mxu0 0.0
    %6569 = vmatmul.mubr.f32.gmra.mxu0 %v6283
    %v6570 = vpop.f32.mrf.mxu0
    %v6571 = vadd.f32 0.0, %v6570
    %v6572 = vpop.f32.mrf.mxu0
    %6573 = vmatprep.mubr.f32.mxu0 0.0
    %6574 = vmatmul.mubr.f32.gmra.mxu0 %v6284
    %v6575 = vpop.f32.mrf.mxu0
    %v6576 = vadd.f32 0.0, %v6575
    %v6577 = vpop.f32.mrf.mxu0
    %6578 = vmatprep.mubr.f32.mxu0 0.0
    %6579 = vmatmul.mubr.f32.gmra.mxu0 %v6285
    %v6580 = vpop.f32.mrf.mxu0
    %v6581 = vadd.f32 0.0, %v6580
    %v6582 = vpop.f32.mrf.mxu0
    %6583 = vmatprep.mubr.f32.mxu0 0.0
    %6584 = vmatmul.mubr.f32.gmra.mxu0 %v6286
    %v6585 = vpop.f32.mrf.mxu0
    %v6586 = vadd.f32 0.0, %v6585
    %v6587 = vpop.f32.mrf.mxu0
    %6588 = vmatprep.mubr.f32.mxu0 0.0
    %6589 = vmatmul.mubr.f32.gmra.mxu0 %v6287
    %v6590 = vpop.f32.mrf.mxu0
    %v6591 = vadd.f32 0.0, %v6590
    %v6592 = vpop.f32.mrf.mxu0
    %6593 = vdwg.mxu0
    %s6594 = scalar_lea.vmem %s3, 128
    %v6595 = vld [vmem:[%s6594] sm:$0xff]
    %v6596 = vld [vmem:[%s6594 + $0x8] sm:$0xff]
    %v6597 = vld [vmem:[%s6594 + $0x10] sm:$0xff]
    %v6598 = vld [vmem:[%s6594 + $0x18] sm:$0xff]
    %v6599 = vld [vmem:[%s6594 + $0x20] sm:$0xff]
    %v6600 = vld [vmem:[%s6594 + $0x28] sm:$0xff]
    %v6601 = vld [vmem:[%s6594 + $0x30] sm:$0xff]
    %v6602 = vld [vmem:[%s6594 + $0x38] sm:$0xff]
    %v6603 = vld [vmem:[%s6594 + $0x40] sm:$0xff]
    %v6604 = vld [vmem:[%s6594 + $0x48] sm:$0xff]
    %v6605 = vld [vmem:[%s6594 + $0x50] sm:$0xff]
    %v6606 = vld [vmem:[%s6594 + $0x58] sm:$0xff]
    %v6607 = vld [vmem:[%s6594 + $0x60] sm:$0xff]
    %v6608 = vld [vmem:[%s6594 + $0x68] sm:$0xff]
    %v6609 = vld [vmem:[%s6594 + $0x70] sm:$0xff]
    %v6610 = vld [vmem:[%s6594 + $0x78] sm:$0xff]
    %6611 = vmatprep.subr.mxu0 0.0
    %6612 = vmatpush1.msra.mxu0 %v6591
    %6613 = vmatprep.subr.mxu0 0.0
    %6614 = vmatpush1.msra.mxu0 %v6586
    %6615 = vmatprep.subr.mxu0 0.0
    %6616 = vmatpush1.msra.mxu0 %v6581
    %6617 = vmatprep.subr.mxu0 0.0
    %6618 = vmatpush1.msra.mxu0 %v6576
    %6619 = vmatprep.subr.mxu0 0.0
    %6620 = vmatpush1.msra.mxu0 %v6571
    %6621 = vmatprep.subr.mxu0 0.0
    %6622 = vmatpush1.msra.mxu0 %v6566
    %6623 = vmatprep.subr.mxu0 0.0
    %6624 = vmatpush1.msra.mxu0 %v6561
    %6625 = vmatprep.subr.mxu0 0.0
    %6626 = vmatpush1.msra.mxu0 %v6556
    %6627 = vmatprep.subr.mxu0 0.0
    %6628 = vmatpush1.msra.mxu0 %v6551
    %6629 = vmatprep.subr.mxu0 0.0
    %6630 = vmatpush1.msra.mxu0 %v6546
    %6631 = vmatprep.subr.mxu0 0.0
    %6632 = vmatpush1.msra.mxu0 %v6541
    %6633 = vmatprep.subr.mxu0 0.0
    %6634 = vmatpush1.msra.mxu0 %v6536
    %6635 = vmatprep.subr.mxu0 0.0
    %6636 = vmatpush1.msra.mxu0 %v6531
    %6637 = vmatprep.subr.mxu0 0.0
    %6638 = vmatpush1.msra.mxu0 %v6526
    %6639 = vmatprep.subr.mxu0 0.0
    %6640 = vmatpush1.msra.mxu0 %v6521
    %6641 = vmatprep.subr.mxu0 0.0
    %6642 = vmatpush1.msra.mxu0 %v6516
    %6643 = vmatprep.subr.mxu0 0.0
    %6644 = vmatpush2.msra.mxu0 0.0
    %6645 = vmatprep.subr.mxu0 0.0
    %6646 = vmatpush2.msra.mxu0 0.0
    %6647 = vmatprep.subr.mxu0 0.0
    %6648 = vmatpush2.msra.mxu0 0.0
    %6649 = vmatprep.subr.mxu0 0.0
    %6650 = vmatpush2.msra.mxu0 0.0
    %6651 = vmatprep.subr.mxu0 0.0
    %6652 = vmatpush2.msra.mxu0 0.0
    %6653 = vmatprep.subr.mxu0 0.0
    %6654 = vmatpush2.msra.mxu0 0.0
    %6655 = vmatprep.subr.mxu0 0.0
    %6656 = vmatpush2.msra.mxu0 0.0
    %6657 = vmatprep.subr.mxu0 0.0
    %6658 = vmatpush2.msra.mxu0 0.0
    %6659 = vmatprep.subr.mxu0 0.0
    %6660 = vmatpush2.msra.mxu0 0.0
    %6661 = vmatprep.subr.mxu0 0.0
    %6662 = vmatpush2.msra.mxu0 0.0
    %6663 = vmatprep.subr.mxu0 0.0
    %6664 = vmatpush2.msra.mxu0 0.0
    %6665 = vmatprep.subr.mxu0 0.0
    %6666 = vmatpush2.msra.mxu0 0.0
    %6667 = vmatprep.subr.mxu0 0.0
    %6668 = vmatpush2.msra.mxu0 0.0
    %6669 = vmatprep.subr.mxu0 0.0
    %6670 = vmatpush2.msra.mxu0 0.0
    %6671 = vmatprep.subr.mxu0 0.0
    %6672 = vmatpush2.msra.mxu0 0.0
    %6673 = vmatprep.subr.mxu0 0.0
    %6674 = vmatpush2.msra.mxu0 0.0
    %6675 = vmatprep.mubr.f32.mxu0 0.0
    %6676 = vmatmul.mubr.f32.gmra.mxu0 %v6595
    %v6677 = vpop.f32.mrf.mxu0
    %v6678 = vadd.f32 0.0, %v6677
    %v6679 = vpop.f32.mrf.mxu0
    %6680 = vmatprep.mubr.f32.mxu0 0.0
    %6681 = vmatmul.mubr.f32.gmra.mxu0 %v6596
    %v6682 = vpop.f32.mrf.mxu0
    %v6683 = vadd.f32 0.0, %v6682
    %v6684 = vpop.f32.mrf.mxu0
    %6685 = vmatprep.mubr.f32.mxu0 0.0
    %6686 = vmatmul.mubr.f32.gmra.mxu0 %v6597
    %v6687 = vpop.f32.mrf.mxu0
    %v6688 = vadd.f32 0.0, %v6687
    %v6689 = vpop.f32.mrf.mxu0
    %6690 = vmatprep.mubr.f32.mxu0 0.0
    %6691 = vmatmul.mubr.f32.gmra.mxu0 %v6598
    %v6692 = vpop.f32.mrf.mxu0
    %v6693 = vadd.f32 0.0, %v6692
    %v6694 = vpop.f32.mrf.mxu0
    %6695 = vmatprep.mubr.f32.mxu0 0.0
    %6696 = vmatmul.mubr.f32.gmra.mxu0 %v6599
    %v6697 = vpop.f32.mrf.mxu0
    %v6698 = vadd.f32 0.0, %v6697
    %v6699 = vpop.f32.mrf.mxu0
    %6700 = vmatprep.mubr.f32.mxu0 0.0
    %6701 = vmatmul.mubr.f32.gmra.mxu0 %v6600
    %v6702 = vpop.f32.mrf.mxu0
    %v6703 = vadd.f32 0.0, %v6702
    %v6704 = vpop.f32.mrf.mxu0
    %6705 = vmatprep.mubr.f32.mxu0 0.0
    %6706 = vmatmul.mubr.f32.gmra.mxu0 %v6601
    %v6707 = vpop.f32.mrf.mxu0
    %v6708 = vadd.f32 0.0, %v6707
    %v6709 = vpop.f32.mrf.mxu0
    %6710 = vmatprep.mubr.f32.mxu0 0.0
    %6711 = vmatmul.mubr.f32.gmra.mxu0 %v6602
    %v6712 = vpop.f32.mrf.mxu0
    %v6713 = vadd.f32 0.0, %v6712
    %v6714 = vpop.f32.mrf.mxu0
    %6715 = vmatprep.mubr.f32.mxu0 0.0
    %6716 = vmatmul.mubr.f32.gmra.mxu0 %v6603
    %v6717 = vpop.f32.mrf.mxu0
    %v6718 = vadd.f32 0.0, %v6717
    %v6719 = vpop.f32.mrf.mxu0
    %6720 = vmatprep.mubr.f32.mxu0 0.0
    %6721 = vmatmul.mubr.f32.gmra.mxu0 %v6604
    %v6722 = vpop.f32.mrf.mxu0
    %v6723 = vadd.f32 0.0, %v6722
    %v6724 = vpop.f32.mrf.mxu0
    %6725 = vmatprep.mubr.f32.mxu0 0.0
    %6726 = vmatmul.mubr.f32.gmra.mxu0 %v6605
    %v6727 = vpop.f32.mrf.mxu0
    %v6728 = vadd.f32 0.0, %v6727
    %v6729 = vpop.f32.mrf.mxu0
    %6730 = vmatprep.mubr.f32.mxu0 0.0
    %6731 = vmatmul.mubr.f32.gmra.mxu0 %v6606
    %v6732 = vpop.f32.mrf.mxu0
    %v6733 = vadd.f32 0.0, %v6732
    %v6734 = vpop.f32.mrf.mxu0
    %6735 = vmatprep.mubr.f32.mxu0 0.0
    %6736 = vmatmul.mubr.f32.gmra.mxu0 %v6607
    %v6737 = vpop.f32.mrf.mxu0
    %v6738 = vadd.f32 0.0, %v6737
    %v6739 = vpop.f32.mrf.mxu0
    %6740 = vmatprep.mubr.f32.mxu0 0.0
    %6741 = vmatmul.mubr.f32.gmra.mxu0 %v6608
    %v6742 = vpop.f32.mrf.mxu0
    %v6743 = vadd.f32 0.0, %v6742
    %v6744 = vpop.f32.mrf.mxu0
    %6745 = vmatprep.mubr.f32.mxu0 0.0
    %6746 = vmatmul.mubr.f32.gmra.mxu0 %v6609
    %v6747 = vpop.f32.mrf.mxu0
    %v6748 = vadd.f32 0.0, %v6747
    %v6749 = vpop.f32.mrf.mxu0
    %6750 = vmatprep.mubr.f32.mxu0 0.0
    %6751 = vmatmul.mubr.f32.gmra.mxu0 %v6610
    %v6752 = vpop.f32.mrf.mxu0
    %v6753 = vadd.f32 0.0, %v6752
    %v6754 = vpop.f32.mrf.mxu0
    %6755 = vdwg.mxu0
    %6756 = vmatprep.subr.mxu0 0.0
    %6757 = vmatpush1.msra.mxu0 %v6430
    %6758 = vmatprep.subr.mxu0 0.0
    %6759 = vmatpush1.msra.mxu0 %v6425
    %6760 = vmatprep.subr.mxu0 0.0
    %6761 = vmatpush1.msra.mxu0 %v6420
    %6762 = vmatprep.subr.mxu0 0.0
    %6763 = vmatpush1.msra.mxu0 %v6415
    %6764 = vmatprep.subr.mxu0 0.0
    %6765 = vmatpush1.msra.mxu0 %v6410
    %6766 = vmatprep.subr.mxu0 0.0
    %6767 = vmatpush1.msra.mxu0 %v6405
    %6768 = vmatprep.subr.mxu0 0.0
    %6769 = vmatpush1.msra.mxu0 %v6400
    %6770 = vmatprep.subr.mxu0 0.0
    %6771 = vmatpush1.msra.mxu0 %v6395
    %6772 = vmatprep.subr.mxu0 0.0
    %6773 = vmatpush1.msra.mxu0 %v6390
    %6774 = vmatprep.subr.mxu0 0.0
    %6775 = vmatpush1.msra.mxu0 %v6385
    %6776 = vmatprep.subr.mxu0 0.0
    %6777 = vmatpush1.msra.mxu0 %v6380
    %6778 = vmatprep.subr.mxu0 0.0
    %6779 = vmatpush1.msra.mxu0 %v6375
    %6780 = vmatprep.subr.mxu0 0.0
    %6781 = vmatpush1.msra.mxu0 %v6370
    %6782 = vmatprep.subr.mxu0 0.0
    %6783 = vmatpush1.msra.mxu0 %v6365
    %6784 = vmatprep.subr.mxu0 0.0
    %6785 = vmatpush1.msra.mxu0 %v6360
    %6786 = vmatprep.subr.mxu0 0.0
    %6787 = vmatpush1.msra.mxu0 %v6355
    %6788 = vmatprep.subr.mxu0 0.0
    %6789 = vmatpush2.msra.mxu0 0.0
    %6790 = vmatprep.subr.mxu0 0.0
    %6791 = vmatpush2.msra.mxu0 0.0
    %6792 = vmatprep.subr.mxu0 0.0
    %6793 = vmatpush2.msra.mxu0 0.0
    %6794 = vmatprep.subr.mxu0 0.0
    %6795 = vmatpush2.msra.mxu0 0.0
    %6796 = vmatprep.subr.mxu0 0.0
    %6797 = vmatpush2.msra.mxu0 0.0
    %6798 = vmatprep.subr.mxu0 0.0
    %6799 = vmatpush2.msra.mxu0 0.0
    %6800 = vmatprep.subr.mxu0 0.0
    %6801 = vmatpush2.msra.mxu0 0.0
    %6802 = vmatprep.subr.mxu0 0.0
    %6803 = vmatpush2.msra.mxu0 0.0
    %6804 = vmatprep.subr.mxu0 0.0
    %6805 = vmatpush2.msra.mxu0 0.0
    %6806 = vmatprep.subr.mxu0 0.0
    %6807 = vmatpush2.msra.mxu0 0.0
    %6808 = vmatprep.subr.mxu0 0.0
    %6809 = vmatpush2.msra.mxu0 0.0
    %6810 = vmatprep.subr.mxu0 0.0
    %6811 = vmatpush2.msra.mxu0 0.0
    %6812 = vmatprep.subr.mxu0 0.0
    %6813 = vmatpush2.msra.mxu0 0.0
    %6814 = vmatprep.subr.mxu0 0.0
    %6815 = vmatpush2.msra.mxu0 0.0
    %6816 = vmatprep.subr.mxu0 0.0
    %6817 = vmatpush2.msra.mxu0 0.0
    %6818 = vmatprep.subr.mxu0 0.0
    %6819 = vmatpush2.msra.mxu0 0.0
    %6820 = vmatprep.mubr.f32.mxu0 0.0
    %6821 = vmatmul.mubr.f32.gmra.mxu0 %v6433
    %v6822 = vpop.f32.mrf.mxu0
    %v6823 = vadd.f32 %v6678, %v6822
    %v6824 = vpop.f32.mrf.mxu0
    %6825 = vmatprep.mubr.f32.mxu0 0.0
    %6826 = vmatmul.mubr.f32.gmra.mxu0 %v6434
    %v6827 = vpop.f32.mrf.mxu0
    %v6828 = vadd.f32 %v6683, %v6827
    %v6829 = vpop.f32.mrf.mxu0
    %6830 = vmatprep.mubr.f32.mxu0 0.0
    %6831 = vmatmul.mubr.f32.gmra.mxu0 %v6435
    %v6832 = vpop.f32.mrf.mxu0
    %v6833 = vadd.f32 %v6688, %v6832
    %v6834 = vpop.f32.mrf.mxu0
    %6835 = vmatprep.mubr.f32.mxu0 0.0
    %6836 = vmatmul.mubr.f32.gmra.mxu0 %v6436
    %v6837 = vpop.f32.mrf.mxu0
    %v6838 = vadd.f32 %v6693, %v6837
    %v6839 = vpop.f32.mrf.mxu0
    %6840 = vmatprep.mubr.f32.mxu0 0.0
    %6841 = vmatmul.mubr.f32.gmra.mxu0 %v6437
    %v6842 = vpop.f32.mrf.mxu0
    %v6843 = vadd.f32 %v6698, %v6842
    %v6844 = vpop.f32.mrf.mxu0
    %6845 = vmatprep.mubr.f32.mxu0 0.0
    %6846 = vmatmul.mubr.f32.gmra.mxu0 %v6438
    %v6847 = vpop.f32.mrf.mxu0
    %v6848 = vadd.f32 %v6703, %v6847
    %v6849 = vpop.f32.mrf.mxu0
    %6850 = vmatprep.mubr.f32.mxu0 0.0
    %6851 = vmatmul.mubr.f32.gmra.mxu0 %v6439
    %v6852 = vpop.f32.mrf.mxu0
    %v6853 = vadd.f32 %v6708, %v6852
    %v6854 = vpop.f32.mrf.mxu0
    %6855 = vmatprep.mubr.f32.mxu0 0.0
    %6856 = vmatmul.mubr.f32.gmra.mxu0 %v6440
    %v6857 = vpop.f32.mrf.mxu0
    %v6858 = vadd.f32 %v6713, %v6857
    %v6859 = vpop.f32.mrf.mxu0
    %6860 = vmatprep.mubr.f32.mxu0 0.0
    %6861 = vmatmul.mubr.f32.gmra.mxu0 %v6441
    %v6862 = vpop.f32.mrf.mxu0
    %v6863 = vadd.f32 %v6718, %v6862
    %v6864 = vpop.f32.mrf.mxu0
    %6865 = vmatprep.mubr.f32.mxu0 0.0
    %6866 = vmatmul.mubr.f32.gmra.mxu0 %v6442
    %v6867 = vpop.f32.mrf.mxu0
    %v6868 = vadd.f32 %v6723, %v6867
    %v6869 = vpop.f32.mrf.mxu0
    %6870 = vmatprep.mubr.f32.mxu0 0.0
    %6871 = vmatmul.mubr.f32.gmra.mxu0 %v6443
    %v6872 = vpop.f32.mrf.mxu0
    %v6873 = vadd.f32 %v6728, %v6872
    %v6874 = vpop.f32.mrf.mxu0
    %6875 = vmatprep.mubr.f32.mxu0 0.0
    %6876 = vmatmul.mubr.f32.gmra.mxu0 %v6444
    %v6877 = vpop.f32.mrf.mxu0
    %v6878 = vadd.f32 %v6733, %v6877
    %v6879 = vpop.f32.mrf.mxu0
    %6880 = vmatprep.mubr.f32.mxu0 0.0
    %6881 = vmatmul.mubr.f32.gmra.mxu0 %v6445
    %v6882 = vpop.f32.mrf.mxu0
    %v6883 = vadd.f32 %v6738, %v6882
    %v6884 = vpop.f32.mrf.mxu0
    %6885 = vmatprep.mubr.f32.mxu0 0.0
    %6886 = vmatmul.mubr.f32.gmra.mxu0 %v6446
    %v6887 = vpop.f32.mrf.mxu0
    %v6888 = vadd.f32 %v6743, %v6887
    %v6889 = vpop.f32.mrf.mxu0
    %6890 = vmatprep.mubr.f32.mxu0 0.0
    %6891 = vmatmul.mubr.f32.gmra.mxu0 %v6447
    %v6892 = vpop.f32.mrf.mxu0
    %v6893 = vadd.f32 %v6748, %v6892
    %v6894 = vpop.f32.mrf.mxu0
    %6895 = vmatprep.mubr.f32.mxu0 0.0
    %6896 = vmatmul.mubr.f32.gmra.mxu0 %v6448
    %v6897 = vpop.f32.mrf.mxu0
    %v6898 = vadd.f32 %v6753, %v6897
    %v6899 = vpop.f32.mrf.mxu0
    %6900 = vdwg.mxu0
    %6901 = vmatprep.subr.mxu0 0.0
    %6902 = vmatpush1.msra.mxu0 %v2488
    %6903 = vmatprep.subr.mxu0 0.0
    %6904 = vmatpush1.msra.mxu0 %v2487
    %6905 = vmatprep.subr.mxu0 0.0
    %6906 = vmatpush1.msra.mxu0 %v2486
    %6907 = vmatprep.subr.mxu0 0.0
    %6908 = vmatpush1.msra.mxu0 %v2485
    %6909 = vmatprep.subr.mxu0 0.0
    %6910 = vmatpush1.msra.mxu0 %v2484
    %6911 = vmatprep.subr.mxu0 0.0
    %6912 = vmatpush1.msra.mxu0 %v2483
    %6913 = vmatprep.subr.mxu0 0.0
    %6914 = vmatpush1.msra.mxu0 %v2482
    %6915 = vmatprep.subr.mxu0 0.0
    %6916 = vmatpush1.msra.mxu0 %v2481
    %6917 = vmatprep.subr.mxu0 0.0
    %6918 = vmatpush1.msra.mxu0 %v2480
    %6919 = vmatprep.subr.mxu0 0.0
    %6920 = vmatpush1.msra.mxu0 %v2479
    %6921 = vmatprep.subr.mxu0 0.0
    %6922 = vmatpush1.msra.mxu0 %v2478
    %6923 = vmatprep.subr.mxu0 0.0
    %6924 = vmatpush1.msra.mxu0 %v2477
    %6925 = vmatprep.subr.mxu0 0.0
    %6926 = vmatpush1.msra.mxu0 %v2476
    %6927 = vmatprep.subr.mxu0 0.0
    %6928 = vmatpush1.msra.mxu0 %v2475
    %6929 = vmatprep.subr.mxu0 0.0
    %6930 = vmatpush1.msra.mxu0 %v2474
    %6931 = vmatprep.subr.mxu0 0.0
    %6932 = vmatpush1.msra.mxu0 %v2473
    %6933 = vmatprep.subr.mxu0 0.0
    %6934 = vmatpush2.msra.mxu0 0.0
    %6935 = vmatprep.subr.mxu0 0.0
    %6936 = vmatpush2.msra.mxu0 0.0
    %6937 = vmatprep.subr.mxu0 0.0
    %6938 = vmatpush2.msra.mxu0 0.0
    %6939 = vmatprep.subr.mxu0 0.0
    %6940 = vmatpush2.msra.mxu0 0.0
    %6941 = vmatprep.subr.mxu0 0.0
    %6942 = vmatpush2.msra.mxu0 0.0
    %6943 = vmatprep.subr.mxu0 0.0
    %6944 = vmatpush2.msra.mxu0 0.0
    %6945 = vmatprep.subr.mxu0 0.0
    %6946 = vmatpush2.msra.mxu0 0.0
    %6947 = vmatprep.subr.mxu0 0.0
    %6948 = vmatpush2.msra.mxu0 0.0
    %6949 = vmatprep.subr.mxu0 0.0
    %6950 = vmatpush2.msra.mxu0 0.0
    %6951 = vmatprep.subr.mxu0 0.0
    %6952 = vmatpush2.msra.mxu0 0.0
    %6953 = vmatprep.subr.mxu0 0.0
    %6954 = vmatpush2.msra.mxu0 0.0
    %6955 = vmatprep.subr.mxu0 0.0
    %6956 = vmatpush2.msra.mxu0 0.0
    %6957 = vmatprep.subr.mxu0 0.0
    %6958 = vmatpush2.msra.mxu0 0.0
    %6959 = vmatprep.subr.mxu0 0.0
    %6960 = vmatpush2.msra.mxu0 0.0
    %6961 = vmatprep.subr.mxu0 0.0
    %6962 = vmatpush2.msra.mxu0 0.0
    %6963 = vmatprep.subr.mxu0 0.0
    %6964 = vmatpush2.msra.mxu0 0.0
    %6965 = vmatprep.mubr.f32.mxu0 0.0
    %6966 = vmatmul.mubr.f32.gmra.mxu0 %v6272
    %v6967 = vpop.f32.mrf.mxu0
    %v6968 = vadd.f32 0.0, %v6967
    %v6969 = vpop.f32.mrf.mxu0
    %6970 = vmatprep.mubr.f32.mxu0 0.0
    %6971 = vmatmul.mubr.f32.gmra.mxu0 %v6273
    %v6972 = vpop.f32.mrf.mxu0
    %v6973 = vadd.f32 0.0, %v6972
    %v6974 = vpop.f32.mrf.mxu0
    %6975 = vmatprep.mubr.f32.mxu0 0.0
    %6976 = vmatmul.mubr.f32.gmra.mxu0 %v6274
    %v6977 = vpop.f32.mrf.mxu0
    %v6978 = vadd.f32 0.0, %v6977
    %v6979 = vpop.f32.mrf.mxu0
    %6980 = vmatprep.mubr.f32.mxu0 0.0
    %6981 = vmatmul.mubr.f32.gmra.mxu0 %v6275
    %v6982 = vpop.f32.mrf.mxu0
    %v6983 = vadd.f32 0.0, %v6982
    %v6984 = vpop.f32.mrf.mxu0
    %6985 = vmatprep.mubr.f32.mxu0 0.0
    %6986 = vmatmul.mubr.f32.gmra.mxu0 %v6276
    %v6987 = vpop.f32.mrf.mxu0
    %v6988 = vadd.f32 0.0, %v6987
    %v6989 = vpop.f32.mrf.mxu0
    %6990 = vmatprep.mubr.f32.mxu0 0.0
    %6991 = vmatmul.mubr.f32.gmra.mxu0 %v6277
    %v6992 = vpop.f32.mrf.mxu0
    %v6993 = vadd.f32 0.0, %v6992
    %v6994 = vpop.f32.mrf.mxu0
    %6995 = vmatprep.mubr.f32.mxu0 0.0
    %6996 = vmatmul.mubr.f32.gmra.mxu0 %v6278
    %v6997 = vpop.f32.mrf.mxu0
    %v6998 = vadd.f32 0.0, %v6997
    %v6999 = vpop.f32.mrf.mxu0
    %7000 = vmatprep.mubr.f32.mxu0 0.0
    %7001 = vmatmul.mubr.f32.gmra.mxu0 %v6279
    %v7002 = vpop.f32.mrf.mxu0
    %v7003 = vadd.f32 0.0, %v7002
    %v7004 = vpop.f32.mrf.mxu0
    %7005 = vmatprep.mubr.f32.mxu0 0.0
    %7006 = vmatmul.mubr.f32.gmra.mxu0 %v6280
    %v7007 = vpop.f32.mrf.mxu0
    %v7008 = vadd.f32 0.0, %v7007
    %v7009 = vpop.f32.mrf.mxu0
    %7010 = vmatprep.mubr.f32.mxu0 0.0
    %7011 = vmatmul.mubr.f32.gmra.mxu0 %v6281
    %v7012 = vpop.f32.mrf.mxu0
    %v7013 = vadd.f32 0.0, %v7012
    %v7014 = vpop.f32.mrf.mxu0
    %7015 = vmatprep.mubr.f32.mxu0 0.0
    %7016 = vmatmul.mubr.f32.gmra.mxu0 %v6282
    %v7017 = vpop.f32.mrf.mxu0
    %v7018 = vadd.f32 0.0, %v7017
    %v7019 = vpop.f32.mrf.mxu0
    %7020 = vmatprep.mubr.f32.mxu0 0.0
    %7021 = vmatmul.mubr.f32.gmra.mxu0 %v6283
    %v7022 = vpop.f32.mrf.mxu0
    %v7023 = vadd.f32 0.0, %v7022
    %v7024 = vpop.f32.mrf.mxu0
    %7025 = vmatprep.mubr.f32.mxu0 0.0
    %7026 = vmatmul.mubr.f32.gmra.mxu0 %v6284
    %v7027 = vpop.f32.mrf.mxu0
    %v7028 = vadd.f32 0.0, %v7027
    %v7029 = vpop.f32.mrf.mxu0
    %7030 = vmatprep.mubr.f32.mxu0 0.0
    %7031 = vmatmul.mubr.f32.gmra.mxu0 %v6285
    %v7032 = vpop.f32.mrf.mxu0
    %v7033 = vadd.f32 0.0, %v7032
    %v7034 = vpop.f32.mrf.mxu0
    %7035 = vmatprep.mubr.f32.mxu0 0.0
    %7036 = vmatmul.mubr.f32.gmra.mxu0 %v6286
    %v7037 = vpop.f32.mrf.mxu0
    %v7038 = vadd.f32 0.0, %v7037
    %v7039 = vpop.f32.mrf.mxu0
    %7040 = vmatprep.mubr.f32.mxu0 0.0
    %7041 = vmatmul.mubr.f32.gmra.mxu0 %v6287
    %v7042 = vpop.f32.mrf.mxu0
    %v7043 = vadd.f32 0.0, %v7042
    %v7044 = vpop.f32.mrf.mxu0
    %7045 = vdwg.mxu0
    %s7046 = scalar_lea.vmem %s3, 256
    %v7047 = vld [vmem:[%s7046] sm:$0xff]
    %v7048 = vld [vmem:[%s7046 + $0x8] sm:$0xff]
    %v7049 = vld [vmem:[%s7046 + $0x10] sm:$0xff]
    %v7050 = vld [vmem:[%s7046 + $0x18] sm:$0xff]
    %v7051 = vld [vmem:[%s7046 + $0x20] sm:$0xff]
    %v7052 = vld [vmem:[%s7046 + $0x28] sm:$0xff]
    %v7053 = vld [vmem:[%s7046 + $0x30] sm:$0xff]
    %v7054 = vld [vmem:[%s7046 + $0x38] sm:$0xff]
    %v7055 = vld [vmem:[%s7046 + $0x40] sm:$0xff]
    %v7056 = vld [vmem:[%s7046 + $0x48] sm:$0xff]
    %v7057 = vld [vmem:[%s7046 + $0x50] sm:$0xff]
    %v7058 = vld [vmem:[%s7046 + $0x58] sm:$0xff]
    %v7059 = vld [vmem:[%s7046 + $0x60] sm:$0xff]
    %v7060 = vld [vmem:[%s7046 + $0x68] sm:$0xff]
    %v7061 = vld [vmem:[%s7046 + $0x70] sm:$0xff]
    %v7062 = vld [vmem:[%s7046 + $0x78] sm:$0xff]
    %7063 = vmatprep.subr.mxu0 0.0
    %7064 = vmatpush1.msra.mxu0 %v7043
    %7065 = vmatprep.subr.mxu0 0.0
    %7066 = vmatpush1.msra.mxu0 %v7038
    %7067 = vmatprep.subr.mxu0 0.0
    %7068 = vmatpush1.msra.mxu0 %v7033
    %7069 = vmatprep.subr.mxu0 0.0
    %7070 = vmatpush1.msra.mxu0 %v7028
    %7071 = vmatprep.subr.mxu0 0.0
    %7072 = vmatpush1.msra.mxu0 %v7023
    %7073 = vmatprep.subr.mxu0 0.0
    %7074 = vmatpush1.msra.mxu0 %v7018
    %7075 = vmatprep.subr.mxu0 0.0
    %7076 = vmatpush1.msra.mxu0 %v7013
    %7077 = vmatprep.subr.mxu0 0.0
    %7078 = vmatpush1.msra.mxu0 %v7008
    %7079 = vmatprep.subr.mxu0 0.0
    %7080 = vmatpush1.msra.mxu0 %v7003
    %7081 = vmatprep.subr.mxu0 0.0
    %7082 = vmatpush1.msra.mxu0 %v6998
    %7083 = vmatprep.subr.mxu0 0.0
    %7084 = vmatpush1.msra.mxu0 %v6993
    %7085 = vmatprep.subr.mxu0 0.0
    %7086 = vmatpush1.msra.mxu0 %v6988
    %7087 = vmatprep.subr.mxu0 0.0
    %7088 = vmatpush1.msra.mxu0 %v6983
    %7089 = vmatprep.subr.mxu0 0.0
    %7090 = vmatpush1.msra.mxu0 %v6978
    %7091 = vmatprep.subr.mxu0 0.0
    %7092 = vmatpush1.msra.mxu0 %v6973
    %7093 = vmatprep.subr.mxu0 0.0
    %7094 = vmatpush1.msra.mxu0 %v6968
    %7095 = vmatprep.subr.mxu0 0.0
    %7096 = vmatpush2.msra.mxu0 0.0
    %7097 = vmatprep.subr.mxu0 0.0
    %7098 = vmatpush2.msra.mxu0 0.0
    %7099 = vmatprep.subr.mxu0 0.0
    %7100 = vmatpush2.msra.mxu0 0.0
    %7101 = vmatprep.subr.mxu0 0.0
    %7102 = vmatpush2.msra.mxu0 0.0
    %7103 = vmatprep.subr.mxu0 0.0
    %7104 = vmatpush2.msra.mxu0 0.0
    %7105 = vmatprep.subr.mxu0 0.0
    %7106 = vmatpush2.msra.mxu0 0.0
    %7107 = vmatprep.subr.mxu0 0.0
    %7108 = vmatpush2.msra.mxu0 0.0
    %7109 = vmatprep.subr.mxu0 0.0
    %7110 = vmatpush2.msra.mxu0 0.0
    %7111 = vmatprep.subr.mxu0 0.0
    %7112 = vmatpush2.msra.mxu0 0.0
    %7113 = vmatprep.subr.mxu0 0.0
    %7114 = vmatpush2.msra.mxu0 0.0
    %7115 = vmatprep.subr.mxu0 0.0
    %7116 = vmatpush2.msra.mxu0 0.0
    %7117 = vmatprep.subr.mxu0 0.0
    %7118 = vmatpush2.msra.mxu0 0.0
    %7119 = vmatprep.subr.mxu0 0.0
    %7120 = vmatpush2.msra.mxu0 0.0
    %7121 = vmatprep.subr.mxu0 0.0
    %7122 = vmatpush2.msra.mxu0 0.0
    %7123 = vmatprep.subr.mxu0 0.0
    %7124 = vmatpush2.msra.mxu0 0.0
    %7125 = vmatprep.subr.mxu0 0.0
    %7126 = vmatpush2.msra.mxu0 0.0
    %7127 = vmatprep.mubr.f32.mxu0 0.0
    %7128 = vmatmul.mubr.f32.gmra.mxu0 %v7047
    %v7129 = vpop.f32.mrf.mxu0
    %v7130 = vadd.f32 0.0, %v7129
    %v7131 = vpop.f32.mrf.mxu0
    %7132 = vmatprep.mubr.f32.mxu0 0.0
    %7133 = vmatmul.mubr.f32.gmra.mxu0 %v7048
    %v7134 = vpop.f32.mrf.mxu0
    %v7135 = vadd.f32 0.0, %v7134
    %v7136 = vpop.f32.mrf.mxu0
    %7137 = vmatprep.mubr.f32.mxu0 0.0
    %7138 = vmatmul.mubr.f32.gmra.mxu0 %v7049
    %v7139 = vpop.f32.mrf.mxu0
    %v7140 = vadd.f32 0.0, %v7139
    %v7141 = vpop.f32.mrf.mxu0
    %7142 = vmatprep.mubr.f32.mxu0 0.0
    %7143 = vmatmul.mubr.f32.gmra.mxu0 %v7050
    %v7144 = vpop.f32.mrf.mxu0
    %v7145 = vadd.f32 0.0, %v7144
    %v7146 = vpop.f32.mrf.mxu0
    %7147 = vmatprep.mubr.f32.mxu0 0.0
    %7148 = vmatmul.mubr.f32.gmra.mxu0 %v7051
    %v7149 = vpop.f32.mrf.mxu0
    %v7150 = vadd.f32 0.0, %v7149
    %v7151 = vpop.f32.mrf.mxu0
    %7152 = vmatprep.mubr.f32.mxu0 0.0
    %7153 = vmatmul.mubr.f32.gmra.mxu0 %v7052
    %v7154 = vpop.f32.mrf.mxu0
    %v7155 = vadd.f32 0.0, %v7154
    %v7156 = vpop.f32.mrf.mxu0
    %7157 = vmatprep.mubr.f32.mxu0 0.0
    %7158 = vmatmul.mubr.f32.gmra.mxu0 %v7053
    %v7159 = vpop.f32.mrf.mxu0
    %v7160 = vadd.f32 0.0, %v7159
    %v7161 = vpop.f32.mrf.mxu0
    %7162 = vmatprep.mubr.f32.mxu0 0.0
    %7163 = vmatmul.mubr.f32.gmra.mxu0 %v7054
    %v7164 = vpop.f32.mrf.mxu0
    %v7165 = vadd.f32 0.0, %v7164
    %v7166 = vpop.f32.mrf.mxu0
    %7167 = vmatprep.mubr.f32.mxu0 0.0
    %7168 = vmatmul.mubr.f32.gmra.mxu0 %v7055
    %v7169 = vpop.f32.mrf.mxu0
    %v7170 = vadd.f32 0.0, %v7169
    %v7171 = vpop.f32.mrf.mxu0
    %7172 = vmatprep.mubr.f32.mxu0 0.0
    %7173 = vmatmul.mubr.f32.gmra.mxu0 %v7056
    %v7174 = vpop.f32.mrf.mxu0
    %v7175 = vadd.f32 0.0, %v7174
    %v7176 = vpop.f32.mrf.mxu0
    %7177 = vmatprep.mubr.f32.mxu0 0.0
    %7178 = vmatmul.mubr.f32.gmra.mxu0 %v7057
    %v7179 = vpop.f32.mrf.mxu0
    %v7180 = vadd.f32 0.0, %v7179
    %v7181 = vpop.f32.mrf.mxu0
    %7182 = vmatprep.mubr.f32.mxu0 0.0
    %7183 = vmatmul.mubr.f32.gmra.mxu0 %v7058
    %v7184 = vpop.f32.mrf.mxu0
    %v7185 = vadd.f32 0.0, %v7184
    %v7186 = vpop.f32.mrf.mxu0
    %7187 = vmatprep.mubr.f32.mxu0 0.0
    %7188 = vmatmul.mubr.f32.gmra.mxu0 %v7059
    %v7189 = vpop.f32.mrf.mxu0
    %v7190 = vadd.f32 0.0, %v7189
    %v7191 = vpop.f32.mrf.mxu0
    %7192 = vmatprep.mubr.f32.mxu0 0.0
    %7193 = vmatmul.mubr.f32.gmra.mxu0 %v7060
    %v7194 = vpop.f32.mrf.mxu0
    %v7195 = vadd.f32 0.0, %v7194
    %v7196 = vpop.f32.mrf.mxu0
    %7197 = vmatprep.mubr.f32.mxu0 0.0
    %7198 = vmatmul.mubr.f32.gmra.mxu0 %v7061
    %v7199 = vpop.f32.mrf.mxu0
    %v7200 = vadd.f32 0.0, %v7199
    %v7201 = vpop.f32.mrf.mxu0
    %7202 = vmatprep.mubr.f32.mxu0 0.0
    %7203 = vmatmul.mubr.f32.gmra.mxu0 %v7062
    %v7204 = vpop.f32.mrf.mxu0
    %v7205 = vadd.f32 0.0, %v7204
    %v7206 = vpop.f32.mrf.mxu0
    %7207 = vdwg.mxu0
    %v7208 = vadd.f32 %v6823, %v7130
    %v7209 = vadd.f32 %v6828, %v7135
    %v7210 = vadd.f32 %v6833, %v7140
    %v7211 = vadd.f32 %v6838, %v7145
    %v7212 = vadd.f32 %v6843, %v7150
    %v7213 = vadd.f32 %v6848, %v7155
    %v7214 = vadd.f32 %v6853, %v7160
    %v7215 = vadd.f32 %v6858, %v7165
    %v7216 = vadd.f32 %v6863, %v7170
    %v7217 = vadd.f32 %v6868, %v7175
    %v7218 = vadd.f32 %v6873, %v7180
    %v7219 = vadd.f32 %v6878, %v7185
    %v7220 = vadd.f32 %v6883, %v7190
    %v7221 = vadd.f32 %v6888, %v7195
    %v7222 = vadd.f32 %v6893, %v7200
    %v7223 = vadd.f32 %v6898, %v7205
    %7224 = vmatprep.subr.mxu0 0.0
    %7225 = vmatpush1.msra.mxu0 %v2836
    %7226 = vmatprep.subr.mxu0 0.0
    %7227 = vmatpush1.msra.mxu0 %v2835
    %7228 = vmatprep.subr.mxu0 0.0
    %7229 = vmatpush1.msra.mxu0 %v2834
    %7230 = vmatprep.subr.mxu0 0.0
    %7231 = vmatpush1.msra.mxu0 %v2833
    %7232 = vmatprep.subr.mxu0 0.0
    %7233 = vmatpush1.msra.mxu0 %v2832
    %7234 = vmatprep.subr.mxu0 0.0
    %7235 = vmatpush1.msra.mxu0 %v2831
    %7236 = vmatprep.subr.mxu0 0.0
    %7237 = vmatpush1.msra.mxu0 %v2830
    %7238 = vmatprep.subr.mxu0 0.0
    %7239 = vmatpush1.msra.mxu0 %v2829
    %7240 = vmatprep.subr.mxu0 0.0
    %7241 = vmatpush1.msra.mxu0 %v2828
    %7242 = vmatprep.subr.mxu0 0.0
    %7243 = vmatpush1.msra.mxu0 %v2827
    %7244 = vmatprep.subr.mxu0 0.0
    %7245 = vmatpush1.msra.mxu0 %v2826
    %7246 = vmatprep.subr.mxu0 0.0
    %7247 = vmatpush1.msra.mxu0 %v2825
    %7248 = vmatprep.subr.mxu0 0.0
    %7249 = vmatpush1.msra.mxu0 %v2824
    %7250 = vmatprep.subr.mxu0 0.0
    %7251 = vmatpush1.msra.mxu0 %v2823
    %7252 = vmatprep.subr.mxu0 0.0
    %7253 = vmatpush1.msra.mxu0 %v2822
    %7254 = vmatprep.subr.mxu0 0.0
    %7255 = vmatpush1.msra.mxu0 %v2821
    %7256 = vmatprep.subr.mxu0 0.0
    %7257 = vmatpush2.msra.mxu0 0.0
    %7258 = vmatprep.subr.mxu0 0.0
    %7259 = vmatpush2.msra.mxu0 0.0
    %7260 = vmatprep.subr.mxu0 0.0
    %7261 = vmatpush2.msra.mxu0 0.0
    %7262 = vmatprep.subr.mxu0 0.0
    %7263 = vmatpush2.msra.mxu0 0.0
    %7264 = vmatprep.subr.mxu0 0.0
    %7265 = vmatpush2.msra.mxu0 0.0
    %7266 = vmatprep.subr.mxu0 0.0
    %7267 = vmatpush2.msra.mxu0 0.0
    %7268 = vmatprep.subr.mxu0 0.0
    %7269 = vmatpush2.msra.mxu0 0.0
    %7270 = vmatprep.subr.mxu0 0.0
    %7271 = vmatpush2.msra.mxu0 0.0
    %7272 = vmatprep.subr.mxu0 0.0
    %7273 = vmatpush2.msra.mxu0 0.0
    %7274 = vmatprep.subr.mxu0 0.0
    %7275 = vmatpush2.msra.mxu0 0.0
    %7276 = vmatprep.subr.mxu0 0.0
    %7277 = vmatpush2.msra.mxu0 0.0
    %7278 = vmatprep.subr.mxu0 0.0
    %7279 = vmatpush2.msra.mxu0 0.0
    %7280 = vmatprep.subr.mxu0 0.0
    %7281 = vmatpush2.msra.mxu0 0.0
    %7282 = vmatprep.subr.mxu0 0.0
    %7283 = vmatpush2.msra.mxu0 0.0
    %7284 = vmatprep.subr.mxu0 0.0
    %7285 = vmatpush2.msra.mxu0 0.0
    %7286 = vmatprep.subr.mxu0 0.0
    %7287 = vmatpush2.msra.mxu0 0.0
    %7288 = vmatprep.mubr.f32.mxu0 0.0
    %7289 = vmatmul.mubr.f32.gmra.mxu0 %v6272
    %v7290 = vpop.f32.mrf.mxu0
    %v7291 = vadd.f32 0.0, %v7290
    %v7292 = vpop.f32.mrf.mxu0
    %7293 = vmatprep.mubr.f32.mxu0 0.0
    %7294 = vmatmul.mubr.f32.gmra.mxu0 %v6273
    %v7295 = vpop.f32.mrf.mxu0
    %v7296 = vadd.f32 0.0, %v7295
    %v7297 = vpop.f32.mrf.mxu0
    %7298 = vmatprep.mubr.f32.mxu0 0.0
    %7299 = vmatmul.mubr.f32.gmra.mxu0 %v6274
    %v7300 = vpop.f32.mrf.mxu0
    %v7301 = vadd.f32 0.0, %v7300
    %v7302 = vpop.f32.mrf.mxu0
    %7303 = vmatprep.mubr.f32.mxu0 0.0
    %7304 = vmatmul.mubr.f32.gmra.mxu0 %v6275
    %v7305 = vpop.f32.mrf.mxu0
    %v7306 = vadd.f32 0.0, %v7305
    %v7307 = vpop.f32.mrf.mxu0
    %7308 = vmatprep.mubr.f32.mxu0 0.0
    %7309 = vmatmul.mubr.f32.gmra.mxu0 %v6276
    %v7310 = vpop.f32.mrf.mxu0
    %v7311 = vadd.f32 0.0, %v7310
    %v7312 = vpop.f32.mrf.mxu0
    %7313 = vmatprep.mubr.f32.mxu0 0.0
    %7314 = vmatmul.mubr.f32.gmra.mxu0 %v6277
    %v7315 = vpop.f32.mrf.mxu0
    %v7316 = vadd.f32 0.0, %v7315
    %v7317 = vpop.f32.mrf.mxu0
    %7318 = vmatprep.mubr.f32.mxu0 0.0
    %7319 = vmatmul.mubr.f32.gmra.mxu0 %v6278
    %v7320 = vpop.f32.mrf.mxu0
    %v7321 = vadd.f32 0.0, %v7320
    %v7322 = vpop.f32.mrf.mxu0
    %7323 = vmatprep.mubr.f32.mxu0 0.0
    %7324 = vmatmul.mubr.f32.gmra.mxu0 %v6279
    %v7325 = vpop.f32.mrf.mxu0
    %v7326 = vadd.f32 0.0, %v7325
    %v7327 = vpop.f32.mrf.mxu0
    %7328 = vmatprep.mubr.f32.mxu0 0.0
    %7329 = vmatmul.mubr.f32.gmra.mxu0 %v6280
    %v7330 = vpop.f32.mrf.mxu0
    %v7331 = vadd.f32 0.0, %v7330
    %v7332 = vpop.f32.mrf.mxu0
    %7333 = vmatprep.mubr.f32.mxu0 0.0
    %7334 = vmatmul.mubr.f32.gmra.mxu0 %v6281
    %v7335 = vpop.f32.mrf.mxu0
    %v7336 = vadd.f32 0.0, %v7335
    %v7337 = vpop.f32.mrf.mxu0
    %7338 = vmatprep.mubr.f32.mxu0 0.0
    %7339 = vmatmul.mubr.f32.gmra.mxu0 %v6282
    %v7340 = vpop.f32.mrf.mxu0
    %v7341 = vadd.f32 0.0, %v7340
    %v7342 = vpop.f32.mrf.mxu0
    %7343 = vmatprep.mubr.f32.mxu0 0.0
    %7344 = vmatmul.mubr.f32.gmra.mxu0 %v6283
    %v7345 = vpop.f32.mrf.mxu0
    %v7346 = vadd.f32 0.0, %v7345
    %v7347 = vpop.f32.mrf.mxu0
    %7348 = vmatprep.mubr.f32.mxu0 0.0
    %7349 = vmatmul.mubr.f32.gmra.mxu0 %v6284
    %v7350 = vpop.f32.mrf.mxu0
    %v7351 = vadd.f32 0.0, %v7350
    %v7352 = vpop.f32.mrf.mxu0
    %7353 = vmatprep.mubr.f32.mxu0 0.0
    %7354 = vmatmul.mubr.f32.gmra.mxu0 %v6285
    %v7355 = vpop.f32.mrf.mxu0
    %v7356 = vadd.f32 0.0, %v7355
    %v7357 = vpop.f32.mrf.mxu0
    %7358 = vmatprep.mubr.f32.mxu0 0.0
    %7359 = vmatmul.mubr.f32.gmra.mxu0 %v6286
    %v7360 = vpop.f32.mrf.mxu0
    %v7361 = vadd.f32 0.0, %v7360
    %v7362 = vpop.f32.mrf.mxu0
    %7363 = vmatprep.mubr.f32.mxu0 0.0
    %7364 = vmatmul.mubr.f32.gmra.mxu0 %v6287
    %v7365 = vpop.f32.mrf.mxu0
    %v7366 = vadd.f32 0.0, %v7365
    %v7367 = vpop.f32.mrf.mxu0
    %7368 = vdwg.mxu0
    %s7369 = scalar_lea.vmem %s3, 384
    %v7370 = vld [vmem:[%s7369] sm:$0xff]
    %v7371 = vld [vmem:[%s7369 + $0x8] sm:$0xff]
    %v7372 = vld [vmem:[%s7369 + $0x10] sm:$0xff]
    %v7373 = vld [vmem:[%s7369 + $0x18] sm:$0xff]
    %v7374 = vld [vmem:[%s7369 + $0x20] sm:$0xff]
    %v7375 = vld [vmem:[%s7369 + $0x28] sm:$0xff]
    %v7376 = vld [vmem:[%s7369 + $0x30] sm:$0xff]
    %v7377 = vld [vmem:[%s7369 + $0x38] sm:$0xff]
    %v7378 = vld [vmem:[%s7369 + $0x40] sm:$0xff]
    %v7379 = vld [vmem:[%s7369 + $0x48] sm:$0xff]
    %v7380 = vld [vmem:[%s7369 + $0x50] sm:$0xff]
    %v7381 = vld [vmem:[%s7369 + $0x58] sm:$0xff]
    %v7382 = vld [vmem:[%s7369 + $0x60] sm:$0xff]
    %v7383 = vld [vmem:[%s7369 + $0x68] sm:$0xff]
    %v7384 = vld [vmem:[%s7369 + $0x70] sm:$0xff]
    %v7385 = vld [vmem:[%s7369 + $0x78] sm:$0xff]
    %7386 = vmatprep.subr.mxu0 0.0
    %7387 = vmatpush1.msra.mxu0 %v7366
    %7388 = vmatprep.subr.mxu0 0.0
    %7389 = vmatpush1.msra.mxu0 %v7361
    %7390 = vmatprep.subr.mxu0 0.0
    %7391 = vmatpush1.msra.mxu0 %v7356
    %7392 = vmatprep.subr.mxu0 0.0
    %7393 = vmatpush1.msra.mxu0 %v7351
    %7394 = vmatprep.subr.mxu0 0.0
    %7395 = vmatpush1.msra.mxu0 %v7346
    %7396 = vmatprep.subr.mxu0 0.0
    %7397 = vmatpush1.msra.mxu0 %v7341
    %7398 = vmatprep.subr.mxu0 0.0
    %7399 = vmatpush1.msra.mxu0 %v7336
    %7400 = vmatprep.subr.mxu0 0.0
    %7401 = vmatpush1.msra.mxu0 %v7331
    %7402 = vmatprep.subr.mxu0 0.0
    %7403 = vmatpush1.msra.mxu0 %v7326
    %7404 = vmatprep.subr.mxu0 0.0
    %7405 = vmatpush1.msra.mxu0 %v7321
    %7406 = vmatprep.subr.mxu0 0.0
    %7407 = vmatpush1.msra.mxu0 %v7316
    %7408 = vmatprep.subr.mxu0 0.0
    %7409 = vmatpush1.msra.mxu0 %v7311
    %7410 = vmatprep.subr.mxu0 0.0
    %7411 = vmatpush1.msra.mxu0 %v7306
    %7412 = vmatprep.subr.mxu0 0.0
    %7413 = vmatpush1.msra.mxu0 %v7301
    %7414 = vmatprep.subr.mxu0 0.0
    %7415 = vmatpush1.msra.mxu0 %v7296
    %7416 = vmatprep.subr.mxu0 0.0
    %7417 = vmatpush1.msra.mxu0 %v7291
    %7418 = vmatprep.subr.mxu0 0.0
    %7419 = vmatpush2.msra.mxu0 0.0
    %7420 = vmatprep.subr.mxu0 0.0
    %7421 = vmatpush2.msra.mxu0 0.0
    %7422 = vmatprep.subr.mxu0 0.0
    %7423 = vmatpush2.msra.mxu0 0.0
    %7424 = vmatprep.subr.mxu0 0.0
    %7425 = vmatpush2.msra.mxu0 0.0
    %7426 = vmatprep.subr.mxu0 0.0
    %7427 = vmatpush2.msra.mxu0 0.0
    %7428 = vmatprep.subr.mxu0 0.0
    %7429 = vmatpush2.msra.mxu0 0.0
    %7430 = vmatprep.subr.mxu0 0.0
    %7431 = vmatpush2.msra.mxu0 0.0
    %7432 = vmatprep.subr.mxu0 0.0
    %7433 = vmatpush2.msra.mxu0 0.0
    %7434 = vmatprep.subr.mxu0 0.0
    %7435 = vmatpush2.msra.mxu0 0.0
    %7436 = vmatprep.subr.mxu0 0.0
    %7437 = vmatpush2.msra.mxu0 0.0
    %7438 = vmatprep.subr.mxu0 0.0
    %7439 = vmatpush2.msra.mxu0 0.0
    %7440 = vmatprep.subr.mxu0 0.0
    %7441 = vmatpush2.msra.mxu0 0.0
    %7442 = vmatprep.subr.mxu0 0.0
    %7443 = vmatpush2.msra.mxu0 0.0
    %7444 = vmatprep.subr.mxu0 0.0
    %7445 = vmatpush2.msra.mxu0 0.0
    %7446 = vmatprep.subr.mxu0 0.0
    %7447 = vmatpush2.msra.mxu0 0.0
    %7448 = vmatprep.subr.mxu0 0.0
    %7449 = vmatpush2.msra.mxu0 0.0
    %7450 = vmatprep.mubr.f32.mxu0 0.0
    %7451 = vmatmul.mubr.f32.gmra.mxu0 %v7370
    %v7452 = vpop.f32.mrf.mxu0
    %v7453 = vadd.f32 0.0, %v7452
    %v7454 = vpop.f32.mrf.mxu0
    %7455 = vmatprep.mubr.f32.mxu0 0.0
    %7456 = vmatmul.mubr.f32.gmra.mxu0 %v7371
    %v7457 = vpop.f32.mrf.mxu0
    %v7458 = vadd.f32 0.0, %v7457
    %v7459 = vpop.f32.mrf.mxu0
    %7460 = vmatprep.mubr.f32.mxu0 0.0
    %7461 = vmatmul.mubr.f32.gmra.mxu0 %v7372
    %v7462 = vpop.f32.mrf.mxu0
    %v7463 = vadd.f32 0.0, %v7462
    %v7464 = vpop.f32.mrf.mxu0
    %7465 = vmatprep.mubr.f32.mxu0 0.0
    %7466 = vmatmul.mubr.f32.gmra.mxu0 %v7373
    %v7467 = vpop.f32.mrf.mxu0
    %v7468 = vadd.f32 0.0, %v7467
    %v7469 = vpop.f32.mrf.mxu0
    %7470 = vmatprep.mubr.f32.mxu0 0.0
    %7471 = vmatmul.mubr.f32.gmra.mxu0 %v7374
    %v7472 = vpop.f32.mrf.mxu0
    %v7473 = vadd.f32 0.0, %v7472
    %v7474 = vpop.f32.mrf.mxu0
    %7475 = vmatprep.mubr.f32.mxu0 0.0
    %7476 = vmatmul.mubr.f32.gmra.mxu0 %v7375
    %v7477 = vpop.f32.mrf.mxu0
    %v7478 = vadd.f32 0.0, %v7477
    %v7479 = vpop.f32.mrf.mxu0
    %7480 = vmatprep.mubr.f32.mxu0 0.0
    %7481 = vmatmul.mubr.f32.gmra.mxu0 %v7376
    %v7482 = vpop.f32.mrf.mxu0
    %v7483 = vadd.f32 0.0, %v7482
    %v7484 = vpop.f32.mrf.mxu0
    %7485 = vmatprep.mubr.f32.mxu0 0.0
    %7486 = vmatmul.mubr.f32.gmra.mxu0 %v7377
    %v7487 = vpop.f32.mrf.mxu0
    %v7488 = vadd.f32 0.0, %v7487
    %v7489 = vpop.f32.mrf.mxu0
    %7490 = vmatprep.mubr.f32.mxu0 0.0
    %7491 = vmatmul.mubr.f32.gmra.mxu0 %v7378
    %v7492 = vpop.f32.mrf.mxu0
    %v7493 = vadd.f32 0.0, %v7492
    %v7494 = vpop.f32.mrf.mxu0
    %7495 = vmatprep.mubr.f32.mxu0 0.0
    %7496 = vmatmul.mubr.f32.gmra.mxu0 %v7379
    %v7497 = vpop.f32.mrf.mxu0
    %v7498 = vadd.f32 0.0, %v7497
    %v7499 = vpop.f32.mrf.mxu0
    %7500 = vmatprep.mubr.f32.mxu0 0.0
    %7501 = vmatmul.mubr.f32.gmra.mxu0 %v7380
    %v7502 = vpop.f32.mrf.mxu0
    %v7503 = vadd.f32 0.0, %v7502
    %v7504 = vpop.f32.mrf.mxu0
    %7505 = vmatprep.mubr.f32.mxu0 0.0
    %7506 = vmatmul.mubr.f32.gmra.mxu0 %v7381
    %v7507 = vpop.f32.mrf.mxu0
    %v7508 = vadd.f32 0.0, %v7507
    %v7509 = vpop.f32.mrf.mxu0
    %7510 = vmatprep.mubr.f32.mxu0 0.0
    %7511 = vmatmul.mubr.f32.gmra.mxu0 %v7382
    %v7512 = vpop.f32.mrf.mxu0
    %v7513 = vadd.f32 0.0, %v7512
    %v7514 = vpop.f32.mrf.mxu0
    %7515 = vmatprep.mubr.f32.mxu0 0.0
    %7516 = vmatmul.mubr.f32.gmra.mxu0 %v7383
    %v7517 = vpop.f32.mrf.mxu0
    %v7518 = vadd.f32 0.0, %v7517
    %v7519 = vpop.f32.mrf.mxu0
    %7520 = vmatprep.mubr.f32.mxu0 0.0
    %7521 = vmatmul.mubr.f32.gmra.mxu0 %v7384
    %v7522 = vpop.f32.mrf.mxu0
    %v7523 = vadd.f32 0.0, %v7522
    %v7524 = vpop.f32.mrf.mxu0
    %7525 = vmatprep.mubr.f32.mxu0 0.0
    %7526 = vmatmul.mubr.f32.gmra.mxu0 %v7385
    %v7527 = vpop.f32.mrf.mxu0
    %v7528 = vadd.f32 0.0, %v7527
    %v7529 = vpop.f32.mrf.mxu0
    %7530 = vdwg.mxu0
    %v7531 = vadd.f32 %v7208, %v7453
    %v7532 = vadd.f32 %v7209, %v7458
    %v7533 = vadd.f32 %v7210, %v7463
    %v7534 = vadd.f32 %v7211, %v7468
    %v7535 = vadd.f32 %v7212, %v7473
    %v7536 = vadd.f32 %v7213, %v7478
    %v7537 = vadd.f32 %v7214, %v7483
    %v7538 = vadd.f32 %v7215, %v7488
    %v7539 = vadd.f32 %v7216, %v7493
    %v7540 = vadd.f32 %v7217, %v7498
    %v7541 = vadd.f32 %v7218, %v7503
    %v7542 = vadd.f32 %v7219, %v7508
    %v7543 = vadd.f32 %v7220, %v7513
    %v7544 = vadd.f32 %v7221, %v7518
    %v7545 = vadd.f32 %v7222, %v7523
    %v7546 = vadd.f32 %v7223, %v7528
    %s7547 = scalar_lea.vmem %s3, 512
    %v7548 = vld [vmem:[%s7547] sm:$0xff]
    %v7549 = vld [vmem:[%s7547 + $0x8] sm:$0xff]
    %v7550 = vld [vmem:[%s7547 + $0x10] sm:$0xff]
    %v7551 = vld [vmem:[%s7547 + $0x18] sm:$0xff]
    %v7552 = vld [vmem:[%s7547 + $0x20] sm:$0xff]
    %v7553 = vld [vmem:[%s7547 + $0x28] sm:$0xff]
    %v7554 = vld [vmem:[%s7547 + $0x30] sm:$0xff]
    %v7555 = vld [vmem:[%s7547 + $0x38] sm:$0xff]
    %v7556 = vld [vmem:[%s7547 + $0x40] sm:$0xff]
    %v7557 = vld [vmem:[%s7547 + $0x48] sm:$0xff]
    %v7558 = vld [vmem:[%s7547 + $0x50] sm:$0xff]
    %v7559 = vld [vmem:[%s7547 + $0x58] sm:$0xff]
    %v7560 = vld [vmem:[%s7547 + $0x60] sm:$0xff]
    %v7561 = vld [vmem:[%s7547 + $0x68] sm:$0xff]
    %v7562 = vld [vmem:[%s7547 + $0x70] sm:$0xff]
    %v7563 = vld [vmem:[%s7547 + $0x78] sm:$0xff]
    %7564 = vmatprep.subr.mxu0 0.0
    %7565 = vmatpush1.msra.mxu0 %v6287
    %7566 = vmatprep.subr.mxu0 0.0
    %7567 = vmatpush1.msra.mxu0 %v6286
    %7568 = vmatprep.subr.mxu0 0.0
    %7569 = vmatpush1.msra.mxu0 %v6285
    %7570 = vmatprep.subr.mxu0 0.0
    %7571 = vmatpush1.msra.mxu0 %v6284
    %7572 = vmatprep.subr.mxu0 0.0
    %7573 = vmatpush1.msra.mxu0 %v6283
    %7574 = vmatprep.subr.mxu0 0.0
    %7575 = vmatpush1.msra.mxu0 %v6282
    %7576 = vmatprep.subr.mxu0 0.0
    %7577 = vmatpush1.msra.mxu0 %v6281
    %7578 = vmatprep.subr.mxu0 0.0
    %7579 = vmatpush1.msra.mxu0 %v6280
    %7580 = vmatprep.subr.mxu0 0.0
    %7581 = vmatpush1.msra.mxu0 %v6279
    %7582 = vmatprep.subr.mxu0 0.0
    %7583 = vmatpush1.msra.mxu0 %v6278
    %7584 = vmatprep.subr.mxu0 0.0
    %7585 = vmatpush1.msra.mxu0 %v6277
    %7586 = vmatprep.subr.mxu0 0.0
    %7587 = vmatpush1.msra.mxu0 %v6276
    %7588 = vmatprep.subr.mxu0 0.0
    %7589 = vmatpush1.msra.mxu0 %v6275
    %7590 = vmatprep.subr.mxu0 0.0
    %7591 = vmatpush1.msra.mxu0 %v6274
    %7592 = vmatprep.subr.mxu0 0.0
    %7593 = vmatpush1.msra.mxu0 %v6273
    %7594 = vmatprep.subr.mxu0 0.0
    %7595 = vmatpush1.msra.mxu0 %v6272
    %7596 = vmatprep.subr.mxu0 0.0
    %7597 = vmatpush2.msra.mxu0 0.0
    %7598 = vmatprep.subr.mxu0 0.0
    %7599 = vmatpush2.msra.mxu0 0.0
    %7600 = vmatprep.subr.mxu0 0.0
    %7601 = vmatpush2.msra.mxu0 0.0
    %7602 = vmatprep.subr.mxu0 0.0
    %7603 = vmatpush2.msra.mxu0 0.0
    %7604 = vmatprep.subr.mxu0 0.0
    %7605 = vmatpush2.msra.mxu0 0.0
    %7606 = vmatprep.subr.mxu0 0.0
    %7607 = vmatpush2.msra.mxu0 0.0
    %7608 = vmatprep.subr.mxu0 0.0
    %7609 = vmatpush2.msra.mxu0 0.0
    %7610 = vmatprep.subr.mxu0 0.0
    %7611 = vmatpush2.msra.mxu0 0.0
    %7612 = vmatprep.subr.mxu0 0.0
    %7613 = vmatpush2.msra.mxu0 0.0
    %7614 = vmatprep.subr.mxu0 0.0
    %7615 = vmatpush2.msra.mxu0 0.0
    %7616 = vmatprep.subr.mxu0 0.0
    %7617 = vmatpush2.msra.mxu0 0.0
    %7618 = vmatprep.subr.mxu0 0.0
    %7619 = vmatpush2.msra.mxu0 0.0
    %7620 = vmatprep.subr.mxu0 0.0
    %7621 = vmatpush2.msra.mxu0 0.0
    %7622 = vmatprep.subr.mxu0 0.0
    %7623 = vmatpush2.msra.mxu0 0.0
    %7624 = vmatprep.subr.mxu0 0.0
    %7625 = vmatpush2.msra.mxu0 0.0
    %7626 = vmatprep.subr.mxu0 0.0
    %7627 = vmatpush2.msra.mxu0 0.0
    %7628 = vmatprep.mubr.f32.mxu0 0.0
    %7629 = vmatmul.mubr.f32.gmra.mxu0 %v7548
    %v7630 = vpop.f32.mrf.mxu0
    %v7631 = vadd.f32 0.0, %v7630
    %v7632 = vpop.f32.mrf.mxu0
    %7633 = vmatprep.mubr.f32.mxu0 0.0
    %7634 = vmatmul.mubr.f32.gmra.mxu0 %v7549
    %v7635 = vpop.f32.mrf.mxu0
    %v7636 = vadd.f32 0.0, %v7635
    %v7637 = vpop.f32.mrf.mxu0
    %7638 = vmatprep.mubr.f32.mxu0 0.0
    %7639 = vmatmul.mubr.f32.gmra.mxu0 %v7550
    %v7640 = vpop.f32.mrf.mxu0
    %v7641 = vadd.f32 0.0, %v7640
    %v7642 = vpop.f32.mrf.mxu0
    %7643 = vmatprep.mubr.f32.mxu0 0.0
    %7644 = vmatmul.mubr.f32.gmra.mxu0 %v7551
    %v7645 = vpop.f32.mrf.mxu0
    %v7646 = vadd.f32 0.0, %v7645
    %v7647 = vpop.f32.mrf.mxu0
    %7648 = vmatprep.mubr.f32.mxu0 0.0
    %7649 = vmatmul.mubr.f32.gmra.mxu0 %v7552
    %v7650 = vpop.f32.mrf.mxu0
    %v7651 = vadd.f32 0.0, %v7650
    %v7652 = vpop.f32.mrf.mxu0
    %7653 = vmatprep.mubr.f32.mxu0 0.0
    %7654 = vmatmul.mubr.f32.gmra.mxu0 %v7553
    %v7655 = vpop.f32.mrf.mxu0
    %v7656 = vadd.f32 0.0, %v7655
    %v7657 = vpop.f32.mrf.mxu0
    %7658 = vmatprep.mubr.f32.mxu0 0.0
    %7659 = vmatmul.mubr.f32.gmra.mxu0 %v7554
    %v7660 = vpop.f32.mrf.mxu0
    %v7661 = vadd.f32 0.0, %v7660
    %v7662 = vpop.f32.mrf.mxu0
    %7663 = vmatprep.mubr.f32.mxu0 0.0
    %7664 = vmatmul.mubr.f32.gmra.mxu0 %v7555
    %v7665 = vpop.f32.mrf.mxu0
    %v7666 = vadd.f32 0.0, %v7665
    %v7667 = vpop.f32.mrf.mxu0
    %7668 = vmatprep.mubr.f32.mxu0 0.0
    %7669 = vmatmul.mubr.f32.gmra.mxu0 %v7556
    %v7670 = vpop.f32.mrf.mxu0
    %v7671 = vadd.f32 0.0, %v7670
    %v7672 = vpop.f32.mrf.mxu0
    %7673 = vmatprep.mubr.f32.mxu0 0.0
    %7674 = vmatmul.mubr.f32.gmra.mxu0 %v7557
    %v7675 = vpop.f32.mrf.mxu0
    %v7676 = vadd.f32 0.0, %v7675
    %v7677 = vpop.f32.mrf.mxu0
    %7678 = vmatprep.mubr.f32.mxu0 0.0
    %7679 = vmatmul.mubr.f32.gmra.mxu0 %v7558
    %v7680 = vpop.f32.mrf.mxu0
    %v7681 = vadd.f32 0.0, %v7680
    %v7682 = vpop.f32.mrf.mxu0
    %7683 = vmatprep.mubr.f32.mxu0 0.0
    %7684 = vmatmul.mubr.f32.gmra.mxu0 %v7559
    %v7685 = vpop.f32.mrf.mxu0
    %v7686 = vadd.f32 0.0, %v7685
    %v7687 = vpop.f32.mrf.mxu0
    %7688 = vmatprep.mubr.f32.mxu0 0.0
    %7689 = vmatmul.mubr.f32.gmra.mxu0 %v7560
    %v7690 = vpop.f32.mrf.mxu0
    %v7691 = vadd.f32 0.0, %v7690
    %v7692 = vpop.f32.mrf.mxu0
    %7693 = vmatprep.mubr.f32.mxu0 0.0
    %7694 = vmatmul.mubr.f32.gmra.mxu0 %v7561
    %v7695 = vpop.f32.mrf.mxu0
    %v7696 = vadd.f32 0.0, %v7695
    %v7697 = vpop.f32.mrf.mxu0
    %7698 = vmatprep.mubr.f32.mxu0 0.0
    %7699 = vmatmul.mubr.f32.gmra.mxu0 %v7562
    %v7700 = vpop.f32.mrf.mxu0
    %v7701 = vadd.f32 0.0, %v7700
    %v7702 = vpop.f32.mrf.mxu0
    %7703 = vmatprep.mubr.f32.mxu0 0.0
    %7704 = vmatmul.mubr.f32.gmra.mxu0 %v7563
    %v7705 = vpop.f32.mrf.mxu0
    %v7706 = vadd.f32 0.0, %v7705
    %v7707 = vpop.f32.mrf.mxu0
    %7708 = vdwg.mxu0
    %v7709 = vadd.f32 %v7531, %v7631
    %v7710 = vadd.f32 %v7532, %v7636
    %v7711 = vadd.f32 %v7533, %v7641
    %v7712 = vadd.f32 %v7534, %v7646
    %v7713 = vadd.f32 %v7535, %v7651
    %v7714 = vadd.f32 %v7536, %v7656
    %v7715 = vadd.f32 %v7537, %v7661
    %v7716 = vadd.f32 %v7538, %v7666
    %v7717 = vadd.f32 %v7539, %v7671
    %v7718 = vadd.f32 %v7540, %v7676
    %v7719 = vadd.f32 %v7541, %v7681
    %v7720 = vadd.f32 %v7542, %v7686
    %v7721 = vadd.f32 %v7543, %v7691
    %v7722 = vadd.f32 %v7544, %v7696
    %v7723 = vadd.f32 %v7545, %v7701
    %v7724 = vadd.f32 %v7546, %v7706
    %7725 = vmatprep.subr.mxu0 0.0
    %7726 = vmatpush1.msra.mxu0 %v3410
    %7727 = vmatprep.subr.mxu0 0.0
    %7728 = vmatpush1.msra.mxu0 %v3409
    %7729 = vmatprep.subr.mxu0 0.0
    %7730 = vmatpush1.msra.mxu0 %v3408
    %7731 = vmatprep.subr.mxu0 0.0
    %7732 = vmatpush1.msra.mxu0 %v3407
    %7733 = vmatprep.subr.mxu0 0.0
    %7734 = vmatpush1.msra.mxu0 %v3406
    %7735 = vmatprep.subr.mxu0 0.0
    %7736 = vmatpush1.msra.mxu0 %v3405
    %7737 = vmatprep.subr.mxu0 0.0
    %7738 = vmatpush1.msra.mxu0 %v3404
    %7739 = vmatprep.subr.mxu0 0.0
    %7740 = vmatpush1.msra.mxu0 %v3403
    %7741 = vmatprep.subr.mxu0 0.0
    %7742 = vmatpush1.msra.mxu0 %v3402
    %7743 = vmatprep.subr.mxu0 0.0
    %7744 = vmatpush1.msra.mxu0 %v3401
    %7745 = vmatprep.subr.mxu0 0.0
    %7746 = vmatpush1.msra.mxu0 %v3400
    %7747 = vmatprep.subr.mxu0 0.0
    %7748 = vmatpush1.msra.mxu0 %v3399
    %7749 = vmatprep.subr.mxu0 0.0
    %7750 = vmatpush1.msra.mxu0 %v3398
    %7751 = vmatprep.subr.mxu0 0.0
    %7752 = vmatpush1.msra.mxu0 %v3397
    %7753 = vmatprep.subr.mxu0 0.0
    %7754 = vmatpush1.msra.mxu0 %v3396
    %7755 = vmatprep.subr.mxu0 0.0
    %7756 = vmatpush1.msra.mxu0 %v3395
    %7757 = vmatprep.subr.mxu0 0.0
    %7758 = vmatpush2.msra.mxu0 0.0
    %7759 = vmatprep.subr.mxu0 0.0
    %7760 = vmatpush2.msra.mxu0 0.0
    %7761 = vmatprep.subr.mxu0 0.0
    %7762 = vmatpush2.msra.mxu0 0.0
    %7763 = vmatprep.subr.mxu0 0.0
    %7764 = vmatpush2.msra.mxu0 0.0
    %7765 = vmatprep.subr.mxu0 0.0
    %7766 = vmatpush2.msra.mxu0 0.0
    %7767 = vmatprep.subr.mxu0 0.0
    %7768 = vmatpush2.msra.mxu0 0.0
    %7769 = vmatprep.subr.mxu0 0.0
    %7770 = vmatpush2.msra.mxu0 0.0
    %7771 = vmatprep.subr.mxu0 0.0
    %7772 = vmatpush2.msra.mxu0 0.0
    %7773 = vmatprep.subr.mxu0 0.0
    %7774 = vmatpush2.msra.mxu0 0.0
    %7775 = vmatprep.subr.mxu0 0.0
    %7776 = vmatpush2.msra.mxu0 0.0
    %7777 = vmatprep.subr.mxu0 0.0
    %7778 = vmatpush2.msra.mxu0 0.0
    %7779 = vmatprep.subr.mxu0 0.0
    %7780 = vmatpush2.msra.mxu0 0.0
    %7781 = vmatprep.subr.mxu0 0.0
    %7782 = vmatpush2.msra.mxu0 0.0
    %7783 = vmatprep.subr.mxu0 0.0
    %7784 = vmatpush2.msra.mxu0 0.0
    %7785 = vmatprep.subr.mxu0 0.0
    %7786 = vmatpush2.msra.mxu0 0.0
    %7787 = vmatprep.subr.mxu0 0.0
    %7788 = vmatpush2.msra.mxu0 0.0
    %7789 = vmatprep.mubr.f32.mxu0 0.0
    %7790 = vmatmul.mubr.f32.gmra.mxu0 %v6272
    %v7791 = vpop.f32.mrf.mxu0
    %v7792 = vadd.f32 0.0, %v7791
    %v7793 = vpop.f32.mrf.mxu0
    %7794 = vmatprep.mubr.f32.mxu0 0.0
    %7795 = vmatmul.mubr.f32.gmra.mxu0 %v6273
    %v7796 = vpop.f32.mrf.mxu0
    %v7797 = vadd.f32 0.0, %v7796
    %v7798 = vpop.f32.mrf.mxu0
    %7799 = vmatprep.mubr.f32.mxu0 0.0
    %7800 = vmatmul.mubr.f32.gmra.mxu0 %v6274
    %v7801 = vpop.f32.mrf.mxu0
    %v7802 = vadd.f32 0.0, %v7801
    %v7803 = vpop.f32.mrf.mxu0
    %7804 = vmatprep.mubr.f32.mxu0 0.0
    %7805 = vmatmul.mubr.f32.gmra.mxu0 %v6275
    %v7806 = vpop.f32.mrf.mxu0
    %v7807 = vadd.f32 0.0, %v7806
    %v7808 = vpop.f32.mrf.mxu0
    %7809 = vmatprep.mubr.f32.mxu0 0.0
    %7810 = vmatmul.mubr.f32.gmra.mxu0 %v6276
    %v7811 = vpop.f32.mrf.mxu0
    %v7812 = vadd.f32 0.0, %v7811
    %v7813 = vpop.f32.mrf.mxu0
    %7814 = vmatprep.mubr.f32.mxu0 0.0
    %7815 = vmatmul.mubr.f32.gmra.mxu0 %v6277
    %v7816 = vpop.f32.mrf.mxu0
    %v7817 = vadd.f32 0.0, %v7816
    %v7818 = vpop.f32.mrf.mxu0
    %7819 = vmatprep.mubr.f32.mxu0 0.0
    %7820 = vmatmul.mubr.f32.gmra.mxu0 %v6278
    %v7821 = vpop.f32.mrf.mxu0
    %v7822 = vadd.f32 0.0, %v7821
    %v7823 = vpop.f32.mrf.mxu0
    %7824 = vmatprep.mubr.f32.mxu0 0.0
    %7825 = vmatmul.mubr.f32.gmra.mxu0 %v6279
    %v7826 = vpop.f32.mrf.mxu0
    %v7827 = vadd.f32 0.0, %v7826
    %v7828 = vpop.f32.mrf.mxu0
    %7829 = vmatprep.mubr.f32.mxu0 0.0
    %7830 = vmatmul.mubr.f32.gmra.mxu0 %v6280
    %v7831 = vpop.f32.mrf.mxu0
    %v7832 = vadd.f32 0.0, %v7831
    %v7833 = vpop.f32.mrf.mxu0
    %7834 = vmatprep.mubr.f32.mxu0 0.0
    %7835 = vmatmul.mubr.f32.gmra.mxu0 %v6281
    %v7836 = vpop.f32.mrf.mxu0
    %v7837 = vadd.f32 0.0, %v7836
    %v7838 = vpop.f32.mrf.mxu0
    %7839 = vmatprep.mubr.f32.mxu0 0.0
    %7840 = vmatmul.mubr.f32.gmra.mxu0 %v6282
    %v7841 = vpop.f32.mrf.mxu0
    %v7842 = vadd.f32 0.0, %v7841
    %v7843 = vpop.f32.mrf.mxu0
    %7844 = vmatprep.mubr.f32.mxu0 0.0
    %7845 = vmatmul.mubr.f32.gmra.mxu0 %v6283
    %v7846 = vpop.f32.mrf.mxu0
    %v7847 = vadd.f32 0.0, %v7846
    %v7848 = vpop.f32.mrf.mxu0
    %7849 = vmatprep.mubr.f32.mxu0 0.0
    %7850 = vmatmul.mubr.f32.gmra.mxu0 %v6284
    %v7851 = vpop.f32.mrf.mxu0
    %v7852 = vadd.f32 0.0, %v7851
    %v7853 = vpop.f32.mrf.mxu0
    %7854 = vmatprep.mubr.f32.mxu0 0.0
    %7855 = vmatmul.mubr.f32.gmra.mxu0 %v6285
    %v7856 = vpop.f32.mrf.mxu0
    %v7857 = vadd.f32 0.0, %v7856
    %v7858 = vpop.f32.mrf.mxu0
    %7859 = vmatprep.mubr.f32.mxu0 0.0
    %7860 = vmatmul.mubr.f32.gmra.mxu0 %v6286
    %v7861 = vpop.f32.mrf.mxu0
    %v7862 = vadd.f32 0.0, %v7861
    %v7863 = vpop.f32.mrf.mxu0
    %7864 = vmatprep.mubr.f32.mxu0 0.0
    %7865 = vmatmul.mubr.f32.gmra.mxu0 %v6287
    %v7866 = vpop.f32.mrf.mxu0
    %v7867 = vadd.f32 0.0, %v7866
    %v7868 = vpop.f32.mrf.mxu0
    %7869 = vdwg.mxu0
    %s7870 = scalar_lea.vmem %s3, 640
    %v7871 = vld [vmem:[%s7870] sm:$0xff]
    %v7872 = vld [vmem:[%s7870 + $0x8] sm:$0xff]
    %v7873 = vld [vmem:[%s7870 + $0x10] sm:$0xff]
    %v7874 = vld [vmem:[%s7870 + $0x18] sm:$0xff]
    %v7875 = vld [vmem:[%s7870 + $0x20] sm:$0xff]
    %v7876 = vld [vmem:[%s7870 + $0x28] sm:$0xff]
    %v7877 = vld [vmem:[%s7870 + $0x30] sm:$0xff]
    %v7878 = vld [vmem:[%s7870 + $0x38] sm:$0xff]
    %v7879 = vld [vmem:[%s7870 + $0x40] sm:$0xff]
    %v7880 = vld [vmem:[%s7870 + $0x48] sm:$0xff]
    %v7881 = vld [vmem:[%s7870 + $0x50] sm:$0xff]
    %v7882 = vld [vmem:[%s7870 + $0x58] sm:$0xff]
    %v7883 = vld [vmem:[%s7870 + $0x60] sm:$0xff]
    %v7884 = vld [vmem:[%s7870 + $0x68] sm:$0xff]
    %v7885 = vld [vmem:[%s7870 + $0x70] sm:$0xff]
    %v7886 = vld [vmem:[%s7870 + $0x78] sm:$0xff]
    %7887 = vmatprep.subr.mxu0 0.0
    %7888 = vmatpush1.msra.mxu0 %v7867
    %7889 = vmatprep.subr.mxu0 0.0
    %7890 = vmatpush1.msra.mxu0 %v7862
    %7891 = vmatprep.subr.mxu0 0.0
    %7892 = vmatpush1.msra.mxu0 %v7857
    %7893 = vmatprep.subr.mxu0 0.0
    %7894 = vmatpush1.msra.mxu0 %v7852
    %7895 = vmatprep.subr.mxu0 0.0
    %7896 = vmatpush1.msra.mxu0 %v7847
    %7897 = vmatprep.subr.mxu0 0.0
    %7898 = vmatpush1.msra.mxu0 %v7842
    %7899 = vmatprep.subr.mxu0 0.0
    %7900 = vmatpush1.msra.mxu0 %v7837
    %7901 = vmatprep.subr.mxu0 0.0
    %7902 = vmatpush1.msra.mxu0 %v7832
    %7903 = vmatprep.subr.mxu0 0.0
    %7904 = vmatpush1.msra.mxu0 %v7827
    %7905 = vmatprep.subr.mxu0 0.0
    %7906 = vmatpush1.msra.mxu0 %v7822
    %7907 = vmatprep.subr.mxu0 0.0
    %7908 = vmatpush1.msra.mxu0 %v7817
    %7909 = vmatprep.subr.mxu0 0.0
    %7910 = vmatpush1.msra.mxu0 %v7812
    %7911 = vmatprep.subr.mxu0 0.0
    %7912 = vmatpush1.msra.mxu0 %v7807
    %7913 = vmatprep.subr.mxu0 0.0
    %7914 = vmatpush1.msra.mxu0 %v7802
    %7915 = vmatprep.subr.mxu0 0.0
    %7916 = vmatpush1.msra.mxu0 %v7797
    %7917 = vmatprep.subr.mxu0 0.0
    %7918 = vmatpush1.msra.mxu0 %v7792
    %7919 = vmatprep.subr.mxu0 0.0
    %7920 = vmatpush2.msra.mxu0 0.0
    %7921 = vmatprep.subr.mxu0 0.0
    %7922 = vmatpush2.msra.mxu0 0.0
    %7923 = vmatprep.subr.mxu0 0.0
    %7924 = vmatpush2.msra.mxu0 0.0
    %7925 = vmatprep.subr.mxu0 0.0
    %7926 = vmatpush2.msra.mxu0 0.0
    %7927 = vmatprep.subr.mxu0 0.0
    %7928 = vmatpush2.msra.mxu0 0.0
    %7929 = vmatprep.subr.mxu0 0.0
    %7930 = vmatpush2.msra.mxu0 0.0
    %7931 = vmatprep.subr.mxu0 0.0
    %7932 = vmatpush2.msra.mxu0 0.0
    %7933 = vmatprep.subr.mxu0 0.0
    %7934 = vmatpush2.msra.mxu0 0.0
    %7935 = vmatprep.subr.mxu0 0.0
    %7936 = vmatpush2.msra.mxu0 0.0
    %7937 = vmatprep.subr.mxu0 0.0
    %7938 = vmatpush2.msra.mxu0 0.0
    %7939 = vmatprep.subr.mxu0 0.0
    %7940 = vmatpush2.msra.mxu0 0.0
    %7941 = vmatprep.subr.mxu0 0.0
    %7942 = vmatpush2.msra.mxu0 0.0
    %7943 = vmatprep.subr.mxu0 0.0
    %7944 = vmatpush2.msra.mxu0 0.0
    %7945 = vmatprep.subr.mxu0 0.0
    %7946 = vmatpush2.msra.mxu0 0.0
    %7947 = vmatprep.subr.mxu0 0.0
    %7948 = vmatpush2.msra.mxu0 0.0
    %7949 = vmatprep.subr.mxu0 0.0
    %7950 = vmatpush2.msra.mxu0 0.0
    %7951 = vmatprep.mubr.f32.mxu0 0.0
    %7952 = vmatmul.mubr.f32.gmra.mxu0 %v7871
    %v7953 = vpop.f32.mrf.mxu0
    %v7954 = vadd.f32 0.0, %v7953
    %v7955 = vpop.f32.mrf.mxu0
    %7956 = vmatprep.mubr.f32.mxu0 0.0
    %7957 = vmatmul.mubr.f32.gmra.mxu0 %v7872
    %v7958 = vpop.f32.mrf.mxu0
    %v7959 = vadd.f32 0.0, %v7958
    %v7960 = vpop.f32.mrf.mxu0
    %7961 = vmatprep.mubr.f32.mxu0 0.0
    %7962 = vmatmul.mubr.f32.gmra.mxu0 %v7873
    %v7963 = vpop.f32.mrf.mxu0
    %v7964 = vadd.f32 0.0, %v7963
    %v7965 = vpop.f32.mrf.mxu0
    %7966 = vmatprep.mubr.f32.mxu0 0.0
    %7967 = vmatmul.mubr.f32.gmra.mxu0 %v7874
    %v7968 = vpop.f32.mrf.mxu0
    %v7969 = vadd.f32 0.0, %v7968
    %v7970 = vpop.f32.mrf.mxu0
    %7971 = vmatprep.mubr.f32.mxu0 0.0
    %7972 = vmatmul.mubr.f32.gmra.mxu0 %v7875
    %v7973 = vpop.f32.mrf.mxu0
    %v7974 = vadd.f32 0.0, %v7973
    %v7975 = vpop.f32.mrf.mxu0
    %7976 = vmatprep.mubr.f32.mxu0 0.0
    %7977 = vmatmul.mubr.f32.gmra.mxu0 %v7876
    %v7978 = vpop.f32.mrf.mxu0
    %v7979 = vadd.f32 0.0, %v7978
    %v7980 = vpop.f32.mrf.mxu0
    %7981 = vmatprep.mubr.f32.mxu0 0.0
    %7982 = vmatmul.mubr.f32.gmra.mxu0 %v7877
    %v7983 = vpop.f32.mrf.mxu0
    %v7984 = vadd.f32 0.0, %v7983
    %v7985 = vpop.f32.mrf.mxu0
    %7986 = vmatprep.mubr.f32.mxu0 0.0
    %7987 = vmatmul.mubr.f32.gmra.mxu0 %v7878
    %v7988 = vpop.f32.mrf.mxu0
    %v7989 = vadd.f32 0.0, %v7988
    %v7990 = vpop.f32.mrf.mxu0
    %7991 = vmatprep.mubr.f32.mxu0 0.0
    %7992 = vmatmul.mubr.f32.gmra.mxu0 %v7879
    %v7993 = vpop.f32.mrf.mxu0
    %v7994 = vadd.f32 0.0, %v7993
    %v7995 = vpop.f32.mrf.mxu0
    %7996 = vmatprep.mubr.f32.mxu0 0.0
    %7997 = vmatmul.mubr.f32.gmra.mxu0 %v7880
    %v7998 = vpop.f32.mrf.mxu0
    %v7999 = vadd.f32 0.0, %v7998
    %v8000 = vpop.f32.mrf.mxu0
    %8001 = vmatprep.mubr.f32.mxu0 0.0
    %8002 = vmatmul.mubr.f32.gmra.mxu0 %v7881
    %v8003 = vpop.f32.mrf.mxu0
    %v8004 = vadd.f32 0.0, %v8003
    %v8005 = vpop.f32.mrf.mxu0
    %8006 = vmatprep.mubr.f32.mxu0 0.0
    %8007 = vmatmul.mubr.f32.gmra.mxu0 %v7882
    %v8008 = vpop.f32.mrf.mxu0
    %v8009 = vadd.f32 0.0, %v8008
    %v8010 = vpop.f32.mrf.mxu0
    %8011 = vmatprep.mubr.f32.mxu0 0.0
    %8012 = vmatmul.mubr.f32.gmra.mxu0 %v7883
    %v8013 = vpop.f32.mrf.mxu0
    %v8014 = vadd.f32 0.0, %v8013
    %v8015 = vpop.f32.mrf.mxu0
    %8016 = vmatprep.mubr.f32.mxu0 0.0
    %8017 = vmatmul.mubr.f32.gmra.mxu0 %v7884
    %v8018 = vpop.f32.mrf.mxu0
    %v8019 = vadd.f32 0.0, %v8018
    %v8020 = vpop.f32.mrf.mxu0
    %8021 = vmatprep.mubr.f32.mxu0 0.0
    %8022 = vmatmul.mubr.f32.gmra.mxu0 %v7885
    %v8023 = vpop.f32.mrf.mxu0
    %v8024 = vadd.f32 0.0, %v8023
    %v8025 = vpop.f32.mrf.mxu0
    %8026 = vmatprep.mubr.f32.mxu0 0.0
    %8027 = vmatmul.mubr.f32.gmra.mxu0 %v7886
    %v8028 = vpop.f32.mrf.mxu0
    %v8029 = vadd.f32 0.0, %v8028
    %v8030 = vpop.f32.mrf.mxu0
    %8031 = vdwg.mxu0
    %v8032 = vadd.f32 %v7709, %v7954
    %v8033 = vadd.f32 %v7710, %v7959
    %v8034 = vadd.f32 %v7711, %v7964
    %v8035 = vadd.f32 %v7712, %v7969
    %v8036 = vadd.f32 %v7713, %v7974
    %v8037 = vadd.f32 %v7714, %v7979
    %v8038 = vadd.f32 %v7715, %v7984
    %v8039 = vadd.f32 %v7716, %v7989
    %v8040 = vadd.f32 %v7717, %v7994
    %v8041 = vadd.f32 %v7718, %v7999
    %v8042 = vadd.f32 %v7719, %v8004
    %v8043 = vadd.f32 %v7720, %v8009
    %v8044 = vadd.f32 %v7721, %v8014
    %v8045 = vadd.f32 %v7722, %v8019
    %v8046 = vadd.f32 %v7723, %v8024
    %v8047 = vadd.f32 %v7724, %v8029
    %8048 = vmatprep.subr.mxu0 0.0
    %8049 = vmatpush1.msra.mxu0 %v3758
    %8050 = vmatprep.subr.mxu0 0.0
    %8051 = vmatpush1.msra.mxu0 %v3757
    %8052 = vmatprep.subr.mxu0 0.0
    %8053 = vmatpush1.msra.mxu0 %v3756
    %8054 = vmatprep.subr.mxu0 0.0
    %8055 = vmatpush1.msra.mxu0 %v3755
    %8056 = vmatprep.subr.mxu0 0.0
    %8057 = vmatpush1.msra.mxu0 %v3754
    %8058 = vmatprep.subr.mxu0 0.0
    %8059 = vmatpush1.msra.mxu0 %v3753
    %8060 = vmatprep.subr.mxu0 0.0
    %8061 = vmatpush1.msra.mxu0 %v3752
    %8062 = vmatprep.subr.mxu0 0.0
    %8063 = vmatpush1.msra.mxu0 %v3751
    %8064 = vmatprep.subr.mxu0 0.0
    %8065 = vmatpush1.msra.mxu0 %v3750
    %8066 = vmatprep.subr.mxu0 0.0
    %8067 = vmatpush1.msra.mxu0 %v3749
    %8068 = vmatprep.subr.mxu0 0.0
    %8069 = vmatpush1.msra.mxu0 %v3748
    %8070 = vmatprep.subr.mxu0 0.0
    %8071 = vmatpush1.msra.mxu0 %v3747
    %8072 = vmatprep.subr.mxu0 0.0
    %8073 = vmatpush1.msra.mxu0 %v3746
    %8074 = vmatprep.subr.mxu0 0.0
    %8075 = vmatpush1.msra.mxu0 %v3745
    %8076 = vmatprep.subr.mxu0 0.0
    %8077 = vmatpush1.msra.mxu0 %v3744
    %8078 = vmatprep.subr.mxu0 0.0
    %8079 = vmatpush1.msra.mxu0 %v3743
    %8080 = vmatprep.subr.mxu0 0.0
    %8081 = vmatpush2.msra.mxu0 0.0
    %8082 = vmatprep.subr.mxu0 0.0
    %8083 = vmatpush2.msra.mxu0 0.0
    %8084 = vmatprep.subr.mxu0 0.0
    %8085 = vmatpush2.msra.mxu0 0.0
    %8086 = vmatprep.subr.mxu0 0.0
    %8087 = vmatpush2.msra.mxu0 0.0
    %8088 = vmatprep.subr.mxu0 0.0
    %8089 = vmatpush2.msra.mxu0 0.0
    %8090 = vmatprep.subr.mxu0 0.0
    %8091 = vmatpush2.msra.mxu0 0.0
    %8092 = vmatprep.subr.mxu0 0.0
    %8093 = vmatpush2.msra.mxu0 0.0
    %8094 = vmatprep.subr.mxu0 0.0
    %8095 = vmatpush2.msra.mxu0 0.0
    %8096 = vmatprep.subr.mxu0 0.0
    %8097 = vmatpush2.msra.mxu0 0.0
    %8098 = vmatprep.subr.mxu0 0.0
    %8099 = vmatpush2.msra.mxu0 0.0
    %8100 = vmatprep.subr.mxu0 0.0
    %8101 = vmatpush2.msra.mxu0 0.0
    %8102 = vmatprep.subr.mxu0 0.0
    %8103 = vmatpush2.msra.mxu0 0.0
    %8104 = vmatprep.subr.mxu0 0.0
    %8105 = vmatpush2.msra.mxu0 0.0
    %8106 = vmatprep.subr.mxu0 0.0
    %8107 = vmatpush2.msra.mxu0 0.0
    %8108 = vmatprep.subr.mxu0 0.0
    %8109 = vmatpush2.msra.mxu0 0.0
    %8110 = vmatprep.subr.mxu0 0.0
    %8111 = vmatpush2.msra.mxu0 0.0
    %8112 = vmatprep.mubr.f32.mxu0 0.0
    %8113 = vmatmul.mubr.f32.gmra.mxu0 %v6272
    %v8114 = vpop.f32.mrf.mxu0
    %v8115 = vadd.f32 0.0, %v8114
    %v8116 = vpop.f32.mrf.mxu0
    %8117 = vmatprep.mubr.f32.mxu0 0.0
    %8118 = vmatmul.mubr.f32.gmra.mxu0 %v6273
    %v8119 = vpop.f32.mrf.mxu0
    %v8120 = vadd.f32 0.0, %v8119
    %v8121 = vpop.f32.mrf.mxu0
    %8122 = vmatprep.mubr.f32.mxu0 0.0
    %8123 = vmatmul.mubr.f32.gmra.mxu0 %v6274
    %v8124 = vpop.f32.mrf.mxu0
    %v8125 = vadd.f32 0.0, %v8124
    %v8126 = vpop.f32.mrf.mxu0
    %8127 = vmatprep.mubr.f32.mxu0 0.0
    %8128 = vmatmul.mubr.f32.gmra.mxu0 %v6275
    %v8129 = vpop.f32.mrf.mxu0
    %v8130 = vadd.f32 0.0, %v8129
    %v8131 = vpop.f32.mrf.mxu0
    %8132 = vmatprep.mubr.f32.mxu0 0.0
    %8133 = vmatmul.mubr.f32.gmra.mxu0 %v6276
    %v8134 = vpop.f32.mrf.mxu0
    %v8135 = vadd.f32 0.0, %v8134
    %v8136 = vpop.f32.mrf.mxu0
    %8137 = vmatprep.mubr.f32.mxu0 0.0
    %8138 = vmatmul.mubr.f32.gmra.mxu0 %v6277
    %v8139 = vpop.f32.mrf.mxu0
    %v8140 = vadd.f32 0.0, %v8139
    %v8141 = vpop.f32.mrf.mxu0
    %8142 = vmatprep.mubr.f32.mxu0 0.0
    %8143 = vmatmul.mubr.f32.gmra.mxu0 %v6278
    %v8144 = vpop.f32.mrf.mxu0
    %v8145 = vadd.f32 0.0, %v8144
    %v8146 = vpop.f32.mrf.mxu0
    %8147 = vmatprep.mubr.f32.mxu0 0.0
    %8148 = vmatmul.mubr.f32.gmra.mxu0 %v6279
    %v8149 = vpop.f32.mrf.mxu0
    %v8150 = vadd.f32 0.0, %v8149
    %v8151 = vpop.f32.mrf.mxu0
    %8152 = vmatprep.mubr.f32.mxu0 0.0
    %8153 = vmatmul.mubr.f32.gmra.mxu0 %v6280
    %v8154 = vpop.f32.mrf.mxu0
    %v8155 = vadd.f32 0.0, %v8154
    %v8156 = vpop.f32.mrf.mxu0
    %8157 = vmatprep.mubr.f32.mxu0 0.0
    %8158 = vmatmul.mubr.f32.gmra.mxu0 %v6281
    %v8159 = vpop.f32.mrf.mxu0
    %v8160 = vadd.f32 0.0, %v8159
    %v8161 = vpop.f32.mrf.mxu0
    %8162 = vmatprep.mubr.f32.mxu0 0.0
    %8163 = vmatmul.mubr.f32.gmra.mxu0 %v6282
    %v8164 = vpop.f32.mrf.mxu0
    %v8165 = vadd.f32 0.0, %v8164
    %v8166 = vpop.f32.mrf.mxu0
    %8167 = vmatprep.mubr.f32.mxu0 0.0
    %8168 = vmatmul.mubr.f32.gmra.mxu0 %v6283
    %v8169 = vpop.f32.mrf.mxu0
    %v8170 = vadd.f32 0.0, %v8169
    %v8171 = vpop.f32.mrf.mxu0
    %8172 = vmatprep.mubr.f32.mxu0 0.0
    %8173 = vmatmul.mubr.f32.gmra.mxu0 %v6284
    %v8174 = vpop.f32.mrf.mxu0
    %v8175 = vadd.f32 0.0, %v8174
    %v8176 = vpop.f32.mrf.mxu0
    %8177 = vmatprep.mubr.f32.mxu0 0.0
    %8178 = vmatmul.mubr.f32.gmra.mxu0 %v6285
    %v8179 = vpop.f32.mrf.mxu0
    %v8180 = vadd.f32 0.0, %v8179
    %v8181 = vpop.f32.mrf.mxu0
    %8182 = vmatprep.mubr.f32.mxu0 0.0
    %8183 = vmatmul.mubr.f32.gmra.mxu0 %v6286
    %v8184 = vpop.f32.mrf.mxu0
    %v8185 = vadd.f32 0.0, %v8184
    %v8186 = vpop.f32.mrf.mxu0
    %8187 = vmatprep.mubr.f32.mxu0 0.0
    %8188 = vmatmul.mubr.f32.gmra.mxu0 %v6287
    %v8189 = vpop.f32.mrf.mxu0
    %v8190 = vadd.f32 0.0, %v8189
    %v8191 = vpop.f32.mrf.mxu0
    %8192 = vdwg.mxu0
    %s8193 = scalar_lea.vmem %s3, 768
    %v8194 = vld [vmem:[%s8193] sm:$0xff]
    %v8195 = vld [vmem:[%s8193 + $0x8] sm:$0xff]
    %v8196 = vld [vmem:[%s8193 + $0x10] sm:$0xff]
    %v8197 = vld [vmem:[%s8193 + $0x18] sm:$0xff]
    %v8198 = vld [vmem:[%s8193 + $0x20] sm:$0xff]
    %v8199 = vld [vmem:[%s8193 + $0x28] sm:$0xff]
    %v8200 = vld [vmem:[%s8193 + $0x30] sm:$0xff]
    %v8201 = vld [vmem:[%s8193 + $0x38] sm:$0xff]
    %v8202 = vld [vmem:[%s8193 + $0x40] sm:$0xff]
    %v8203 = vld [vmem:[%s8193 + $0x48] sm:$0xff]
    %v8204 = vld [vmem:[%s8193 + $0x50] sm:$0xff]
    %v8205 = vld [vmem:[%s8193 + $0x58] sm:$0xff]
    %v8206 = vld [vmem:[%s8193 + $0x60] sm:$0xff]
    %v8207 = vld [vmem:[%s8193 + $0x68] sm:$0xff]
    %v8208 = vld [vmem:[%s8193 + $0x70] sm:$0xff]
    %v8209 = vld [vmem:[%s8193 + $0x78] sm:$0xff]
    %8210 = vmatprep.subr.mxu0 0.0
    %8211 = vmatpush1.msra.mxu0 %v8190
    %8212 = vmatprep.subr.mxu0 0.0
    %8213 = vmatpush1.msra.mxu0 %v8185
    %8214 = vmatprep.subr.mxu0 0.0
    %8215 = vmatpush1.msra.mxu0 %v8180
    %8216 = vmatprep.subr.mxu0 0.0
    %8217 = vmatpush1.msra.mxu0 %v8175
    %8218 = vmatprep.subr.mxu0 0.0
    %8219 = vmatpush1.msra.mxu0 %v8170
    %8220 = vmatprep.subr.mxu0 0.0
    %8221 = vmatpush1.msra.mxu0 %v8165
    %8222 = vmatprep.subr.mxu0 0.0
    %8223 = vmatpush1.msra.mxu0 %v8160
    %8224 = vmatprep.subr.mxu0 0.0
    %8225 = vmatpush1.msra.mxu0 %v8155
    %8226 = vmatprep.subr.mxu0 0.0
    %8227 = vmatpush1.msra.mxu0 %v8150
    %8228 = vmatprep.subr.mxu0 0.0
    %8229 = vmatpush1.msra.mxu0 %v8145
    %8230 = vmatprep.subr.mxu0 0.0
    %8231 = vmatpush1.msra.mxu0 %v8140
    %8232 = vmatprep.subr.mxu0 0.0
    %8233 = vmatpush1.msra.mxu0 %v8135
    %8234 = vmatprep.subr.mxu0 0.0
    %8235 = vmatpush1.msra.mxu0 %v8130
    %8236 = vmatprep.subr.mxu0 0.0
    %8237 = vmatpush1.msra.mxu0 %v8125
    %8238 = vmatprep.subr.mxu0 0.0
    %8239 = vmatpush1.msra.mxu0 %v8120
    %8240 = vmatprep.subr.mxu0 0.0
    %8241 = vmatpush1.msra.mxu0 %v8115
    %8242 = vmatprep.subr.mxu0 0.0
    %8243 = vmatpush2.msra.mxu0 0.0
    %8244 = vmatprep.subr.mxu0 0.0
    %8245 = vmatpush2.msra.mxu0 0.0
    %8246 = vmatprep.subr.mxu0 0.0
    %8247 = vmatpush2.msra.mxu0 0.0
    %8248 = vmatprep.subr.mxu0 0.0
    %8249 = vmatpush2.msra.mxu0 0.0
    %8250 = vmatprep.subr.mxu0 0.0
    %8251 = vmatpush2.msra.mxu0 0.0
    %8252 = vmatprep.subr.mxu0 0.0
    %8253 = vmatpush2.msra.mxu0 0.0
    %8254 = vmatprep.subr.mxu0 0.0
    %8255 = vmatpush2.msra.mxu0 0.0
    %8256 = vmatprep.subr.mxu0 0.0
    %8257 = vmatpush2.msra.mxu0 0.0
    %8258 = vmatprep.subr.mxu0 0.0
    %8259 = vmatpush2.msra.mxu0 0.0
    %8260 = vmatprep.subr.mxu0 0.0
    %8261 = vmatpush2.msra.mxu0 0.0
    %8262 = vmatprep.subr.mxu0 0.0
    %8263 = vmatpush2.msra.mxu0 0.0
    %8264 = vmatprep.subr.mxu0 0.0
    %8265 = vmatpush2.msra.mxu0 0.0
    %8266 = vmatprep.subr.mxu0 0.0
    %8267 = vmatpush2.msra.mxu0 0.0
    %8268 = vmatprep.subr.mxu0 0.0
    %8269 = vmatpush2.msra.mxu0 0.0
    %8270 = vmatprep.subr.mxu0 0.0
    %8271 = vmatpush2.msra.mxu0 0.0
    %8272 = vmatprep.subr.mxu0 0.0
    %8273 = vmatpush2.msra.mxu0 0.0
    %8274 = vmatprep.mubr.f32.mxu0 0.0
    %8275 = vmatmul.mubr.f32.gmra.mxu0 %v8194
    %v8276 = vpop.f32.mrf.mxu0
    %v8277 = vadd.f32 0.0, %v8276
    %v8278 = vpop.f32.mrf.mxu0
    %8279 = vmatprep.mubr.f32.mxu0 0.0
    %8280 = vmatmul.mubr.f32.gmra.mxu0 %v8195
    %v8281 = vpop.f32.mrf.mxu0
    %v8282 = vadd.f32 0.0, %v8281
    %v8283 = vpop.f32.mrf.mxu0
    %8284 = vmatprep.mubr.f32.mxu0 0.0
    %8285 = vmatmul.mubr.f32.gmra.mxu0 %v8196
    %v8286 = vpop.f32.mrf.mxu0
    %v8287 = vadd.f32 0.0, %v8286
    %v8288 = vpop.f32.mrf.mxu0
    %8289 = vmatprep.mubr.f32.mxu0 0.0
    %8290 = vmatmul.mubr.f32.gmra.mxu0 %v8197
    %v8291 = vpop.f32.mrf.mxu0
    %v8292 = vadd.f32 0.0, %v8291
    %v8293 = vpop.f32.mrf.mxu0
    %8294 = vmatprep.mubr.f32.mxu0 0.0
    %8295 = vmatmul.mubr.f32.gmra.mxu0 %v8198
    %v8296 = vpop.f32.mrf.mxu0
    %v8297 = vadd.f32 0.0, %v8296
    %v8298 = vpop.f32.mrf.mxu0
    %8299 = vmatprep.mubr.f32.mxu0 0.0
    %8300 = vmatmul.mubr.f32.gmra.mxu0 %v8199
    %v8301 = vpop.f32.mrf.mxu0
    %v8302 = vadd.f32 0.0, %v8301
    %v8303 = vpop.f32.mrf.mxu0
    %8304 = vmatprep.mubr.f32.mxu0 0.0
    %8305 = vmatmul.mubr.f32.gmra.mxu0 %v8200
    %v8306 = vpop.f32.mrf.mxu0
    %v8307 = vadd.f32 0.0, %v8306
    %v8308 = vpop.f32.mrf.mxu0
    %8309 = vmatprep.mubr.f32.mxu0 0.0
    %8310 = vmatmul.mubr.f32.gmra.mxu0 %v8201
    %v8311 = vpop.f32.mrf.mxu0
    %v8312 = vadd.f32 0.0, %v8311
    %v8313 = vpop.f32.mrf.mxu0
    %8314 = vmatprep.mubr.f32.mxu0 0.0
    %8315 = vmatmul.mubr.f32.gmra.mxu0 %v8202
    %v8316 = vpop.f32.mrf.mxu0
    %v8317 = vadd.f32 0.0, %v8316
    %v8318 = vpop.f32.mrf.mxu0
    %8319 = vmatprep.mubr.f32.mxu0 0.0
    %8320 = vmatmul.mubr.f32.gmra.mxu0 %v8203
    %v8321 = vpop.f32.mrf.mxu0
    %v8322 = vadd.f32 0.0, %v8321
    %v8323 = vpop.f32.mrf.mxu0
    %8324 = vmatprep.mubr.f32.mxu0 0.0
    %8325 = vmatmul.mubr.f32.gmra.mxu0 %v8204
    %v8326 = vpop.f32.mrf.mxu0
    %v8327 = vadd.f32 0.0, %v8326
    %v8328 = vpop.f32.mrf.mxu0
    %8329 = vmatprep.mubr.f32.mxu0 0.0
    %8330 = vmatmul.mubr.f32.gmra.mxu0 %v8205
    %v8331 = vpop.f32.mrf.mxu0
    %v8332 = vadd.f32 0.0, %v8331
    %v8333 = vpop.f32.mrf.mxu0
    %8334 = vmatprep.mubr.f32.mxu0 0.0
    %8335 = vmatmul.mubr.f32.gmra.mxu0 %v8206
    %v8336 = vpop.f32.mrf.mxu0
    %v8337 = vadd.f32 0.0, %v8336
    %v8338 = vpop.f32.mrf.mxu0
    %8339 = vmatprep.mubr.f32.mxu0 0.0
    %8340 = vmatmul.mubr.f32.gmra.mxu0 %v8207
    %v8341 = vpop.f32.mrf.mxu0
    %v8342 = vadd.f32 0.0, %v8341
    %v8343 = vpop.f32.mrf.mxu0
    %8344 = vmatprep.mubr.f32.mxu0 0.0
    %8345 = vmatmul.mubr.f32.gmra.mxu0 %v8208
    %v8346 = vpop.f32.mrf.mxu0
    %v8347 = vadd.f32 0.0, %v8346
    %v8348 = vpop.f32.mrf.mxu0
    %8349 = vmatprep.mubr.f32.mxu0 0.0
    %8350 = vmatmul.mubr.f32.gmra.mxu0 %v8209
    %v8351 = vpop.f32.mrf.mxu0
    %v8352 = vadd.f32 0.0, %v8351
    %v8353 = vpop.f32.mrf.mxu0
    %8354 = vdwg.mxu0
    %v8355 = vadd.f32 %v8032, %v8277
    %v8356 = vadd.f32 %v8033, %v8282
    %v8357 = vadd.f32 %v8034, %v8287
    %v8358 = vadd.f32 %v8035, %v8292
    %v8359 = vadd.f32 %v8036, %v8297
    %v8360 = vadd.f32 %v8037, %v8302
    %v8361 = vadd.f32 %v8038, %v8307
    %v8362 = vadd.f32 %v8039, %v8312
    %v8363 = vadd.f32 %v8040, %v8317
    %v8364 = vadd.f32 %v8041, %v8322
    %v8365 = vadd.f32 %v8042, %v8327
    %v8366 = vadd.f32 %v8043, %v8332
    %v8367 = vadd.f32 %v8044, %v8337
    %v8368 = vadd.f32 %v8045, %v8342
    %v8369 = vadd.f32 %v8046, %v8347
    %v8370 = vadd.f32 %v8047, %v8352
    %8371 = vmatprep.subr.mxu0 0.0
    %8372 = vmatpush1.msra.mxu0 %v4106
    %8373 = vmatprep.subr.mxu0 0.0
    %8374 = vmatpush1.msra.mxu0 %v4105
    %8375 = vmatprep.subr.mxu0 0.0
    %8376 = vmatpush1.msra.mxu0 %v4104
    %8377 = vmatprep.subr.mxu0 0.0
    %8378 = vmatpush1.msra.mxu0 %v4103
    %8379 = vmatprep.subr.mxu0 0.0
    %8380 = vmatpush1.msra.mxu0 %v4102
    %8381 = vmatprep.subr.mxu0 0.0
    %8382 = vmatpush1.msra.mxu0 %v4101
    %8383 = vmatprep.subr.mxu0 0.0
    %8384 = vmatpush1.msra.mxu0 %v4100
    %8385 = vmatprep.subr.mxu0 0.0
    %8386 = vmatpush1.msra.mxu0 %v4099
    %8387 = vmatprep.subr.mxu0 0.0
    %8388 = vmatpush1.msra.mxu0 %v4098
    %8389 = vmatprep.subr.mxu0 0.0
    %8390 = vmatpush1.msra.mxu0 %v4097
    %8391 = vmatprep.subr.mxu0 0.0
    %8392 = vmatpush1.msra.mxu0 %v4096
    %8393 = vmatprep.subr.mxu0 0.0
    %8394 = vmatpush1.msra.mxu0 %v4095
    %8395 = vmatprep.subr.mxu0 0.0
    %8396 = vmatpush1.msra.mxu0 %v4094
    %8397 = vmatprep.subr.mxu0 0.0
    %8398 = vmatpush1.msra.mxu0 %v4093
    %8399 = vmatprep.subr.mxu0 0.0
    %8400 = vmatpush1.msra.mxu0 %v4092
    %8401 = vmatprep.subr.mxu0 0.0
    %8402 = vmatpush1.msra.mxu0 %v4091
    %8403 = vmatprep.subr.mxu0 0.0
    %8404 = vmatpush2.msra.mxu0 0.0
    %8405 = vmatprep.subr.mxu0 0.0
    %8406 = vmatpush2.msra.mxu0 0.0
    %8407 = vmatprep.subr.mxu0 0.0
    %8408 = vmatpush2.msra.mxu0 0.0
    %8409 = vmatprep.subr.mxu0 0.0
    %8410 = vmatpush2.msra.mxu0 0.0
    %8411 = vmatprep.subr.mxu0 0.0
    %8412 = vmatpush2.msra.mxu0 0.0
    %8413 = vmatprep.subr.mxu0 0.0
    %8414 = vmatpush2.msra.mxu0 0.0
    %8415 = vmatprep.subr.mxu0 0.0
    %8416 = vmatpush2.msra.mxu0 0.0
    %8417 = vmatprep.subr.mxu0 0.0
    %8418 = vmatpush2.msra.mxu0 0.0
    %8419 = vmatprep.subr.mxu0 0.0
    %8420 = vmatpush2.msra.mxu0 0.0
    %8421 = vmatprep.subr.mxu0 0.0
    %8422 = vmatpush2.msra.mxu0 0.0
    %8423 = vmatprep.subr.mxu0 0.0
    %8424 = vmatpush2.msra.mxu0 0.0
    %8425 = vmatprep.subr.mxu0 0.0
    %8426 = vmatpush2.msra.mxu0 0.0
    %8427 = vmatprep.subr.mxu0 0.0
    %8428 = vmatpush2.msra.mxu0 0.0
    %8429 = vmatprep.subr.mxu0 0.0
    %8430 = vmatpush2.msra.mxu0 0.0
    %8431 = vmatprep.subr.mxu0 0.0
    %8432 = vmatpush2.msra.mxu0 0.0
    %8433 = vmatprep.subr.mxu0 0.0
    %8434 = vmatpush2.msra.mxu0 0.0
    %8435 = vmatprep.mubr.f32.mxu0 0.0
    %8436 = vmatmul.mubr.f32.gmra.mxu0 %v6272
    %v8437 = vpop.f32.mrf.mxu0
    %v8438 = vadd.f32 0.0, %v8437
    %v8439 = vpop.f32.mrf.mxu0
    %8440 = vmatprep.mubr.f32.mxu0 0.0
    %8441 = vmatmul.mubr.f32.gmra.mxu0 %v6273
    %v8442 = vpop.f32.mrf.mxu0
    %v8443 = vadd.f32 0.0, %v8442
    %v8444 = vpop.f32.mrf.mxu0
    %8445 = vmatprep.mubr.f32.mxu0 0.0
    %8446 = vmatmul.mubr.f32.gmra.mxu0 %v6274
    %v8447 = vpop.f32.mrf.mxu0
    %v8448 = vadd.f32 0.0, %v8447
    %v8449 = vpop.f32.mrf.mxu0
    %8450 = vmatprep.mubr.f32.mxu0 0.0
    %8451 = vmatmul.mubr.f32.gmra.mxu0 %v6275
    %v8452 = vpop.f32.mrf.mxu0
    %v8453 = vadd.f32 0.0, %v8452
    %v8454 = vpop.f32.mrf.mxu0
    %8455 = vmatprep.mubr.f32.mxu0 0.0
    %8456 = vmatmul.mubr.f32.gmra.mxu0 %v6276
    %v8457 = vpop.f32.mrf.mxu0
    %v8458 = vadd.f32 0.0, %v8457
    %v8459 = vpop.f32.mrf.mxu0
    %8460 = vmatprep.mubr.f32.mxu0 0.0
    %8461 = vmatmul.mubr.f32.gmra.mxu0 %v6277
    %v8462 = vpop.f32.mrf.mxu0
    %v8463 = vadd.f32 0.0, %v8462
    %v8464 = vpop.f32.mrf.mxu0
    %8465 = vmatprep.mubr.f32.mxu0 0.0
    %8466 = vmatmul.mubr.f32.gmra.mxu0 %v6278
    %v8467 = vpop.f32.mrf.mxu0
    %v8468 = vadd.f32 0.0, %v8467
    %v8469 = vpop.f32.mrf.mxu0
    %8470 = vmatprep.mubr.f32.mxu0 0.0
    %8471 = vmatmul.mubr.f32.gmra.mxu0 %v6279
    %v8472 = vpop.f32.mrf.mxu0
    %v8473 = vadd.f32 0.0, %v8472
    %v8474 = vpop.f32.mrf.mxu0
    %8475 = vmatprep.mubr.f32.mxu0 0.0
    %8476 = vmatmul.mubr.f32.gmra.mxu0 %v6280
    %v8477 = vpop.f32.mrf.mxu0
    %v8478 = vadd.f32 0.0, %v8477
    %v8479 = vpop.f32.mrf.mxu0
    %8480 = vmatprep.mubr.f32.mxu0 0.0
    %8481 = vmatmul.mubr.f32.gmra.mxu0 %v6281
    %v8482 = vpop.f32.mrf.mxu0
    %v8483 = vadd.f32 0.0, %v8482
    %v8484 = vpop.f32.mrf.mxu0
    %8485 = vmatprep.mubr.f32.mxu0 0.0
    %8486 = vmatmul.mubr.f32.gmra.mxu0 %v6282
    %v8487 = vpop.f32.mrf.mxu0
    %v8488 = vadd.f32 0.0, %v8487
    %v8489 = vpop.f32.mrf.mxu0
    %8490 = vmatprep.mubr.f32.mxu0 0.0
    %8491 = vmatmul.mubr.f32.gmra.mxu0 %v6283
    %v8492 = vpop.f32.mrf.mxu0
    %v8493 = vadd.f32 0.0, %v8492
    %v8494 = vpop.f32.mrf.mxu0
    %8495 = vmatprep.mubr.f32.mxu0 0.0
    %8496 = vmatmul.mubr.f32.gmra.mxu0 %v6284
    %v8497 = vpop.f32.mrf.mxu0
    %v8498 = vadd.f32 0.0, %v8497
    %v8499 = vpop.f32.mrf.mxu0
    %8500 = vmatprep.mubr.f32.mxu0 0.0
    %8501 = vmatmul.mubr.f32.gmra.mxu0 %v6285
    %v8502 = vpop.f32.mrf.mxu0
    %v8503 = vadd.f32 0.0, %v8502
    %v8504 = vpop.f32.mrf.mxu0
    %8505 = vmatprep.mubr.f32.mxu0 0.0
    %8506 = vmatmul.mubr.f32.gmra.mxu0 %v6286
    %v8507 = vpop.f32.mrf.mxu0
    %v8508 = vadd.f32 0.0, %v8507
    %v8509 = vpop.f32.mrf.mxu0
    %8510 = vmatprep.mubr.f32.mxu0 0.0
    %8511 = vmatmul.mubr.f32.gmra.mxu0 %v6287
    %v8512 = vpop.f32.mrf.mxu0
    %v8513 = vadd.f32 0.0, %v8512
    %v8514 = vpop.f32.mrf.mxu0
    %8515 = vdwg.mxu0
    %s8516 = scalar_lea.vmem %s3, 896
    %v8517 = vld [vmem:[%s8516] sm:$0xff]
    %v8518 = vld [vmem:[%s8516 + $0x8] sm:$0xff]
    %v8519 = vld [vmem:[%s8516 + $0x10] sm:$0xff]
    %v8520 = vld [vmem:[%s8516 + $0x18] sm:$0xff]
    %v8521 = vld [vmem:[%s8516 + $0x20] sm:$0xff]
    %v8522 = vld [vmem:[%s8516 + $0x28] sm:$0xff]
    %v8523 = vld [vmem:[%s8516 + $0x30] sm:$0xff]
    %v8524 = vld [vmem:[%s8516 + $0x38] sm:$0xff]
    %v8525 = vld [vmem:[%s8516 + $0x40] sm:$0xff]
    %v8526 = vld [vmem:[%s8516 + $0x48] sm:$0xff]
    %v8527 = vld [vmem:[%s8516 + $0x50] sm:$0xff]
    %v8528 = vld [vmem:[%s8516 + $0x58] sm:$0xff]
    %v8529 = vld [vmem:[%s8516 + $0x60] sm:$0xff]
    %v8530 = vld [vmem:[%s8516 + $0x68] sm:$0xff]
    %v8531 = vld [vmem:[%s8516 + $0x70] sm:$0xff]
    %v8532 = vld [vmem:[%s8516 + $0x78] sm:$0xff]
    %8533 = vmatprep.subr.mxu0 0.0
    %8534 = vmatpush1.msra.mxu0 %v8513
    %8535 = vmatprep.subr.mxu0 0.0
    %8536 = vmatpush1.msra.mxu0 %v8508
    %8537 = vmatprep.subr.mxu0 0.0
    %8538 = vmatpush1.msra.mxu0 %v8503
    %8539 = vmatprep.subr.mxu0 0.0
    %8540 = vmatpush1.msra.mxu0 %v8498
    %8541 = vmatprep.subr.mxu0 0.0
    %8542 = vmatpush1.msra.mxu0 %v8493
    %8543 = vmatprep.subr.mxu0 0.0
    %8544 = vmatpush1.msra.mxu0 %v8488
    %8545 = vmatprep.subr.mxu0 0.0
    %8546 = vmatpush1.msra.mxu0 %v8483
    %8547 = vmatprep.subr.mxu0 0.0
    %8548 = vmatpush1.msra.mxu0 %v8478
    %8549 = vmatprep.subr.mxu0 0.0
    %8550 = vmatpush1.msra.mxu0 %v8473
    %8551 = vmatprep.subr.mxu0 0.0
    %8552 = vmatpush1.msra.mxu0 %v8468
    %8553 = vmatprep.subr.mxu0 0.0
    %8554 = vmatpush1.msra.mxu0 %v8463
    %8555 = vmatprep.subr.mxu0 0.0
    %8556 = vmatpush1.msra.mxu0 %v8458
    %8557 = vmatprep.subr.mxu0 0.0
    %8558 = vmatpush1.msra.mxu0 %v8453
    %8559 = vmatprep.subr.mxu0 0.0
    %8560 = vmatpush1.msra.mxu0 %v8448
    %8561 = vmatprep.subr.mxu0 0.0
    %8562 = vmatpush1.msra.mxu0 %v8443
    %8563 = vmatprep.subr.mxu0 0.0
    %8564 = vmatpush1.msra.mxu0 %v8438
    %8565 = vmatprep.subr.mxu0 0.0
    %8566 = vmatpush2.msra.mxu0 0.0
    %8567 = vmatprep.subr.mxu0 0.0
    %8568 = vmatpush2.msra.mxu0 0.0
    %8569 = vmatprep.subr.mxu0 0.0
    %8570 = vmatpush2.msra.mxu0 0.0
    %8571 = vmatprep.subr.mxu0 0.0
    %8572 = vmatpush2.msra.mxu0 0.0
    %8573 = vmatprep.subr.mxu0 0.0
    %8574 = vmatpush2.msra.mxu0 0.0
    %8575 = vmatprep.subr.mxu0 0.0
    %8576 = vmatpush2.msra.mxu0 0.0
    %8577 = vmatprep.subr.mxu0 0.0
    %8578 = vmatpush2.msra.mxu0 0.0
    %8579 = vmatprep.subr.mxu0 0.0
    %8580 = vmatpush2.msra.mxu0 0.0
    %8581 = vmatprep.subr.mxu0 0.0
    %8582 = vmatpush2.msra.mxu0 0.0
    %8583 = vmatprep.subr.mxu0 0.0
    %8584 = vmatpush2.msra.mxu0 0.0
    %8585 = vmatprep.subr.mxu0 0.0
    %8586 = vmatpush2.msra.mxu0 0.0
    %8587 = vmatprep.subr.mxu0 0.0
    %8588 = vmatpush2.msra.mxu0 0.0
    %8589 = vmatprep.subr.mxu0 0.0
    %8590 = vmatpush2.msra.mxu0 0.0
    %8591 = vmatprep.subr.mxu0 0.0
    %8592 = vmatpush2.msra.mxu0 0.0
    %8593 = vmatprep.subr.mxu0 0.0
    %8594 = vmatpush2.msra.mxu0 0.0
    %8595 = vmatprep.subr.mxu0 0.0
    %8596 = vmatpush2.msra.mxu0 0.0
    %8597 = vmatprep.mubr.f32.mxu0 0.0
    %8598 = vmatmul.mubr.f32.gmra.mxu0 %v8517
    %v8599 = vpop.f32.mrf.mxu0
    %v8600 = vadd.f32 0.0, %v8599
    %v8601 = vpop.f32.mrf.mxu0
    %8602 = vmatprep.mubr.f32.mxu0 0.0
    %8603 = vmatmul.mubr.f32.gmra.mxu0 %v8518
    %v8604 = vpop.f32.mrf.mxu0
    %v8605 = vadd.f32 0.0, %v8604
    %v8606 = vpop.f32.mrf.mxu0
    %8607 = vmatprep.mubr.f32.mxu0 0.0
    %8608 = vmatmul.mubr.f32.gmra.mxu0 %v8519
    %v8609 = vpop.f32.mrf.mxu0
    %v8610 = vadd.f32 0.0, %v8609
    %v8611 = vpop.f32.mrf.mxu0
    %8612 = vmatprep.mubr.f32.mxu0 0.0
    %8613 = vmatmul.mubr.f32.gmra.mxu0 %v8520
    %v8614 = vpop.f32.mrf.mxu0
    %v8615 = vadd.f32 0.0, %v8614
    %v8616 = vpop.f32.mrf.mxu0
    %8617 = vmatprep.mubr.f32.mxu0 0.0
    %8618 = vmatmul.mubr.f32.gmra.mxu0 %v8521
    %v8619 = vpop.f32.mrf.mxu0
    %v8620 = vadd.f32 0.0, %v8619
    %v8621 = vpop.f32.mrf.mxu0
    %8622 = vmatprep.mubr.f32.mxu0 0.0
    %8623 = vmatmul.mubr.f32.gmra.mxu0 %v8522
    %v8624 = vpop.f32.mrf.mxu0
    %v8625 = vadd.f32 0.0, %v8624
    %v8626 = vpop.f32.mrf.mxu0
    %8627 = vmatprep.mubr.f32.mxu0 0.0
    %8628 = vmatmul.mubr.f32.gmra.mxu0 %v8523
    %v8629 = vpop.f32.mrf.mxu0
    %v8630 = vadd.f32 0.0, %v8629
    %v8631 = vpop.f32.mrf.mxu0
    %8632 = vmatprep.mubr.f32.mxu0 0.0
    %8633 = vmatmul.mubr.f32.gmra.mxu0 %v8524
    %v8634 = vpop.f32.mrf.mxu0
    %v8635 = vadd.f32 0.0, %v8634
    %v8636 = vpop.f32.mrf.mxu0
    %8637 = vmatprep.mubr.f32.mxu0 0.0
    %8638 = vmatmul.mubr.f32.gmra.mxu0 %v8525
    %v8639 = vpop.f32.mrf.mxu0
    %v8640 = vadd.f32 0.0, %v8639
    %v8641 = vpop.f32.mrf.mxu0
    %8642 = vmatprep.mubr.f32.mxu0 0.0
    %8643 = vmatmul.mubr.f32.gmra.mxu0 %v8526
    %v8644 = vpop.f32.mrf.mxu0
    %v8645 = vadd.f32 0.0, %v8644
    %v8646 = vpop.f32.mrf.mxu0
    %8647 = vmatprep.mubr.f32.mxu0 0.0
    %8648 = vmatmul.mubr.f32.gmra.mxu0 %v8527
    %v8649 = vpop.f32.mrf.mxu0
    %v8650 = vadd.f32 0.0, %v8649
    %v8651 = vpop.f32.mrf.mxu0
    %8652 = vmatprep.mubr.f32.mxu0 0.0
    %8653 = vmatmul.mubr.f32.gmra.mxu0 %v8528
    %v8654 = vpop.f32.mrf.mxu0
    %v8655 = vadd.f32 0.0, %v8654
    %v8656 = vpop.f32.mrf.mxu0
    %8657 = vmatprep.mubr.f32.mxu0 0.0
    %8658 = vmatmul.mubr.f32.gmra.mxu0 %v8529
    %v8659 = vpop.f32.mrf.mxu0
    %v8660 = vadd.f32 0.0, %v8659
    %v8661 = vpop.f32.mrf.mxu0
    %8662 = vmatprep.mubr.f32.mxu0 0.0
    %8663 = vmatmul.mubr.f32.gmra.mxu0 %v8530
    %v8664 = vpop.f32.mrf.mxu0
    %v8665 = vadd.f32 0.0, %v8664
    %v8666 = vpop.f32.mrf.mxu0
    %8667 = vmatprep.mubr.f32.mxu0 0.0
    %8668 = vmatmul.mubr.f32.gmra.mxu0 %v8531
    %v8669 = vpop.f32.mrf.mxu0
    %v8670 = vadd.f32 0.0, %v8669
    %v8671 = vpop.f32.mrf.mxu0
    %8672 = vmatprep.mubr.f32.mxu0 0.0
    %8673 = vmatmul.mubr.f32.gmra.mxu0 %v8532
    %v8674 = vpop.f32.mrf.mxu0
    %v8675 = vadd.f32 0.0, %v8674
    %v8676 = vpop.f32.mrf.mxu0
    %8677 = vdwg.mxu0
    %v8678 = vadd.f32 %v8355, %v8600
    %v8679 = vadd.f32 %v8356, %v8605
    %v8680 = vadd.f32 %v8357, %v8610
    %v8681 = vadd.f32 %v8358, %v8615
    %v8682 = vadd.f32 %v8359, %v8620
    %v8683 = vadd.f32 %v8360, %v8625
    %v8684 = vadd.f32 %v8361, %v8630
    %v8685 = vadd.f32 %v8362, %v8635
    %v8686 = vadd.f32 %v8363, %v8640
    %v8687 = vadd.f32 %v8364, %v8645
    %v8688 = vadd.f32 %v8365, %v8650
    %v8689 = vadd.f32 %v8366, %v8655
    %v8690 = vadd.f32 %v8367, %v8660
    %v8691 = vadd.f32 %v8368, %v8665
    %v8692 = vadd.f32 %v8369, %v8670
    %v8693 = vadd.f32 %v8370, %v8675
    %8694 = vmatprep.subr.mxu0 0.0
    %8695 = vmatpush1.msra.mxu0 %v4454
    %8696 = vmatprep.subr.mxu0 0.0
    %8697 = vmatpush1.msra.mxu0 %v4453
    %8698 = vmatprep.subr.mxu0 0.0
    %8699 = vmatpush1.msra.mxu0 %v4452
    %8700 = vmatprep.subr.mxu0 0.0
    %8701 = vmatpush1.msra.mxu0 %v4451
    %8702 = vmatprep.subr.mxu0 0.0
    %8703 = vmatpush1.msra.mxu0 %v4450
    %8704 = vmatprep.subr.mxu0 0.0
    %8705 = vmatpush1.msra.mxu0 %v4449
    %8706 = vmatprep.subr.mxu0 0.0
    %8707 = vmatpush1.msra.mxu0 %v4448
    %8708 = vmatprep.subr.mxu0 0.0
    %8709 = vmatpush1.msra.mxu0 %v4447
    %8710 = vmatprep.subr.mxu0 0.0
    %8711 = vmatpush1.msra.mxu0 %v4446
    %8712 = vmatprep.subr.mxu0 0.0
    %8713 = vmatpush1.msra.mxu0 %v4445
    %8714 = vmatprep.subr.mxu0 0.0
    %8715 = vmatpush1.msra.mxu0 %v4444
    %8716 = vmatprep.subr.mxu0 0.0
    %8717 = vmatpush1.msra.mxu0 %v4443
    %8718 = vmatprep.subr.mxu0 0.0
    %8719 = vmatpush1.msra.mxu0 %v4442
    %8720 = vmatprep.subr.mxu0 0.0
    %8721 = vmatpush1.msra.mxu0 %v4441
    %8722 = vmatprep.subr.mxu0 0.0
    %8723 = vmatpush1.msra.mxu0 %v4440
    %8724 = vmatprep.subr.mxu0 0.0
    %8725 = vmatpush1.msra.mxu0 %v4439
    %8726 = vmatprep.subr.mxu0 0.0
    %8727 = vmatpush2.msra.mxu0 0.0
    %8728 = vmatprep.subr.mxu0 0.0
    %8729 = vmatpush2.msra.mxu0 0.0
    %8730 = vmatprep.subr.mxu0 0.0
    %8731 = vmatpush2.msra.mxu0 0.0
    %8732 = vmatprep.subr.mxu0 0.0
    %8733 = vmatpush2.msra.mxu0 0.0
    %8734 = vmatprep.subr.mxu0 0.0
    %8735 = vmatpush2.msra.mxu0 0.0
    %8736 = vmatprep.subr.mxu0 0.0
    %8737 = vmatpush2.msra.mxu0 0.0
    %8738 = vmatprep.subr.mxu0 0.0
    %8739 = vmatpush2.msra.mxu0 0.0
    %8740 = vmatprep.subr.mxu0 0.0
    %8741 = vmatpush2.msra.mxu0 0.0
    %8742 = vmatprep.subr.mxu0 0.0
    %8743 = vmatpush2.msra.mxu0 0.0
    %8744 = vmatprep.subr.mxu0 0.0
    %8745 = vmatpush2.msra.mxu0 0.0
    %8746 = vmatprep.subr.mxu0 0.0
    %8747 = vmatpush2.msra.mxu0 0.0
    %8748 = vmatprep.subr.mxu0 0.0
    %8749 = vmatpush2.msra.mxu0 0.0
    %8750 = vmatprep.subr.mxu0 0.0
    %8751 = vmatpush2.msra.mxu0 0.0
    %8752 = vmatprep.subr.mxu0 0.0
    %8753 = vmatpush2.msra.mxu0 0.0
    %8754 = vmatprep.subr.mxu0 0.0
    %8755 = vmatpush2.msra.mxu0 0.0
    %8756 = vmatprep.subr.mxu0 0.0
    %8757 = vmatpush2.msra.mxu0 0.0
    %8758 = vmatprep.mubr.f32.mxu0 0.0
    %8759 = vmatmul.mubr.f32.gmra.mxu0 %v6272
    %v8760 = vpop.f32.mrf.mxu0
    %v8761 = vadd.f32 0.0, %v8760
    %v8762 = vpop.f32.mrf.mxu0
    %8763 = vmatprep.mubr.f32.mxu0 0.0
    %8764 = vmatmul.mubr.f32.gmra.mxu0 %v6273
    %v8765 = vpop.f32.mrf.mxu0
    %v8766 = vadd.f32 0.0, %v8765
    %v8767 = vpop.f32.mrf.mxu0
    %8768 = vmatprep.mubr.f32.mxu0 0.0
    %8769 = vmatmul.mubr.f32.gmra.mxu0 %v6274
    %v8770 = vpop.f32.mrf.mxu0
    %v8771 = vadd.f32 0.0, %v8770
    %v8772 = vpop.f32.mrf.mxu0
    %8773 = vmatprep.mubr.f32.mxu0 0.0
    %8774 = vmatmul.mubr.f32.gmra.mxu0 %v6275
    %v8775 = vpop.f32.mrf.mxu0
    %v8776 = vadd.f32 0.0, %v8775
    %v8777 = vpop.f32.mrf.mxu0
    %8778 = vmatprep.mubr.f32.mxu0 0.0
    %8779 = vmatmul.mubr.f32.gmra.mxu0 %v6276
    %v8780 = vpop.f32.mrf.mxu0
    %v8781 = vadd.f32 0.0, %v8780
    %v8782 = vpop.f32.mrf.mxu0
    %8783 = vmatprep.mubr.f32.mxu0 0.0
    %8784 = vmatmul.mubr.f32.gmra.mxu0 %v6277
    %v8785 = vpop.f32.mrf.mxu0
    %v8786 = vadd.f32 0.0, %v8785
    %v8787 = vpop.f32.mrf.mxu0
    %8788 = vmatprep.mubr.f32.mxu0 0.0
    %8789 = vmatmul.mubr.f32.gmra.mxu0 %v6278
    %v8790 = vpop.f32.mrf.mxu0
    %v8791 = vadd.f32 0.0, %v8790
    %v8792 = vpop.f32.mrf.mxu0
    %8793 = vmatprep.mubr.f32.mxu0 0.0
    %8794 = vmatmul.mubr.f32.gmra.mxu0 %v6279
    %v8795 = vpop.f32.mrf.mxu0
    %v8796 = vadd.f32 0.0, %v8795
    %v8797 = vpop.f32.mrf.mxu0
    %8798 = vmatprep.mubr.f32.mxu0 0.0
    %8799 = vmatmul.mubr.f32.gmra.mxu0 %v6280
    %v8800 = vpop.f32.mrf.mxu0
    %v8801 = vadd.f32 0.0, %v8800
    %v8802 = vpop.f32.mrf.mxu0
    %8803 = vmatprep.mubr.f32.mxu0 0.0
    %8804 = vmatmul.mubr.f32.gmra.mxu0 %v6281
    %v8805 = vpop.f32.mrf.mxu0
    %v8806 = vadd.f32 0.0, %v8805
    %v8807 = vpop.f32.mrf.mxu0
    %8808 = vmatprep.mubr.f32.mxu0 0.0
    %8809 = vmatmul.mubr.f32.gmra.mxu0 %v6282
    %v8810 = vpop.f32.mrf.mxu0
    %v8811 = vadd.f32 0.0, %v8810
    %v8812 = vpop.f32.mrf.mxu0
    %8813 = vmatprep.mubr.f32.mxu0 0.0
    %8814 = vmatmul.mubr.f32.gmra.mxu0 %v6283
    %v8815 = vpop.f32.mrf.mxu0
    %v8816 = vadd.f32 0.0, %v8815
    %v8817 = vpop.f32.mrf.mxu0
    %8818 = vmatprep.mubr.f32.mxu0 0.0
    %8819 = vmatmul.mubr.f32.gmra.mxu0 %v6284
    %v8820 = vpop.f32.mrf.mxu0
    %v8821 = vadd.f32 0.0, %v8820
    %v8822 = vpop.f32.mrf.mxu0
    %8823 = vmatprep.mubr.f32.mxu0 0.0
    %8824 = vmatmul.mubr.f32.gmra.mxu0 %v6285
    %v8825 = vpop.f32.mrf.mxu0
    %v8826 = vadd.f32 0.0, %v8825
    %v8827 = vpop.f32.mrf.mxu0
    %8828 = vmatprep.mubr.f32.mxu0 0.0
    %8829 = vmatmul.mubr.f32.gmra.mxu0 %v6286
    %v8830 = vpop.f32.mrf.mxu0
    %v8831 = vadd.f32 0.0, %v8830
    %v8832 = vpop.f32.mrf.mxu0
    %8833 = vmatprep.mubr.f32.mxu0 0.0
    %8834 = vmatmul.mubr.f32.gmra.mxu0 %v6287
    %v8835 = vpop.f32.mrf.mxu0
    %v8836 = vadd.f32 0.0, %v8835
    %v8837 = vpop.f32.mrf.mxu0
    %8838 = vdwg.mxu0
    %s8839 = scalar_lea.vmem %s3, 1024
    %v8840 = vld [vmem:[%s8839] sm:$0xff]
    %v8841 = vld [vmem:[%s8839 + $0x8] sm:$0xff]
    %v8842 = vld [vmem:[%s8839 + $0x10] sm:$0xff]
    %v8843 = vld [vmem:[%s8839 + $0x18] sm:$0xff]
    %v8844 = vld [vmem:[%s8839 + $0x20] sm:$0xff]
    %v8845 = vld [vmem:[%s8839 + $0x28] sm:$0xff]
    %v8846 = vld [vmem:[%s8839 + $0x30] sm:$0xff]
    %v8847 = vld [vmem:[%s8839 + $0x38] sm:$0xff]
    %v8848 = vld [vmem:[%s8839 + $0x40] sm:$0xff]
    %v8849 = vld [vmem:[%s8839 + $0x48] sm:$0xff]
    %v8850 = vld [vmem:[%s8839 + $0x50] sm:$0xff]
    %v8851 = vld [vmem:[%s8839 + $0x58] sm:$0xff]
    %v8852 = vld [vmem:[%s8839 + $0x60] sm:$0xff]
    %v8853 = vld [vmem:[%s8839 + $0x68] sm:$0xff]
    %v8854 = vld [vmem:[%s8839 + $0x70] sm:$0xff]
    %v8855 = vld [vmem:[%s8839 + $0x78] sm:$0xff]
    %8856 = vmatprep.subr.mxu0 0.0
    %8857 = vmatpush1.msra.mxu0 %v8836
    %8858 = vmatprep.subr.mxu0 0.0
    %8859 = vmatpush1.msra.mxu0 %v8831
    %8860 = vmatprep.subr.mxu0 0.0
    %8861 = vmatpush1.msra.mxu0 %v8826
    %8862 = vmatprep.subr.mxu0 0.0
    %8863 = vmatpush1.msra.mxu0 %v8821
    %8864 = vmatprep.subr.mxu0 0.0
    %8865 = vmatpush1.msra.mxu0 %v8816
    %8866 = vmatprep.subr.mxu0 0.0
    %8867 = vmatpush1.msra.mxu0 %v8811
    %8868 = vmatprep.subr.mxu0 0.0
    %8869 = vmatpush1.msra.mxu0 %v8806
    %8870 = vmatprep.subr.mxu0 0.0
    %8871 = vmatpush1.msra.mxu0 %v8801
    %8872 = vmatprep.subr.mxu0 0.0
    %8873 = vmatpush1.msra.mxu0 %v8796
    %8874 = vmatprep.subr.mxu0 0.0
    %8875 = vmatpush1.msra.mxu0 %v8791
    %8876 = vmatprep.subr.mxu0 0.0
    %8877 = vmatpush1.msra.mxu0 %v8786
    %8878 = vmatprep.subr.mxu0 0.0
    %8879 = vmatpush1.msra.mxu0 %v8781
    %8880 = vmatprep.subr.mxu0 0.0
    %8881 = vmatpush1.msra.mxu0 %v8776
    %8882 = vmatprep.subr.mxu0 0.0
    %8883 = vmatpush1.msra.mxu0 %v8771
    %8884 = vmatprep.subr.mxu0 0.0
    %8885 = vmatpush1.msra.mxu0 %v8766
    %8886 = vmatprep.subr.mxu0 0.0
    %8887 = vmatpush1.msra.mxu0 %v8761
    %8888 = vmatprep.subr.mxu0 0.0
    %8889 = vmatpush2.msra.mxu0 0.0
    %8890 = vmatprep.subr.mxu0 0.0
    %8891 = vmatpush2.msra.mxu0 0.0
    %8892 = vmatprep.subr.mxu0 0.0
    %8893 = vmatpush2.msra.mxu0 0.0
    %8894 = vmatprep.subr.mxu0 0.0
    %8895 = vmatpush2.msra.mxu0 0.0
    %8896 = vmatprep.subr.mxu0 0.0
    %8897 = vmatpush2.msra.mxu0 0.0
    %8898 = vmatprep.subr.mxu0 0.0
    %8899 = vmatpush2.msra.mxu0 0.0
    %8900 = vmatprep.subr.mxu0 0.0
    %8901 = vmatpush2.msra.mxu0 0.0
    %8902 = vmatprep.subr.mxu0 0.0
    %8903 = vmatpush2.msra.mxu0 0.0
    %8904 = vmatprep.subr.mxu0 0.0
    %8905 = vmatpush2.msra.mxu0 0.0
    %8906 = vmatprep.subr.mxu0 0.0
    %8907 = vmatpush2.msra.mxu0 0.0
    %8908 = vmatprep.subr.mxu0 0.0
    %8909 = vmatpush2.msra.mxu0 0.0
    %8910 = vmatprep.subr.mxu0 0.0
    %8911 = vmatpush2.msra.mxu0 0.0
    %8912 = vmatprep.subr.mxu0 0.0
    %8913 = vmatpush2.msra.mxu0 0.0
    %8914 = vmatprep.subr.mxu0 0.0
    %8915 = vmatpush2.msra.mxu0 0.0
    %8916 = vmatprep.subr.mxu0 0.0
    %8917 = vmatpush2.msra.mxu0 0.0
    %8918 = vmatprep.subr.mxu0 0.0
    %8919 = vmatpush2.msra.mxu0 0.0
    %8920 = vmatprep.mubr.f32.mxu0 0.0
    %8921 = vmatmul.mubr.f32.gmra.mxu0 %v8840
    %v8922 = vpop.f32.mrf.mxu0
    %v8923 = vadd.f32 0.0, %v8922
    %v8924 = vpop.f32.mrf.mxu0
    %8925 = vmatprep.mubr.f32.mxu0 0.0
    %8926 = vmatmul.mubr.f32.gmra.mxu0 %v8841
    %v8927 = vpop.f32.mrf.mxu0
    %v8928 = vadd.f32 0.0, %v8927
    %v8929 = vpop.f32.mrf.mxu0
    %8930 = vmatprep.mubr.f32.mxu0 0.0
    %8931 = vmatmul.mubr.f32.gmra.mxu0 %v8842
    %v8932 = vpop.f32.mrf.mxu0
    %v8933 = vadd.f32 0.0, %v8932
    %v8934 = vpop.f32.mrf.mxu0
    %8935 = vmatprep.mubr.f32.mxu0 0.0
    %8936 = vmatmul.mubr.f32.gmra.mxu0 %v8843
    %v8937 = vpop.f32.mrf.mxu0
    %v8938 = vadd.f32 0.0, %v8937
    %v8939 = vpop.f32.mrf.mxu0
    %8940 = vmatprep.mubr.f32.mxu0 0.0
    %8941 = vmatmul.mubr.f32.gmra.mxu0 %v8844
    %v8942 = vpop.f32.mrf.mxu0
    %v8943 = vadd.f32 0.0, %v8942
    %v8944 = vpop.f32.mrf.mxu0
    %8945 = vmatprep.mubr.f32.mxu0 0.0
    %8946 = vmatmul.mubr.f32.gmra.mxu0 %v8845
    %v8947 = vpop.f32.mrf.mxu0
    %v8948 = vadd.f32 0.0, %v8947
    %v8949 = vpop.f32.mrf.mxu0
    %8950 = vmatprep.mubr.f32.mxu0 0.0
    %8951 = vmatmul.mubr.f32.gmra.mxu0 %v8846
    %v8952 = vpop.f32.mrf.mxu0
    %v8953 = vadd.f32 0.0, %v8952
    %v8954 = vpop.f32.mrf.mxu0
    %8955 = vmatprep.mubr.f32.mxu0 0.0
    %8956 = vmatmul.mubr.f32.gmra.mxu0 %v8847
    %v8957 = vpop.f32.mrf.mxu0
    %v8958 = vadd.f32 0.0, %v8957
    %v8959 = vpop.f32.mrf.mxu0
    %8960 = vmatprep.mubr.f32.mxu0 0.0
    %8961 = vmatmul.mubr.f32.gmra.mxu0 %v8848
    %v8962 = vpop.f32.mrf.mxu0
    %v8963 = vadd.f32 0.0, %v8962
    %v8964 = vpop.f32.mrf.mxu0
    %8965 = vmatprep.mubr.f32.mxu0 0.0
    %8966 = vmatmul.mubr.f32.gmra.mxu0 %v8849
    %v8967 = vpop.f32.mrf.mxu0
    %v8968 = vadd.f32 0.0, %v8967
    %v8969 = vpop.f32.mrf.mxu0
    %8970 = vmatprep.mubr.f32.mxu0 0.0
    %8971 = vmatmul.mubr.f32.gmra.mxu0 %v8850
    %v8972 = vpop.f32.mrf.mxu0
    %v8973 = vadd.f32 0.0, %v8972
    %v8974 = vpop.f32.mrf.mxu0
    %8975 = vmatprep.mubr.f32.mxu0 0.0
    %8976 = vmatmul.mubr.f32.gmra.mxu0 %v8851
    %v8977 = vpop.f32.mrf.mxu0
    %v8978 = vadd.f32 0.0, %v8977
    %v8979 = vpop.f32.mrf.mxu0
    %8980 = vmatprep.mubr.f32.mxu0 0.0
    %8981 = vmatmul.mubr.f32.gmra.mxu0 %v8852
    %v8982 = vpop.f32.mrf.mxu0
    %v8983 = vadd.f32 0.0, %v8982
    %v8984 = vpop.f32.mrf.mxu0
    %8985 = vmatprep.mubr.f32.mxu0 0.0
    %8986 = vmatmul.mubr.f32.gmra.mxu0 %v8853
    %v8987 = vpop.f32.mrf.mxu0
    %v8988 = vadd.f32 0.0, %v8987
    %v8989 = vpop.f32.mrf.mxu0
    %8990 = vmatprep.mubr.f32.mxu0 0.0
    %8991 = vmatmul.mubr.f32.gmra.mxu0 %v8854
    %v8992 = vpop.f32.mrf.mxu0
    %v8993 = vadd.f32 0.0, %v8992
    %v8994 = vpop.f32.mrf.mxu0
    %8995 = vmatprep.mubr.f32.mxu0 0.0
    %8996 = vmatmul.mubr.f32.gmra.mxu0 %v8855
    %v8997 = vpop.f32.mrf.mxu0
    %v8998 = vadd.f32 0.0, %v8997
    %v8999 = vpop.f32.mrf.mxu0
    %9000 = vdwg.mxu0
    %v9001 = vadd.f32 %v8678, %v8923
    %v9002 = vadd.f32 %v8679, %v8928
    %v9003 = vadd.f32 %v8680, %v8933
    %v9004 = vadd.f32 %v8681, %v8938
    %v9005 = vadd.f32 %v8682, %v8943
    %v9006 = vadd.f32 %v8683, %v8948
    %v9007 = vadd.f32 %v8684, %v8953
    %v9008 = vadd.f32 %v8685, %v8958
    %v9009 = vadd.f32 %v8686, %v8963
    %v9010 = vadd.f32 %v8687, %v8968
    %v9011 = vadd.f32 %v8688, %v8973
    %v9012 = vadd.f32 %v8689, %v8978
    %v9013 = vadd.f32 %v8690, %v8983
    %v9014 = vadd.f32 %v8691, %v8988
    %v9015 = vadd.f32 %v8692, %v8993
    %v9016 = vadd.f32 %v8693, %v8998
    %9017 = vset.pattern.permute.xlu0 4
    %9018 = vperm.xlu0 %9017, %v54
    %v9019 = vpop.permute.xlu0 %9018
    %9021 = vset.pattern.permute.xlu0 4
    %9022 = vperm.xlu0 %9021, %v55
    %v9023 = vpop.permute.xlu0 %9022
    %9025 = vset.pattern.permute.xlu0 4
    %9026 = vperm.xlu0 %9025, %v56
    %v9027 = vpop.permute.xlu0 %9026
    %9029 = vset.pattern.permute.xlu0 4
    %9030 = vperm.xlu0 %9029, %v57
    %v9031 = vpop.permute.xlu0 %9030
    %9033 = vset.pattern.permute.xlu0 4
    %9034 = vperm.xlu0 %9033, %v58
    %v9035 = vpop.permute.xlu0 %9034
    %9037 = vset.pattern.permute.xlu0 4
    %9038 = vperm.xlu0 %9037, %v59
    %v9039 = vpop.permute.xlu0 %9038
    %9041 = vset.pattern.permute.xlu0 4
    %9042 = vperm.xlu0 %9041, %v60
    %v9043 = vpop.permute.xlu0 %9042
    %9045 = vset.pattern.permute.xlu0 4
    %9046 = vperm.xlu0 %9045, %v61
    %v9047 = vpop.permute.xlu0 %9046
    %9049 = vset.pattern.permute.xlu0 4
    %9050 = vperm.xlu0 %9049, %v62
    %v9051 = vpop.permute.xlu0 %9050
    %9053 = vset.pattern.permute.xlu0 4
    %9054 = vperm.xlu0 %9053, %v63
    %v9055 = vpop.permute.xlu0 %9054
    %9057 = vset.pattern.permute.xlu0 4
    %9058 = vperm.xlu0 %9057, %v64
    %v9059 = vpop.permute.xlu0 %9058
    %9061 = vset.pattern.permute.xlu0 4
    %9062 = vperm.xlu0 %9061, %v65
    %v9063 = vpop.permute.xlu0 %9062
    %9065 = vset.pattern.permute.xlu0 4
    %9066 = vperm.xlu0 %9065, %v66
    %v9067 = vpop.permute.xlu0 %9066
    %9069 = vset.pattern.permute.xlu0 4
    %9070 = vperm.xlu0 %9069, %v67
    %v9071 = vpop.permute.xlu0 %9070
    %9073 = vset.pattern.permute.xlu0 4
    %9074 = vperm.xlu0 %9073, %v68
    %v9075 = vpop.permute.xlu0 %9074
    %9077 = vset.pattern.permute.xlu0 4
    %9078 = vperm.xlu0 %9077, %v69
    %v9079 = vpop.permute.xlu0 %9078
    %v9081 = vadd.f32 %v9001, %v9019
    %v9082 = vadd.f32 %v9002, %v9023
    %v9083 = vadd.f32 %v9003, %v9027
    %v9084 = vadd.f32 %v9004, %v9031
    %v9085 = vadd.f32 %v9005, %v9035
    %v9086 = vadd.f32 %v9006, %v9039
    %v9087 = vadd.f32 %v9007, %v9043
    %v9088 = vadd.f32 %v9008, %v9047
    %v9089 = vadd.f32 %v9009, %v9051
    %v9090 = vadd.f32 %v9010, %v9055
    %v9091 = vadd.f32 %v9011, %v9059
    %v9092 = vadd.f32 %v9012, %v9063
    %v9093 = vadd.f32 %v9013, %v9067
    %v9094 = vadd.f32 %v9014, %v9071
    %v9095 = vadd.f32 %v9015, %v9075
    %v9096 = vadd.f32 %v9016, %v9079
    %v9097 = vld [vmem:[%s5] sm:$0xff]
    %v9098 = vld [vmem:[%s5 + $0x8] sm:$0xff]
    %v9099 = vld [vmem:[%s5 + $0x10] sm:$0xff]
    %v9100 = vld [vmem:[%s5 + $0x18] sm:$0xff]
    %v9101 = vld [vmem:[%s5 + $0x20] sm:$0xff]
    %v9102 = vld [vmem:[%s5 + $0x28] sm:$0xff]
    %v9103 = vld [vmem:[%s5 + $0x30] sm:$0xff]
    %v9104 = vld [vmem:[%s5 + $0x38] sm:$0xff]
    %v9105 = vld [vmem:[%s5 + $0x40] sm:$0xff]
    %v9106 = vld [vmem:[%s5 + $0x48] sm:$0xff]
    %v9107 = vld [vmem:[%s5 + $0x50] sm:$0xff]
    %v9108 = vld [vmem:[%s5 + $0x58] sm:$0xff]
    %v9109 = vld [vmem:[%s5 + $0x60] sm:$0xff]
    %v9110 = vld [vmem:[%s5 + $0x68] sm:$0xff]
    %v9111 = vld [vmem:[%s5 + $0x70] sm:$0xff]
    %v9112 = vld [vmem:[%s5 + $0x78] sm:$0xff]
    %v9114 = vsel %vm931, %v9097, 0
    %v9117 = vsel %vm931, %v9098, 0
    %v9120 = vsel %vm931, %v9099, 0
    %v9123 = vsel %vm931, %v9100, 0
    %v9126 = vsel %vm931, %v9101, 0
    %v9129 = vsel %vm931, %v9102, 0
    %v9132 = vsel %vm931, %v9103, 0
    %v9135 = vsel %vm931, %v9104, 0
    %v9138 = vsel %vm931, %v9105, 0
    %v9141 = vsel %vm931, %v9106, 0
    %v9144 = vsel %vm931, %v9107, 0
    %v9147 = vsel %vm931, %v9108, 0
    %v9150 = vsel %vm931, %v9109, 0
    %v9153 = vsel %vm931, %v9110, 0
    %v9156 = vsel %vm931, %v9111, 0
    %v9159 = vsel %vm931, %v9112, 0
    %9161 = vmatprep.subr.mxu0 0.0
    %9162 = vmatpush1.msra.mxu0 0.0
    %9163 = vmatprep.subr.mxu0 0.0
    %9164 = vmatpush1.msra.mxu0 0.0
    %9165 = vmatprep.subr.mxu0 0.0
    %9166 = vmatpush1.msra.mxu0 0.0
    %9167 = vmatprep.subr.mxu0 0.0
    %9168 = vmatpush1.msra.mxu0 0.0
    %9169 = vmatprep.subr.mxu0 0.0
    %9170 = vmatpush1.msra.mxu0 0.0
    %9171 = vmatprep.subr.mxu0 0.0
    %9172 = vmatpush1.msra.mxu0 0.0
    %9173 = vmatprep.subr.mxu0 0.0
    %9174 = vmatpush1.msra.mxu0 0.0
    %9175 = vmatprep.subr.mxu0 0.0
    %9176 = vmatpush1.msra.mxu0 0.0
    %9177 = vmatprep.subr.mxu0 0.0
    %9178 = vmatpush1.msra.mxu0 %v1187
    %9179 = vmatprep.subr.mxu0 0.0
    %9180 = vmatpush1.msra.mxu0 %v1182
    %9181 = vmatprep.subr.mxu0 0.0
    %9182 = vmatpush1.msra.mxu0 %v1177
    %9183 = vmatprep.subr.mxu0 0.0
    %9184 = vmatpush1.msra.mxu0 %v1172
    %9185 = vmatprep.subr.mxu0 0.0
    %9186 = vmatpush1.msra.mxu0 %v1167
    %9187 = vmatprep.subr.mxu0 0.0
    %9188 = vmatpush1.msra.mxu0 %v1162
    %9189 = vmatprep.subr.mxu0 0.0
    %9190 = vmatpush1.msra.mxu0 %v1157
    %9191 = vmatprep.subr.mxu0 0.0
    %9192 = vmatpush1.msra.mxu0 %v1152
    %9193 = vmatprep.subr.mxu0 0.0
    %9194 = vmatpush2.msra.mxu0 0.0
    %9195 = vmatprep.subr.mxu0 0.0
    %9196 = vmatpush2.msra.mxu0 0.0
    %9197 = vmatprep.subr.mxu0 0.0
    %9198 = vmatpush2.msra.mxu0 0.0
    %9199 = vmatprep.subr.mxu0 0.0
    %9200 = vmatpush2.msra.mxu0 0.0
    %9201 = vmatprep.subr.mxu0 0.0
    %9202 = vmatpush2.msra.mxu0 0.0
    %9203 = vmatprep.subr.mxu0 0.0
    %9204 = vmatpush2.msra.mxu0 0.0
    %9205 = vmatprep.subr.mxu0 0.0
    %9206 = vmatpush2.msra.mxu0 0.0
    %9207 = vmatprep.subr.mxu0 0.0
    %9208 = vmatpush2.msra.mxu0 0.0
    %9209 = vmatprep.subr.mxu0 0.0
    %9210 = vmatpush2.msra.mxu0 0.0
    %9211 = vmatprep.subr.mxu0 0.0
    %9212 = vmatpush2.msra.mxu0 0.0
    %9213 = vmatprep.subr.mxu0 0.0
    %9214 = vmatpush2.msra.mxu0 0.0
    %9215 = vmatprep.subr.mxu0 0.0
    %9216 = vmatpush2.msra.mxu0 0.0
    %9217 = vmatprep.subr.mxu0 0.0
    %9218 = vmatpush2.msra.mxu0 0.0
    %9219 = vmatprep.subr.mxu0 0.0
    %9220 = vmatpush2.msra.mxu0 0.0
    %9221 = vmatprep.subr.mxu0 0.0
    %9222 = vmatpush2.msra.mxu0 0.0
    %9223 = vmatprep.subr.mxu0 0.0
    %9224 = vmatpush2.msra.mxu0 0.0
    %9225 = vmatprep.mubr.f32.mxu0 0.0
    %9226 = vmatmul.mubr.f32.gmra.mxu0 %v9114
    %v9227 = vpop.f32.mrf.mxu0
    %v9228 = vadd.f32 0.0, %v9227
    %v9229 = vpop.f32.mrf.mxu0
    %9230 = vmatprep.mubr.f32.mxu0 0.0
    %9231 = vmatmul.mubr.f32.gmra.mxu0 %v9117
    %v9232 = vpop.f32.mrf.mxu0
    %v9233 = vadd.f32 0.0, %v9232
    %v9234 = vpop.f32.mrf.mxu0
    %9235 = vmatprep.mubr.f32.mxu0 0.0
    %9236 = vmatmul.mubr.f32.gmra.mxu0 %v9120
    %v9237 = vpop.f32.mrf.mxu0
    %v9238 = vadd.f32 0.0, %v9237
    %v9239 = vpop.f32.mrf.mxu0
    %9240 = vmatprep.mubr.f32.mxu0 0.0
    %9241 = vmatmul.mubr.f32.gmra.mxu0 %v9123
    %v9242 = vpop.f32.mrf.mxu0
    %v9243 = vadd.f32 0.0, %v9242
    %v9244 = vpop.f32.mrf.mxu0
    %9245 = vmatprep.mubr.f32.mxu0 0.0
    %9246 = vmatmul.mubr.f32.gmra.mxu0 %v9126
    %v9247 = vpop.f32.mrf.mxu0
    %v9248 = vadd.f32 0.0, %v9247
    %v9249 = vpop.f32.mrf.mxu0
    %9250 = vmatprep.mubr.f32.mxu0 0.0
    %9251 = vmatmul.mubr.f32.gmra.mxu0 %v9129
    %v9252 = vpop.f32.mrf.mxu0
    %v9253 = vadd.f32 0.0, %v9252
    %v9254 = vpop.f32.mrf.mxu0
    %9255 = vmatprep.mubr.f32.mxu0 0.0
    %9256 = vmatmul.mubr.f32.gmra.mxu0 %v9132
    %v9257 = vpop.f32.mrf.mxu0
    %v9258 = vadd.f32 0.0, %v9257
    %v9259 = vpop.f32.mrf.mxu0
    %9260 = vmatprep.mubr.f32.mxu0 0.0
    %9261 = vmatmul.mubr.f32.gmra.mxu0 %v9135
    %v9262 = vpop.f32.mrf.mxu0
    %v9263 = vadd.f32 0.0, %v9262
    %v9264 = vpop.f32.mrf.mxu0
    %9265 = vmatprep.mubr.f32.mxu0 0.0
    %9266 = vmatmul.mubr.f32.gmra.mxu0 %v9138
    %v9267 = vpop.f32.mrf.mxu0
    %v9268 = vadd.f32 0.0, %v9267
    %v9269 = vpop.f32.mrf.mxu0
    %9270 = vmatprep.mubr.f32.mxu0 0.0
    %9271 = vmatmul.mubr.f32.gmra.mxu0 %v9141
    %v9272 = vpop.f32.mrf.mxu0
    %v9273 = vadd.f32 0.0, %v9272
    %v9274 = vpop.f32.mrf.mxu0
    %9275 = vmatprep.mubr.f32.mxu0 0.0
    %9276 = vmatmul.mubr.f32.gmra.mxu0 %v9144
    %v9277 = vpop.f32.mrf.mxu0
    %v9278 = vadd.f32 0.0, %v9277
    %v9279 = vpop.f32.mrf.mxu0
    %9280 = vmatprep.mubr.f32.mxu0 0.0
    %9281 = vmatmul.mubr.f32.gmra.mxu0 %v9147
    %v9282 = vpop.f32.mrf.mxu0
    %v9283 = vadd.f32 0.0, %v9282
    %v9284 = vpop.f32.mrf.mxu0
    %9285 = vmatprep.mubr.f32.mxu0 0.0
    %9286 = vmatmul.mubr.f32.gmra.mxu0 %v9150
    %v9287 = vpop.f32.mrf.mxu0
    %v9288 = vadd.f32 0.0, %v9287
    %v9289 = vpop.f32.mrf.mxu0
    %9290 = vmatprep.mubr.f32.mxu0 0.0
    %9291 = vmatmul.mubr.f32.gmra.mxu0 %v9153
    %v9292 = vpop.f32.mrf.mxu0
    %v9293 = vadd.f32 0.0, %v9292
    %v9294 = vpop.f32.mrf.mxu0
    %9295 = vmatprep.mubr.f32.mxu0 0.0
    %9296 = vmatmul.mubr.f32.gmra.mxu0 %v9156
    %v9297 = vpop.f32.mrf.mxu0
    %v9298 = vadd.f32 0.0, %v9297
    %v9299 = vpop.f32.mrf.mxu0
    %9300 = vmatprep.mubr.f32.mxu0 0.0
    %9301 = vmatmul.mubr.f32.gmra.mxu0 %v9159
    %v9302 = vpop.f32.mrf.mxu0
    %v9303 = vadd.f32 0.0, %v9302
    %v9304 = vpop.f32.mrf.mxu0
    %9305 = vdwg.mxu0
    %v9306 = vadd.f32 %v9081, %v9228
    %v9307 = vadd.f32 %v9082, %v9233
    %v9308 = vadd.f32 %v9083, %v9238
    %v9309 = vadd.f32 %v9084, %v9243
    %v9310 = vadd.f32 %v9085, %v9248
    %v9311 = vadd.f32 %v9086, %v9253
    %v9312 = vadd.f32 %v9087, %v9258
    %v9313 = vadd.f32 %v9088, %v9263
    %v9314 = vadd.f32 %v9089, %v9268
    %v9315 = vadd.f32 %v9090, %v9273
    %v9316 = vadd.f32 %v9091, %v9278
    %v9317 = vadd.f32 %v9092, %v9283
    %v9318 = vadd.f32 %v9093, %v9288
    %v9319 = vadd.f32 %v9094, %v9293
    %v9320 = vadd.f32 %v9095, %v9298
    %v9321 = vadd.f32 %v9096, %v9303
    %9322 = vset.pattern.permute.xlu0 5
    %9323 = vperm.xlu0 %9322, %v54
    %v9324 = vpop.permute.xlu0 %9323
    %9326 = vset.pattern.permute.xlu0 5
    %9327 = vperm.xlu0 %9326, %v55
    %v9328 = vpop.permute.xlu0 %9327
    %9330 = vset.pattern.permute.xlu0 5
    %9331 = vperm.xlu0 %9330, %v56
    %v9332 = vpop.permute.xlu0 %9331
    %9334 = vset.pattern.permute.xlu0 5
    %9335 = vperm.xlu0 %9334, %v57
    %v9336 = vpop.permute.xlu0 %9335
    %9338 = vset.pattern.permute.xlu0 5
    %9339 = vperm.xlu0 %9338, %v58
    %v9340 = vpop.permute.xlu0 %9339
    %9342 = vset.pattern.permute.xlu0 5
    %9343 = vperm.xlu0 %9342, %v59
    %v9344 = vpop.permute.xlu0 %9343
    %9346 = vset.pattern.permute.xlu0 5
    %9347 = vperm.xlu0 %9346, %v60
    %v9348 = vpop.permute.xlu0 %9347
    %9350 = vset.pattern.permute.xlu0 5
    %9351 = vperm.xlu0 %9350, %v61
    %v9352 = vpop.permute.xlu0 %9351
    %9354 = vset.pattern.permute.xlu0 5
    %9355 = vperm.xlu0 %9354, %v62
    %v9356 = vpop.permute.xlu0 %9355
    %9358 = vset.pattern.permute.xlu0 5
    %9359 = vperm.xlu0 %9358, %v63
    %v9360 = vpop.permute.xlu0 %9359
    %9362 = vset.pattern.permute.xlu0 5
    %9363 = vperm.xlu0 %9362, %v64
    %v9364 = vpop.permute.xlu0 %9363
    %9366 = vset.pattern.permute.xlu0 5
    %9367 = vperm.xlu0 %9366, %v65
    %v9368 = vpop.permute.xlu0 %9367
    %9370 = vset.pattern.permute.xlu0 5
    %9371 = vperm.xlu0 %9370, %v66
    %v9372 = vpop.permute.xlu0 %9371
    %9374 = vset.pattern.permute.xlu0 5
    %9375 = vperm.xlu0 %9374, %v67
    %v9376 = vpop.permute.xlu0 %9375
    %9378 = vset.pattern.permute.xlu0 5
    %9379 = vperm.xlu0 %9378, %v68
    %v9380 = vpop.permute.xlu0 %9379
    %9382 = vset.pattern.permute.xlu0 5
    %9383 = vperm.xlu0 %9382, %v69
    %v9384 = vpop.permute.xlu0 %9383
    %v9386 = vadd.f32 %v9306, %v9324
    %v9387 = vadd.f32 %v9307, %v9328
    %v9388 = vadd.f32 %v9308, %v9332
    %v9389 = vadd.f32 %v9309, %v9336
    %v9390 = vadd.f32 %v9310, %v9340
    %v9391 = vadd.f32 %v9311, %v9344
    %v9392 = vadd.f32 %v9312, %v9348
    %v9393 = vadd.f32 %v9313, %v9352
    %v9394 = vadd.f32 %v9314, %v9356
    %v9395 = vadd.f32 %v9315, %v9360
    %v9396 = vadd.f32 %v9316, %v9364
    %v9397 = vadd.f32 %v9317, %v9368
    %v9398 = vadd.f32 %v9318, %v9372
    %v9399 = vadd.f32 %v9319, %v9376
    %v9400 = vadd.f32 %v9320, %v9380
    %v9401 = vadd.f32 %v9321, %v9384
    %9402 = vst.msk [vmem:[%s9] sm:$0xff] %vm931, %v9386
    %9403 = vst.msk [vmem:[%s9 + $0x8] sm:$0xff] %vm931, %v9387
    %9404 = vst.msk [vmem:[%s9 + $0x10] sm:$0xff] %vm931, %v9388
    %9405 = vst.msk [vmem:[%s9 + $0x18] sm:$0xff] %vm931, %v9389
    %9406 = vst.msk [vmem:[%s9 + $0x20] sm:$0xff] %vm931, %v9390
    %9407 = vst.msk [vmem:[%s9 + $0x28] sm:$0xff] %vm931, %v9391
    %9408 = vst.msk [vmem:[%s9 + $0x30] sm:$0xff] %vm931, %v9392
    %9409 = vst.msk [vmem:[%s9 + $0x38] sm:$0xff] %vm931, %v9393
    %9410 = vst.msk [vmem:[%s9 + $0x40] sm:$0xff] %vm931, %v9394
    %9411 = vst.msk [vmem:[%s9 + $0x48] sm:$0xff] %vm931, %v9395
    %9412 = vst.msk [vmem:[%s9 + $0x50] sm:$0xff] %vm931, %v9396
    %9413 = vst.msk [vmem:[%s9 + $0x58] sm:$0xff] %vm931, %v9397
    %9414 = vst.msk [vmem:[%s9 + $0x60] sm:$0xff] %vm931, %v9398
    %9415 = vst.msk [vmem:[%s9 + $0x68] sm:$0xff] %vm931, %v9399
    %9416 = vst.msk [vmem:[%s9 + $0x70] sm:$0xff] %vm931, %v9400
    %9417 = vst.msk [vmem:[%s9 + $0x78] sm:$0xff] %vm931, %v9401
    %9434 = vrot.lane.b32.xlu0 %v9386, 64
    %v9435 = vpop.permute.xlu0 %9434
    %9436 = vrot.lane.b32.xlu0 %v9387, 64
    %v9437 = vpop.permute.xlu0 %9436
    %9438 = vrot.lane.b32.xlu0 %v9388, 64
    %v9439 = vpop.permute.xlu0 %9438
    %9440 = vrot.lane.b32.xlu0 %v9389, 64
    %v9441 = vpop.permute.xlu0 %9440
    %9442 = vrot.lane.b32.xlu0 %v9390, 64
    %v9443 = vpop.permute.xlu0 %9442
    %9444 = vrot.lane.b32.xlu0 %v9391, 64
    %v9445 = vpop.permute.xlu0 %9444
    %9446 = vrot.lane.b32.xlu0 %v9392, 64
    %v9447 = vpop.permute.xlu0 %9446
    %9448 = vrot.lane.b32.xlu0 %v9393, 64
    %v9449 = vpop.permute.xlu0 %9448
    %9450 = vrot.lane.b32.xlu0 %v9394, 64
    %v9451 = vpop.permute.xlu0 %9450
    %9452 = vrot.lane.b32.xlu0 %v9395, 64
    %v9453 = vpop.permute.xlu0 %9452
    %9454 = vrot.lane.b32.xlu0 %v9396, 64
    %v9455 = vpop.permute.xlu0 %9454
    %9456 = vrot.lane.b32.xlu0 %v9397, 64
    %v9457 = vpop.permute.xlu0 %9456
    %9458 = vrot.lane.b32.xlu0 %v9398, 64
    %v9459 = vpop.permute.xlu0 %9458
    %9460 = vrot.lane.b32.xlu0 %v9399, 64
    %v9461 = vpop.permute.xlu0 %9460
    %9462 = vrot.lane.b32.xlu0 %v9400, 64
    %v9463 = vpop.permute.xlu0 %9462
    %9464 = vrot.lane.b32.xlu0 %v9401, 64
    %v9465 = vpop.permute.xlu0 %9464
    %s9482 = scalar_lea.vmem %s9, 128
    %9483 = vst.msk [vmem:[%s9482] sm:$0xff] %vm931, %v9435
    %9484 = vst.msk [vmem:[%s9482 + $0x8] sm:$0xff] %vm931, %v9437
    %9485 = vst.msk [vmem:[%s9482 + $0x10] sm:$0xff] %vm931, %v9439
    %9486 = vst.msk [vmem:[%s9482 + $0x18] sm:$0xff] %vm931, %v9441
    %9487 = vst.msk [vmem:[%s9482 + $0x20] sm:$0xff] %vm931, %v9443
    %9488 = vst.msk [vmem:[%s9482 + $0x28] sm:$0xff] %vm931, %v9445
    %9489 = vst.msk [vmem:[%s9482 + $0x30] sm:$0xff] %vm931, %v9447
    %9490 = vst.msk [vmem:[%s9482 + $0x38] sm:$0xff] %vm931, %v9449
    %9491 = vst.msk [vmem:[%s9482 + $0x40] sm:$0xff] %vm931, %v9451
    %9492 = vst.msk [vmem:[%s9482 + $0x48] sm:$0xff] %vm931, %v9453
    %9493 = vst.msk [vmem:[%s9482 + $0x50] sm:$0xff] %vm931, %v9455
    %9494 = vst.msk [vmem:[%s9482 + $0x58] sm:$0xff] %vm931, %v9457
    %9495 = vst.msk [vmem:[%s9482 + $0x60] sm:$0xff] %vm931, %v9459
    %9496 = vst.msk [vmem:[%s9482 + $0x68] sm:$0xff] %vm931, %v9461
    %9497 = vst.msk [vmem:[%s9482 + $0x70] sm:$0xff] %vm931, %v9463
    %9498 = vst.msk [vmem:[%s9482 + $0x78] sm:$0xff] %vm931, %v9465
    // Predicated region
    $region42: #{unet_residual_block.1} parent=1 // pred_check
      _
    $region43: #{unet_residual_block.1} parent=1 // pred_check_branch
      %9500 = sbr.rel (0) target = $region45
    $region44: #{unet_residual_block.1} parent=1 // pred_region
      _
    $region45: #{unet_residual_block.1} parent=1 // pred_fallthru
      _
    // Predicated region
    $region46: #{unet_residual_block.1} parent=1 // pred_check
      _
    $region47: #{unet_residual_block.1} parent=1 // pred_check_branch
      %9502 = sbr.rel (0) target = $region49
    $region48: #{unet_residual_block.1} parent=1 // pred_region
      _
    $region49: #{unet_residual_block.1} parent=1 // pred_fallthru
      _
    %9503 = vsyncpa [#allocation3], 1

</llo_original>
